<compile_context>
chip_gen: v7x
topology: tpu7x:2x2x1
jax: 0.10.0
libtpu: 0.0.40
codegen_flags: <defaults>
</compile_context>

<pallas_src>
import functools

import jax
import jax.numpy as jnp
import numpy as np
from jax.experimental import pallas as pl
from jax.experimental.pallas import tpu as pltpu


# ----------------------------------------------------------------------------
# Small helpers
# ----------------------------------------------------------------------------
def _round_up(x, m):
    return ((x + m - 1) // m) * m


def _pad_axis(x, axis, target):
    if x.shape[axis] == target:
        return x
    widths = [(0, 0)] * x.ndim
    widths[axis] = (0, target - x.shape[axis])
    return jnp.pad(x, widths)


def _vmem_params():
    """(vmem_limit_bytes or None, per-tile working-set budget) for this chip."""
    kind = ""
    try:
        kind = jax.devices()[0].device_kind.lower()
    except Exception:
        pass
    if any(t in kind for t in ("v4", "v5", "v6")):
        # 128 MiB physical VMEM per TensorCore: big tiles amortize the ~0.35us
        # per-grid-step overhead and produce larger, more efficient DMAs.
        return 96 * (1 << 20), 64 * (1 << 20)
    if any(t in kind for t in ("v2", "v3")):
        return None, 6 * (1 << 20)
    # v7x (64 MiB per TensorCore) or unknown chip: stay conservative and leave
    # headroom for compiler scratch.
    return 48 * (1 << 20), 26 * (1 << 20)


def _padded_block_bytes(shape, dtype):
    """VMEM footprint of a block: minor dim padded to 128 lanes, second-minor
    to the sublane tile (8 * 32-bit packing)."""
    itemsize = jnp.dtype(dtype).itemsize
    packing = max(1, 4 // itemsize)
    s = [int(v) for v in shape]
    if len(s) < 2:
        s = [1] * (2 - len(s)) + s
    lead = 1
    for v in s[:-2]:
        lead *= v
    return lead * _round_up(s[-2], 8 * packing) * _round_up(s[-1], 128) * itemsize


def _choose_tn(N, K, dh, d_stage_out, io_dtype, budget):
    """Largest N-tile (multiple of 8) whose LFA-stage working set (double
    buffered inputs/outputs + f32 in-kernel temporaries, all lane-padded)
    fits the per-chip budget."""
    n_cap = _round_up(max(N, 8), 8)
    best, tn = 8, 8
    while tn <= min(2048, n_cap):
        need = (
            2 * _padded_block_bytes((tn, K, dh), io_dtype)              # gathered features
            + 2 * _padded_block_bytes((tn, K, 3), io_dtype)             # gathered neighbour xyz
            + 2 * _padded_block_bytes((tn, 3), jnp.float32)             # centre xyz
            + 2 * _padded_block_bytes((tn, d_stage_out), io_dtype)      # stage output
            + 5 * _padded_block_bytes((tn * K, max(dh, 16)), jnp.float32)  # fx/att/exp temps
            + (2 << 20)                                                 # weights + headroom
        )
        if need > budget:
            break
        best = tn
        tn += 8
    return best


def _compiler_params(vmem_limit):
    kw = dict(dimension_semantics=("parallel", "parallel"))
    if vmem_limit is not None:
        kw["vmem_limit_bytes"] = int(vmem_limit)
    return pltpu.CompilerParams(**kw)


# ----------------------------------------------------------------------------
# Kernel A: pointwise conv (1x1) + folded BN + optional ReLU  (drb.mlp1)
# ----------------------------------------------------------------------------
def _pointwise_kernel(x_ref, w_ref, b_ref, o_ref, *, act):
    y = jnp.dot(x_ref[0].astype(jnp.float32), w_ref[...],
                preferred_element_type=jnp.float32) + b_ref[...]
    if act == "relu":
        y = jnp.maximum(y, 0.0)
    o_ref[0] = y.astype(o_ref.dtype)


def pointwise_conv(x, w, b, *, act, tn, out_dtype, vmem_limit):
    B, Np, cin = x.shape
    cout = w.shape[1]
    return pl.pallas_call(
        functools.partial(_pointwise_kernel, act=act),
        out_shape=jax.ShapeDtypeStruct((B, Np, cout), out_dtype),
        grid=(Np // tn, B),
        in_specs=[
            pl.BlockSpec((1, tn, cin), lambda n, b: (b, n, 0)),
            pl.BlockSpec((cin, cout), lambda n, b: (0, 0)),
            pl.BlockSpec((1, cout), lambda n, b: (0, 0)),
        ],
        out_specs=pl.BlockSpec((1, tn, cout), lambda n, b: (b, n, 0)),
        compiler_params=_compiler_params(vmem_limit),
    )(x, w, b.reshape(1, cout))


# ----------------------------------------------------------------------------
# Kernel B: fused LFA stage
#   in-kernel: relative position encoding -> lfa mlp chain -> implicit concat
#   attention (split-weight) -> per-channel softmax over K -> weighted sum
#   -> att_pooling mlp (+ReLU).  Nothing intermediate touches HBM.
# ----------------------------------------------------------------------------
def _lfa_stage_kernel(*refs, n_extra_mlps):
    (gf_ref, gx_ref, xyz_ref,
     w_dis_ref, w_rel_ref, w_xyzt_ref, w_nxyz_ref, b1_ref) = refs[:8]
    idx = 8
    extra = []
    for _ in range(n_extra_mlps):
        extra.append((refs[idx], refs[idx + 1]))
        idx += 2
    (w_nn_ref, w_xn_ref, w_nx_ref, w_xx_ref,
     wm_n_ref, wm_x_ref, bm_ref) = refs[idx:idx + 7]
    o_ref = refs[idx + 7]

    fn = gf_ref[0].astype(jnp.float32)                        # (TN, K, dh)
    nxyz = gx_ref[0].astype(jnp.float32)                      # (TN, K, 3)
    TN, K, dh = fn.shape

    xyz_c = xyz_ref[0].astype(jnp.float32)                    # (TN, 3) centre xyz
    xyz_t = jnp.broadcast_to(xyz_c[:, None, :], (TN, K, 3))   # tiled over K
    rel = xyz_t - nxyz
    dis = jnp.sqrt(jnp.sum(rel * rel, axis=-1, keepdims=True))  # (TN, K, 1)

    M = TN * K
    # lfa.mlp1 on the 10-ch encoding [dis, rel, xyz_tile, neigh_xyz]; the weight
    # is pre-split by rows, so the encoding is never materialized/concatenated.
    fx = (dis.reshape(M, 1) * w_dis_ref[...]
          + jnp.dot(rel.reshape(M, 3), w_rel_ref[...], preferred_element_type=jnp.float32)
          + jnp.dot(xyz_t.reshape(M, 3), w_xyzt_ref[...], preferred_element_type=jnp.float32)
          + jnp.dot(nxyz.reshape(M, 3), w_nxyz_ref[...], preferred_element_type=jnp.float32)
          + b1_ref[...])
    fx = jnp.maximum(fx, 0.0)                                 # (M, dh)  == f_xyz
    for w_ref, b_ref in extra:                                # lfa.mlp2 (stage 2 only)
        fx = jnp.maximum(
            jnp.dot(fx, w_ref[...], preferred_element_type=jnp.float32) + b_ref[...], 0.0)

    fn2 = fn.reshape(M, dh)
    # Att_pooling fc on the implicit concat [f_neigh ; f_xyz]; weight split by
    # rows AND columns, so no lane-offset slicing is ever needed downstream.
    att_n = (jnp.dot(fn2, w_nn_ref[...], preferred_element_type=jnp.float32)
             + jnp.dot(fx, w_xn_ref[...], preferred_element_type=jnp.float32)).reshape(TN, K, dh)
    att_x = (jnp.dot(fn2, w_nx_ref[...], preferred_element_type=jnp.float32)
             + jnp.dot(fx, w_xx_ref[...], preferred_element_type=jnp.float32)).reshape(TN, K, dh)

    def _softmax_k(a):  # per-channel softmax over the neighbour axis
        m = jnp.max(a, axis=1, keepdims=True)
        p = jnp.exp(a - m)
        return p * pl.reciprocal(jnp.sum(p, axis=1, keepdims=True), approx=True)

    agg_n = jnp.sum(fn * _softmax_k(att_n), axis=1)                    # (TN, dh)
    agg_x = jnp.sum(fx.reshape(TN, K, dh) * _softmax_k(att_x), axis=1)  # (TN, dh)

    y = (jnp.dot(agg_n, wm_n_ref[...], preferred_element_type=jnp.float32)
         + jnp.dot(agg_x, wm_x_ref[...], preferred_element_type=jnp.float32)
         + bm_ref[...])
    o_ref[0] = jnp.maximum(y, 0.0).astype(o_ref.dtype)


def lfa_stage(g_feat, g_xyz, xyz, enc_mlp, extra_mlps, fc_w, mlp_w, mlp_b,
              *, tn, out_dtype, vmem_limit):
    B, Np, K, dh = g_feat.shape
    d_o = mlp_w.shape[1]

    w1, b1 = enc_mlp                                  # (10, dh), (dh,)
    w_dis, w_rel, w_xyzt, w_nxyz = w1[0:1], w1[1:4], w1[4:7], w1[7:10]
    w_nn, w_nx = fc_w[:dh, :dh], fc_w[:dh, dh:]
    w_xn, w_xx = fc_w[dh:, :dh], fc_w[dh:, dh:]
    wm_n, wm_x = mlp_w[:dh], mlp_w[dh:]

    operands = [g_feat, g_xyz, xyz,
                w_dis, w_rel, w_xyzt, w_nxyz, b1.reshape(1, dh)]
    in_specs = [
        pl.BlockSpec((1, tn, K, dh), lambda n, b: (b, n, 0, 0)),
        pl.BlockSpec((1, tn, K, 3), lambda n, b: (b, n, 0, 0)),
        pl.BlockSpec((1, tn, 3), lambda n, b: (b, n, 0)),
    ]
    in_specs += [pl.BlockSpec(w.shape, lambda n, b: (0, 0))
                 for w in (w_dis, w_rel, w_xyzt, w_nxyz)]
    in_specs += [pl.BlockSpec((1, dh), lambda n, b: (0, 0))]
    for (w, bb) in extra_mlps:
        operands += [w, bb.reshape(1, -1)]
        in_specs += [pl.BlockSpec(w.shape, lambda n, b: (0, 0)),
                     pl.BlockSpec((1, bb.shape[-1]), lambda n, b: (0, 0))]
    for w in (w_nn, w_xn, w_nx, w_xx, wm_n, wm_x):
        operands.append(w)
        in_specs.append(pl.BlockSpec(w.shape, lambda n, b: (0, 0)))
    operands.append(mlp_b.reshape(1, d_o))
    in_specs.append(pl.BlockSpec((1, d_o), lambda n, b: (0, 0)))

    return pl.pallas_call(
        functools.partial(_lfa_stage_kernel, n_extra_mlps=len(extra_mlps)),
        out_shape=jax.ShapeDtypeStruct((B, Np, d_o), out_dtype),
        grid=(Np // tn, B),
        in_specs=in_specs,
        out_specs=pl.BlockSpec((1, tn, d_o), lambda n, b: (b, n, 0)),
        compiler_params=_compiler_params(vmem_limit),
    )(*operands)


# ----------------------------------------------------------------------------
# Kernel C: fused residual head
#   leaky_relu( mlp2(f_pc_agg2) + shortcut(feature), slope=0.2 )
# ----------------------------------------------------------------------------
def _residual_kernel(x1_ref, x2_ref, w1_ref, w2_ref, b_ref, o_ref):
    # Two tiny-contraction dots into one f32 accumulator (MXU has huge slack
    # here); bias is pre-summed by the wrapper.
    y = (jnp.dot(x1_ref[0].astype(jnp.float32), w1_ref[...],
                 preferred_element_type=jnp.float32)
         + jnp.dot(x2_ref[0].astype(jnp.float32), w2_ref[...],
                   preferred_element_type=jnp.float32)
         + b_ref[...])
    o_ref[0] = jnp.where(y >= 0.0, y, 0.2 * y).astype(o_ref.dtype)


def residual_head(x1, x2, w1, w2, b, *, tn, out_dtype, vmem_limit):
    B, Np, c1 = x1.shape
    c2 = x2.shape[-1]
    cout = w1.shape[1]
    return pl.pallas_call(
        _residual_kernel,
        out_shape=jax.ShapeDtypeStruct((B, Np, cout), out_dtype),
        grid=(Np // tn, B),
        in_specs=[
            pl.BlockSpec((1, tn, c1), lambda n, b: (b, n, 0)),
            pl.BlockSpec((1, tn, c2), lambda n, b: (b, n, 0)),
            pl.BlockSpec((c1, cout), lambda n, b: (0, 0)),
            pl.BlockSpec((c2, cout), lambda n, b: (0, 0)),
            pl.BlockSpec((1, cout), lambda n, b: (0, 0)),
        ],
        out_specs=pl.BlockSpec((1, tn, cout), lambda n, b: (b, n, 0)),
        compiler_params=_compiler_params(vmem_limit),
    )(x1, x2, w1, w2, b.reshape(1, cout))


# ----------------------------------------------------------------------------
# Plain-JAX glue: neighbour gather (see TODO at top of file)
# ----------------------------------------------------------------------------
def gather_neighbour(pc, neigh_idx):
    # pc: [B, Np, C], neigh_idx: [B, Nq, K] -> [B, Nq, K, C]
    B, Nq, K = neigh_idx.shape
    C = pc.shape[-1]
    flat = neigh_idx.reshape(B, Nq * K)
    g = jnp.take_along_axis(pc, flat[..., None], axis=1)
    return g.reshape(B, Nq, K, C)


def relative_pos_encoding(xyz, neigh_idx):
    # reference-only helper (the Pallas path computes this inside the LFA kernel)
    B, N, K = neigh_idx.shape
    neighbor_xyz = gather_neighbour(xyz, neigh_idx)
    xyz_tile = jnp.broadcast_to(xyz[:, :, None, :], (B, N, K, 3))
    relative_xyz = xyz_tile - neighbor_xyz
    relative_dis = jnp.sqrt(jnp.sum(relative_xyz ** 2, axis=-1, keepdims=True))
    return jnp.concatenate([relative_dis, relative_xyz, xyz_tile, neighbor_xyz], axis=-1)


# ----------------------------------------------------------------------------
# Full Dilated_res_block forward (Pallas kernels on the hot path)
# ----------------------------------------------------------------------------
def dilated_res_block_forward(params, feature, xyz, neigh_idx, *, io_dtype=jnp.bfloat16):
    # feature: [B, N, d_in] (channels-last), xyz: [B, N, 3], neigh_idx: [B, N, K]
    B, N, d_in = feature.shape
    K = neigh_idx.shape[-1]
    dh = params["mlp1_w"].shape[1]            # d_out // 2
    d_out = 2 * dh

    vmem_limit, budget = _vmem_params()
    tn = _choose_tn(N, K, dh, d_out, io_dtype, budget)
    Np = _round_up(N, tn)

    # Pad the point axis once; every intermediate stays padded; one final slice.
    featp = _pad_axis(feature, 1, Np)
    xyzp = _pad_axis(xyz, 1, Np)
    idxp = _pad_axis(neigh_idx, 1, Np)        # padded idx 0 -> gathers a valid row

    # drb.mlp1 : d_in -> d_out//2 (conv + folded BN + relu)
    f_pc = pointwise_conv(featp, params["mlp1_w"], params["mlp1_b"], act="relu",
                          tn=tn, out_dtype=io_dtype, vmem_limit=vmem_limit)

    # TODO(synk): the K-neighbour gathers stay as XLA gathers between kernels
    # (Mosaic has no general dynamic row-gather lowering); neighbour xyz is
    # gathered once and reused by both stages, features are gathered in io_dtype.
    g_xyz = gather_neighbour(xyzp.astype(io_dtype), idxp)         # [B,Np,K,3]
    g_f1 = gather_neighbour(f_pc, idxp)                           # [B,Np,K,dh]

    # Stage 1: pos-encoding + lfa.mlp1 + att_pooling_1, all in VMEM.
    f_agg1 = lfa_stage(
        g_f1, g_xyz, xyzp,
        (params["lfa_mlp1_w"], params["lfa_mlp1_b"]), [],
        params["ap1_fc_w"], params["ap1_mlp_w"], params["ap1_mlp_b"],
        tn=tn, out_dtype=io_dtype, vmem_limit=vmem_limit)         # [B,Np,dh]

    g_f2 = gather_neighbour(f_agg1, idxp)                         # [B,Np,K,dh]

    # Stage 2: pos-encoding + lfa.mlp1 -> lfa.mlp2 (recomputed in VMEM) + att_pooling_2.
    f_agg2 = lfa_stage(
        g_f2, g_xyz, xyzp,
        (params["lfa_mlp1_w"], params["lfa_mlp1_b"]),
        [(params["lfa_mlp2_w"], params["lfa_mlp2_b"])],
        params["ap2_fc_w"], params["ap2_mlp_w"], params["ap2_mlp_b"],
        tn=tn, out_dtype=io_dtype, vmem_limit=vmem_limit)         # [B,Np,d_out]

    # drb.mlp2 + shortcut + leaky_relu, fused (re-reads `feature` instead of
    # materializing the wider shortcut activation).
    out = residual_head(f_agg2, featp, params["mlp2_w"], params["sc_w"],
                        params["mlp2_b"] + params["sc_b"],
                        tn=tn, out_dtype=jnp.float32, vmem_limit=vmem_limit)
    return out[:, :N] if Np != N else out


# ----------------------------------------------------------------------------
# Pure-JAX f32 reference (same folded params) for correctness check
# ----------------------------------------------------------------------------
def ref_forward(params, feature, xyz, neigh_idx):
    def conv(x, w, b, act):
        y = x @ w + b
        return jnp.maximum(y, 0.0) if act else y

    def ap(feat, wfc, wm, bm):
        att = jnp.einsum("bnkd,de->bnke", feat, wfc)
        s = jax.nn.softmax(att, axis=2)
        agg = jnp.sum(feat * s, axis=2)
        return jnp.maximum(agg @ wm + bm, 0.0)

    f_pc = conv(feature, params["mlp1_w"], params["mlp1_b"], True)
    f_xyz_enc = relative_pos_encoding(xyz, neigh_idx)
    f_xyz = conv(f_xyz_enc, params["lfa_mlp1_w"], params["lfa_mlp1_b"], True)
    f_concat = jnp.concatenate([gather_neighbour(f_pc, neigh_idx), f_xyz], axis=-1)
    f_pc_agg = ap(f_concat, params["ap1_fc_w"], params["ap1_mlp_w"], params["ap1_mlp_b"])
    f_xyz2 = conv(f_xyz, params["lfa_mlp2_w"], params["lfa_mlp2_b"], True)
    f_concat2 = jnp.concatenate([gather_neighbour(f_pc_agg, neigh_idx), f_xyz2], axis=-1)
    f_pc_agg2 = ap(f_concat2, params["ap2_fc_w"], params["ap2_mlp_w"], params["ap2_mlp_b"])
    y = conv(f_pc_agg2, params["mlp2_w"], params["mlp2_b"], False) + \
        conv(feature, params["sc_w"], params["sc_b"], False)
    return jnp.where(y >= 0, y, 0.2 * y)


# ----------------------------------------------------------------------------
# Deterministic parameter construction (conv weight + folded BatchNorm)
# ----------------------------------------------------------------------------
def make_conv_bn(key, cin, cout, eps=1e-5):
    k1, k2, k3, k4, k5 = jax.random.split(key, 5)
    w = jax.random.normal(k1, (cin, cout), jnp.float32) / jnp.sqrt(float(cin))
    gamma = 1.0 + 0.1 * jax.random.normal(k2, (cout,), jnp.float32)
    beta = 0.1 * jax.random.normal(k3, (cout,), jnp.float32)
    mean = 0.1 * jax.random.normal(k4, (cout,), jnp.float32)
    var = jnp.abs(jax.random.normal(k5, (cout,), jnp.float32)) + 0.5
    scale = gamma / jnp.sqrt(var + eps)
    return w * scale[None, :], beta - mean * scale


def make_params(key, d_in, d_out):
    dh = d_out // 2
    keys = jax.random.split(key, 10)
    p = {}
    p["mlp1_w"], p["mlp1_b"] = make_conv_bn(keys[0], d_in, dh)            # drb.mlp1
    p["lfa_mlp1_w"], p["lfa_mlp1_b"] = make_conv_bn(keys[1], 10, dh)      # lfa.mlp1
    p["ap1_fc_w"] = jax.random.normal(keys[2], (d_out, d_out), jnp.float32) / jnp.sqrt(float(d_out))
    p["ap1_mlp_w"], p["ap1_mlp_b"] = make_conv_bn(keys[3], d_out, dh)     # att_pool_1.mlp
    p["lfa_mlp2_w"], p["lfa_mlp2_b"] = make_conv_bn(keys[4], dh, dh)      # lfa.mlp2
    p["ap2_fc_w"] = jax.random.normal(keys[5], (d_out, d_out), jnp.float32) / jnp.sqrt(float(d_out))
    p["ap2_mlp_w"], p["ap2_mlp_b"] = make_conv_bn(keys[6], d_out, d_out)  # att_pool_2.mlp
    p["mlp2_w"], p["mlp2_b"] = make_conv_bn(keys[7], d_out, 2 * d_out)    # drb.mlp2 (no act)
    p["sc_w"], p["sc_b"] = make_conv_bn(keys[8], d_in, 2 * d_out)         # drb.shortcut (no act)
    return p


if __name__ == "__main__":
    B, N, K = 2, 16, 8
    d_in, d_out = 4, 8

    root = jax.random.PRNGKey(0)
    k_feat, k_xyz, k_idx, k_par = jax.random.split(root, 4)

    feature = jax.random.normal(k_feat, (B, N, d_in), jnp.float32)   # PyTorch: [B, d_in, N, 1]
    xyz = jax.random.normal(k_xyz, (B, N, 3), jnp.float32)
    neigh_idx = jax.random.randint(k_idx, (B, N, K), 0, N, jnp.int32)
    params = make_params(k_par, d_in, d_out)

    ref = ref_forward(params, feature, xyz, neigh_idx)

    # f32-io path: tight tolerance (validates the math end to end).
    fwd_f32 = jax.jit(functools.partial(dilated_res_block_forward, io_dtype=jnp.float32))
    out_f32 = jax.block_until_ready(fwd_f32(params, feature, xyz, neigh_idx))
    np.testing.assert_allclose(np.asarray(out_f32), np.asarray(ref), rtol=5e-3, atol=5e-3)

    # bf16-io path (default / production): intermediates round-trip HBM in bf16.
    fwd_bf16 = jax.jit(functools.partial(dilated_res_block_forward, io_dtype=jnp.bfloat16))
    out_bf16 = jax.block_until_ready(fwd_bf16(params, feature, xyz, neigh_idx))
    np.testing.assert_allclose(np.asarray(out_bf16, dtype=np.float32), np.asarray(ref),
                               rtol=5e-2, atol=5e-2)

    assert out_f32.shape == (B, N, 2 * d_out)
    print("KERNEL_OK")
</pallas_src>

<mosaic_0001>
module attributes {stable_mosaic.version = 11 : i64} {
  func.func @_pointwise_kernel(%arg0: i32, %arg1: i32, %arg2: memref<1x16x4xf32, #tpu.memory_space<vmem>>, %arg3: memref<4x4xf32, #tpu.memory_space<vmem>>, %arg4: memref<1x4xf32, #tpu.memory_space<vmem>>, %arg5: memref<1x16x4xf32, #tpu.memory_space<vmem>>) attributes {dimension_semantics = [#tpu.dimension_semantics<parallel>, #tpu.dimension_semantics<parallel>], iteration_bounds = array<i64: 1, 2>, scalar_prefetch = 0 : i64, scratch_operands = 0 : i64, tpu.core_type = #tpu.core_type<tc>, window_params = [{transform_indices = @transform_0, window_bounds = array<i64: 1, 16, 4>}, {pipeline_mode = #tpu.pipeline_mode<synchronous>, transform_indices = @transform_1, window_bounds = array<i64: 4, 4>}, {pipeline_mode = #tpu.pipeline_mode<synchronous>, transform_indices = @transform_2, window_bounds = array<i64: 1, 4>}, {transform_indices = @transform_3, window_bounds = array<i64: 1, 16, 4>}]} {
    %c0 = arith.constant 0 : index
    %c0_0 = arith.constant 0 : index
    %c0_1 = arith.constant 0 : index
    %0 = vector.load %arg2[%c0, %c0_0, %c0_1] : memref<1x16x4xf32, #tpu.memory_space<vmem>>, vector<1x16x4xf32>
    %1 = vector.shape_cast %0 : vector<1x16x4xf32> to vector<16x4xf32>
    %c0_2 = arith.constant 0 : index
    %c0_3 = arith.constant 0 : index
    %2 = vector.load %arg3[%c0_2, %c0_3] : memref<4x4xf32, #tpu.memory_space<vmem>>, vector<4x4xf32>
    %cst = arith.constant dense<0.000000e+00> : vector<16x4xf32>
    %3 = tpu.matmul %1, %2, %cst {dimension_numbers = #tpu.dot_dimension_numbers<[1], [0], [0], [1], [0, 0, 1, 1], [], []>} : vector<16x4xf32>, vector<4x4xf32>, vector<16x4xf32> -> vector<16x4xf32>
    %c0_4 = arith.constant 0 : index
    %c0_5 = arith.constant 0 : index
    %4 = vector.load %arg4[%c0_4, %c0_5] : memref<1x4xf32, #tpu.memory_space<vmem>>, vector<1x4xf32>
    %5 = vector.broadcast %4 : vector<1x4xf32> to vector<16x4xf32>
    %6 = arith.addf %3, %5 : vector<16x4xf32>
    %cst_6 = arith.constant 0.000000e+00 : f32
    %7 = vector.broadcast %cst_6 : f32 to vector<16x4xf32>
    %8 = arith.maximumf %6, %7 : vector<16x4xf32>
    %c0_7 = arith.constant 0 : index
    %c0_8 = arith.constant 0 : index
    %c0_9 = arith.constant 0 : index
    %9 = vector.load %arg5[%c0_7, %c0_8, %c0_9] : memref<1x16x4xf32, #tpu.memory_space<vmem>>, vector<1x16x4xf32>
    %10 = vector.shape_cast %9 : vector<1x16x4xf32> to vector<16x4xf32>
    %11 = vector.shape_cast %8 : vector<16x4xf32> to vector<1x16x4xf32>
    tpu.vector_store %arg5[%c0_7, %c0_8, %c0_9], %11 {strides = array<i32>} : memref<1x16x4xf32, #tpu.memory_space<vmem>>, vector<1x16x4xf32>,
    return
  }
  func.func @transform_0(%arg0: i32, %arg1: i32) -> (i32, i32, i32) {
    %c0_i32 = arith.constant 0 : i32
    %c0_i32_0 = arith.constant 0 : i32
    return %arg1, %arg0, %c0_i32 : i32, i32, i32
  }
  func.func @transform_1(%arg0: i32, %arg1: i32) -> (i32, i32) {
    %c0_i32 = arith.constant 0 : i32
    %c0_i32_0 = arith.constant 0 : i32
    %c0_i32_1 = arith.constant 0 : i32
    return %c0_i32, %c0_i32_0 : i32, i32
  }
  func.func @transform_2(%arg0: i32, %arg1: i32) -> (i32, i32) {
    %c0_i32 = arith.constant 0 : i32
    %c0_i32_0 = arith.constant 0 : i32
    %c0_i32_1 = arith.constant 0 : i32
    return %c0_i32, %c0_i32_0 : i32, i32
  }
  func.func @transform_3(%arg0: i32, %arg1: i32) -> (i32, i32, i32) {
    %c0_i32 = arith.constant 0 : i32
    %c0_i32_0 = arith.constant 0 : i32
    return %arg1, %arg0, %c0_i32 : i32, i32, i32
  }
}

module attributes {stable_mosaic.version = 11 : i64} {
  func.func @_lfa_stage_kernel(%arg0: i32, %arg1: i32, %arg2: memref<1x16x8x4xf32, #tpu.memory_space<vmem>>, %arg3: memref<1x16x8x3xf32, #tpu.memory_space<vmem>>, %arg4: memref<1x16x3xf32, #tpu.memory_space<vmem>>, %arg5: memref<1x4xf32, #tpu.memory_space<vmem>>, %arg6: memref<3x4xf32, #tpu.memory_space<vmem>>, %arg7: memref<3x4xf32, #tpu.memory_space<vmem>>, %arg8: memref<3x4xf32, #tpu.memory_space<vmem>>, %arg9: memref<1x4xf32, #tpu.memory_space<vmem>>, %arg10: memref<4x4xf32, #tpu.memory_space<vmem>>, %arg11: memref<4x4xf32, #tpu.memory_space<vmem>>, %arg12: memref<4x4xf32, #tpu.memory_space<vmem>>, %arg13: memref<4x4xf32, #tpu.memory_space<vmem>>, %arg14: memref<4x4xf32, #tpu.memory_space<vmem>>, %arg15: memref<4x4xf32, #tpu.memory_space<vmem>>, %arg16: memref<1x4xf32, #tpu.memory_space<vmem>>, %arg17: memref<1x16x4xf32, #tpu.memory_space<vmem>>) attributes {dimension_semantics = [#tpu.dimension_semantics<parallel>, #tpu.dimension_semantics<parallel>], iteration_bounds = array<i64: 1, 2>, scalar_prefetch = 0 : i64, scratch_operands = 0 : i64, tpu.core_type = #tpu.core_type<tc>, window_params = [{transform_indices = @transform_0, window_bounds = array<i64: 1, 16, 8, 4>}, {transform_indices = @transform_1, window_bounds = array<i64: 1, 16, 8, 3>}, {transform_indices = @transform_2, window_bounds = array<i64: 1, 16, 3>}, {pipeline_mode = #tpu.pipeline_mode<synchronous>, transform_indices = @transform_3, window_bounds = array<i64: 1, 4>}, {pipeline_mode = #tpu.pipeline_mode<synchronous>, transform_indices = @transform_4, window_bounds = array<i64: 3, 4>}, {pipeline_mode = #tpu.pipeline_mode<synchronous>, transform_indices = @transform_5, window_bounds = array<i64: 3, 4>}, {pipeline_mode = #tpu.pipeline_mode<synchronous>, transform_indices = @transform_6, window_bounds = array<i64: 3, 4>}, {pipeline_mode = #tpu.pipeline_mode<synchronous>, transform_indices = @transform_7, window_bounds = array<i64: 1, 4>}, {pipeline_mode = #tpu.pipeline_mode<synchronous>, transform_indices = @transform_8, window_bounds = array<i64: 4, 4>}, {pipeline_mode = #tpu.pipeline_mode<synchronous>, transform_indices = @transform_9, window_bounds = array<i64: 4, 4>}, {pipeline_mode = #tpu.pipeline_mode<synchronous>, transform_indices = @transform_10, window_bounds = array<i64: 4, 4>}, {pipeline_mode = #tpu.pipeline_mode<synchronous>, transform_indices = @transform_11, window_bounds = array<i64: 4, 4>}, {pipeline_mode = #tpu.pipeline_mode<synchronous>, transform_indices = @transform_12, window_bounds = array<i64: 4, 4>}, {pipeline_mode = #tpu.pipeline_mode<synchronous>, transform_indices = @transform_13, window_bounds = array<i64: 4, 4>}, {pipeline_mode = #tpu.pipeline_mode<synchronous>, transform_indices = @transform_14, window_bounds = array<i64: 1, 4>}, {transform_indices = @transform_15, window_bounds = array<i64: 1, 16, 4>}]} {
    %c0 = arith.constant 0 : index
    %c0_0 = arith.constant 0 : index
    %c0_1 = arith.constant 0 : index
    %c0_2 = arith.constant 0 : index
    %0 = vector.load %arg2[%c0, %c0_0, %c0_1, %c0_2] : memref<1x16x8x4xf32, #tpu.memory_space<vmem>>, vector<1x16x8x4xf32>
    %1 = vector.shape_cast %0 : vector<1x16x8x4xf32> to vector<16x8x4xf32>
    %c0_3 = arith.constant 0 : index
    %c0_4 = arith.constant 0 : index
    %c0_5 = arith.constant 0 : index
    %c0_6 = arith.constant 0 : index
    %2 = vector.load %arg3[%c0_3, %c0_4, %c0_5, %c0_6] : memref<1x16x8x3xf32, #tpu.memory_space<vmem>>, vector<1x16x8x3xf32>
    %3 = vector.shape_cast %2 : vector<1x16x8x3xf32> to vector<16x8x3xf32>
    %c0_7 = arith.constant 0 : index
    %c0_8 = arith.constant 0 : index
    %c0_9 = arith.constant 0 : index
    %4 = vector.load %arg4[%c0_7, %c0_8, %c0_9] : memref<1x16x3xf32, #tpu.memory_space<vmem>>, vector<1x16x3xf32>
    %5 = vector.shape_cast %4 : vector<1x16x3xf32> to vector<16x3xf32>
    %6 = vector.shape_cast %5 : vector<16x3xf32> to vector<16x1x3xf32>
    %7 = vector.shape_cast %6 : vector<16x1x3xf32> to vector<16x1x3xf32>
    %8 = vector.broadcast %7 : vector<16x1x3xf32> to vector<16x8x3xf32>
    %9 = arith.subf %8, %3 : vector<16x8x3xf32>
    %10 = arith.mulf %9, %9 : vector<16x8x3xf32>
    %cst = arith.constant dense<0.000000e+00> : vector<16x8xf32>
    %11 = vector.multi_reduction <add>, %10, %cst [2] : vector<16x8x3xf32> to vector<16x8xf32>
    %12 = vector.shape_cast %11 : vector<16x8xf32> to vector<16x8x1xf32>
    %13 = math.sqrt %12 : vector<16x8x1xf32>
    %14 = vector.shape_cast %13 : vector<16x8x1xf32> to vector<128x1xf32>
    %c0_10 = arith.constant 0 : index
    %c0_11 = arith.constant 0 : index
    %15 = vector.load %arg5[%c0_10, %c0_11] : memref<1x4xf32, #tpu.memory_space<vmem>>, vector<1x4xf32>
    %16 = vector.broadcast %14 : vector<128x1xf32> to vector<128x4xf32>
    %17 = vector.broadcast %15 : vector<1x4xf32> to vector<128x4xf32>
    %18 = arith.mulf %16, %17 : vector<128x4xf32>
    %19 = vector.shape_cast %9 : vector<16x8x3xf32> to vector<128x3xf32>
    %c0_12 = arith.constant 0 : index
    %c0_13 = arith.constant 0 : index
    %20 = vector.load %arg6[%c0_12, %c0_13] : memref<3x4xf32, #tpu.memory_space<vmem>>, vector<3x4xf32>
    %cst_14 = arith.constant dense<0.000000e+00> : vector<128x4xf32>
    %21 = tpu.matmul %19, %20, %cst_14 {dimension_numbers = #tpu.dot_dimension_numbers<[1], [0], [0], [1], [0, 0, 1, 1], [], []>} : vector<128x3xf32>, vector<3x4xf32>, vector<128x4xf32> -> vector<128x4xf32>
    %22 = arith.addf %18, %21 : vector<128x4xf32>
    %23 = vector.shape_cast %8 : vector<16x8x3xf32> to vector<128x3xf32>
    %c0_15 = arith.constant 0 : index
    %c0_16 = arith.constant 0 : index
    %24 = vector.load %arg7[%c0_15, %c0_16] : memref<3x4xf32, #tpu.memory_space<vmem>>, vector<3x4xf32>
    %cst_17 = arith.constant dense<0.000000e+00> : vector<128x4xf32>
    %25 = tpu.matmul %23, %24, %cst_17 {dimension_numbers = #tpu.dot_dimension_numbers<[1], [0], [0], [1], [0, 0, 1, 1], [], []>} : vector<128x3xf32>, vector<3x4xf32>, vector<128x4xf32> -> vector<128x4xf32>
    %26 = arith.addf %22, %25 : vector<128x4xf32>
    %27 = vector.shape_cast %3 : vector<16x8x3xf32> to vector<128x3xf32>
    %c0_18 = arith.constant 0 : index
    %c0_19 = arith.constant 0 : index
    %28 = vector.load %arg8[%c0_18, %c0_19] : memref<3x4xf32, #tpu.memory_space<vmem>>, vector<3x4xf32>
    %cst_20 = arith.constant dense<0.000000e+00> : vector<128x4xf32>
    %29 = tpu.matmul %27, %28, %cst_20 {dimension_numbers = #tpu.dot_dimension_numbers<[1], [0], [0], [1], [0, 0, 1, 1], [], []>} : vector<128x3xf32>, vector<3x4xf32>, vector<128x4xf32> -> vector<128x4xf32>
    %30 = arith.addf %26, %29 : vector<128x4xf32>
    %c0_21 = arith.constant 0 : index
    %c0_22 = arith.constant 0 : index
    %31 = vector.load %arg9[%c0_21, %c0_22] : memref<1x4xf32, #tpu.memory_space<vmem>>, vector<1x4xf32>
    %32 = vector.broadcast %31 : vector<1x4xf32> to vector<128x4xf32>
    %33 = arith.addf %30, %32 : vector<128x4xf32>
    %cst_23 = arith.constant 0.000000e+00 : f32
    %34 = vector.broadcast %cst_23 : f32 to vector<128x4xf32>
    %35 = arith.maximumf %33, %34 : vector<128x4xf32>
    %36 = vector.shape_cast %1 : vector<16x8x4xf32> to vector<128x4xf32>
    %c0_24 = arith.constant 0 : index
    %c0_25 = arith.constant 0 : index
    %37 = vector.load %arg10[%c0_24, %c0_25] : memref<4x4xf32, #tpu.memory_space<vmem>>, vector<4x4xf32>
    %cst_26 = arith.constant dense<0.000000e+00> : vector<128x4xf32>
    %38 = tpu.matmul %36, %37, %cst_26 {dimension_numbers = #tpu.dot_dimension_numbers<[1], [0], [0], [1], [0, 0, 1, 1], [], []>} : vector<128x4xf32>, vector<4x4xf32>, vector<128x4xf32> -> vector<128x4xf32>
    %c0_27 = arith.constant 0 : index
    %c0_28 = arith.constant 0 : index
    %39 = vector.load %arg11[%c0_27, %c0_28] : memref<4x4xf32, #tpu.memory_space<vmem>>, vector<4x4xf32>
    %cst_29 = arith.constant dense<0.000000e+00> : vector<128x4xf32>
    %40 = tpu.matmul %35, %39, %cst_29 {dimension_numbers = #tpu.dot_dimension_numbers<[1], [0], [0], [1], [0, 0, 1, 1], [], []>} : vector<128x4xf32>, vector<4x4xf32>, vector<128x4xf32> -> vector<128x4xf32>
    %41 = arith.addf %38, %40 : vector<128x4xf32>
    %42 = vector.shape_cast %41 : vector<128x4xf32> to vector<16x8x4xf32>
    %c0_30 = arith.constant 0 : index
    %c0_31 = arith.constant 0 : index
    %43 = vector.load %arg12[%c0_30, %c0_31] : memref<4x4xf32, #tpu.memory_space<vmem>>, vector<4x4xf32>
    %cst_32 = arith.constant dense<0.000000e+00> : vector<128x4xf32>
    %44 = tpu.matmul %36, %43, %cst_32 {dimension_numbers = #tpu.dot_dimension_numbers<[1], [0], [0], [1], [0, 0, 1, 1], [], []>} : vector<128x4xf32>, vector<4x4xf32>, vector<128x4xf32> -> vector<128x4xf32>
    %c0_33 = arith.constant 0 : index
    %c0_34 = arith.constant 0 : index
    %45 = vector.load %arg13[%c0_33, %c0_34] : memref<4x4xf32, #tpu.memory_space<vmem>>, vector<4x4xf32>
    %cst_35 = arith.constant dense<0.000000e+00> : vector<128x4xf32>
    %46 = tpu.matmul %35, %45, %cst_35 {dimension_numbers = #tpu.dot_dimension_numbers<[1], [0], [0], [1], [0, 0, 1, 1], [], []>} : vector<128x4xf32>, vector<4x4xf32>, vector<128x4xf32> -> vector<128x4xf32>
    %47 = arith.addf %44, %46 : vector<128x4xf32>
    %48 = vector.shape_cast %47 : vector<128x4xf32> to vector<16x8x4xf32>
    %cst_36 = arith.constant dense<0xFF800000> : vector<16x4xf32>
    %49 = vector.multi_reduction <maximumf>, %42, %cst_36 [1] : vector<16x8x4xf32> to vector<16x4xf32>
    %50 = vector.shape_cast %49 : vector<16x4xf32> to vector<16x1x4xf32>
    %51 = vector.broadcast %50 : vector<16x1x4xf32> to vector<16x8x4xf32>
    %52 = arith.subf %42, %51 : vector<16x8x4xf32>
    %53 = math.exp %52 : vector<16x8x4xf32>
    %cst_37 = arith.constant dense<0.000000e+00> : vector<16x4xf32>
    %54 = vector.multi_reduction <add>, %53, %cst_37 [1] : vector<16x8x4xf32> to vector<16x4xf32>
    %55 = vector.shape_cast %54 : vector<16x4xf32> to vector<16x1x4xf32>
    %56 = tpu.reciprocal %55 {approx = true} : vector<16x1x4xf32> -> vector<16x1x4xf32>
    %57 = vector.broadcast %56 : vector<16x1x4xf32> to vector<16x8x4xf32>
    %58 = arith.mulf %53, %57 : vector<16x8x4xf32>
    %59 = arith.mulf %1, %58 : vector<16x8x4xf32>
    %cst_38 = arith.constant dense<0.000000e+00> : vector<16x4xf32>
    %60 = vector.multi_reduction <add>, %59, %cst_38 [1] : vector<16x8x4xf32> to vector<16x4xf32>
    %61 = vector.shape_cast %35 : vector<128x4xf32> to vector<16x8x4xf32>
    %cst_39 = arith.constant dense<0xFF800000> : vector<16x4xf32>
    %62 = vector.multi_reduction <maximumf>, %48, %cst_39 [1] : vector<16x8x4xf32> to vector<16x4xf32>
    %63 = vector.shape_cast %62 : vector<16x4xf32> to vector<16x1x4xf32>
    %64 = vector.broadcast %63 : vector<16x1x4xf32> to vector<16x8x4xf32>
    %65 = arith.subf %48, %64 : vector<16x8x4xf32>
    %66 = math.exp %65 : vector<16x8x4xf32>
    %cst_40 = arith.constant dense<0.000000e+00> : vector<16x4xf32>
    %67 = vector.multi_reduction <add>, %66, %cst_40 [1] : vector<16x8x4xf32> to vector<16x4xf32>
    %68 = vector.shape_cast %67 : vector<16x4xf32> to vector<16x1x4xf32>
    %69 = tpu.reciprocal %68 {approx = true} : vector<16x1x4xf32> -> vector<16x1x4xf32>
    %70 = vector.broadcast %69 : vector<16x1x4xf32> to vector<16x8x4xf32>
    %71 = arith.mulf %66, %70 : vector<16x8x4xf32>
    %72 = arith.mulf %61, %71 : vector<16x8x4xf32>
    %cst_41 = arith.constant dense<0.000000e+00> : vector<16x4xf32>
    %73 = vector.multi_reduction <add>, %72, %cst_41 [1] : vector<16x8x4xf32> to vector<16x4xf32>
    %c0_42 = arith.constant 0 : index
    %c0_43 = arith.constant 0 : index
    %74 = vector.load %arg14[%c0_42, %c0_43] : memref<4x4xf32, #tpu.memory_space<vmem>>, vector<4x4xf32>
    %cst_44 = arith.constant dense<0.000000e+00> : vector<16x4xf32>
    %75 = tpu.matmul %60, %74, %cst_44 {dimension_numbers = #tpu.dot_dimension_numbers<[1], [0], [0], [1], [0, 0, 1, 1], [], []>} : vector<16x4xf32>, vector<4x4xf32>, vector<16x4xf32> -> vector<16x4xf32>
    %c0_45 = arith.constant 0 : index
    %c0_46 = arith.constant 0 : index
    %76 = vector.load %arg15[%c0_45, %c0_46] : memref<4x4xf32, #tpu.memory_space<vmem>>, vector<4x4xf32>
    %cst_47 = arith.constant dense<0.000000e+00> : vector<16x4xf32>
    %77 = tpu.matmul %73, %76, %cst_47 {dimension_numbers = #tpu.dot_dimension_numbers<[1], [0], [0], [1], [0, 0, 1, 1], [], []>} : vector<16x4xf32>, vector<4x4xf32>, vector<16x4xf32> -> vector<16x4xf32>
    %78 = arith.addf %75, %77 : vector<16x4xf32>
    %c0_48 = arith.constant 0 : index
    %c0_49 = arith.constant 0 : index
    %79 = vector.load %arg16[%c0_48, %c0_49] : memref<1x4xf32, #tpu.memory_space<vmem>>, vector<1x4xf32>
    %80 = vector.broadcast %79 : vector<1x4xf32> to vector<16x4xf32>
    %81 = arith.addf %78, %80 : vector<16x4xf32>
    %cst_50 = arith.constant 0.000000e+00 : f32
    %82 = vector.broadcast %cst_50 : f32 to vector<16x4xf32>
    %83 = arith.maximumf %81, %82 : vector<16x4xf32>
    %c0_51 = arith.constant 0 : index
    %c0_52 = arith.constant 0 : index
    %c0_53 = arith.constant 0 : index
    %84 = vector.load %arg17[%c0_51, %c0_52, %c0_53] : memref<1x16x4xf32, #tpu.memory_space<vmem>>, vector<1x16x4xf32>
    %85 = vector.shape_cast %84 : vector<1x16x4xf32> to vector<16x4xf32>
    %86 = vector.shape_cast %83 : vector<16x4xf32> to vector<1x16x4xf32>
    tpu.vector_store %arg17[%c0_51, %c0_52, %c0_53], %86 {strides = array<i32>} : memref<1x16x4xf32, #tpu.memory_space<vmem>>, vector<1x16x4xf32>,
    return
  }
  func.func @transform_0(%arg0: i32, %arg1: i32) -> (i32, i32, i32, i32) {
    %c0_i32 = arith.constant 0 : i32
    %c0_i32_0 = arith.constant 0 : i32
    %c0_i32_1 = arith.constant 0 : i32
    return %arg1, %arg0, %c0_i32, %c0_i32_0 : i32, i32, i32, i32
  }
  func.func @transform_1(%arg0: i32, %arg1: i32) -> (i32, i32, i32, i32) {
    %c0_i32 = arith.constant 0 : i32
    %c0_i32_0 = arith.constant 0 : i32
    %c0_i32_1 = arith.constant 0 : i32
    return %arg1, %arg0, %c0_i32, %c0_i32_0 : i32, i32, i32, i32
  }
  func.func @transform_2(%arg0: i32, %arg1: i32) -> (i32, i32, i32) {
    %c0_i32 = arith.constant 0 : i32
    %c0_i32_0 = arith.constant 0 : i32
    return %arg1, %arg0, %c0_i32 : i32, i32, i32
  }
  func.func @transform_3(%arg0: i32, %arg1: i32) -> (i32, i32) {
    %c0_i32 = arith.constant 0 : i32
    %c0_i32_0 = arith.constant 0 : i32
    %c0_i32_1 = arith.constant 0 : i32
    return %c0_i32, %c0_i32_0 : i32, i32
  }
  func.func @transform_4(%arg0: i32, %arg1: i32) -> (i32, i32) {
    %c0_i32 = arith.constant 0 : i32
    %c0_i32_0 = arith.constant 0 : i32
    %c0_i32_1 = arith.constant 0 : i32
    return %c0_i32, %c0_i32_0 : i32, i32
  }
  func.func @transform_5(%arg0: i32, %arg1: i32) -> (i32, i32) {
    %c0_i32 = arith.constant 0 : i32
    %c0_i32_0 = arith.constant 0 : i32
    %c0_i32_1 = arith.constant 0 : i32
    return %c0_i32, %c0_i32_0 : i32, i32
  }
  func.func @transform_6(%arg0: i32, %arg1: i32) -> (i32, i32) {
    %c0_i32 = arith.constant 0 : i32
    %c0_i32_0 = arith.constant 0 : i32
    %c0_i32_1 = arith.constant 0 : i32
    return %c0_i32, %c0_i32_0 : i32, i32
  }
  func.func @transform_7(%arg0: i32, %arg1: i32) -> (i32, i32) {
    %c0_i32 = arith.constant 0 : i32
    %c0_i32_0 = arith.constant 0 : i32
    %c0_i32_1 = arith.constant 0 : i32
    return %c0_i32, %c0_i32_0 : i32, i32
  }
  func.func @transform_8(%arg0: i32, %arg1: i32) -> (i32, i32) {
    %c0_i32 = arith.constant 0 : i32
    %c0_i32_0 = arith.constant 0 : i32
    %c0_i32_1 = arith.constant 0 : i32
    return %c0_i32, %c0_i32_0 : i32, i32
  }
  func.func @transform_9(%arg0: i32, %arg1: i32) -> (i32, i32) {
    %c0_i32 = arith.constant 0 : i32
    %c0_i32_0 = arith.constant 0 : i32
    %c0_i32_1 = arith.constant 0 : i32
    return %c0_i32, %c0_i32_0 : i32, i32
  }
  func.func @transform_10(%arg0: i32, %arg1: i32) -> (i32, i32) {
    %c0_i32 = arith.constant 0 : i32
    %c0_i32_0 = arith.constant 0 : i32
    %c0_i32_1 = arith.constant 0 : i32
    return %c0_i32, %c0_i32_0 : i32, i32
  }
  func.func @transform_11(%arg0: i32, %arg1: i32) -> (i32, i32) {
    %c0_i32 = arith.constant 0 : i32
    %c0_i32_0 = arith.constant 0 : i32
    %c0_i32_1 = arith.constant 0 : i32
    return %c0_i32, %c0_i32_0 : i32, i32
  }
  func.func @transform_12(%arg0: i32, %arg1: i32) -> (i32, i32) {
    %c0_i32 = arith.constant 0 : i32
    %c0_i32_0 = arith.constant 0 : i32
    %c0_i32_1 = arith.constant 0 : i32
    return %c0_i32, %c0_i32_0 : i32, i32
  }
  func.func @transform_13(%arg0: i32, %arg1: i32) -> (i32, i32) {
    %c0_i32 = arith.constant 0 : i32
    %c0_i32_0 = arith.constant 0 : i32
    %c0_i32_1 = arith.constant 0 : i32
    return %c0_i32, %c0_i32_0 : i32, i32
  }
  func.func @transform_14(%arg0: i32, %arg1: i32) -> (i32, i32) {
    %c0_i32 = arith.constant 0 : i32
    %c0_i32_0 = arith.constant 0 : i32
    %c0_i32_1 = arith.constant 0 : i32
    return %c0_i32, %c0_i32_0 : i32, i32
  }
  func.func @transform_15(%arg0: i32, %arg1: i32) -> (i32, i32, i32) {
    %c0_i32 = arith.constant 0 : i32
    %c0_i32_0 = arith.constant 0 : i32
    return %arg1, %arg0, %c0_i32 : i32, i32, i32
  }
}

module attributes {stable_mosaic.version = 11 : i64} {
  func.func @_lfa_stage_kernel(%arg0: i32, %arg1: i32, %arg2: memref<1x16x8x4xf32, #tpu.memory_space<vmem>>, %arg3: memref<1x16x8x3xf32, #tpu.memory_space<vmem>>, %arg4: memref<1x16x3xf32, #tpu.memory_space<vmem>>, %arg5: memref<1x4xf32, #tpu.memory_space<vmem>>, %arg6: memref<3x4xf32, #tpu.memory_space<vmem>>, %arg7: memref<3x4xf32, #tpu.memory_space<vmem>>, %arg8: memref<3x4xf32, #tpu.memory_space<vmem>>, %arg9: memref<1x4xf32, #tpu.memory_space<vmem>>, %arg10: memref<4x4xf32, #tpu.memory_space<vmem>>, %arg11: memref<1x4xf32, #tpu.memory_space<vmem>>, %arg12: memref<4x4xf32, #tpu.memory_space<vmem>>, %arg13: memref<4x4xf32, #tpu.memory_space<vmem>>, %arg14: memref<4x4xf32, #tpu.memory_space<vmem>>, %arg15: memref<4x4xf32, #tpu.memory_space<vmem>>, %arg16: memref<4x8xf32, #tpu.memory_space<vmem>>, %arg17: memref<4x8xf32, #tpu.memory_space<vmem>>, %arg18: memref<1x8xf32, #tpu.memory_space<vmem>>, %arg19: memref<1x16x8xf32, #tpu.memory_space<vmem>>) attributes {dimension_semantics = [#tpu.dimension_semantics<parallel>, #tpu.dimension_semantics<parallel>], iteration_bounds = array<i64: 1, 2>, scalar_prefetch = 0 : i64, scratch_operands = 0 : i64, tpu.core_type = #tpu.core_type<tc>, window_params = [{transform_indices = @transform_0, window_bounds = array<i64: 1, 16, 8, 4>}, {transform_indices = @transform_1, window_bounds = array<i64: 1, 16, 8, 3>}, {transform_indices = @transform_2, window_bounds = array<i64: 1, 16, 3>}, {pipeline_mode = #tpu.pipeline_mode<synchronous>, transform_indices = @transform_3, window_bounds = array<i64: 1, 4>}, {pipeline_mode = #tpu.pipeline_mode<synchronous>, transform_indices = @transform_4, window_bounds = array<i64: 3, 4>}, {pipeline_mode = #tpu.pipeline_mode<synchronous>, transform_indices = @transform_5, window_bounds = array<i64: 3, 4>}, {pipeline_mode = #tpu.pipeline_mode<synchronous>, transform_indices = @transform_6, window_bounds = array<i64: 3, 4>}, {pipeline_mode = #tpu.pipeline_mode<synchronous>, transform_indices = @transform_7, window_bounds = array<i64: 1, 4>}, {pipeline_mode = #tpu.pipeline_mode<synchronous>, transform_indices = @transform_8, window_bounds = array<i64: 4, 4>}, {pipeline_mode = #tpu.pipeline_mode<synchronous>, transform_indices = @transform_9, window_bounds = array<i64: 1, 4>}, {pipeline_mode = #tpu.pipeline_mode<synchronous>, transform_indices = @transform_10, window_bounds = array<i64: 4, 4>}, {pipeline_mode = #tpu.pipeline_mode<synchronous>, transform_indices = @transform_11, window_bounds = array<i64: 4, 4>}, {pipeline_mode = #tpu.pipeline_mode<synchronous>, transform_indices = @transform_12, window_bounds = array<i64: 4, 4>}, {pipeline_mode = #tpu.pipeline_mode<synchronous>, transform_indices = @transform_13, window_bounds = array<i64: 4, 4>}, {pipeline_mode = #tpu.pipeline_mode<synchronous>, transform_indices = @transform_14, window_bounds = array<i64: 4, 8>}, {pipeline_mode = #tpu.pipeline_mode<synchronous>, transform_indices = @transform_15, window_bounds = array<i64: 4, 8>}, {pipeline_mode = #tpu.pipeline_mode<synchronous>, transform_indices = @transform_16, window_bounds = array<i64: 1, 8>}, {transform_indices = @transform_17, window_bounds = array<i64: 1, 16, 8>}]} {
    %c0 = arith.constant 0 : index
    %c0_0 = arith.constant 0 : index
    %c0_1 = arith.constant 0 : index
    %c0_2 = arith.constant 0 : index
    %0 = vector.load %arg2[%c0, %c0_0, %c0_1, %c0_2] : memref<1x16x8x4xf32, #tpu.memory_space<vmem>>, vector<1x16x8x4xf32>
    %1 = vector.shape_cast %0 : vector<1x16x8x4xf32> to vector<16x8x4xf32>
    %c0_3 = arith.constant 0 : index
    %c0_4 = arith.constant 0 : index
    %c0_5 = arith.constant 0 : index
    %c0_6 = arith.constant 0 : index
    %2 = vector.load %arg3[%c0_3, %c0_4, %c0_5, %c0_6] : memref<1x16x8x3xf32, #tpu.memory_space<vmem>>, vector<1x16x8x3xf32>
    %3 = vector.shape_cast %2 : vector<1x16x8x3xf32> to vector<16x8x3xf32>
    %c0_7 = arith.constant 0 : index
    %c0_8 = arith.constant 0 : index
    %c0_9 = arith.constant 0 : index
    %4 = vector.load %arg4[%c0_7, %c0_8, %c0_9] : memref<1x16x3xf32, #tpu.memory_space<vmem>>, vector<1x16x3xf32>
    %5 = vector.shape_cast %4 : vector<1x16x3xf32> to vector<16x3xf32>
    %6 = vector.shape_cast %5 : vector<16x3xf32> to vector<16x1x3xf32>
    %7 = vector.shape_cast %6 : vector<16x1x3xf32> to vector<16x1x3xf32>
    %8 = vector.broadcast %7 : vector<16x1x3xf32> to vector<16x8x3xf32>
    %9 = arith.subf %8, %3 : vector<16x8x3xf32>
    %10 = arith.mulf %9, %9 : vector<16x8x3xf32>
    %cst = arith.constant dense<0.000000e+00> : vector<16x8xf32>
    %11 = vector.multi_reduction <add>, %10, %cst [2] : vector<16x8x3xf32> to vector<16x8xf32>
    %12 = vector.shape_cast %11 : vector<16x8xf32> to vector<16x8x1xf32>
    %13 = math.sqrt %12 : vector<16x8x1xf32>
    %14 = vector.shape_cast %13 : vector<16x8x1xf32> to vector<128x1xf32>
    %c0_10 = arith.constant 0 : index
    %c0_11 = arith.constant 0 : index
    %15 = vector.load %arg5[%c0_10, %c0_11] : memref<1x4xf32, #tpu.memory_space<vmem>>, vector<1x4xf32>
    %16 = vector.broadcast %14 : vector<128x1xf32> to vector<128x4xf32>
    %17 = vector.broadcast %15 : vector<1x4xf32> to vector<128x4xf32>
    %18 = arith.mulf %16, %17 : vector<128x4xf32>
    %19 = vector.shape_cast %9 : vector<16x8x3xf32> to vector<128x3xf32>
    %c0_12 = arith.constant 0 : index
    %c0_13 = arith.constant 0 : index
    %20 = vector.load %arg6[%c0_12, %c0_13] : memref<3x4xf32, #tpu.memory_space<vmem>>, vector<3x4xf32>
    %cst_14 = arith.constant dense<0.000000e+00> : vector<128x4xf32>
    %21 = tpu.matmul %19, %20, %cst_14 {dimension_numbers = #tpu.dot_dimension_numbers<[1], [0], [0], [1], [0, 0, 1, 1], [], []>} : vector<128x3xf32>, vector<3x4xf32>, vector<128x4xf32> -> vector<128x4xf32>
    %22 = arith.addf %18, %21 : vector<128x4xf32>
    %23 = vector.shape_cast %8 : vector<16x8x3xf32> to vector<128x3xf32>
    %c0_15 = arith.constant 0 : index
    %c0_16 = arith.constant 0 : index
    %24 = vector.load %arg7[%c0_15, %c0_16] : memref<3x4xf32, #tpu.memory_space<vmem>>, vector<3x4xf32>
    %cst_17 = arith.constant dense<0.000000e+00> : vector<128x4xf32>
    %25 = tpu.matmul %23, %24, %cst_17 {dimension_numbers = #tpu.dot_dimension_numbers<[1], [0], [0], [1], [0, 0, 1, 1], [], []>} : vector<128x3xf32>, vector<3x4xf32>, vector<128x4xf32> -> vector<128x4xf32>
    %26 = arith.addf %22, %25 : vector<128x4xf32>
    %27 = vector.shape_cast %3 : vector<16x8x3xf32> to vector<128x3xf32>
    %c0_18 = arith.constant 0 : index
    %c0_19 = arith.constant 0 : index
    %28 = vector.load %arg8[%c0_18, %c0_19] : memref<3x4xf32, #tpu.memory_space<vmem>>, vector<3x4xf32>
    %cst_20 = arith.constant dense<0.000000e+00> : vector<128x4xf32>
    %29 = tpu.matmul %27, %28, %cst_20 {dimension_numbers = #tpu.dot_dimension_numbers<[1], [0], [0], [1], [0, 0, 1, 1], [], []>} : vector<128x3xf32>, vector<3x4xf32>, vector<128x4xf32> -> vector<128x4xf32>
    %30 = arith.addf %26, %29 : vector<128x4xf32>
    %c0_21 = arith.constant 0 : index
    %c0_22 = arith.constant 0 : index
    %31 = vector.load %arg9[%c0_21, %c0_22] : memref<1x4xf32, #tpu.memory_space<vmem>>, vector<1x4xf32>
    %32 = vector.broadcast %31 : vector<1x4xf32> to vector<128x4xf32>
    %33 = arith.addf %30, %32 : vector<128x4xf32>
    %cst_23 = arith.constant 0.000000e+00 : f32
    %34 = vector.broadcast %cst_23 : f32 to vector<128x4xf32>
    %35 = arith.maximumf %33, %34 : vector<128x4xf32>
    %c0_24 = arith.constant 0 : index
    %c0_25 = arith.constant 0 : index
    %36 = vector.load %arg10[%c0_24, %c0_25] : memref<4x4xf32, #tpu.memory_space<vmem>>, vector<4x4xf32>
    %cst_26 = arith.constant dense<0.000000e+00> : vector<128x4xf32>
    %37 = tpu.matmul %35, %36, %cst_26 {dimension_numbers = #tpu.dot_dimension_numbers<[1], [0], [0], [1], [0, 0, 1, 1], [], []>} : vector<128x4xf32>, vector<4x4xf32>, vector<128x4xf32> -> vector<128x4xf32>
    %c0_27 = arith.constant 0 : index
    %c0_28 = arith.constant 0 : index
    %38 = vector.load %arg11[%c0_27, %c0_28] : memref<1x4xf32, #tpu.memory_space<vmem>>, vector<1x4xf32>
    %39 = vector.broadcast %38 : vector<1x4xf32> to vector<128x4xf32>
    %40 = arith.addf %37, %39 : vector<128x4xf32>
    %cst_29 = arith.constant 0.000000e+00 : f32
    %41 = vector.broadcast %cst_29 : f32 to vector<128x4xf32>
    %42 = arith.maximumf %40, %41 : vector<128x4xf32>
    %43 = vector.shape_cast %1 : vector<16x8x4xf32> to vector<128x4xf32>
    %c0_30 = arith.constant 0 : index
    %c0_31 = arith.constant 0 : index
    %44 = vector.load %arg12[%c0_30, %c0_31] : memref<4x4xf32, #tpu.memory_space<vmem>>, vector<4x4xf32>
    %cst_32 = arith.constant dense<0.000000e+00> : vector<128x4xf32>
    %45 = tpu.matmul %43, %44, %cst_32 {dimension_numbers = #tpu.dot_dimension_numbers<[1], [0], [0], [1], [0, 0, 1, 1], [], []>} : vector<128x4xf32>, vector<4x4xf32>, vector<128x4xf32> -> vector<128x4xf32>
    %c0_33 = arith.constant 0 : index
    %c0_34 = arith.constant 0 : index
    %46 = vector.load %arg13[%c0_33, %c0_34] : memref<4x4xf32, #tpu.memory_space<vmem>>, vector<4x4xf32>
    %cst_35 = arith.constant dense<0.000000e+00> : vector<128x4xf32>
    %47 = tpu.matmul %42, %46, %cst_35 {dimension_numbers = #tpu.dot_dimension_numbers<[1], [0], [0], [1], [0, 0, 1, 1], [], []>} : vector<128x4xf32>, vector<4x4xf32>, vector<128x4xf32> -> vector<128x4xf32>
    %48 = arith.addf %45, %47 : vector<128x4xf32>
    %49 = vector.shape_cast %48 : vector<128x4xf32> to vector<16x8x4xf32>
    %c0_36 = arith.constant 0 : index
    %c0_37 = arith.constant 0 : index
    %50 = vector.load %arg14[%c0_36, %c0_37] : memref<4x4xf32, #tpu.memory_space<vmem>>, vector<4x4xf32>
    %cst_38 = arith.constant dense<0.000000e+00> : vector<128x4xf32>
    %51 = tpu.matmul %43, %50, %cst_38 {dimension_numbers = #tpu.dot_dimension_numbers<[1], [0], [0], [1], [0, 0, 1, 1], [], []>} : vector<128x4xf32>, vector<4x4xf32>, vector<128x4xf32> -> vector<128x4xf32>
    %c0_39 = arith.constant 0 : index
    %c0_40 = arith.constant 0 : index
    %52 = vector.load %arg15[%c0_39, %c0_40] : memref<4x4xf32, #tpu.memory_space<vmem>>, vector<4x4xf32>
    %cst_41 = arith.constant dense<0.000000e+00> : vector<128x4xf32>
    %53 = tpu.matmul %42, %52, %cst_41 {dimension_numbers = #tpu.dot_dimension_numbers<[1], [0], [0], [1], [0, 0, 1, 1], [], []>} : vector<128x4xf32>, vector<4x4xf32>, vector<128x4xf32> -> vector<128x4xf32>
    %54 = arith.addf %51, %53 : vector<128x4xf32>
    %55 = vector.shape_cast %54 : vector<128x4xf32> to vector<16x8x4xf32>
    %cst_42 = arith.constant dense<0xFF800000> : vector<16x4xf32>
    %56 = vector.multi_reduction <maximumf>, %49, %cst_42 [1] : vector<16x8x4xf32> to vector<16x4xf32>
    %57 = vector.shape_cast %56 : vector<16x4xf32> to vector<16x1x4xf32>
    %58 = vector.broadcast %57 : vector<16x1x4xf32> to vector<16x8x4xf32>
    %59 = arith.subf %49, %58 : vector<16x8x4xf32>
    %60 = math.exp %59 : vector<16x8x4xf32>
    %cst_43 = arith.constant dense<0.000000e+00> : vector<16x4xf32>
    %61 = vector.multi_reduction <add>, %60, %cst_43 [1] : vector<16x8x4xf32> to vector<16x4xf32>
    %62 = vector.shape_cast %61 : vector<16x4xf32> to vector<16x1x4xf32>
    %63 = tpu.reciprocal %62 {approx = true} : vector<16x1x4xf32> -> vector<16x1x4xf32>
    %64 = vector.broadcast %63 : vector<16x1x4xf32> to vector<16x8x4xf32>
    %65 = arith.mulf %60, %64 : vector<16x8x4xf32>
    %66 = arith.mulf %1, %65 : vector<16x8x4xf32>
    %cst_44 = arith.constant dense<0.000000e+00> : vector<16x4xf32>
    %67 = vector.multi_reduction <add>, %66, %cst_44 [1] : vector<16x8x4xf32> to vector<16x4xf32>
    %68 = vector.shape_cast %42 : vector<128x4xf32> to vector<16x8x4xf32>
    %cst_45 = arith.constant dense<0xFF800000> : vector<16x4xf32>
    %69 = vector.multi_reduction <maximumf>, %55, %cst_45 [1] : vector<16x8x4xf32> to vector<16x4xf32>
    %70 = vector.shape_cast %69 : vector<16x4xf32> to vector<16x1x4xf32>
    %71 = vector.broadcast %70 : vector<16x1x4xf32> to vector<16x8x4xf32>
    %72 = arith.subf %55, %71 : vector<16x8x4xf32>
    %73 = math.exp %72 : vector<16x8x4xf32>
    %cst_46 = arith.constant dense<0.000000e+00> : vector<16x4xf32>
    %74 = vector.multi_reduction <add>, %73, %cst_46 [1] : vector<16x8x4xf32> to vector<16x4xf32>
    %75 = vector.shape_cast %74 : vector<16x4xf32> to vector<16x1x4xf32>
    %76 = tpu.reciprocal %75 {approx = true} : vector<16x1x4xf32> -> vector<16x1x4xf32>
    %77 = vector.broadcast %76 : vector<16x1x4xf32> to vector<16x8x4xf32>
    %78 = arith.mulf %73, %77 : vector<16x8x4xf32>
    %79 = arith.mulf %68, %78 : vector<16x8x4xf32>
    %cst_47 = arith.constant dense<0.000000e+00> : vector<16x4xf32>
    %80 = vector.multi_reduction <add>, %79, %cst_47 [1] : vector<16x8x4xf32> to vector<16x4xf32>
    %c0_48 = arith.constant 0 : index
    %c0_49 = arith.constant 0 : index
    %81 = vector.load %arg16[%c0_48, %c0_49] : memref<4x8xf32, #tpu.memory_space<vmem>>, vector<4x8xf32>
    %cst_50 = arith.constant dense<0.000000e+00> : vector<16x8xf32>
    %82 = tpu.matmul %67, %81, %cst_50 {dimension_numbers = #tpu.dot_dimension_numbers<[1], [0], [0], [1], [0, 0, 1, 1], [], []>} : vector<16x4xf32>, vector<4x8xf32>, vector<16x8xf32> -> vector<16x8xf32>
    %c0_51 = arith.constant 0 : index
    %c0_52 = arith.constant 0 : index
    %83 = vector.load %arg17[%c0_51, %c0_52] : memref<4x8xf32, #tpu.memory_space<vmem>>, vector<4x8xf32>
    %cst_53 = arith.constant dense<0.000000e+00> : vector<16x8xf32>
    %84 = tpu.matmul %80, %83, %cst_53 {dimension_numbers = #tpu.dot_dimension_numbers<[1], [0], [0], [1], [0, 0, 1, 1], [], []>} : vector<16x4xf32>, vector<4x8xf32>, vector<16x8xf32> -> vector<16x8xf32>
    %85 = arith.addf %82, %84 : vector<16x8xf32>
    %c0_54 = arith.constant 0 : index
    %c0_55 = arith.constant 0 : index
    %86 = vector.load %arg18[%c0_54, %c0_55] : memref<1x8xf32, #tpu.memory_space<vmem>>, vector<1x8xf32>
    %87 = vector.broadcast %86 : vector<1x8xf32> to vector<16x8xf32>
    %88 = arith.addf %85, %87 : vector<16x8xf32>
    %cst_56 = arith.constant 0.000000e+00 : f32
    %89 = vector.broadcast %cst_56 : f32 to vector<16x8xf32>
    %90 = arith.maximumf %88, %89 : vector<16x8xf32>
    %c0_57 = arith.constant 0 : index
    %c0_58 = arith.constant 0 : index
    %c0_59 = arith.constant 0 : index
    %91 = vector.load %arg19[%c0_57, %c0_58, %c0_59] : memref<1x16x8xf32, #tpu.memory_space<vmem>>, vector<1x16x8xf32>
    %92 = vector.shape_cast %91 : vector<1x16x8xf32> to vector<16x8xf32>
    %93 = vector.shape_cast %90 : vector<16x8xf32> to vector<1x16x8xf32>
    tpu.vector_store %arg19[%c0_57, %c0_58, %c0_59], %93 {strides = array<i32>} : memref<1x16x8xf32, #tpu.memory_space<vmem>>, vector<1x16x8xf32>,
    return
  }
  func.func @transform_0(%arg0: i32, %arg1: i32) -> (i32, i32, i32, i32) {
    %c0_i32 = arith.constant 0 : i32
    %c0_i32_0 = arith.constant 0 : i32
    %c0_i32_1 = arith.constant 0 : i32
    return %arg1, %arg0, %c0_i32, %c0_i32_0 : i32, i32, i32, i32
  }
  func.func @transform_1(%arg0: i32, %arg1: i32) -> (i32, i32, i32, i32) {
    %c0_i32 = arith.constant 0 : i32
    %c0_i32_0 = arith.constant 0 : i32
    %c0_i32_1 = arith.constant 0 : i32
    return %arg1, %arg0, %c0_i32, %c0_i32_0 : i32, i32, i32, i32
  }
  func.func @transform_2(%arg0: i32, %arg1: i32) -> (i32, i32, i32) {
    %c0_i32 = arith.constant 0 : i32
    %c0_i32_0 = arith.constant 0 : i32
    return %arg1, %arg0, %c0_i32 : i32, i32, i32
  }
  func.func @transform_3(%arg0: i32, %arg1: i32) -> (i32, i32) {
    %c0_i32 = arith.constant 0 : i32
    %c0_i32_0 = arith.constant 0 : i32
    %c0_i32_1 = arith.constant 0 : i32
    return %c0_i32, %c0_i32_0 : i32, i32
  }
  func.func @transform_4(%arg0: i32, %arg1: i32) -> (i32, i32) {
    %c0_i32 = arith.constant 0 : i32
    %c0_i32_0 = arith.constant 0 : i32
    %c0_i32_1 = arith.constant 0 : i32
    return %c0_i32, %c0_i32_0 : i32, i32
  }
  func.func @transform_5(%arg0: i32, %arg1: i32) -> (i32, i32) {
    %c0_i32 = arith.constant 0 : i32
    %c0_i32_0 = arith.constant 0 : i32
    %c0_i32_1 = arith.constant 0 : i32
    return %c0_i32, %c0_i32_0 : i32, i32
  }
  func.func @transform_6(%arg0: i32, %arg1: i32) -> (i32, i32) {
    %c0_i32 = arith.constant 0 : i32
    %c0_i32_0 = arith.constant 0 : i32
    %c0_i32_1 = arith.constant 0 : i32
    return %c0_i32, %c0_i32_0 : i32, i32
  }
  func.func @transform_7(%arg0: i32, %arg1: i32) -> (i32, i32) {
    %c0_i32 = arith.constant 0 : i32
    %c0_i32_0 = arith.constant 0 : i32
    %c0_i32_1 = arith.constant 0 : i32
    return %c0_i32, %c0_i32_0 : i32, i32
  }
  func.func @transform_8(%arg0: i32, %arg1: i32) -> (i32, i32) {
    %c0_i32 = arith.constant 0 : i32
    %c0_i32_0 = arith.constant 0 : i32
    %c0_i32_1 = arith.constant 0 : i32
    return %c0_i32, %c0_i32_0 : i32, i32
  }
  func.func @transform_9(%arg0: i32, %arg1: i32) -> (i32, i32) {
    %c0_i32 = arith.constant 0 : i32
    %c0_i32_0 = arith.constant 0 : i32
    %c0_i32_1 = arith.constant 0 : i32
    return %c0_i32, %c0_i32_0 : i32, i32
  }
  func.func @transform_10(%arg0: i32, %arg1: i32) -> (i32, i32) {
    %c0_i32 = arith.constant 0 : i32
    %c0_i32_0 = arith.constant 0 : i32
    %c0_i32_1 = arith.constant 0 : i32
    return %c0_i32, %c0_i32_0 : i32, i32
  }
  func.func @transform_11(%arg0: i32, %arg1: i32) -> (i32, i32) {
    %c0_i32 = arith.constant 0 : i32
    %c0_i32_0 = arith.constant 0 : i32
    %c0_i32_1 = arith.constant 0 : i32
    return %c0_i32, %c0_i32_0 : i32, i32
  }
  func.func @transform_12(%arg0: i32, %arg1: i32) -> (i32, i32) {
    %c0_i32 = arith.constant 0 : i32
    %c0_i32_0 = arith.constant 0 : i32
    %c0_i32_1 = arith.constant 0 : i32
    return %c0_i32, %c0_i32_0 : i32, i32
  }
  func.func @transform_13(%arg0: i32, %arg1: i32) -> (i32, i32) {
    %c0_i32 = arith.constant 0 : i32
    %c0_i32_0 = arith.constant 0 : i32
    %c0_i32_1 = arith.constant 0 : i32
    return %c0_i32, %c0_i32_0 : i32, i32
  }
  func.func @transform_14(%arg0: i32, %arg1: i32) -> (i32, i32) {
    %c0_i32 = arith.constant 0 : i32
    %c0_i32_0 = arith.constant 0 : i32
    %c0_i32_1 = arith.constant 0 : i32
    return %c0_i32, %c0_i32_0 : i32, i32
  }
  func.func @transform_15(%arg0: i32, %arg1: i32) -> (i32, i32) {
    %c0_i32 = arith.constant 0 : i32
    %c0_i32_0 = arith.constant 0 : i32
    %c0_i32_1 = arith.constant 0 : i32
    return %c0_i32, %c0_i32_0 : i32, i32
  }
  func.func @transform_16(%arg0: i32, %arg1: i32) -> (i32, i32) {
    %c0_i32 = arith.constant 0 : i32
    %c0_i32_0 = arith.constant 0 : i32
    %c0_i32_1 = arith.constant 0 : i32
    return %c0_i32, %c0_i32_0 : i32, i32
  }
  func.func @transform_17(%arg0: i32, %arg1: i32) -> (i32, i32, i32) {
    %c0_i32 = arith.constant 0 : i32
    %c0_i32_0 = arith.constant 0 : i32
    return %arg1, %arg0, %c0_i32 : i32, i32, i32
  }
}

module attributes {stable_mosaic.version = 11 : i64} {
  func.func @_residual_kernel(%arg0: i32, %arg1: i32, %arg2: memref<1x16x8xf32, #tpu.memory_space<vmem>>, %arg3: memref<1x16x4xf32, #tpu.memory_space<vmem>>, %arg4: memref<8x16xf32, #tpu.memory_space<vmem>>, %arg5: memref<4x16xf32, #tpu.memory_space<vmem>>, %arg6: memref<1x16xf32, #tpu.memory_space<vmem>>, %arg7: memref<1x16x16xf32, #tpu.memory_space<vmem>>) attributes {dimension_semantics = [#tpu.dimension_semantics<parallel>, #tpu.dimension_semantics<parallel>], iteration_bounds = array<i64: 1, 2>, scalar_prefetch = 0 : i64, scratch_operands = 0 : i64, tpu.core_type = #tpu.core_type<tc>, window_params = [{transform_indices = @transform_0, window_bounds = array<i64: 1, 16, 8>}, {transform_indices = @transform_1, window_bounds = array<i64: 1, 16, 4>}, {pipeline_mode = #tpu.pipeline_mode<synchronous>, transform_indices = @transform_2, window_bounds = array<i64: 8, 16>}, {pipeline_mode = #tpu.pipeline_mode<synchronous>, transform_indices = @transform_3, window_bounds = array<i64: 4, 16>}, {pipeline_mode = #tpu.pipeline_mode<synchronous>, transform_indices = @transform_4, window_bounds = array<i64: 1, 16>}, {transform_indices = @transform_5, window_bounds = array<i64: 1, 16, 16>}]} {
    %c0 = arith.constant 0 : index
    %c0_0 = arith.constant 0 : index
    %c0_1 = arith.constant 0 : index
    %0 = vector.load %arg2[%c0, %c0_0, %c0_1] : memref<1x16x8xf32, #tpu.memory_space<vmem>>, vector<1x16x8xf32>
    %1 = vector.shape_cast %0 : vector<1x16x8xf32> to vector<16x8xf32>
    %c0_2 = arith.constant 0 : index
    %c0_3 = arith.constant 0 : index
    %2 = vector.load %arg4[%c0_2, %c0_3] : memref<8x16xf32, #tpu.memory_space<vmem>>, vector<8x16xf32>
    %cst = arith.constant dense<0.000000e+00> : vector<16x16xf32>
    %3 = tpu.matmul %1, %2, %cst {dimension_numbers = #tpu.dot_dimension_numbers<[1], [0], [0], [1], [0, 0, 1, 1], [], []>} : vector<16x8xf32>, vector<8x16xf32>, vector<16x16xf32> -> vector<16x16xf32>
    %c0_4 = arith.constant 0 : index
    %c0_5 = arith.constant 0 : index
    %c0_6 = arith.constant 0 : index
    %4 = vector.load %arg3[%c0_4, %c0_5, %c0_6] : memref<1x16x4xf32, #tpu.memory_space<vmem>>, vector<1x16x4xf32>
    %5 = vector.shape_cast %4 : vector<1x16x4xf32> to vector<16x4xf32>
    %c0_7 = arith.constant 0 : index
    %c0_8 = arith.constant 0 : index
    %6 = vector.load %arg5[%c0_7, %c0_8] : memref<4x16xf32, #tpu.memory_space<vmem>>, vector<4x16xf32>
    %cst_9 = arith.constant dense<0.000000e+00> : vector<16x16xf32>
    %7 = tpu.matmul %5, %6, %cst_9 {dimension_numbers = #tpu.dot_dimension_numbers<[1], [0], [0], [1], [0, 0, 1, 1], [], []>} : vector<16x4xf32>, vector<4x16xf32>, vector<16x16xf32> -> vector<16x16xf32>
    %8 = arith.addf %3, %7 : vector<16x16xf32>
    %c0_10 = arith.constant 0 : index
    %c0_11 = arith.constant 0 : index
    %9 = vector.load %arg6[%c0_10, %c0_11] : memref<1x16xf32, #tpu.memory_space<vmem>>, vector<1x16xf32>
    %10 = vector.broadcast %9 : vector<1x16xf32> to vector<16x16xf32>
    %11 = arith.addf %8, %10 : vector<16x16xf32>
    %cst_12 = arith.constant 0.000000e+00 : f32
    %12 = vector.broadcast %cst_12 : f32 to vector<16x16xf32>
    %13 = arith.cmpf oge, %11, %12 : vector<16x16xf32>
    %cst_13 = arith.constant 2.000000e-01 : f32
    %14 = vector.broadcast %cst_13 : f32 to vector<16x16xf32>
    %15 = arith.mulf %14, %11 : vector<16x16xf32>
    %16 = arith.select %13, %11, %15 : vector<16x16xi1>, vector<16x16xf32>
    %c0_14 = arith.constant 0 : index
    %c0_15 = arith.constant 0 : index
    %c0_16 = arith.constant 0 : index
    %17 = vector.load %arg7[%c0_14, %c0_15, %c0_16] : memref<1x16x16xf32, #tpu.memory_space<vmem>>, vector<1x16x16xf32>
    %18 = vector.shape_cast %17 : vector<1x16x16xf32> to vector<16x16xf32>
    %19 = vector.shape_cast %16 : vector<16x16xf32> to vector<1x16x16xf32>
    tpu.vector_store %arg7[%c0_14, %c0_15, %c0_16], %19 {strides = array<i32>} : memref<1x16x16xf32, #tpu.memory_space<vmem>>, vector<1x16x16xf32>,
    return
  }
  func.func @transform_0(%arg0: i32, %arg1: i32) -> (i32, i32, i32) {
    %c0_i32 = arith.constant 0 : i32
    %c0_i32_0 = arith.constant 0 : i32
    return %arg1, %arg0, %c0_i32 : i32, i32, i32
  }
  func.func @transform_1(%arg0: i32, %arg1: i32) -> (i32, i32, i32) {
    %c0_i32 = arith.constant 0 : i32
    %c0_i32_0 = arith.constant 0 : i32
    return %arg1, %arg0, %c0_i32 : i32, i32, i32
  }
  func.func @transform_2(%arg0: i32, %arg1: i32) -> (i32, i32) {
    %c0_i32 = arith.constant 0 : i32
    %c0_i32_0 = arith.constant 0 : i32
    %c0_i32_1 = arith.constant 0 : i32
    return %c0_i32, %c0_i32_0 : i32, i32
  }
  func.func @transform_3(%arg0: i32, %arg1: i32) -> (i32, i32) {
    %c0_i32 = arith.constant 0 : i32
    %c0_i32_0 = arith.constant 0 : i32
    %c0_i32_1 = arith.constant 0 : i32
    return %c0_i32, %c0_i32_0 : i32, i32
  }
  func.func @transform_4(%arg0: i32, %arg1: i32) -> (i32, i32) {
    %c0_i32 = arith.constant 0 : i32
    %c0_i32_0 = arith.constant 0 : i32
    %c0_i32_1 = arith.constant 0 : i32
    return %c0_i32, %c0_i32_0 : i32, i32
  }
  func.func @transform_5(%arg0: i32, %arg1: i32) -> (i32, i32, i32) {
    %c0_i32 = arith.constant 0 : i32
    %c0_i32_0 = arith.constant 0 : i32
    return %arg1, %arg0, %c0_i32 : i32, i32, i32
  }
}

</mosaic_0001>

<llo_original>
// kernel: dilated_res_block_forward.4
$region0: #{dilated_res_block_forward.4}
  #allocation0 [shape = 'u32[]', space=smem, size = 0x4, offset = 0x4, fixed_abs, tag = 'smem constant byte address 0x4 - core index']
  #allocation1 [shape = 'u32[144,128]{1,0:T(1,128)}', space=vmem, size = 0x12000, scoped, tag = 'internal scratch']
  %s0 = inlined_call_operand.vmem [shape: f32[2,16,4], index: 0, kind: input, shape index: {}]
  %s1 = inlined_call_operand.vmem [shape: f32[4,4], index: 1, kind: input, shape index: {}]
  %s2 = inlined_call_operand.vmem [shape: f32[1,4], index: 2, kind: input, shape index: {}]
  %s3 = inlined_call_operand.vmem [shape: f32[2,16,4], index: 3, kind: output, shape index: {}]
  %s4 = sld [smem:[#allocation0]]
  $region45: #{dilated_res_block_forward.4} parent=0
    _
  %s6 = ssub.s32 1, %s4
  %s7 = scalar_select 0, %s6, %s4
  loop: start=0, step=1, limit=4
  $region2: #{dilated_res_block_forward.4} parent=0 // loop_pre_header
    _
  $region3: #{dilated_res_block_forward.4} parent=0 // loop_header
    %s9 = sphi 0, %s13
    %p10 = scmp.ge.s32.totalorder %s9, 4
    %s16 = sphi 0, %s28
    %s17 = sphi 0, %s24
    %s18 = sphi 0, %s16
    %s19 = sphi 0, %s17
    %s20 = sphi 0, %s18
    %s21 = sphi 0, %s19
    %s33 = sphi 0, %s35
    %s36 = sphi 0, %s33
    %s37 = sphi 0, %s36
    %s53 = sphi 0, %s37
    %s57 = sphi 0, %s57
    %s59 = sphi 0, %s57
    %s60 = sphi 0, %s59
    %s74 = sphi 0, %s60
    %s78 = sphi 0, %s78
    %s80 = sphi 0, %s78
    %s81 = sphi 0, %s80
    %s95 = sphi 0, %s81
    %s103 = sphi 0, %s105
    %s106 = sphi 0, %s103
    %s107 = sphi 0, %s106
    %s123 = sphi 0, %s107
  $region4: #{dilated_res_block_forward.4} parent=0 // loop_header_branch
    %12 = sbr.rel (%p10) target = $region8
  $region5: #{dilated_res_block_forward.4} parent=0 // loop_body
    %s14 = ssub.s32 %s9, 1
    %s15 = ssub.s32 %s9, 2
    %s22 = sadd.s32 1, %s17
    %p23 = scmp.ge.s32.totalorder %s22, 2
    %s24 = scalar_select %p23, 0, %s22
    %s25 = sadd.s32 1, %s16
    %s26 = scalar_select %p23, %s25, %s16
    %p27 = scmp.ge.s32.totalorder %s26, 1
    %s28 = scalar_select %p27, 0, %s26
    %s29 = ssub.s32 %s17, %s24
    %s30 = ssub.s32 %s16, %s28
    %s31 = sor.u32 %s29, %s30
    %p32 = scmp.eq.s32.totalorder %s31, 0
    %s34 = sadd.s32 %s33, 1
    %s35 = scalar_select %p32, %s33, %s34
    %p38 = pneg %p32
    %p39 = scmp.eq.s32.totalorder %s9, 1
    %p40 = por %p38, %p39
    %p41 = scmp.ne.s32.totalorder %s33, %s36
    %p42 = scmp.eq.s32.totalorder %s9, 0
    %p43 = por %p41, %p42
    %p44 = scmp.ne.s32.totalorder %s33, %s36
    %p45 = scmp.eq.s32.totalorder %s14, 1
    %p46 = por %p44, %p45
    %p47 = scmp.ne.s32.totalorder %s36, %s37
    %p48 = scmp.eq.s32.totalorder %s14, 0
    %p49 = por %p47, %p48
    %p50 = scmp.ne.s32.totalorder %s36, %s37
    %p51 = scmp.eq.s32.totalorder %s15, 1
    %p52 = por %p50, %p51
    %p54 = scmp.ne.s32.totalorder %s37, %s53
    %p55 = scmp.eq.s32.totalorder %s15, 0
    %p56 = por %p54, %p55
    %s58 = sadd.s32 %s57, 1
    %p61 = scmp.eq.s32.totalorder %s9, 1
    %p62 = scmp.ne.s32.totalorder %s57, %s59
    %p63 = scmp.eq.s32.totalorder %s9, 0
    %p64 = por %p62, %p63
    %p65 = scmp.ne.s32.totalorder %s57, %s59
    %p66 = scmp.eq.s32.totalorder %s14, 1
    %p67 = por %p65, %p66
    %p68 = scmp.ne.s32.totalorder %s59, %s60
    %p69 = scmp.eq.s32.totalorder %s14, 0
    %p70 = por %p68, %p69
    %p71 = scmp.ne.s32.totalorder %s59, %s60
    %p72 = scmp.eq.s32.totalorder %s15, 1
    %p73 = por %p71, %p72
    %p75 = scmp.ne.s32.totalorder %s60, %s74
    %p76 = scmp.eq.s32.totalorder %s15, 0
    %p77 = por %p75, %p76
    %s79 = sadd.s32 %s78, 1
    %p82 = scmp.eq.s32.totalorder %s9, 1
    %p83 = scmp.ne.s32.totalorder %s78, %s80
    %p84 = scmp.eq.s32.totalorder %s9, 0
    %p85 = por %p83, %p84
    %p86 = scmp.ne.s32.totalorder %s78, %s80
    %p87 = scmp.eq.s32.totalorder %s14, 1
    %p88 = por %p86, %p87
    %p89 = scmp.ne.s32.totalorder %s80, %s81
    %p90 = scmp.eq.s32.totalorder %s14, 0
    %p91 = por %p89, %p90
    %p92 = scmp.ne.s32.totalorder %s80, %s81
    %p93 = scmp.eq.s32.totalorder %s15, 1
    %p94 = por %p92, %p93
    %p96 = scmp.ne.s32.totalorder %s81, %s95
    %p97 = scmp.eq.s32.totalorder %s15, 0
    %p98 = por %p96, %p97
    %s99 = ssub.s32 %s17, %s24
    %s100 = ssub.s32 %s16, %s28
    %s101 = sor.u32 %s99, %s100
    %p102 = scmp.eq.s32.totalorder %s101, 0
    %s104 = sadd.s32 %s103, 1
    %s105 = scalar_select %p102, %s103, %s104
    %p108 = pneg %p102
    %p109 = scmp.eq.s32.totalorder %s9, 1
    %p110 = por %p108, %p109
    %p111 = scmp.ne.s32.totalorder %s103, %s106
    %p112 = scmp.eq.s32.totalorder %s9, 0
    %p113 = por %p111, %p112
    %p114 = scmp.ne.s32.totalorder %s103, %s106
    %p115 = scmp.eq.s32.totalorder %s14, 1
    %p116 = por %p114, %p115
    %p117 = scmp.ne.s32.totalorder %s106, %s107
    %p118 = scmp.eq.s32.totalorder %s14, 0
    %p119 = por %p117, %p118
    %p120 = scmp.ne.s32.totalorder %s106, %s107
    %p121 = scmp.eq.s32.totalorder %s15, 1
    %p122 = por %p120, %p121
    %p124 = scmp.ne.s32.totalorder %s107, %s123
    %p125 = scmp.eq.s32.totalorder %s15, 0
    %p126 = por %p124, %p125
    %p127 = scmp.le.s32.totalorder 1, %s9
    %p128 = scmp.lt.s32.totalorder %s9, 3
    %p129 = pnand %p127, %p128
    %p130 = pneg %p129
    // Predicated region
    $region9: #{dilated_res_block_forward.4} parent=5 // pred_check
      _
    $region10: #{dilated_res_block_forward.4} parent=5 // pred_check_branch
      %132 = sbr.rel (%p129) target = $region12
    $region11: #{dilated_res_block_forward.4} parent=5 // pred_region
      %s133 = ssub.s32 %s9, 1
      // Predicated region
      $region13: #{dilated_res_block_forward.4} parent=11 // pred_check
        %p134 = pneg %p70
      $region14: #{dilated_res_block_forward.4} parent=11 // pred_check_branch
        %136 = sbr.rel (%p134) target = $region16
      $region15: #{dilated_res_block_forward.4} parent=11 // pred_region
        _
      $region16: #{dilated_res_block_forward.4} parent=11 // pred_fallthru
        _
      // Predicated region
      $region17: #{dilated_res_block_forward.4} parent=11 // pred_check
        %p137 = pneg %p91
      $region18: #{dilated_res_block_forward.4} parent=11 // pred_check_branch
        %139 = sbr.rel (%p137) target = $region20
      $region19: #{dilated_res_block_forward.4} parent=11 // pred_region
        _
      $region20: #{dilated_res_block_forward.4} parent=11 // pred_fallthru
        _
    $region12: #{dilated_res_block_forward.4} parent=5 // pred_fallthru
      _
    %p140 = scmp.lt.s32.totalorder %s9, 2
    // Predicated region
    $region21: #{dilated_res_block_forward.4} parent=5 // pred_check
      %p141 = pneg %p140
    $region22: #{dilated_res_block_forward.4} parent=5 // pred_check_branch
      %143 = sbr.rel (%p141) target = $region24
    $region23: #{dilated_res_block_forward.4} parent=5 // pred_region
      // Predicated region
      $region25: #{dilated_res_block_forward.4} parent=23 // pred_check
        %p144 = pneg %p43
      $region26: #{dilated_res_block_forward.4} parent=23 // pred_check_branch
        %146 = sbr.rel (%p144) target = $region28
      $region27: #{dilated_res_block_forward.4} parent=23 // pred_region
        %s147 = smul.u32 2, %s16
        %p148 = scmp.lt.s32.totalorder %s17, 1
        %s149 = scalar_select %p148, %s17, 1
        %p150 = scmp.lt.s32.totalorder %s147, 1
        %s151 = scalar_select %p150, %s147, 1
        %s152 = smul.addr %s149, 2
        %s153 = sadd.s32 %s151, %s152
        %s154 = smul.addr %s153, 8
        %s155 = scalar_lea.vmem %s0, %s154
        %s156 = smul.u32 2, %s16
      $region28: #{dilated_res_block_forward.4} parent=23 // pred_fallthru
        _
    $region24: #{dilated_res_block_forward.4} parent=5 // pred_fallthru
      _
    %p157 = scmp.le.s32.totalorder 1, %s9
    %p158 = scmp.lt.s32.totalorder %s9, 3
    %p159 = pnand %p157, %p158
    %p160 = pneg %p159
    // Predicated region
    $region29: #{dilated_res_block_forward.4} parent=5 // pred_check
      _
    $region30: #{dilated_res_block_forward.4} parent=5 // pred_check_branch
      %162 = sbr.rel (%p159) target = $region32
    $region31: #{dilated_res_block_forward.4} parent=5 // pred_region
      %s163 = ssub.s32 %s9, 1
      %s164 = smul.u32 2, %s18
      %p165 = scmp.lt.s32.totalorder %s19, 1
      %s166 = scalar_select %p165, %s19, 1
      %p167 = scmp.lt.s32.totalorder %s164, 1
      %s168 = scalar_select %p167, %s164, 1
      %s169 = smul.addr %s166, 2
      %s170 = sadd.s32 %s168, %s169
      %s171 = smul.addr %s170, 8
      %s172 = scalar_lea.vmem %s0, %s171
      %p173 = pneg %p49
      %p174 = pneg %p46
      %p175 = pneg %p70
      %p176 = pneg %p67
      %p177 = pneg %p91
      %p178 = pneg %p88
      %p179 = pneg %p119
      %p180 = pneg %p116
      %s181 = smul.u32 2, %s18
      %p182 = scmp.lt.s32.totalorder %s19, 1
      %s183 = scalar_select %p182, %s19, 1
      %p184 = scmp.lt.s32.totalorder %s181, 1
      %s185 = scalar_select %p184, %s181, 1
      %s186 = smul.addr %s183, 2
      %s187 = sadd.s32 %s185, %s186
      %s188 = smul.addr %s187, 8
      %s189 = scalar_lea.vmem %s3, %s188
      %s190 = smul.u32 2, %s18
      %p191 = scmp.lt.s32.totalorder %s19, 1
      %s192 = scalar_select %p191, %s19, 1
      %p193 = scmp.lt.s32.totalorder %s190, 1
      %s194 = scalar_select %p193, %s190, 1
      %s195 = smul.addr %s192, 2
      %s196 = sadd.s32 %s194, %s195
      %s197 = smul.addr %s196, 8
      %s198 = scalar_lea.vmem %s0, %s197
      %s199 = smul.u32 2, %s18
      %s200 = smul.u32 2, %s18
      %p201 = scmp.lt.s32.totalorder %s19, 1
      %s202 = scalar_select %p201, %s19, 1
      %p203 = scmp.lt.s32.totalorder %s200, 1
      %s204 = scalar_select %p203, %s200, 1
      %s205 = smul.addr %s202, 2
      %s206 = sadd.s32 %s204, %s205
      %s207 = smul.addr %s206, 8
      %s208 = scalar_lea.vmem %s3, %s207
      %s209 = smul.u32 2, %s18
      %v210 = vld [vmem:[%s198] sm:$0xff]
      %v211 = vld [vmem:[%s198 + $0x8] sm:$0xff]
      %v212 = vld [vmem:[%s1] sm:$0xf]
      %v213 = vld [vmem:[%s2] sm:$0x1]
      %v215 = vlaneseq
      %v216 = vshrl.u32 %v215, 7
      %v217 = vsub.s32 0, %v216
      %v218 = vrot.slane %v213, %v217
      %vm220 = vcmask 31744
      %v222 = vsel %vm220, %v210, 0
      %v225 = vsel %vm220, %v211, 0
      %vm227 = vcmask 1043456
      %v229 = vsel %vm227, %v212, 0
      %231 = vmatprep.subr.mxu0 0.0
      %232 = vmatpush1.msra.mxu0 %v229
      %233 = vmatprep.subr.mxu0 0.0
      %234 = vmatpush1.msra.mxu0 0.0
      %235 = vmatprep.subr.mxu0 0.0
      %236 = vmatpush1.msra.mxu0 0.0
      %237 = vmatprep.subr.mxu0 0.0
      %238 = vmatpush1.msra.mxu0 0.0
      %239 = vmatprep.subr.mxu0 0.0
      %240 = vmatpush1.msra.mxu0 0.0
      %241 = vmatprep.subr.mxu0 0.0
      %242 = vmatpush1.msra.mxu0 0.0
      %243 = vmatprep.subr.mxu0 0.0
      %244 = vmatpush1.msra.mxu0 0.0
      %245 = vmatprep.subr.mxu0 0.0
      %246 = vmatpush1.msra.mxu0 0.0
      %247 = vmatprep.subr.mxu0 0.0
      %248 = vmatpush1.msra.mxu0 0.0
      %249 = vmatprep.subr.mxu0 0.0
      %250 = vmatpush1.msra.mxu0 0.0
      %251 = vmatprep.subr.mxu0 0.0
      %252 = vmatpush1.msra.mxu0 0.0
      %253 = vmatprep.subr.mxu0 0.0
      %254 = vmatpush1.msra.mxu0 0.0
      %255 = vmatprep.subr.mxu0 0.0
      %256 = vmatpush1.msra.mxu0 0.0
      %257 = vmatprep.subr.mxu0 0.0
      %258 = vmatpush1.msra.mxu0 0.0
      %259 = vmatprep.subr.mxu0 0.0
      %260 = vmatpush1.msra.mxu0 0.0
      %261 = vmatprep.subr.mxu0 0.0
      %262 = vmatpush1.msra.mxu0 0.0
      %263 = vmatprep.subr.mxu0 0.0
      %264 = vmatpush1.msra.mxu0 0.0
      %265 = vmatprep.subr.mxu0 0.0
      %266 = vmatpush1.msra.mxu0 0.0
      %267 = vmatprep.subr.mxu0 0.0
      %268 = vmatpush1.msra.mxu0 0.0
      %269 = vmatprep.subr.mxu0 0.0
      %270 = vmatpush1.msra.mxu0 0.0
      %271 = vmatprep.subr.mxu0 0.0
      %272 = vmatpush1.msra.mxu0 0.0
      %273 = vmatprep.subr.mxu0 0.0
      %274 = vmatpush1.msra.mxu0 0.0
      %275 = vmatprep.subr.mxu0 0.0
      %276 = vmatpush1.msra.mxu0 0.0
      %277 = vmatprep.subr.mxu0 0.0
      %278 = vmatpush1.msra.mxu0 0.0
      %279 = vmatprep.subr.mxu0 0.0
      %280 = vmatpush1.msra.mxu0 0.0
      %281 = vmatprep.subr.mxu0 0.0
      %282 = vmatpush1.msra.mxu0 0.0
      %283 = vmatprep.subr.mxu0 0.0
      %284 = vmatpush1.msra.mxu0 0.0
      %285 = vmatprep.subr.mxu0 0.0
      %286 = vmatpush1.msra.mxu0 0.0
      %287 = vmatprep.subr.mxu0 0.0
      %288 = vmatpush1.msra.mxu0 0.0
      %289 = vmatprep.subr.mxu0 0.0
      %290 = vmatpush1.msra.mxu0 0.0
      %291 = vmatprep.subr.mxu0 0.0
      %292 = vmatpush1.msra.mxu0 0.0
      %293 = vmatprep.subr.mxu0 0.0
      %294 = vmatpush1.msra.mxu0 0.0
      %295 = vmatprep.mubr.f32.mxu0 0.0
      %296 = vmatmul.mubr.f32.gmra.mrb[0].mxu0 %v222
      %v297 = vpop.f32.mrb[0].mxu0
      %v298 = vadd.f32 %v218, %v297
      %v299 = vpop.f32.mrb[0].mxu0
      %300 = vmatprep.mubr.f32.mxu0 0.0
      %301 = vmatmul.mubr.f32.gmra.mrb[0].mxu0 %v225
      %v302 = vpop.f32.mrb[0].mxu0
      %v303 = vadd.f32 %v218, %v302
      %v304 = vpop.f32.mrb[0].mxu0
      %305 = vdwg.mxu0
      %v306 = vmax.f32 %v298, 0.0
      %v307 = vmax.f32 %v303, 0.0
      %308 = vst.msk [vmem:[%s208] sm:$0xff] %vm220, %v306
      %309 = vst.msk [vmem:[%s208 + $0x8] sm:$0xff] %vm220, %v307
      %s310 = smul.u32 2, %s18
      %p311 = scmp.lt.s32.totalorder %s19, 1
      %s312 = scalar_select %p311, %s19, 1
      %p313 = scmp.lt.s32.totalorder %s310, 1
      %s314 = scalar_select %p313, %s310, 1
      %s315 = smul.addr %s312, 2
      %s316 = sadd.s32 %s314, %s315
      %s317 = smul.addr %s316, 8
      %s318 = scalar_lea.vmem %s3, %s317
      // Predicated region
      $region33: #{dilated_res_block_forward.4} parent=31 // pred_check
        %p319 = pneg %p116
      $region34: #{dilated_res_block_forward.4} parent=31 // pred_check_branch
        %321 = sbr.rel (%p319) target = $region36
      $region35: #{dilated_res_block_forward.4} parent=31 // pred_region
        %s322 = smul.u32 2, %s18
      $region36: #{dilated_res_block_forward.4} parent=31 // pred_fallthru
        _
    $region32: #{dilated_res_block_forward.4} parent=5 // pred_fallthru
      _
    %p323 = scmp.le.s32.totalorder 2, %s9
    // Predicated region
    $region37: #{dilated_res_block_forward.4} parent=5 // pred_check
      %p324 = pneg %p323
    $region38: #{dilated_res_block_forward.4} parent=5 // pred_check_branch
      %326 = sbr.rel (%p324) target = $region40
    $region39: #{dilated_res_block_forward.4} parent=5 // pred_region
      %s327 = ssub.s32 %s9, 2
      // Predicated region
      $region41: #{dilated_res_block_forward.4} parent=39 // pred_check
        %p328 = pneg %p122
      $region42: #{dilated_res_block_forward.4} parent=39 // pred_check_branch
        %330 = sbr.rel (%p328) target = $region44
      $region43: #{dilated_res_block_forward.4} parent=39 // pred_region
        %s331 = smul.u32 2, %s20
        %p332 = scmp.lt.s32.totalorder %s21, 1
        %s333 = scalar_select %p332, %s21, 1
        %p334 = scmp.lt.s32.totalorder %s331, 1
        %s335 = scalar_select %p334, %s331, 1
        %s336 = smul.addr %s333, 2
        %s337 = sadd.s32 %s335, %s336
        %s338 = smul.addr %s337, 8
        %s339 = scalar_lea.vmem %s3, %s338
      $region44: #{dilated_res_block_forward.4} parent=39 // pred_fallthru
        _
    $region40: #{dilated_res_block_forward.4} parent=5 // pred_fallthru
      _
  $region6: #{dilated_res_block_forward.4} parent=0 // loop_footer
    %s13 = sadd.s32 1, %s9
  $region7: #{dilated_res_block_forward.4} parent=0 // loop_footer_branch
    %8 = sbr.rel target = $region3
  $region8: #{dilated_res_block_forward.4} parent=0 // loop_exit
    _

// kernel: dilated_res_block_forward.5
$region0: #{dilated_res_block_forward.5}
  #allocation0 [shape = 'u32[]', space=smem, size = 0x4, offset = 0x4, fixed_abs, tag = 'smem constant byte address 0x4 - core index']
  #allocation1 [shape = 'u32[144,128]{1,0:T(1,128)}', space=vmem, size = 0x12000, scoped, tag = 'internal scratch']
  %s0 = inlined_call_operand.vmem [shape: f32[2,16,8,4], index: 0, kind: input, shape index: {}]
  %s1 = inlined_call_operand.vmem [shape: f32[2,16,8,3], index: 1, kind: input, shape index: {}]
  %s2 = inlined_call_operand.vmem [shape: f32[2,16,3], index: 2, kind: input, shape index: {}]
  %s3 = inlined_call_operand.vmem [shape: f32[1,4], index: 3, kind: input, shape index: {}]
  %s4 = inlined_call_operand.vmem [shape: f32[3,4], index: 4, kind: input, shape index: {}]
  %s5 = inlined_call_operand.vmem [shape: f32[3,4], index: 5, kind: input, shape index: {}]
  %s6 = inlined_call_operand.vmem [shape: f32[3,4], index: 6, kind: input, shape index: {}]
  %s7 = inlined_call_operand.vmem [shape: f32[1,4], index: 7, kind: input, shape index: {}]
  %s8 = inlined_call_operand.vmem [shape: f32[4,4], index: 8, kind: input, shape index: {}]
  %s9 = inlined_call_operand.vmem [shape: f32[4,4], index: 9, kind: input, shape index: {}]
  %s10 = inlined_call_operand.vmem [shape: f32[4,4], index: 10, kind: input, shape index: {}]
  %s11 = inlined_call_operand.vmem [shape: f32[4,4], index: 11, kind: input, shape index: {}]
  %s12 = inlined_call_operand.vmem [shape: f32[4,4], index: 12, kind: input, shape index: {}]
  %s13 = inlined_call_operand.vmem [shape: f32[4,4], index: 13, kind: input, shape index: {}]
  %s14 = inlined_call_operand.vmem [shape: f32[1,4], index: 14, kind: input, shape index: {}]
  %s15 = inlined_call_operand.vmem [shape: f32[2,16,4], index: 15, kind: output, shape index: {}]
  %s16 = sld [smem:[#allocation0]]
  $region93: #{dilated_res_block_forward.5} parent=0
    _
  %s18 = ssub.s32 1, %s16
  %s19 = scalar_select 0, %s18, %s16
  loop: start=0, step=1, limit=4
  $region2: #{dilated_res_block_forward.5} parent=0 // loop_pre_header
    _
  $region3: #{dilated_res_block_forward.5} parent=0 // loop_header
    %s21 = sphi 0, %s25
    %p22 = scmp.ge.s32.totalorder %s21, 4
    %s28 = sphi 0, %s40
    %s29 = sphi 0, %s36
    %s30 = sphi 0, %s28
    %s31 = sphi 0, %s29
    %s32 = sphi 0, %s30
    %s33 = sphi 0, %s31
    %s45 = sphi 0, %s47
    %s48 = sphi 0, %s45
    %s49 = sphi 0, %s48
    %s65 = sphi 0, %s49
    %s73 = sphi 0, %s75
    %s76 = sphi 0, %s73
    %s77 = sphi 0, %s76
    %s93 = sphi 0, %s77
    %s101 = sphi 0, %s103
    %s104 = sphi 0, %s101
    %s105 = sphi 0, %s104
    %s121 = sphi 0, %s105
    %s125 = sphi 0, %s125
    %s127 = sphi 0, %s125
    %s128 = sphi 0, %s127
    %s142 = sphi 0, %s128
    %s146 = sphi 0, %s146
    %s148 = sphi 0, %s146
    %s149 = sphi 0, %s148
    %s163 = sphi 0, %s149
    %s167 = sphi 0, %s167
    %s169 = sphi 0, %s167
    %s170 = sphi 0, %s169
    %s184 = sphi 0, %s170
    %s188 = sphi 0, %s188
    %s190 = sphi 0, %s188
    %s191 = sphi 0, %s190
    %s205 = sphi 0, %s191
    %s209 = sphi 0, %s209
    %s211 = sphi 0, %s209
    %s212 = sphi 0, %s211
    %s226 = sphi 0, %s212
    %s230 = sphi 0, %s230
    %s232 = sphi 0, %s230
    %s233 = sphi 0, %s232
    %s247 = sphi 0, %s233
    %s251 = sphi 0, %s251
    %s253 = sphi 0, %s251
    %s254 = sphi 0, %s253
    %s268 = sphi 0, %s254
    %s272 = sphi 0, %s272
    %s274 = sphi 0, %s272
    %s275 = sphi 0, %s274
    %s289 = sphi 0, %s275
    %s293 = sphi 0, %s293
    %s295 = sphi 0, %s293
    %s296 = sphi 0, %s295
    %s310 = sphi 0, %s296
    %s314 = sphi 0, %s314
    %s316 = sphi 0, %s314
    %s317 = sphi 0, %s316
    %s331 = sphi 0, %s317
    %s335 = sphi 0, %s335
    %s337 = sphi 0, %s335
    %s338 = sphi 0, %s337
    %s352 = sphi 0, %s338
    %s356 = sphi 0, %s356
    %s358 = sphi 0, %s356
    %s359 = sphi 0, %s358
    %s373 = sphi 0, %s359
    %s381 = sphi 0, %s383
    %s384 = sphi 0, %s381
    %s385 = sphi 0, %s384
    %s401 = sphi 0, %s385
  $region4: #{dilated_res_block_forward.5} parent=0 // loop_header_branch
    %24 = sbr.rel (%p22) target = $region8
  $region5: #{dilated_res_block_forward.5} parent=0 // loop_body
    %s26 = ssub.s32 %s21, 1
    %s27 = ssub.s32 %s21, 2
    %s34 = sadd.s32 1, %s29
    %p35 = scmp.ge.s32.totalorder %s34, 2
    %s36 = scalar_select %p35, 0, %s34
    %s37 = sadd.s32 1, %s28
    %s38 = scalar_select %p35, %s37, %s28
    %p39 = scmp.ge.s32.totalorder %s38, 1
    %s40 = scalar_select %p39, 0, %s38
    %s41 = ssub.s32 %s29, %s36
    %s42 = ssub.s32 %s28, %s40
    %s43 = sor.u32 %s41, %s42
    %p44 = scmp.eq.s32.totalorder %s43, 0
    %s46 = sadd.s32 %s45, 1
    %s47 = scalar_select %p44, %s45, %s46
    %p50 = pneg %p44
    %p51 = scmp.eq.s32.totalorder %s21, 1
    %p52 = por %p50, %p51
    %p53 = scmp.ne.s32.totalorder %s45, %s48
    %p54 = scmp.eq.s32.totalorder %s21, 0
    %p55 = por %p53, %p54
    %p56 = scmp.ne.s32.totalorder %s45, %s48
    %p57 = scmp.eq.s32.totalorder %s26, 1
    %p58 = por %p56, %p57
    %p59 = scmp.ne.s32.totalorder %s48, %s49
    %p60 = scmp.eq.s32.totalorder %s26, 0
    %p61 = por %p59, %p60
    %p62 = scmp.ne.s32.totalorder %s48, %s49
    %p63 = scmp.eq.s32.totalorder %s27, 1
    %p64 = por %p62, %p63
    %p66 = scmp.ne.s32.totalorder %s49, %s65
    %p67 = scmp.eq.s32.totalorder %s27, 0
    %p68 = por %p66, %p67
    %s69 = ssub.s32 %s29, %s36
    %s70 = ssub.s32 %s28, %s40
    %s71 = sor.u32 %s69, %s70
    %p72 = scmp.eq.s32.totalorder %s71, 0
    %s74 = sadd.s32 %s73, 1
    %s75 = scalar_select %p72, %s73, %s74
    %p78 = pneg %p72
    %p79 = scmp.eq.s32.totalorder %s21, 1
    %p80 = por %p78, %p79
    %p81 = scmp.ne.s32.totalorder %s73, %s76
    %p82 = scmp.eq.s32.totalorder %s21, 0
    %p83 = por %p81, %p82
    %p84 = scmp.ne.s32.totalorder %s73, %s76
    %p85 = scmp.eq.s32.totalorder %s26, 1
    %p86 = por %p84, %p85
    %p87 = scmp.ne.s32.totalorder %s76, %s77
    %p88 = scmp.eq.s32.totalorder %s26, 0
    %p89 = por %p87, %p88
    %p90 = scmp.ne.s32.totalorder %s76, %s77
    %p91 = scmp.eq.s32.totalorder %s27, 1
    %p92 = por %p90, %p91
    %p94 = scmp.ne.s32.totalorder %s77, %s93
    %p95 = scmp.eq.s32.totalorder %s27, 0
    %p96 = por %p94, %p95
    %s97 = ssub.s32 %s29, %s36
    %s98 = ssub.s32 %s28, %s40
    %s99 = sor.u32 %s97, %s98
    %p100 = scmp.eq.s32.totalorder %s99, 0
    %s102 = sadd.s32 %s101, 1
    %s103 = scalar_select %p100, %s101, %s102
    %p106 = pneg %p100
    %p107 = scmp.eq.s32.totalorder %s21, 1
    %p108 = por %p106, %p107
    %p109 = scmp.ne.s32.totalorder %s101, %s104
    %p110 = scmp.eq.s32.totalorder %s21, 0
    %p111 = por %p109, %p110
    %p112 = scmp.ne.s32.totalorder %s101, %s104
    %p113 = scmp.eq.s32.totalorder %s26, 1
    %p114 = por %p112, %p113
    %p115 = scmp.ne.s32.totalorder %s104, %s105
    %p116 = scmp.eq.s32.totalorder %s26, 0
    %p117 = por %p115, %p116
    %p118 = scmp.ne.s32.totalorder %s104, %s105
    %p119 = scmp.eq.s32.totalorder %s27, 1
    %p120 = por %p118, %p119
    %p122 = scmp.ne.s32.totalorder %s105, %s121
    %p123 = scmp.eq.s32.totalorder %s27, 0
    %p124 = por %p122, %p123
    %s126 = sadd.s32 %s125, 1
    %p129 = scmp.eq.s32.totalorder %s21, 1
    %p130 = scmp.ne.s32.totalorder %s125, %s127
    %p131 = scmp.eq.s32.totalorder %s21, 0
    %p132 = por %p130, %p131
    %p133 = scmp.ne.s32.totalorder %s125, %s127
    %p134 = scmp.eq.s32.totalorder %s26, 1
    %p135 = por %p133, %p134
    %p136 = scmp.ne.s32.totalorder %s127, %s128
    %p137 = scmp.eq.s32.totalorder %s26, 0
    %p138 = por %p136, %p137
    %p139 = scmp.ne.s32.totalorder %s127, %s128
    %p140 = scmp.eq.s32.totalorder %s27, 1
    %p141 = por %p139, %p140
    %p143 = scmp.ne.s32.totalorder %s128, %s142
    %p144 = scmp.eq.s32.totalorder %s27, 0
    %p145 = por %p143, %p144
    %s147 = sadd.s32 %s146, 1
    %p150 = scmp.eq.s32.totalorder %s21, 1
    %p151 = scmp.ne.s32.totalorder %s146, %s148
    %p152 = scmp.eq.s32.totalorder %s21, 0
    %p153 = por %p151, %p152
    %p154 = scmp.ne.s32.totalorder %s146, %s148
    %p155 = scmp.eq.s32.totalorder %s26, 1
    %p156 = por %p154, %p155
    %p157 = scmp.ne.s32.totalorder %s148, %s149
    %p158 = scmp.eq.s32.totalorder %s26, 0
    %p159 = por %p157, %p158
    %p160 = scmp.ne.s32.totalorder %s148, %s149
    %p161 = scmp.eq.s32.totalorder %s27, 1
    %p162 = por %p160, %p161
    %p164 = scmp.ne.s32.totalorder %s149, %s163
    %p165 = scmp.eq.s32.totalorder %s27, 0
    %p166 = por %p164, %p165
    %s168 = sadd.s32 %s167, 1
    %p171 = scmp.eq.s32.totalorder %s21, 1
    %p172 = scmp.ne.s32.totalorder %s167, %s169
    %p173 = scmp.eq.s32.totalorder %s21, 0
    %p174 = por %p172, %p173
    %p175 = scmp.ne.s32.totalorder %s167, %s169
    %p176 = scmp.eq.s32.totalorder %s26, 1
    %p177 = por %p175, %p176
    %p178 = scmp.ne.s32.totalorder %s169, %s170
    %p179 = scmp.eq.s32.totalorder %s26, 0
    %p180 = por %p178, %p179
    %p181 = scmp.ne.s32.totalorder %s169, %s170
    %p182 = scmp.eq.s32.totalorder %s27, 1
    %p183 = por %p181, %p182
    %p185 = scmp.ne.s32.totalorder %s170, %s184
    %p186 = scmp.eq.s32.totalorder %s27, 0
    %p187 = por %p185, %p186
    %s189 = sadd.s32 %s188, 1
    %p192 = scmp.eq.s32.totalorder %s21, 1
    %p193 = scmp.ne.s32.totalorder %s188, %s190
    %p194 = scmp.eq.s32.totalorder %s21, 0
    %p195 = por %p193, %p194
    %p196 = scmp.ne.s32.totalorder %s188, %s190
    %p197 = scmp.eq.s32.totalorder %s26, 1
    %p198 = por %p196, %p197
    %p199 = scmp.ne.s32.totalorder %s190, %s191
    %p200 = scmp.eq.s32.totalorder %s26, 0
    %p201 = por %p199, %p200
    %p202 = scmp.ne.s32.totalorder %s190, %s191
    %p203 = scmp.eq.s32.totalorder %s27, 1
    %p204 = por %p202, %p203
    %p206 = scmp.ne.s32.totalorder %s191, %s205
    %p207 = scmp.eq.s32.totalorder %s27, 0
    %p208 = por %p206, %p207
    %s210 = sadd.s32 %s209, 1
    %p213 = scmp.eq.s32.totalorder %s21, 1
    %p214 = scmp.ne.s32.totalorder %s209, %s211
    %p215 = scmp.eq.s32.totalorder %s21, 0
    %p216 = por %p214, %p215
    %p217 = scmp.ne.s32.totalorder %s209, %s211
    %p218 = scmp.eq.s32.totalorder %s26, 1
    %p219 = por %p217, %p218
    %p220 = scmp.ne.s32.totalorder %s211, %s212
    %p221 = scmp.eq.s32.totalorder %s26, 0
    %p222 = por %p220, %p221
    %p223 = scmp.ne.s32.totalorder %s211, %s212
    %p224 = scmp.eq.s32.totalorder %s27, 1
    %p225 = por %p223, %p224
    %p227 = scmp.ne.s32.totalorder %s212, %s226
    %p228 = scmp.eq.s32.totalorder %s27, 0
    %p229 = por %p227, %p228
    %s231 = sadd.s32 %s230, 1
    %p234 = scmp.eq.s32.totalorder %s21, 1
    %p235 = scmp.ne.s32.totalorder %s230, %s232
    %p236 = scmp.eq.s32.totalorder %s21, 0
    %p237 = por %p235, %p236
    %p238 = scmp.ne.s32.totalorder %s230, %s232
    %p239 = scmp.eq.s32.totalorder %s26, 1
    %p240 = por %p238, %p239
    %p241 = scmp.ne.s32.totalorder %s232, %s233
    %p242 = scmp.eq.s32.totalorder %s26, 0
    %p243 = por %p241, %p242
    %p244 = scmp.ne.s32.totalorder %s232, %s233
    %p245 = scmp.eq.s32.totalorder %s27, 1
    %p246 = por %p244, %p245
    %p248 = scmp.ne.s32.totalorder %s233, %s247
    %p249 = scmp.eq.s32.totalorder %s27, 0
    %p250 = por %p248, %p249
    %s252 = sadd.s32 %s251, 1
    %p255 = scmp.eq.s32.totalorder %s21, 1
    %p256 = scmp.ne.s32.totalorder %s251, %s253
    %p257 = scmp.eq.s32.totalorder %s21, 0
    %p258 = por %p256, %p257
    %p259 = scmp.ne.s32.totalorder %s251, %s253
    %p260 = scmp.eq.s32.totalorder %s26, 1
    %p261 = por %p259, %p260
    %p262 = scmp.ne.s32.totalorder %s253, %s254
    %p263 = scmp.eq.s32.totalorder %s26, 0
    %p264 = por %p262, %p263
    %p265 = scmp.ne.s32.totalorder %s253, %s254
    %p266 = scmp.eq.s32.totalorder %s27, 1
    %p267 = por %p265, %p266
    %p269 = scmp.ne.s32.totalorder %s254, %s268
    %p270 = scmp.eq.s32.totalorder %s27, 0
    %p271 = por %p269, %p270
    %s273 = sadd.s32 %s272, 1
    %p276 = scmp.eq.s32.totalorder %s21, 1
    %p277 = scmp.ne.s32.totalorder %s272, %s274
    %p278 = scmp.eq.s32.totalorder %s21, 0
    %p279 = por %p277, %p278
    %p280 = scmp.ne.s32.totalorder %s272, %s274
    %p281 = scmp.eq.s32.totalorder %s26, 1
    %p282 = por %p280, %p281
    %p283 = scmp.ne.s32.totalorder %s274, %s275
    %p284 = scmp.eq.s32.totalorder %s26, 0
    %p285 = por %p283, %p284
    %p286 = scmp.ne.s32.totalorder %s274, %s275
    %p287 = scmp.eq.s32.totalorder %s27, 1
    %p288 = por %p286, %p287
    %p290 = scmp.ne.s32.totalorder %s275, %s289
    %p291 = scmp.eq.s32.totalorder %s27, 0
    %p292 = por %p290, %p291
    %s294 = sadd.s32 %s293, 1
    %p297 = scmp.eq.s32.totalorder %s21, 1
    %p298 = scmp.ne.s32.totalorder %s293, %s295
    %p299 = scmp.eq.s32.totalorder %s21, 0
    %p300 = por %p298, %p299
    %p301 = scmp.ne.s32.totalorder %s293, %s295
    %p302 = scmp.eq.s32.totalorder %s26, 1
    %p303 = por %p301, %p302
    %p304 = scmp.ne.s32.totalorder %s295, %s296
    %p305 = scmp.eq.s32.totalorder %s26, 0
    %p306 = por %p304, %p305
    %p307 = scmp.ne.s32.totalorder %s295, %s296
    %p308 = scmp.eq.s32.totalorder %s27, 1
    %p309 = por %p307, %p308
    %p311 = scmp.ne.s32.totalorder %s296, %s310
    %p312 = scmp.eq.s32.totalorder %s27, 0
    %p313 = por %p311, %p312
    %s315 = sadd.s32 %s314, 1
    %p318 = scmp.eq.s32.totalorder %s21, 1
    %p319 = scmp.ne.s32.totalorder %s314, %s316
    %p320 = scmp.eq.s32.totalorder %s21, 0
    %p321 = por %p319, %p320
    %p322 = scmp.ne.s32.totalorder %s314, %s316
    %p323 = scmp.eq.s32.totalorder %s26, 1
    %p324 = por %p322, %p323
    %p325 = scmp.ne.s32.totalorder %s316, %s317
    %p326 = scmp.eq.s32.totalorder %s26, 0
    %p327 = por %p325, %p326
    %p328 = scmp.ne.s32.totalorder %s316, %s317
    %p329 = scmp.eq.s32.totalorder %s27, 1
    %p330 = por %p328, %p329
    %p332 = scmp.ne.s32.totalorder %s317, %s331
    %p333 = scmp.eq.s32.totalorder %s27, 0
    %p334 = por %p332, %p333
    %s336 = sadd.s32 %s335, 1
    %p339 = scmp.eq.s32.totalorder %s21, 1
    %p340 = scmp.ne.s32.totalorder %s335, %s337
    %p341 = scmp.eq.s32.totalorder %s21, 0
    %p342 = por %p340, %p341
    %p343 = scmp.ne.s32.totalorder %s335, %s337
    %p344 = scmp.eq.s32.totalorder %s26, 1
    %p345 = por %p343, %p344
    %p346 = scmp.ne.s32.totalorder %s337, %s338
    %p347 = scmp.eq.s32.totalorder %s26, 0
    %p348 = por %p346, %p347
    %p349 = scmp.ne.s32.totalorder %s337, %s338
    %p350 = scmp.eq.s32.totalorder %s27, 1
    %p351 = por %p349, %p350
    %p353 = scmp.ne.s32.totalorder %s338, %s352
    %p354 = scmp.eq.s32.totalorder %s27, 0
    %p355 = por %p353, %p354
    %s357 = sadd.s32 %s356, 1
    %p360 = scmp.eq.s32.totalorder %s21, 1
    %p361 = scmp.ne.s32.totalorder %s356, %s358
    %p362 = scmp.eq.s32.totalorder %s21, 0
    %p363 = por %p361, %p362
    %p364 = scmp.ne.s32.totalorder %s356, %s358
    %p365 = scmp.eq.s32.totalorder %s26, 1
    %p366 = por %p364, %p365
    %p367 = scmp.ne.s32.totalorder %s358, %s359
    %p368 = scmp.eq.s32.totalorder %s26, 0
    %p369 = por %p367, %p368
    %p370 = scmp.ne.s32.totalorder %s358, %s359
    %p371 = scmp.eq.s32.totalorder %s27, 1
    %p372 = por %p370, %p371
    %p374 = scmp.ne.s32.totalorder %s359, %s373
    %p375 = scmp.eq.s32.totalorder %s27, 0
    %p376 = por %p374, %p375
    %s377 = ssub.s32 %s29, %s36
    %s378 = ssub.s32 %s28, %s40
    %s379 = sor.u32 %s377, %s378
    %p380 = scmp.eq.s32.totalorder %s379, 0
    %s382 = sadd.s32 %s381, 1
    %s383 = scalar_select %p380, %s381, %s382
    %p386 = pneg %p380
    %p387 = scmp.eq.s32.totalorder %s21, 1
    %p388 = por %p386, %p387
    %p389 = scmp.ne.s32.totalorder %s381, %s384
    %p390 = scmp.eq.s32.totalorder %s21, 0
    %p391 = por %p389, %p390
    %p392 = scmp.ne.s32.totalorder %s381, %s384
    %p393 = scmp.eq.s32.totalorder %s26, 1
    %p394 = por %p392, %p393
    %p395 = scmp.ne.s32.totalorder %s384, %s385
    %p396 = scmp.eq.s32.totalorder %s26, 0
    %p397 = por %p395, %p396
    %p398 = scmp.ne.s32.totalorder %s384, %s385
    %p399 = scmp.eq.s32.totalorder %s27, 1
    %p400 = por %p398, %p399
    %p402 = scmp.ne.s32.totalorder %s385, %s401
    %p403 = scmp.eq.s32.totalorder %s27, 0
    %p404 = por %p402, %p403
    %p405 = scmp.le.s32.totalorder 1, %s21
    %p406 = scmp.lt.s32.totalorder %s21, 3
    %p407 = pnand %p405, %p406
    %p408 = pneg %p407
    // Predicated region
    $region9: #{dilated_res_block_forward.5} parent=5 // pred_check
      _
    $region10: #{dilated_res_block_forward.5} parent=5 // pred_check_branch
      %410 = sbr.rel (%p407) target = $region12
    $region11: #{dilated_res_block_forward.5} parent=5 // pred_region
      %s411 = ssub.s32 %s21, 1
      // Predicated region
      $region13: #{dilated_res_block_forward.5} parent=11 // pred_check
        %p412 = pneg %p138
      $region14: #{dilated_res_block_forward.5} parent=11 // pred_check_branch
        %414 = sbr.rel (%p412) target = $region16
      $region15: #{dilated_res_block_forward.5} parent=11 // pred_region
        _
      $region16: #{dilated_res_block_forward.5} parent=11 // pred_fallthru
        _
      // Predicated region
      $region17: #{dilated_res_block_forward.5} parent=11 // pred_check
        %p415 = pneg %p159
      $region18: #{dilated_res_block_forward.5} parent=11 // pred_check_branch
        %417 = sbr.rel (%p415) target = $region20
      $region19: #{dilated_res_block_forward.5} parent=11 // pred_region
        _
      $region20: #{dilated_res_block_forward.5} parent=11 // pred_fallthru
        _
      // Predicated region
      $region21: #{dilated_res_block_forward.5} parent=11 // pred_check
        %p418 = pneg %p180
      $region22: #{dilated_res_block_forward.5} parent=11 // pred_check_branch
        %420 = sbr.rel (%p418) target = $region24
      $region23: #{dilated_res_block_forward.5} parent=11 // pred_region
        _
      $region24: #{dilated_res_block_forward.5} parent=11 // pred_fallthru
        _
      // Predicated region
      $region25: #{dilated_res_block_forward.5} parent=11 // pred_check
        %p421 = pneg %p201
      $region26: #{dilated_res_block_forward.5} parent=11 // pred_check_branch
        %423 = sbr.rel (%p421) target = $region28
      $region27: #{dilated_res_block_forward.5} parent=11 // pred_region
        _
      $region28: #{dilated_res_block_forward.5} parent=11 // pred_fallthru
        _
      // Predicated region
      $region29: #{dilated_res_block_forward.5} parent=11 // pred_check
        %p424 = pneg %p222
      $region30: #{dilated_res_block_forward.5} parent=11 // pred_check_branch
        %426 = sbr.rel (%p424) target = $region32
      $region31: #{dilated_res_block_forward.5} parent=11 // pred_region
        _
      $region32: #{dilated_res_block_forward.5} parent=11 // pred_fallthru
        _
      // Predicated region
      $region33: #{dilated_res_block_forward.5} parent=11 // pred_check
        %p427 = pneg %p243
      $region34: #{dilated_res_block_forward.5} parent=11 // pred_check_branch
        %429 = sbr.rel (%p427) target = $region36
      $region35: #{dilated_res_block_forward.5} parent=11 // pred_region
        _
      $region36: #{dilated_res_block_forward.5} parent=11 // pred_fallthru
        _
      // Predicated region
      $region37: #{dilated_res_block_forward.5} parent=11 // pred_check
        %p430 = pneg %p264
      $region38: #{dilated_res_block_forward.5} parent=11 // pred_check_branch
        %432 = sbr.rel (%p430) target = $region40
      $region39: #{dilated_res_block_forward.5} parent=11 // pred_region
        _
      $region40: #{dilated_res_block_forward.5} parent=11 // pred_fallthru
        _
      // Predicated region
      $region41: #{dilated_res_block_forward.5} parent=11 // pred_check
        %p433 = pneg %p285
      $region42: #{dilated_res_block_forward.5} parent=11 // pred_check_branch
        %435 = sbr.rel (%p433) target = $region44
      $region43: #{dilated_res_block_forward.5} parent=11 // pred_region
        _
      $region44: #{dilated_res_block_forward.5} parent=11 // pred_fallthru
        _
      // Predicated region
      $region45: #{dilated_res_block_forward.5} parent=11 // pred_check
        %p436 = pneg %p306
      $region46: #{dilated_res_block_forward.5} parent=11 // pred_check_branch
        %438 = sbr.rel (%p436) target = $region48
      $region47: #{dilated_res_block_forward.5} parent=11 // pred_region
        _
      $region48: #{dilated_res_block_forward.5} parent=11 // pred_fallthru
        _
      // Predicated region
      $region49: #{dilated_res_block_forward.5} parent=11 // pred_check
        %p439 = pneg %p327
      $region50: #{dilated_res_block_forward.5} parent=11 // pred_check_branch
        %441 = sbr.rel (%p439) target = $region52
      $region51: #{dilated_res_block_forward.5} parent=11 // pred_region
        _
      $region52: #{dilated_res_block_forward.5} parent=11 // pred_fallthru
        _
      // Predicated region
      $region53: #{dilated_res_block_forward.5} parent=11 // pred_check
        %p442 = pneg %p348
      $region54: #{dilated_res_block_forward.5} parent=11 // pred_check_branch
        %444 = sbr.rel (%p442) target = $region56
      $region55: #{dilated_res_block_forward.5} parent=11 // pred_region
        _
      $region56: #{dilated_res_block_forward.5} parent=11 // pred_fallthru
        _
      // Predicated region
      $region57: #{dilated_res_block_forward.5} parent=11 // pred_check
        %p445 = pneg %p369
      $region58: #{dilated_res_block_forward.5} parent=11 // pred_check_branch
        %447 = sbr.rel (%p445) target = $region60
      $region59: #{dilated_res_block_forward.5} parent=11 // pred_region
        _
      $region60: #{dilated_res_block_forward.5} parent=11 // pred_fallthru
        _
    $region12: #{dilated_res_block_forward.5} parent=5 // pred_fallthru
      _
    %p448 = scmp.lt.s32.totalorder %s21, 2
    // Predicated region
    $region61: #{dilated_res_block_forward.5} parent=5 // pred_check
      %p449 = pneg %p448
    $region62: #{dilated_res_block_forward.5} parent=5 // pred_check_branch
      %451 = sbr.rel (%p449) target = $region64
    $region63: #{dilated_res_block_forward.5} parent=5 // pred_region
      // Predicated region
      $region65: #{dilated_res_block_forward.5} parent=63 // pred_check
        %p452 = pneg %p55
      $region66: #{dilated_res_block_forward.5} parent=63 // pred_check_branch
        %454 = sbr.rel (%p452) target = $region68
      $region67: #{dilated_res_block_forward.5} parent=63 // pred_region
        %s455 = smul.u32 16, %s28
        %p456 = scmp.lt.s32.totalorder %s29, 1
        %s457 = scalar_select %p456, %s29, 1
        %p458 = scmp.lt.s32.totalorder %s455, 15
        %s459 = scalar_select %p458, %s455, 15
        %s460 = smul.addr %s457, 16
        %s461 = sadd.s32 %s459, %s460
        %s462 = smul.addr %s461, 8
        %s463 = scalar_lea.vmem %s0, %s462
        %s464 = smul.u32 16, %s28
      $region68: #{dilated_res_block_forward.5} parent=63 // pred_fallthru
        _
      // Predicated region
      $region69: #{dilated_res_block_forward.5} parent=63 // pred_check
        %p465 = pneg %p83
      $region70: #{dilated_res_block_forward.5} parent=63 // pred_check_branch
        %467 = sbr.rel (%p465) target = $region72
      $region71: #{dilated_res_block_forward.5} parent=63 // pred_region
        %s468 = smul.u32 16, %s28
        %p469 = scmp.lt.s32.totalorder %s29, 1
        %s470 = scalar_select %p469, %s29, 1
        %p471 = scmp.lt.s32.totalorder %s468, 15
        %s472 = scalar_select %p471, %s468, 15
        %s473 = smul.addr %s470, 16
        %s474 = sadd.s32 %s472, %s473
        %s475 = smul.addr %s474, 8
        %s476 = scalar_lea.vmem %s1, %s475
        %s477 = smul.u32 16, %s28
      $region72: #{dilated_res_block_forward.5} parent=63 // pred_fallthru
        _
      // Predicated region
      $region73: #{dilated_res_block_forward.5} parent=63 // pred_check
        %p478 = pneg %p111
      $region74: #{dilated_res_block_forward.5} parent=63 // pred_check_branch
        %480 = sbr.rel (%p478) target = $region76
      $region75: #{dilated_res_block_forward.5} parent=63 // pred_region
        %s481 = smul.u32 2, %s28
        %p482 = scmp.lt.s32.totalorder %s29, 1
        %s483 = scalar_select %p482, %s29, 1
        %p484 = scmp.lt.s32.totalorder %s481, 1
        %s485 = scalar_select %p484, %s481, 1
        %s486 = smul.addr %s483, 2
        %s487 = sadd.s32 %s485, %s486
        %s488 = smul.addr %s487, 8
        %s489 = scalar_lea.vmem %s2, %s488
        %s490 = smul.u32 2, %s28
      $region76: #{dilated_res_block_forward.5} parent=63 // pred_fallthru
        _
    $region64: #{dilated_res_block_forward.5} parent=5 // pred_fallthru
      _
    %p491 = scmp.le.s32.totalorder 1, %s21
    %p492 = scmp.lt.s32.totalorder %s21, 3
    %p493 = pnand %p491, %p492
    %p494 = pneg %p493
    // Predicated region
    $region77: #{dilated_res_block_forward.5} parent=5 // pred_check
      _
    $region78: #{dilated_res_block_forward.5} parent=5 // pred_check_branch
      %496 = sbr.rel (%p493) target = $region80
    $region79: #{dilated_res_block_forward.5} parent=5 // pred_region
      %s497 = ssub.s32 %s21, 1
      %s498 = smul.u32 16, %s30
      %p499 = scmp.lt.s32.totalorder %s31, 1
      %s500 = scalar_select %p499, %s31, 1
      %p501 = scmp.lt.s32.totalorder %s498, 15
      %s502 = scalar_select %p501, %s498, 15
      %s503 = smul.addr %s500, 16
      %s504 = sadd.s32 %s502, %s503
      %s505 = smul.addr %s504, 8
      %s506 = scalar_lea.vmem %s0, %s505
      %p507 = pneg %p61
      %p508 = pneg %p58
      %s509 = smul.u32 16, %s30
      %p510 = scmp.lt.s32.totalorder %s31, 1
      %s511 = scalar_select %p510, %s31, 1
      %p512 = scmp.lt.s32.totalorder %s509, 15
      %s513 = scalar_select %p512, %s509, 15
      %s514 = smul.addr %s511, 16
      %s515 = sadd.s32 %s513, %s514
      %s516 = smul.addr %s515, 8
      %s517 = scalar_lea.vmem %s1, %s516
      %p518 = pneg %p89
      %p519 = pneg %p86
      %s520 = smul.u32 2, %s30
      %p521 = scmp.lt.s32.totalorder %s31, 1
      %s522 = scalar_select %p521, %s31, 1
      %p523 = scmp.lt.s32.totalorder %s520, 1
      %s524 = scalar_select %p523, %s520, 1
      %s525 = smul.addr %s522, 2
      %s526 = sadd.s32 %s524, %s525
      %s527 = smul.addr %s526, 8
      %s528 = scalar_lea.vmem %s2, %s527
      %p529 = pneg %p117
      %p530 = pneg %p114
      %p531 = pneg %p138
      %p532 = pneg %p135
      %p533 = pneg %p159
      %p534 = pneg %p156
      %p535 = pneg %p180
      %p536 = pneg %p177
      %p537 = pneg %p201
      %p538 = pneg %p198
      %p539 = pneg %p222
      %p540 = pneg %p219
      %p541 = pneg %p243
      %p542 = pneg %p240
      %p543 = pneg %p264
      %p544 = pneg %p261
      %p545 = pneg %p285
      %p546 = pneg %p282
      %p547 = pneg %p306
      %p548 = pneg %p303
      %p549 = pneg %p327
      %p550 = pneg %p324
      %p551 = pneg %p348
      %p552 = pneg %p345
      %p553 = pneg %p369
      %p554 = pneg %p366
      %p555 = pneg %p397
      %p556 = pneg %p394
      %s557 = smul.u32 2, %s30
      %p558 = scmp.lt.s32.totalorder %s31, 1
      %s559 = scalar_select %p558, %s31, 1
      %p560 = scmp.lt.s32.totalorder %s557, 1
      %s561 = scalar_select %p560, %s557, 1
      %s562 = smul.addr %s559, 2
      %s563 = sadd.s32 %s561, %s562
      %s564 = smul.addr %s563, 8
      %s565 = scalar_lea.vmem %s15, %s564
      %s566 = smul.u32 16, %s30
      %p567 = scmp.lt.s32.totalorder %s31, 1
      %s568 = scalar_select %p567, %s31, 1
      %p569 = scmp.lt.s32.totalorder %s566, 15
      %s570 = scalar_select %p569, %s566, 15
      %s571 = smul.addr %s568, 16
      %s572 = sadd.s32 %s570, %s571
      %s573 = smul.addr %s572, 8
      %s574 = scalar_lea.vmem %s0, %s573
      %s575 = smul.u32 16, %s30
      %s576 = smul.u32 16, %s30
      %p577 = scmp.lt.s32.totalorder %s31, 1
      %s578 = scalar_select %p577, %s31, 1
      %p579 = scmp.lt.s32.totalorder %s576, 15
      %s580 = scalar_select %p579, %s576, 15
      %s581 = smul.addr %s578, 16
      %s582 = sadd.s32 %s580, %s581
      %s583 = smul.addr %s582, 8
      %s584 = scalar_lea.vmem %s1, %s583
      %s585 = smul.u32 16, %s30
      %s586 = smul.u32 2, %s30
      %p587 = scmp.lt.s32.totalorder %s31, 1
      %s588 = scalar_select %p587, %s31, 1
      %p589 = scmp.lt.s32.totalorder %s586, 1
      %s590 = scalar_select %p589, %s586, 1
      %s591 = smul.addr %s588, 2
      %s592 = sadd.s32 %s590, %s591
      %s593 = smul.addr %s592, 8
      %s594 = scalar_lea.vmem %s2, %s593
      %s595 = smul.u32 2, %s30
      %s596 = smul.u32 2, %s30
      %p597 = scmp.lt.s32.totalorder %s31, 1
      %s598 = scalar_select %p597, %s31, 1
      %p599 = scmp.lt.s32.totalorder %s596, 1
      %s600 = scalar_select %p599, %s596, 1
      %s601 = smul.addr %s598, 2
      %s602 = sadd.s32 %s600, %s601
      %s603 = smul.addr %s602, 8
      %s604 = scalar_lea.vmem %s15, %s603
      %s605 = smul.u32 2, %s30
      %v606 = vld [vmem:[%s574] sm:$0xff]
      %v607 = vld [vmem:[%s574 + $0x8] sm:$0xff]
      %v608 = vld [vmem:[%s574 + $0x10] sm:$0xff]
      %v609 = vld [vmem:[%s574 + $0x18] sm:$0xff]
      %v610 = vld [vmem:[%s574 + $0x20] sm:$0xff]
      %v611 = vld [vmem:[%s574 + $0x28] sm:$0xff]
      %v612 = vld [vmem:[%s574 + $0x30] sm:$0xff]
      %v613 = vld [vmem:[%s574 + $0x38] sm:$0xff]
      %v614 = vld [vmem:[%s574 + $0x40] sm:$0xff]
      %v615 = vld [vmem:[%s574 + $0x48] sm:$0xff]
      %v616 = vld [vmem:[%s574 + $0x50] sm:$0xff]
      %v617 = vld [vmem:[%s574 + $0x58] sm:$0xff]
      %v618 = vld [vmem:[%s574 + $0x60] sm:$0xff]
      %v619 = vld [vmem:[%s574 + $0x68] sm:$0xff]
      %v620 = vld [vmem:[%s574 + $0x70] sm:$0xff]
      %v621 = vld [vmem:[%s574 + $0x78] sm:$0xff]
      %v622 = vld [vmem:[%s584] sm:$0xff]
      %v623 = vld [vmem:[%s584 + $0x8] sm:$0xff]
      %v624 = vld [vmem:[%s584 + $0x10] sm:$0xff]
      %v625 = vld [vmem:[%s584 + $0x18] sm:$0xff]
      %v626 = vld [vmem:[%s584 + $0x20] sm:$0xff]
      %v627 = vld [vmem:[%s584 + $0x28] sm:$0xff]
      %v628 = vld [vmem:[%s584 + $0x30] sm:$0xff]
      %v629 = vld [vmem:[%s584 + $0x38] sm:$0xff]
      %v630 = vld [vmem:[%s584 + $0x40] sm:$0xff]
      %v631 = vld [vmem:[%s584 + $0x48] sm:$0xff]
      %v632 = vld [vmem:[%s584 + $0x50] sm:$0xff]
      %v633 = vld [vmem:[%s584 + $0x58] sm:$0xff]
      %v634 = vld [vmem:[%s584 + $0x60] sm:$0xff]
      %v635 = vld [vmem:[%s584 + $0x68] sm:$0xff]
      %v636 = vld [vmem:[%s584 + $0x70] sm:$0xff]
      %v637 = vld [vmem:[%s584 + $0x78] sm:$0xff]
      %v638 = vld [vmem:[%s594] sm:$0xff]
      %v639 = vld [vmem:[%s594 + $0x8] sm:$0xff]
      %v642 = vcombine.high %v638, %v638
      %v644 = vunpack.c.l.s4 1966171168
      %v645 = vunpack.c.0.s8 %v644
      %v646 = vlaneseq
      %v647 = vshrl.u32 %v646, 7
      %v648 = vsub.s32 %v645, %v647
      %v649 = vrot.slane %v638, %v648
      %v651 = vunpack.c.l.s4 1966171168
      %v652 = vunpack.c.0.s8 %v651
      %v653 = vlaneseq
      %v654 = vshrl.u32 %v653, 7
      %v655 = vsub.s32 %v652, %v654
      %v656 = vrot.slane %v642, %v655
      %v657 = vcombine.high %v649, %v649
      %v658 = vcombine.high %v656, %v656
      %v660 = vunpack.c.l.s4 1966171168
      %v661 = vunpack.c.0.s8 %v660
      %v662 = vlaneseq
      %v663 = vshrl.u32 %v662, 7
      %v664 = vsub.s32 %v661, %v663
      %v665 = vrot.slane %v649, %v664
      %v667 = vunpack.c.l.s4 1966171168
      %v668 = vunpack.c.0.s8 %v667
      %v669 = vlaneseq
      %v670 = vshrl.u32 %v669, 7
      %v671 = vsub.s32 %v668, %v670
      %v672 = vrot.slane %v656, %v671
      %v674 = vunpack.c.l.s4 1966171168
      %v675 = vunpack.c.0.s8 %v674
      %v676 = vlaneseq
      %v677 = vshrl.u32 %v676, 7
      %v678 = vsub.s32 %v675, %v677
      %v679 = vrot.slane %v657, %v678
      %v681 = vunpack.c.l.s4 1966171168
      %v682 = vunpack.c.0.s8 %v681
      %v683 = vlaneseq
      %v684 = vshrl.u32 %v683, 7
      %v685 = vsub.s32 %v682, %v684
      %v686 = vrot.slane %v658, %v685
      %v687 = vcombine.high %v665, %v665
      %v688 = vcombine.high %v672, %v672
      %v689 = vcombine.high %v679, %v679
      %v690 = vcombine.high %v686, %v686
      %v691 = vcombine.high %v639, %v639
      %v693 = vunpack.c.l.s4 1966171168
      %v694 = vunpack.c.0.s8 %v693
      %v695 = vlaneseq
      %v696 = vshrl.u32 %v695, 7
      %v697 = vsub.s32 %v694, %v696
      %v698 = vrot.slane %v639, %v697
      %v700 = vunpack.c.l.s4 1966171168
      %v701 = vunpack.c.0.s8 %v700
      %v702 = vlaneseq
      %v703 = vshrl.u32 %v702, 7
      %v704 = vsub.s32 %v701, %v703
      %v705 = vrot.slane %v691, %v704
      %v706 = vcombine.high %v698, %v698
      %v707 = vcombine.high %v705, %v705
      %v709 = vunpack.c.l.s4 1966171168
      %v710 = vunpack.c.0.s8 %v709
      %v711 = vlaneseq
      %v712 = vshrl.u32 %v711, 7
      %v713 = vsub.s32 %v710, %v712
      %v714 = vrot.slane %v698, %v713
      %v716 = vunpack.c.l.s4 1966171168
      %v717 = vunpack.c.0.s8 %v716
      %v718 = vlaneseq
      %v719 = vshrl.u32 %v718, 7
      %v720 = vsub.s32 %v717, %v719
      %v721 = vrot.slane %v705, %v720
      %v723 = vunpack.c.l.s4 1966171168
      %v724 = vunpack.c.0.s8 %v723
      %v725 = vlaneseq
      %v726 = vshrl.u32 %v725, 7
      %v727 = vsub.s32 %v724, %v726
      %v728 = vrot.slane %v706, %v727
      %v730 = vunpack.c.l.s4 1966171168
      %v731 = vunpack.c.0.s8 %v730
      %v732 = vlaneseq
      %v733 = vshrl.u32 %v732, 7
      %v734 = vsub.s32 %v731, %v733
      %v735 = vrot.slane %v707, %v734
      %v736 = vcombine.high %v714, %v714
      %v737 = vcombine.high %v721, %v721
      %v738 = vcombine.high %v728, %v728
      %v739 = vcombine.high %v735, %v735
      %v740 = vlaneseq
      %v741 = vshrl.u32 %v740, 7
      %v742 = vsub.s32 0, %v741
      %v743 = vrot.slane %v665, %v742
      %v744 = vlaneseq
      %v745 = vshrl.u32 %v744, 7
      %v746 = vsub.s32 0, %v745
      %v747 = vrot.slane %v679, %v746
      %v748 = vlaneseq
      %v749 = vshrl.u32 %v748, 7
      %v750 = vsub.s32 0, %v749
      %v751 = vrot.slane %v687, %v750
      %v752 = vlaneseq
      %v753 = vshrl.u32 %v752, 7
      %v754 = vsub.s32 0, %v753
      %v755 = vrot.slane %v689, %v754
      %v756 = vlaneseq
      %v757 = vshrl.u32 %v756, 7
      %v758 = vsub.s32 0, %v757
      %v759 = vrot.slane %v672, %v758
      %v760 = vlaneseq
      %v761 = vshrl.u32 %v760, 7
      %v762 = vsub.s32 0, %v761
      %v763 = vrot.slane %v686, %v762
      %v764 = vlaneseq
      %v765 = vshrl.u32 %v764, 7
      %v766 = vsub.s32 0, %v765
      %v767 = vrot.slane %v688, %v766
      %v768 = vlaneseq
      %v769 = vshrl.u32 %v768, 7
      %v770 = vsub.s32 0, %v769
      %v771 = vrot.slane %v690, %v770
      %v772 = vlaneseq
      %v773 = vshrl.u32 %v772, 7
      %v774 = vsub.s32 0, %v773
      %v775 = vrot.slane %v714, %v774
      %v776 = vlaneseq
      %v777 = vshrl.u32 %v776, 7
      %v778 = vsub.s32 0, %v777
      %v779 = vrot.slane %v728, %v778
      %v780 = vlaneseq
      %v781 = vshrl.u32 %v780, 7
      %v782 = vsub.s32 0, %v781
      %v783 = vrot.slane %v736, %v782
      %v784 = vlaneseq
      %v785 = vshrl.u32 %v784, 7
      %v786 = vsub.s32 0, %v785
      %v787 = vrot.slane %v738, %v786
      %v788 = vlaneseq
      %v789 = vshrl.u32 %v788, 7
      %v790 = vsub.s32 0, %v789
      %v791 = vrot.slane %v721, %v790
      %v792 = vlaneseq
      %v793 = vshrl.u32 %v792, 7
      %v794 = vsub.s32 0, %v793
      %v795 = vrot.slane %v735, %v794
      %v796 = vlaneseq
      %v797 = vshrl.u32 %v796, 7
      %v798 = vsub.s32 0, %v797
      %v799 = vrot.slane %v737, %v798
      %v800 = vlaneseq
      %v801 = vshrl.u32 %v800, 7
      %v802 = vsub.s32 0, %v801
      %v803 = vrot.slane %v739, %v802
      %v820 = vsub.f32 %v743, %v622
      %v821 = vsub.f32 %v747, %v623
      %v822 = vsub.f32 %v751, %v624
      %v823 = vsub.f32 %v755, %v625
      %v824 = vsub.f32 %v759, %v626
      %v825 = vsub.f32 %v763, %v627
      %v826 = vsub.f32 %v767, %v628
      %v827 = vsub.f32 %v771, %v629
      %v828 = vsub.f32 %v775, %v630
      %v829 = vsub.f32 %v779, %v631
      %v830 = vsub.f32 %v783, %v632
      %v831 = vsub.f32 %v787, %v633
      %v832 = vsub.f32 %v791, %v634
      %v833 = vsub.f32 %v795, %v635
      %v834 = vsub.f32 %v799, %v636
      %v835 = vsub.f32 %v803, %v637
      %v836 = vmul.f32 %v820, %v820
      %v837 = vmul.f32 %v821, %v821
      %v838 = vmul.f32 %v822, %v822
      %v839 = vmul.f32 %v823, %v823
      %v840 = vmul.f32 %v824, %v824
      %v841 = vmul.f32 %v825, %v825
      %v842 = vmul.f32 %v826, %v826
      %v843 = vmul.f32 %v827, %v827
      %v844 = vmul.f32 %v828, %v828
      %v845 = vmul.f32 %v829, %v829
      %v846 = vmul.f32 %v830, %v830
      %v847 = vmul.f32 %v831, %v831
      %v848 = vmul.f32 %v832, %v832
      %v849 = vmul.f32 %v833, %v833
      %v850 = vmul.f32 %v834, %v834
      %v851 = vmul.f32 %v835, %v835
      %vm852 = vcmask 23552
      %v853 = vsel %vm852, %v836, 0.0
      %854 = vadd.xlane.f32.xlu0 %v853
      %v855 = vpop.xlane.xlu0 %854
      %v856 = vsel %vm852, %v837, 0.0
      %857 = vadd.xlane.f32.xlu0 %v856
      %v858 = vpop.xlane.xlu0 %857
      %v859 = vsel %vm852, %v838, 0.0
      %860 = vadd.xlane.f32.xlu0 %v859
      %v861 = vpop.xlane.xlu0 %860
      %v862 = vsel %vm852, %v839, 0.0
      %863 = vadd.xlane.f32.xlu0 %v862
      %v864 = vpop.xlane.xlu0 %863
      %v865 = vsel %vm852, %v840, 0.0
      %866 = vadd.xlane.f32.xlu0 %v865
      %v867 = vpop.xlane.xlu0 %866
      %v868 = vsel %vm852, %v841, 0.0
      %869 = vadd.xlane.f32.xlu0 %v868
      %v870 = vpop.xlane.xlu0 %869
      %v871 = vsel %vm852, %v842, 0.0
      %872 = vadd.xlane.f32.xlu0 %v871
      %v873 = vpop.xlane.xlu0 %872
      %v874 = vsel %vm852, %v843, 0.0
      %875 = vadd.xlane.f32.xlu0 %v874
      %v876 = vpop.xlane.xlu0 %875
      %v877 = vsel %vm852, %v844, 0.0
      %878 = vadd.xlane.f32.xlu0 %v877
      %v879 = vpop.xlane.xlu0 %878
      %v880 = vsel %vm852, %v845, 0.0
      %881 = vadd.xlane.f32.xlu0 %v880
      %v882 = vpop.xlane.xlu0 %881
      %v883 = vsel %vm852, %v846, 0.0
      %884 = vadd.xlane.f32.xlu0 %v883
      %v885 = vpop.xlane.xlu0 %884
      %v886 = vsel %vm852, %v847, 0.0
      %887 = vadd.xlane.f32.xlu0 %v886
      %v888 = vpop.xlane.xlu0 %887
      %v889 = vsel %vm852, %v848, 0.0
      %890 = vadd.xlane.f32.xlu0 %v889
      %v891 = vpop.xlane.xlu0 %890
      %v892 = vsel %vm852, %v849, 0.0
      %893 = vadd.xlane.f32.xlu0 %v892
      %v894 = vpop.xlane.xlu0 %893
      %v895 = vsel %vm852, %v850, 0.0
      %896 = vadd.xlane.f32.xlu0 %v895
      %v897 = vpop.xlane.xlu0 %896
      %v898 = vsel %vm852, %v851, 0.0
      %899 = vadd.xlane.f32.xlu0 %v898
      %v900 = vpop.xlane.xlu0 %899
      %v901 = vrsqrt.pop %v855
      %v902 = vmul.f32 %v855, %v901
      %vm903 = vcmp.eq.f32.partialorder %v855, inf
      %v904 = vsel %vm903, %v855, %v902
      %vm905 = vcmp.eq.f32.partialorder %v855, 0.0
      %v906 = vand.u32 %v855, 2147483648
      %v907 = vsel %vm905, %v906, %v904
      %v908 = vrsqrt.pop %v858
      %v909 = vmul.f32 %v858, %v908
      %vm910 = vcmp.eq.f32.partialorder %v858, inf
      %v911 = vsel %vm910, %v858, %v909
      %vm912 = vcmp.eq.f32.partialorder %v858, 0.0
      %v913 = vand.u32 %v858, 2147483648
      %v914 = vsel %vm912, %v913, %v911
      %v915 = vrsqrt.pop %v861
      %v916 = vmul.f32 %v861, %v915
      %vm917 = vcmp.eq.f32.partialorder %v861, inf
      %v918 = vsel %vm917, %v861, %v916
      %vm919 = vcmp.eq.f32.partialorder %v861, 0.0
      %v920 = vand.u32 %v861, 2147483648
      %v921 = vsel %vm919, %v920, %v918
      %v922 = vrsqrt.pop %v864
      %v923 = vmul.f32 %v864, %v922
      %vm924 = vcmp.eq.f32.partialorder %v864, inf
      %v925 = vsel %vm924, %v864, %v923
      %vm926 = vcmp.eq.f32.partialorder %v864, 0.0
      %v927 = vand.u32 %v864, 2147483648
      %v928 = vsel %vm926, %v927, %v925
      %v929 = vrsqrt.pop %v867
      %v930 = vmul.f32 %v867, %v929
      %vm931 = vcmp.eq.f32.partialorder %v867, inf
      %v932 = vsel %vm931, %v867, %v930
      %vm933 = vcmp.eq.f32.partialorder %v867, 0.0
      %v934 = vand.u32 %v867, 2147483648
      %v935 = vsel %vm933, %v934, %v932
      %v936 = vrsqrt.pop %v870
      %v937 = vmul.f32 %v870, %v936
      %vm938 = vcmp.eq.f32.partialorder %v870, inf
      %v939 = vsel %vm938, %v870, %v937
      %vm940 = vcmp.eq.f32.partialorder %v870, 0.0
      %v941 = vand.u32 %v870, 2147483648
      %v942 = vsel %vm940, %v941, %v939
      %v943 = vrsqrt.pop %v873
      %v944 = vmul.f32 %v873, %v943
      %vm945 = vcmp.eq.f32.partialorder %v873, inf
      %v946 = vsel %vm945, %v873, %v944
      %vm947 = vcmp.eq.f32.partialorder %v873, 0.0
      %v948 = vand.u32 %v873, 2147483648
      %v949 = vsel %vm947, %v948, %v946
      %v950 = vrsqrt.pop %v876
      %v951 = vmul.f32 %v876, %v950
      %vm952 = vcmp.eq.f32.partialorder %v876, inf
      %v953 = vsel %vm952, %v876, %v951
      %vm954 = vcmp.eq.f32.partialorder %v876, 0.0
      %v955 = vand.u32 %v876, 2147483648
      %v956 = vsel %vm954, %v955, %v953
      %v957 = vrsqrt.pop %v879
      %v958 = vmul.f32 %v879, %v957
      %vm959 = vcmp.eq.f32.partialorder %v879, inf
      %v960 = vsel %vm959, %v879, %v958
      %vm961 = vcmp.eq.f32.partialorder %v879, 0.0
      %v962 = vand.u32 %v879, 2147483648
      %v963 = vsel %vm961, %v962, %v960
      %v964 = vrsqrt.pop %v882
      %v965 = vmul.f32 %v882, %v964
      %vm966 = vcmp.eq.f32.partialorder %v882, inf
      %v967 = vsel %vm966, %v882, %v965
      %vm968 = vcmp.eq.f32.partialorder %v882, 0.0
      %v969 = vand.u32 %v882, 2147483648
      %v970 = vsel %vm968, %v969, %v967
      %v971 = vrsqrt.pop %v885
      %v972 = vmul.f32 %v885, %v971
      %vm973 = vcmp.eq.f32.partialorder %v885, inf
      %v974 = vsel %vm973, %v885, %v972
      %vm975 = vcmp.eq.f32.partialorder %v885, 0.0
      %v976 = vand.u32 %v885, 2147483648
      %v977 = vsel %vm975, %v976, %v974
      %v978 = vrsqrt.pop %v888
      %v979 = vmul.f32 %v888, %v978
      %vm980 = vcmp.eq.f32.partialorder %v888, inf
      %v981 = vsel %vm980, %v888, %v979
      %vm982 = vcmp.eq.f32.partialorder %v888, 0.0
      %v983 = vand.u32 %v888, 2147483648
      %v984 = vsel %vm982, %v983, %v981
      %v985 = vrsqrt.pop %v891
      %v986 = vmul.f32 %v891, %v985
      %vm987 = vcmp.eq.f32.partialorder %v891, inf
      %v988 = vsel %vm987, %v891, %v986
      %vm989 = vcmp.eq.f32.partialorder %v891, 0.0
      %v990 = vand.u32 %v891, 2147483648
      %v991 = vsel %vm989, %v990, %v988
      %v992 = vrsqrt.pop %v894
      %v993 = vmul.f32 %v894, %v992
      %vm994 = vcmp.eq.f32.partialorder %v894, inf
      %v995 = vsel %vm994, %v894, %v993
      %vm996 = vcmp.eq.f32.partialorder %v894, 0.0
      %v997 = vand.u32 %v894, 2147483648
      %v998 = vsel %vm996, %v997, %v995
      %v999 = vrsqrt.pop %v897
      %v1000 = vmul.f32 %v897, %v999
      %vm1001 = vcmp.eq.f32.partialorder %v897, inf
      %v1002 = vsel %vm1001, %v897, %v1000
      %vm1003 = vcmp.eq.f32.partialorder %v897, 0.0
      %v1004 = vand.u32 %v897, 2147483648
      %v1005 = vsel %vm1003, %v1004, %v1002
      %v1006 = vrsqrt.pop %v900
      %v1007 = vmul.f32 %v900, %v1006
      %vm1008 = vcmp.eq.f32.partialorder %v900, inf
      %v1009 = vsel %vm1008, %v900, %v1007
      %vm1010 = vcmp.eq.f32.partialorder %v900, 0.0
      %v1011 = vand.u32 %v900, 2147483648
      %v1012 = vsel %vm1010, %v1011, %v1009
      %v1013 = vld [vmem:[%s3] sm:$0x1]
      %v1015 = vlaneseq
      %v1016 = vshrl.u32 %v1015, 7
      %v1017 = vsub.s32 0, %v1016
      %v1018 = vrot.slane %v1013, %v1017
      %v1020 = vmul.f32 %v907, %v1018
      %v1021 = vmul.f32 %v914, %v1018
      %v1022 = vmul.f32 %v921, %v1018
      %v1023 = vmul.f32 %v928, %v1018
      %v1024 = vmul.f32 %v935, %v1018
      %v1025 = vmul.f32 %v942, %v1018
      %v1026 = vmul.f32 %v949, %v1018
      %v1027 = vmul.f32 %v956, %v1018
      %v1028 = vmul.f32 %v963, %v1018
      %v1029 = vmul.f32 %v970, %v1018
      %v1030 = vmul.f32 %v977, %v1018
      %v1031 = vmul.f32 %v984, %v1018
      %v1032 = vmul.f32 %v991, %v1018
      %v1033 = vmul.f32 %v998, %v1018
      %v1034 = vmul.f32 %v1005, %v1018
      %v1035 = vmul.f32 %v1012, %v1018
      %v1036 = vld [vmem:[%s4] sm:$0x7]
      %v1038 = vsel %vm852, %v820, 0
      %v1041 = vsel %vm852, %v821, 0
      %v1044 = vsel %vm852, %v822, 0
      %v1047 = vsel %vm852, %v823, 0
      %v1050 = vsel %vm852, %v824, 0
      %v1053 = vsel %vm852, %v825, 0
      %v1056 = vsel %vm852, %v826, 0
      %v1059 = vsel %vm852, %v827, 0
      %v1062 = vsel %vm852, %v828, 0
      %v1065 = vsel %vm852, %v829, 0
      %v1068 = vsel %vm852, %v830, 0
      %v1071 = vsel %vm852, %v831, 0
      %v1074 = vsel %vm852, %v832, 0
      %v1077 = vsel %vm852, %v833, 0
      %v1080 = vsel %vm852, %v834, 0
      %v1083 = vsel %vm852, %v835, 0
      %vm1085 = vcmask 1042432
      %v1087 = vsel %vm1085, %v1036, 0
      %1089 = vmatprep.subr.mxu0 0.0
      %1090 = vmatpush1.msra.mxu0 %v1087
      %1091 = vmatprep.subr.mxu0 0.0
      %1092 = vmatpush1.msra.mxu0 0.0
      %1093 = vmatprep.subr.mxu0 0.0
      %1094 = vmatpush1.msra.mxu0 0.0
      %1095 = vmatprep.subr.mxu0 0.0
      %1096 = vmatpush1.msra.mxu0 0.0
      %1097 = vmatprep.subr.mxu0 0.0
      %1098 = vmatpush1.msra.mxu0 0.0
      %1099 = vmatprep.subr.mxu0 0.0
      %1100 = vmatpush1.msra.mxu0 0.0
      %1101 = vmatprep.subr.mxu0 0.0
      %1102 = vmatpush1.msra.mxu0 0.0
      %1103 = vmatprep.subr.mxu0 0.0
      %1104 = vmatpush1.msra.mxu0 0.0
      %1105 = vmatprep.subr.mxu0 0.0
      %1106 = vmatpush1.msra.mxu0 0.0
      %1107 = vmatprep.subr.mxu0 0.0
      %1108 = vmatpush1.msra.mxu0 0.0
      %1109 = vmatprep.subr.mxu0 0.0
      %1110 = vmatpush1.msra.mxu0 0.0
      %1111 = vmatprep.subr.mxu0 0.0
      %1112 = vmatpush1.msra.mxu0 0.0
      %1113 = vmatprep.subr.mxu0 0.0
      %1114 = vmatpush1.msra.mxu0 0.0
      %1115 = vmatprep.subr.mxu0 0.0
      %1116 = vmatpush1.msra.mxu0 0.0
      %1117 = vmatprep.subr.mxu0 0.0
      %1118 = vmatpush1.msra.mxu0 0.0
      %1119 = vmatprep.subr.mxu0 0.0
      %1120 = vmatpush1.msra.mxu0 0.0
      %1121 = vmatprep.subr.mxu0 0.0
      %1122 = vmatpush1.msra.mxu0 0.0
      %1123 = vmatprep.subr.mxu0 0.0
      %1124 = vmatpush1.msra.mxu0 0.0
      %1125 = vmatprep.subr.mxu0 0.0
      %1126 = vmatpush1.msra.mxu0 0.0
      %1127 = vmatprep.subr.mxu0 0.0
      %1128 = vmatpush1.msra.mxu0 0.0
      %1129 = vmatprep.subr.mxu0 0.0
      %1130 = vmatpush1.msra.mxu0 0.0
      %1131 = vmatprep.subr.mxu0 0.0
      %1132 = vmatpush1.msra.mxu0 0.0
      %1133 = vmatprep.subr.mxu0 0.0
      %1134 = vmatpush1.msra.mxu0 0.0
      %1135 = vmatprep.subr.mxu0 0.0
      %1136 = vmatpush1.msra.mxu0 0.0
      %1137 = vmatprep.subr.mxu0 0.0
      %1138 = vmatpush1.msra.mxu0 0.0
      %1139 = vmatprep.subr.mxu0 0.0
      %1140 = vmatpush1.msra.mxu0 0.0
      %1141 = vmatprep.subr.mxu0 0.0
      %1142 = vmatpush1.msra.mxu0 0.0
      %1143 = vmatprep.subr.mxu0 0.0
      %1144 = vmatpush1.msra.mxu0 0.0
      %1145 = vmatprep.subr.mxu0 0.0
      %1146 = vmatpush1.msra.mxu0 0.0
      %1147 = vmatprep.subr.mxu0 0.0
      %1148 = vmatpush1.msra.mxu0 0.0
      %1149 = vmatprep.subr.mxu0 0.0
      %1150 = vmatpush1.msra.mxu0 0.0
      %1151 = vmatprep.subr.mxu0 0.0
      %1152 = vmatpush1.msra.mxu0 0.0
      %1153 = vmatprep.mubr.f32.mxu0 0.0
      %1154 = vmatmul.mubr.f32.gmra.mrb[0].mxu0 %v1038
      %v1155 = vpop.f32.mrb[0].mxu0
      %v1156 = vadd.f32 0.0, %v1155
      %v1157 = vpop.f32.mrb[0].mxu0
      %1158 = vmatprep.mubr.f32.mxu0 0.0
      %1159 = vmatmul.mubr.f32.gmra.mrb[0].mxu0 %v1041
      %v1160 = vpop.f32.mrb[0].mxu0
      %v1161 = vadd.f32 0.0, %v1160
      %v1162 = vpop.f32.mrb[0].mxu0
      %1163 = vmatprep.mubr.f32.mxu0 0.0
      %1164 = vmatmul.mubr.f32.gmra.mrb[0].mxu0 %v1044
      %v1165 = vpop.f32.mrb[0].mxu0
      %v1166 = vadd.f32 0.0, %v1165
      %v1167 = vpop.f32.mrb[0].mxu0
      %1168 = vmatprep.mubr.f32.mxu0 0.0
      %1169 = vmatmul.mubr.f32.gmra.mrb[0].mxu0 %v1047
      %v1170 = vpop.f32.mrb[0].mxu0
      %v1171 = vadd.f32 0.0, %v1170
      %v1172 = vpop.f32.mrb[0].mxu0
      %1173 = vmatprep.mubr.f32.mxu0 0.0
      %1174 = vmatmul.mubr.f32.gmra.mrb[0].mxu0 %v1050
      %v1175 = vpop.f32.mrb[0].mxu0
      %v1176 = vadd.f32 0.0, %v1175
      %v1177 = vpop.f32.mrb[0].mxu0
      %1178 = vmatprep.mubr.f32.mxu0 0.0
      %1179 = vmatmul.mubr.f32.gmra.mrb[0].mxu0 %v1053
      %v1180 = vpop.f32.mrb[0].mxu0
      %v1181 = vadd.f32 0.0, %v1180
      %v1182 = vpop.f32.mrb[0].mxu0
      %1183 = vmatprep.mubr.f32.mxu0 0.0
      %1184 = vmatmul.mubr.f32.gmra.mrb[0].mxu0 %v1056
      %v1185 = vpop.f32.mrb[0].mxu0
      %v1186 = vadd.f32 0.0, %v1185
      %v1187 = vpop.f32.mrb[0].mxu0
      %1188 = vmatprep.mubr.f32.mxu0 0.0
      %1189 = vmatmul.mubr.f32.gmra.mrb[0].mxu0 %v1059
      %v1190 = vpop.f32.mrb[0].mxu0
      %v1191 = vadd.f32 0.0, %v1190
      %v1192 = vpop.f32.mrb[0].mxu0
      %1193 = vmatprep.mubr.f32.mxu0 0.0
      %1194 = vmatmul.mubr.f32.gmra.mrb[0].mxu0 %v1062
      %v1195 = vpop.f32.mrb[0].mxu0
      %v1196 = vadd.f32 0.0, %v1195
      %v1197 = vpop.f32.mrb[0].mxu0
      %1198 = vmatprep.mubr.f32.mxu0 0.0
      %1199 = vmatmul.mubr.f32.gmra.mrb[0].mxu0 %v1065
      %v1200 = vpop.f32.mrb[0].mxu0
      %v1201 = vadd.f32 0.0, %v1200
      %v1202 = vpop.f32.mrb[0].mxu0
      %1203 = vmatprep.mubr.f32.mxu0 0.0
      %1204 = vmatmul.mubr.f32.gmra.mrb[0].mxu0 %v1068
      %v1205 = vpop.f32.mrb[0].mxu0
      %v1206 = vadd.f32 0.0, %v1205
      %v1207 = vpop.f32.mrb[0].mxu0
      %1208 = vmatprep.mubr.f32.mxu0 0.0
      %1209 = vmatmul.mubr.f32.gmra.mrb[0].mxu0 %v1071
      %v1210 = vpop.f32.mrb[0].mxu0
      %v1211 = vadd.f32 0.0, %v1210
      %v1212 = vpop.f32.mrb[0].mxu0
      %1213 = vmatprep.mubr.f32.mxu0 0.0
      %1214 = vmatmul.mubr.f32.gmra.mrb[0].mxu0 %v1074
      %v1215 = vpop.f32.mrb[0].mxu0
      %v1216 = vadd.f32 0.0, %v1215
      %v1217 = vpop.f32.mrb[0].mxu0
      %1218 = vmatprep.mubr.f32.mxu0 0.0
      %1219 = vmatmul.mubr.f32.gmra.mrb[0].mxu0 %v1077
      %v1220 = vpop.f32.mrb[0].mxu0
      %v1221 = vadd.f32 0.0, %v1220
      %v1222 = vpop.f32.mrb[0].mxu0
      %1223 = vmatprep.mubr.f32.mxu0 0.0
      %1224 = vmatmul.mubr.f32.gmra.mrb[0].mxu0 %v1080
      %v1225 = vpop.f32.mrb[0].mxu0
      %v1226 = vadd.f32 0.0, %v1225
      %v1227 = vpop.f32.mrb[0].mxu0
      %1228 = vmatprep.mubr.f32.mxu0 0.0
      %1229 = vmatmul.mubr.f32.gmra.mrb[0].mxu0 %v1083
      %v1230 = vpop.f32.mrb[0].mxu0
      %v1231 = vadd.f32 0.0, %v1230
      %v1232 = vpop.f32.mrb[0].mxu0
      %1233 = vdwg.mxu0
      %v1234 = vadd.f32 %v1020, %v1156
      %v1235 = vadd.f32 %v1021, %v1161
      %v1236 = vadd.f32 %v1022, %v1166
      %v1237 = vadd.f32 %v1023, %v1171
      %v1238 = vadd.f32 %v1024, %v1176
      %v1239 = vadd.f32 %v1025, %v1181
      %v1240 = vadd.f32 %v1026, %v1186
      %v1241 = vadd.f32 %v1027, %v1191
      %v1242 = vadd.f32 %v1028, %v1196
      %v1243 = vadd.f32 %v1029, %v1201
      %v1244 = vadd.f32 %v1030, %v1206
      %v1245 = vadd.f32 %v1031, %v1211
      %v1246 = vadd.f32 %v1032, %v1216
      %v1247 = vadd.f32 %v1033, %v1221
      %v1248 = vadd.f32 %v1034, %v1226
      %v1249 = vadd.f32 %v1035, %v1231
      %v1250 = vld [vmem:[%s5] sm:$0x7]
      %v1251 = vsel %vm852, %v743, 0
      %v1253 = vsel %vm852, %v747, 0
      %v1255 = vsel %vm852, %v751, 0
      %v1257 = vsel %vm852, %v755, 0
      %v1259 = vsel %vm852, %v759, 0
      %v1261 = vsel %vm852, %v763, 0
      %v1263 = vsel %vm852, %v767, 0
      %v1265 = vsel %vm852, %v771, 0
      %v1267 = vsel %vm852, %v775, 0
      %v1269 = vsel %vm852, %v779, 0
      %v1271 = vsel %vm852, %v783, 0
      %v1273 = vsel %vm852, %v787, 0
      %v1275 = vsel %vm852, %v791, 0
      %v1277 = vsel %vm852, %v795, 0
      %v1279 = vsel %vm852, %v799, 0
      %v1281 = vsel %vm852, %v803, 0
      %v1284 = vsel %vm1085, %v1250, 0
      %1286 = vmatprep.subr.mxu0 0.0
      %1287 = vmatpush1.msra.mxu0 %v1284
      %1288 = vmatprep.subr.mxu0 0.0
      %1289 = vmatpush1.msra.mxu0 0.0
      %1290 = vmatprep.subr.mxu0 0.0
      %1291 = vmatpush1.msra.mxu0 0.0
      %1292 = vmatprep.subr.mxu0 0.0
      %1293 = vmatpush1.msra.mxu0 0.0
      %1294 = vmatprep.subr.mxu0 0.0
      %1295 = vmatpush1.msra.mxu0 0.0
      %1296 = vmatprep.subr.mxu0 0.0
      %1297 = vmatpush1.msra.mxu0 0.0
      %1298 = vmatprep.subr.mxu0 0.0
      %1299 = vmatpush1.msra.mxu0 0.0
      %1300 = vmatprep.subr.mxu0 0.0
      %1301 = vmatpush1.msra.mxu0 0.0
      %1302 = vmatprep.subr.mxu0 0.0
      %1303 = vmatpush1.msra.mxu0 0.0
      %1304 = vmatprep.subr.mxu0 0.0
      %1305 = vmatpush1.msra.mxu0 0.0
      %1306 = vmatprep.subr.mxu0 0.0
      %1307 = vmatpush1.msra.mxu0 0.0
      %1308 = vmatprep.subr.mxu0 0.0
      %1309 = vmatpush1.msra.mxu0 0.0
      %1310 = vmatprep.subr.mxu0 0.0
      %1311 = vmatpush1.msra.mxu0 0.0
      %1312 = vmatprep.subr.mxu0 0.0
      %1313 = vmatpush1.msra.mxu0 0.0
      %1314 = vmatprep.subr.mxu0 0.0
      %1315 = vmatpush1.msra.mxu0 0.0
      %1316 = vmatprep.subr.mxu0 0.0
      %1317 = vmatpush1.msra.mxu0 0.0
      %1318 = vmatprep.subr.mxu0 0.0
      %1319 = vmatpush1.msra.mxu0 0.0
      %1320 = vmatprep.subr.mxu0 0.0
      %1321 = vmatpush1.msra.mxu0 0.0
      %1322 = vmatprep.subr.mxu0 0.0
      %1323 = vmatpush1.msra.mxu0 0.0
      %1324 = vmatprep.subr.mxu0 0.0
      %1325 = vmatpush1.msra.mxu0 0.0
      %1326 = vmatprep.subr.mxu0 0.0
      %1327 = vmatpush1.msra.mxu0 0.0
      %1328 = vmatprep.subr.mxu0 0.0
      %1329 = vmatpush1.msra.mxu0 0.0
      %1330 = vmatprep.subr.mxu0 0.0
      %1331 = vmatpush1.msra.mxu0 0.0
      %1332 = vmatprep.subr.mxu0 0.0
      %1333 = vmatpush1.msra.mxu0 0.0
      %1334 = vmatprep.subr.mxu0 0.0
      %1335 = vmatpush1.msra.mxu0 0.0
      %1336 = vmatprep.subr.mxu0 0.0
      %1337 = vmatpush1.msra.mxu0 0.0
      %1338 = vmatprep.subr.mxu0 0.0
      %1339 = vmatpush1.msra.mxu0 0.0
      %1340 = vmatprep.subr.mxu0 0.0
      %1341 = vmatpush1.msra.mxu0 0.0
      %1342 = vmatprep.subr.mxu0 0.0
      %1343 = vmatpush1.msra.mxu0 0.0
      %1344 = vmatprep.subr.mxu0 0.0
      %1345 = vmatpush1.msra.mxu0 0.0
      %1346 = vmatprep.subr.mxu0 0.0
      %1347 = vmatpush1.msra.mxu0 0.0
      %1348 = vmatprep.subr.mxu0 0.0
      %1349 = vmatpush1.msra.mxu0 0.0
      %1350 = vmatprep.mubr.f32.mxu0 0.0
      %1351 = vmatmul.mubr.f32.gmra.mrb[0].mxu0 %v1251
      %v1352 = vpop.f32.mrb[0].mxu0
      %v1353 = vadd.f32 0.0, %v1352
      %v1354 = vpop.f32.mrb[0].mxu0
      %1355 = vmatprep.mubr.f32.mxu0 0.0
      %1356 = vmatmul.mubr.f32.gmra.mrb[0].mxu0 %v1253
      %v1357 = vpop.f32.mrb[0].mxu0
      %v1358 = vadd.f32 0.0, %v1357
      %v1359 = vpop.f32.mrb[0].mxu0
      %1360 = vmatprep.mubr.f32.mxu0 0.0
      %1361 = vmatmul.mubr.f32.gmra.mrb[0].mxu0 %v1255
      %v1362 = vpop.f32.mrb[0].mxu0
      %v1363 = vadd.f32 0.0, %v1362
      %v1364 = vpop.f32.mrb[0].mxu0
      %1365 = vmatprep.mubr.f32.mxu0 0.0
      %1366 = vmatmul.mubr.f32.gmra.mrb[0].mxu0 %v1257
      %v1367 = vpop.f32.mrb[0].mxu0
      %v1368 = vadd.f32 0.0, %v1367
      %v1369 = vpop.f32.mrb[0].mxu0
      %1370 = vmatprep.mubr.f32.mxu0 0.0
      %1371 = vmatmul.mubr.f32.gmra.mrb[0].mxu0 %v1259
      %v1372 = vpop.f32.mrb[0].mxu0
      %v1373 = vadd.f32 0.0, %v1372
      %v1374 = vpop.f32.mrb[0].mxu0
      %1375 = vmatprep.mubr.f32.mxu0 0.0
      %1376 = vmatmul.mubr.f32.gmra.mrb[0].mxu0 %v1261
      %v1377 = vpop.f32.mrb[0].mxu0
      %v1378 = vadd.f32 0.0, %v1377
      %v1379 = vpop.f32.mrb[0].mxu0
      %1380 = vmatprep.mubr.f32.mxu0 0.0
      %1381 = vmatmul.mubr.f32.gmra.mrb[0].mxu0 %v1263
      %v1382 = vpop.f32.mrb[0].mxu0
      %v1383 = vadd.f32 0.0, %v1382
      %v1384 = vpop.f32.mrb[0].mxu0
      %1385 = vmatprep.mubr.f32.mxu0 0.0
      %1386 = vmatmul.mubr.f32.gmra.mrb[0].mxu0 %v1265
      %v1387 = vpop.f32.mrb[0].mxu0
      %v1388 = vadd.f32 0.0, %v1387
      %v1389 = vpop.f32.mrb[0].mxu0
      %1390 = vmatprep.mubr.f32.mxu0 0.0
      %1391 = vmatmul.mubr.f32.gmra.mrb[0].mxu0 %v1267
      %v1392 = vpop.f32.mrb[0].mxu0
      %v1393 = vadd.f32 0.0, %v1392
      %v1394 = vpop.f32.mrb[0].mxu0
      %1395 = vmatprep.mubr.f32.mxu0 0.0
      %1396 = vmatmul.mubr.f32.gmra.mrb[0].mxu0 %v1269
      %v1397 = vpop.f32.mrb[0].mxu0
      %v1398 = vadd.f32 0.0, %v1397
      %v1399 = vpop.f32.mrb[0].mxu0
      %1400 = vmatprep.mubr.f32.mxu0 0.0
      %1401 = vmatmul.mubr.f32.gmra.mrb[0].mxu0 %v1271
      %v1402 = vpop.f32.mrb[0].mxu0
      %v1403 = vadd.f32 0.0, %v1402
      %v1404 = vpop.f32.mrb[0].mxu0
      %1405 = vmatprep.mubr.f32.mxu0 0.0
      %1406 = vmatmul.mubr.f32.gmra.mrb[0].mxu0 %v1273
      %v1407 = vpop.f32.mrb[0].mxu0
      %v1408 = vadd.f32 0.0, %v1407
      %v1409 = vpop.f32.mrb[0].mxu0
      %1410 = vmatprep.mubr.f32.mxu0 0.0
      %1411 = vmatmul.mubr.f32.gmra.mrb[0].mxu0 %v1275
      %v1412 = vpop.f32.mrb[0].mxu0
      %v1413 = vadd.f32 0.0, %v1412
      %v1414 = vpop.f32.mrb[0].mxu0
      %1415 = vmatprep.mubr.f32.mxu0 0.0
      %1416 = vmatmul.mubr.f32.gmra.mrb[0].mxu0 %v1277
      %v1417 = vpop.f32.mrb[0].mxu0
      %v1418 = vadd.f32 0.0, %v1417
      %v1419 = vpop.f32.mrb[0].mxu0
      %1420 = vmatprep.mubr.f32.mxu0 0.0
      %1421 = vmatmul.mubr.f32.gmra.mrb[0].mxu0 %v1279
      %v1422 = vpop.f32.mrb[0].mxu0
      %v1423 = vadd.f32 0.0, %v1422
      %v1424 = vpop.f32.mrb[0].mxu0
      %1425 = vmatprep.mubr.f32.mxu0 0.0
      %1426 = vmatmul.mubr.f32.gmra.mrb[0].mxu0 %v1281
      %v1427 = vpop.f32.mrb[0].mxu0
      %v1428 = vadd.f32 0.0, %v1427
      %v1429 = vpop.f32.mrb[0].mxu0
      %1430 = vdwg.mxu0
      %v1431 = vadd.f32 %v1234, %v1353
      %v1432 = vadd.f32 %v1235, %v1358
      %v1433 = vadd.f32 %v1236, %v1363
      %v1434 = vadd.f32 %v1237, %v1368
      %v1435 = vadd.f32 %v1238, %v1373
      %v1436 = vadd.f32 %v1239, %v1378
      %v1437 = vadd.f32 %v1240, %v1383
      %v1438 = vadd.f32 %v1241, %v1388
      %v1439 = vadd.f32 %v1242, %v1393
      %v1440 = vadd.f32 %v1243, %v1398
      %v1441 = vadd.f32 %v1244, %v1403
      %v1442 = vadd.f32 %v1245, %v1408
      %v1443 = vadd.f32 %v1246, %v1413
      %v1444 = vadd.f32 %v1247, %v1418
      %v1445 = vadd.f32 %v1248, %v1423
      %v1446 = vadd.f32 %v1249, %v1428
      %v1447 = vld [vmem:[%s6] sm:$0x7]
      %v1449 = vsel %vm852, %v622, 0
      %v1452 = vsel %vm852, %v623, 0
      %v1455 = vsel %vm852, %v624, 0
      %v1458 = vsel %vm852, %v625, 0
      %v1461 = vsel %vm852, %v626, 0
      %v1464 = vsel %vm852, %v627, 0
      %v1467 = vsel %vm852, %v628, 0
      %v1470 = vsel %vm852, %v629, 0
      %v1473 = vsel %vm852, %v630, 0
      %v1476 = vsel %vm852, %v631, 0
      %v1479 = vsel %vm852, %v632, 0
      %v1482 = vsel %vm852, %v633, 0
      %v1485 = vsel %vm852, %v634, 0
      %v1488 = vsel %vm852, %v635, 0
      %v1491 = vsel %vm852, %v636, 0
      %v1494 = vsel %vm852, %v637, 0
      %v1497 = vsel %vm1085, %v1447, 0
      %1499 = vmatprep.subr.mxu0 0.0
      %1500 = vmatpush1.msra.mxu0 %v1497
      %1501 = vmatprep.subr.mxu0 0.0
      %1502 = vmatpush1.msra.mxu0 0.0
      %1503 = vmatprep.subr.mxu0 0.0
      %1504 = vmatpush1.msra.mxu0 0.0
      %1505 = vmatprep.subr.mxu0 0.0
      %1506 = vmatpush1.msra.mxu0 0.0
      %1507 = vmatprep.subr.mxu0 0.0
      %1508 = vmatpush1.msra.mxu0 0.0
      %1509 = vmatprep.subr.mxu0 0.0
      %1510 = vmatpush1.msra.mxu0 0.0
      %1511 = vmatprep.subr.mxu0 0.0
      %1512 = vmatpush1.msra.mxu0 0.0
      %1513 = vmatprep.subr.mxu0 0.0
      %1514 = vmatpush1.msra.mxu0 0.0
      %1515 = vmatprep.subr.mxu0 0.0
      %1516 = vmatpush1.msra.mxu0 0.0
      %1517 = vmatprep.subr.mxu0 0.0
      %1518 = vmatpush1.msra.mxu0 0.0
      %1519 = vmatprep.subr.mxu0 0.0
      %1520 = vmatpush1.msra.mxu0 0.0
      %1521 = vmatprep.subr.mxu0 0.0
      %1522 = vmatpush1.msra.mxu0 0.0
      %1523 = vmatprep.subr.mxu0 0.0
      %1524 = vmatpush1.msra.mxu0 0.0
      %1525 = vmatprep.subr.mxu0 0.0
      %1526 = vmatpush1.msra.mxu0 0.0
      %1527 = vmatprep.subr.mxu0 0.0
      %1528 = vmatpush1.msra.mxu0 0.0
      %1529 = vmatprep.subr.mxu0 0.0
      %1530 = vmatpush1.msra.mxu0 0.0
      %1531 = vmatprep.subr.mxu0 0.0
      %1532 = vmatpush1.msra.mxu0 0.0
      %1533 = vmatprep.subr.mxu0 0.0
      %1534 = vmatpush1.msra.mxu0 0.0
      %1535 = vmatprep.subr.mxu0 0.0
      %1536 = vmatpush1.msra.mxu0 0.0
      %1537 = vmatprep.subr.mxu0 0.0
      %1538 = vmatpush1.msra.mxu0 0.0
      %1539 = vmatprep.subr.mxu0 0.0
      %1540 = vmatpush1.msra.mxu0 0.0
      %1541 = vmatprep.subr.mxu0 0.0
      %1542 = vmatpush1.msra.mxu0 0.0
      %1543 = vmatprep.subr.mxu0 0.0
      %1544 = vmatpush1.msra.mxu0 0.0
      %1545 = vmatprep.subr.mxu0 0.0
      %1546 = vmatpush1.msra.mxu0 0.0
      %1547 = vmatprep.subr.mxu0 0.0
      %1548 = vmatpush1.msra.mxu0 0.0
      %1549 = vmatprep.subr.mxu0 0.0
      %1550 = vmatpush1.msra.mxu0 0.0
      %1551 = vmatprep.subr.mxu0 0.0
      %1552 = vmatpush1.msra.mxu0 0.0
      %1553 = vmatprep.subr.mxu0 0.0
      %1554 = vmatpush1.msra.mxu0 0.0
      %1555 = vmatprep.subr.mxu0 0.0
      %1556 = vmatpush1.msra.mxu0 0.0
      %1557 = vmatprep.subr.mxu0 0.0
      %1558 = vmatpush1.msra.mxu0 0.0
      %1559 = vmatprep.subr.mxu0 0.0
      %1560 = vmatpush1.msra.mxu0 0.0
      %1561 = vmatprep.subr.mxu0 0.0
      %1562 = vmatpush1.msra.mxu0 0.0
      %1563 = vmatprep.mubr.f32.mxu0 0.0
      %1564 = vmatmul.mubr.f32.gmra.mrb[0].mxu0 %v1449
      %v1565 = vpop.f32.mrb[0].mxu0
      %v1566 = vadd.f32 0.0, %v1565
      %v1567 = vpop.f32.mrb[0].mxu0
      %1568 = vmatprep.mubr.f32.mxu0 0.0
      %1569 = vmatmul.mubr.f32.gmra.mrb[0].mxu0 %v1452
      %v1570 = vpop.f32.mrb[0].mxu0
      %v1571 = vadd.f32 0.0, %v1570
      %v1572 = vpop.f32.mrb[0].mxu0
      %1573 = vmatprep.mubr.f32.mxu0 0.0
      %1574 = vmatmul.mubr.f32.gmra.mrb[0].mxu0 %v1455
      %v1575 = vpop.f32.mrb[0].mxu0
      %v1576 = vadd.f32 0.0, %v1575
      %v1577 = vpop.f32.mrb[0].mxu0
      %1578 = vmatprep.mubr.f32.mxu0 0.0
      %1579 = vmatmul.mubr.f32.gmra.mrb[0].mxu0 %v1458
      %v1580 = vpop.f32.mrb[0].mxu0
      %v1581 = vadd.f32 0.0, %v1580
      %v1582 = vpop.f32.mrb[0].mxu0
      %1583 = vmatprep.mubr.f32.mxu0 0.0
      %1584 = vmatmul.mubr.f32.gmra.mrb[0].mxu0 %v1461
      %v1585 = vpop.f32.mrb[0].mxu0
      %v1586 = vadd.f32 0.0, %v1585
      %v1587 = vpop.f32.mrb[0].mxu0
      %1588 = vmatprep.mubr.f32.mxu0 0.0
      %1589 = vmatmul.mubr.f32.gmra.mrb[0].mxu0 %v1464
      %v1590 = vpop.f32.mrb[0].mxu0
      %v1591 = vadd.f32 0.0, %v1590
      %v1592 = vpop.f32.mrb[0].mxu0
      %1593 = vmatprep.mubr.f32.mxu0 0.0
      %1594 = vmatmul.mubr.f32.gmra.mrb[0].mxu0 %v1467
      %v1595 = vpop.f32.mrb[0].mxu0
      %v1596 = vadd.f32 0.0, %v1595
      %v1597 = vpop.f32.mrb[0].mxu0
      %1598 = vmatprep.mubr.f32.mxu0 0.0
      %1599 = vmatmul.mubr.f32.gmra.mrb[0].mxu0 %v1470
      %v1600 = vpop.f32.mrb[0].mxu0
      %v1601 = vadd.f32 0.0, %v1600
      %v1602 = vpop.f32.mrb[0].mxu0
      %1603 = vmatprep.mubr.f32.mxu0 0.0
      %1604 = vmatmul.mubr.f32.gmra.mrb[0].mxu0 %v1473
      %v1605 = vpop.f32.mrb[0].mxu0
      %v1606 = vadd.f32 0.0, %v1605
      %v1607 = vpop.f32.mrb[0].mxu0
      %1608 = vmatprep.mubr.f32.mxu0 0.0
      %1609 = vmatmul.mubr.f32.gmra.mrb[0].mxu0 %v1476
      %v1610 = vpop.f32.mrb[0].mxu0
      %v1611 = vadd.f32 0.0, %v1610
      %v1612 = vpop.f32.mrb[0].mxu0
      %1613 = vmatprep.mubr.f32.mxu0 0.0
      %1614 = vmatmul.mubr.f32.gmra.mrb[0].mxu0 %v1479
      %v1615 = vpop.f32.mrb[0].mxu0
      %v1616 = vadd.f32 0.0, %v1615
      %v1617 = vpop.f32.mrb[0].mxu0
      %1618 = vmatprep.mubr.f32.mxu0 0.0
      %1619 = vmatmul.mubr.f32.gmra.mrb[0].mxu0 %v1482
      %v1620 = vpop.f32.mrb[0].mxu0
      %v1621 = vadd.f32 0.0, %v1620
      %v1622 = vpop.f32.mrb[0].mxu0
      %1623 = vmatprep.mubr.f32.mxu0 0.0
      %1624 = vmatmul.mubr.f32.gmra.mrb[0].mxu0 %v1485
      %v1625 = vpop.f32.mrb[0].mxu0
      %v1626 = vadd.f32 0.0, %v1625
      %v1627 = vpop.f32.mrb[0].mxu0
      %1628 = vmatprep.mubr.f32.mxu0 0.0
      %1629 = vmatmul.mubr.f32.gmra.mrb[0].mxu0 %v1488
      %v1630 = vpop.f32.mrb[0].mxu0
      %v1631 = vadd.f32 0.0, %v1630
      %v1632 = vpop.f32.mrb[0].mxu0
      %1633 = vmatprep.mubr.f32.mxu0 0.0
      %1634 = vmatmul.mubr.f32.gmra.mrb[0].mxu0 %v1491
      %v1635 = vpop.f32.mrb[0].mxu0
      %v1636 = vadd.f32 0.0, %v1635
      %v1637 = vpop.f32.mrb[0].mxu0
      %1638 = vmatprep.mubr.f32.mxu0 0.0
      %1639 = vmatmul.mubr.f32.gmra.mrb[0].mxu0 %v1494
      %v1640 = vpop.f32.mrb[0].mxu0
      %v1641 = vadd.f32 0.0, %v1640
      %v1642 = vpop.f32.mrb[0].mxu0
      %1643 = vdwg.mxu0
      %v1644 = vadd.f32 %v1431, %v1566
      %v1645 = vadd.f32 %v1432, %v1571
      %v1646 = vadd.f32 %v1433, %v1576
      %v1647 = vadd.f32 %v1434, %v1581
      %v1648 = vadd.f32 %v1435, %v1586
      %v1649 = vadd.f32 %v1436, %v1591
      %v1650 = vadd.f32 %v1437, %v1596
      %v1651 = vadd.f32 %v1438, %v1601
      %v1652 = vadd.f32 %v1439, %v1606
      %v1653 = vadd.f32 %v1440, %v1611
      %v1654 = vadd.f32 %v1441, %v1616
      %v1655 = vadd.f32 %v1442, %v1621
      %v1656 = vadd.f32 %v1443, %v1626
      %v1657 = vadd.f32 %v1444, %v1631
      %v1658 = vadd.f32 %v1445, %v1636
      %v1659 = vadd.f32 %v1446, %v1641
      %v1660 = vld [vmem:[%s7] sm:$0x1]
      %v1662 = vlaneseq
      %v1663 = vshrl.u32 %v1662, 7
      %v1664 = vsub.s32 0, %v1663
      %v1665 = vrot.slane %v1660, %v1664
      %v1667 = vadd.f32 %v1644, %v1665
      %v1668 = vadd.f32 %v1645, %v1665
      %v1669 = vadd.f32 %v1646, %v1665
      %v1670 = vadd.f32 %v1647, %v1665
      %v1671 = vadd.f32 %v1648, %v1665
      %v1672 = vadd.f32 %v1649, %v1665
      %v1673 = vadd.f32 %v1650, %v1665
      %v1674 = vadd.f32 %v1651, %v1665
      %v1675 = vadd.f32 %v1652, %v1665
      %v1676 = vadd.f32 %v1653, %v1665
      %v1677 = vadd.f32 %v1654, %v1665
      %v1678 = vadd.f32 %v1655, %v1665
      %v1679 = vadd.f32 %v1656, %v1665
      %v1680 = vadd.f32 %v1657, %v1665
      %v1681 = vadd.f32 %v1658, %v1665
      %v1682 = vadd.f32 %v1659, %v1665
      %v1683 = vmax.f32 %v1667, 0.0
      %v1684 = vmax.f32 %v1668, 0.0
      %v1685 = vmax.f32 %v1669, 0.0
      %v1686 = vmax.f32 %v1670, 0.0
      %v1687 = vmax.f32 %v1671, 0.0
      %v1688 = vmax.f32 %v1672, 0.0
      %v1689 = vmax.f32 %v1673, 0.0
      %v1690 = vmax.f32 %v1674, 0.0
      %v1691 = vmax.f32 %v1675, 0.0
      %v1692 = vmax.f32 %v1676, 0.0
      %v1693 = vmax.f32 %v1677, 0.0
      %v1694 = vmax.f32 %v1678, 0.0
      %v1695 = vmax.f32 %v1679, 0.0
      %v1696 = vmax.f32 %v1680, 0.0
      %v1697 = vmax.f32 %v1681, 0.0
      %v1698 = vmax.f32 %v1682, 0.0
      %v1699 = vld [vmem:[%s8] sm:$0xf]
      %v1700 = vld [vmem:[%s9] sm:$0xf]
      %vm1701 = vcmask 31744
      %v1703 = vsel %vm1701, %v1683, 0
      %v1706 = vsel %vm1701, %v1684, 0
      %v1709 = vsel %vm1701, %v1685, 0
      %v1712 = vsel %vm1701, %v1686, 0
      %v1715 = vsel %vm1701, %v1687, 0
      %v1718 = vsel %vm1701, %v1688, 0
      %v1721 = vsel %vm1701, %v1689, 0
      %v1724 = vsel %vm1701, %v1690, 0
      %v1727 = vsel %vm1701, %v1691, 0
      %v1730 = vsel %vm1701, %v1692, 0
      %v1733 = vsel %vm1701, %v1693, 0
      %v1736 = vsel %vm1701, %v1694, 0
      %v1739 = vsel %vm1701, %v1695, 0
      %v1742 = vsel %vm1701, %v1696, 0
      %v1745 = vsel %vm1701, %v1697, 0
      %v1748 = vsel %vm1701, %v1698, 0
      %vm1750 = vcmask 1043456
      %v1752 = vsel %vm1750, %v1700, 0
      %1754 = vmatprep.subr.mxu0 0.0
      %1755 = vmatpush1.msra.mxu0 %v1752
      %1756 = vmatprep.subr.mxu0 0.0
      %1757 = vmatpush1.msra.mxu0 0.0
      %1758 = vmatprep.subr.mxu0 0.0
      %1759 = vmatpush1.msra.mxu0 0.0
      %1760 = vmatprep.subr.mxu0 0.0
      %1761 = vmatpush1.msra.mxu0 0.0
      %1762 = vmatprep.subr.mxu0 0.0
      %1763 = vmatpush1.msra.mxu0 0.0
      %1764 = vmatprep.subr.mxu0 0.0
      %1765 = vmatpush1.msra.mxu0 0.0
      %1766 = vmatprep.subr.mxu0 0.0
      %1767 = vmatpush1.msra.mxu0 0.0
      %1768 = vmatprep.subr.mxu0 0.0
      %1769 = vmatpush1.msra.mxu0 0.0
      %1770 = vmatprep.subr.mxu0 0.0
      %1771 = vmatpush1.msra.mxu0 0.0
      %1772 = vmatprep.subr.mxu0 0.0
      %1773 = vmatpush1.msra.mxu0 0.0
      %1774 = vmatprep.subr.mxu0 0.0
      %1775 = vmatpush1.msra.mxu0 0.0
      %1776 = vmatprep.subr.mxu0 0.0
      %1777 = vmatpush1.msra.mxu0 0.0
      %1778 = vmatprep.subr.mxu0 0.0
      %1779 = vmatpush1.msra.mxu0 0.0
      %1780 = vmatprep.subr.mxu0 0.0
      %1781 = vmatpush1.msra.mxu0 0.0
      %1782 = vmatprep.subr.mxu0 0.0
      %1783 = vmatpush1.msra.mxu0 0.0
      %1784 = vmatprep.subr.mxu0 0.0
      %1785 = vmatpush1.msra.mxu0 0.0
      %1786 = vmatprep.subr.mxu0 0.0
      %1787 = vmatpush1.msra.mxu0 0.0
      %1788 = vmatprep.subr.mxu0 0.0
      %1789 = vmatpush1.msra.mxu0 0.0
      %1790 = vmatprep.subr.mxu0 0.0
      %1791 = vmatpush1.msra.mxu0 0.0
      %1792 = vmatprep.subr.mxu0 0.0
      %1793 = vmatpush1.msra.mxu0 0.0
      %1794 = vmatprep.subr.mxu0 0.0
      %1795 = vmatpush1.msra.mxu0 0.0
      %1796 = vmatprep.subr.mxu0 0.0
      %1797 = vmatpush1.msra.mxu0 0.0
      %1798 = vmatprep.subr.mxu0 0.0
      %1799 = vmatpush1.msra.mxu0 0.0
      %1800 = vmatprep.subr.mxu0 0.0
      %1801 = vmatpush1.msra.mxu0 0.0
      %1802 = vmatprep.subr.mxu0 0.0
      %1803 = vmatpush1.msra.mxu0 0.0
      %1804 = vmatprep.subr.mxu0 0.0
      %1805 = vmatpush1.msra.mxu0 0.0
      %1806 = vmatprep.subr.mxu0 0.0
      %1807 = vmatpush1.msra.mxu0 0.0
      %1808 = vmatprep.subr.mxu0 0.0
      %1809 = vmatpush1.msra.mxu0 0.0
      %1810 = vmatprep.subr.mxu0 0.0
      %1811 = vmatpush1.msra.mxu0 0.0
      %1812 = vmatprep.subr.mxu0 0.0
      %1813 = vmatpush1.msra.mxu0 0.0
      %1814 = vmatprep.subr.mxu0 0.0
      %1815 = vmatpush1.msra.mxu0 0.0
      %1816 = vmatprep.subr.mxu0 0.0
      %1817 = vmatpush1.msra.mxu0 0.0
      %1818 = vmatprep.mubr.f32.mxu0 0.0
      %1819 = vmatmul.mubr.f32.gmra.mrb[0].mxu0 %v1703
      %v1820 = vpop.f32.mrb[0].mxu0
      %v1821 = vadd.f32 0.0, %v1820
      %v1822 = vpop.f32.mrb[0].mxu0
      %1823 = vmatprep.mubr.f32.mxu0 0.0
      %1824 = vmatmul.mubr.f32.gmra.mrb[0].mxu0 %v1706
      %v1825 = vpop.f32.mrb[0].mxu0
      %v1826 = vadd.f32 0.0, %v1825
      %v1827 = vpop.f32.mrb[0].mxu0
      %1828 = vmatprep.mubr.f32.mxu0 0.0
      %1829 = vmatmul.mubr.f32.gmra.mrb[0].mxu0 %v1709
      %v1830 = vpop.f32.mrb[0].mxu0
      %v1831 = vadd.f32 0.0, %v1830
      %v1832 = vpop.f32.mrb[0].mxu0
      %1833 = vmatprep.mubr.f32.mxu0 0.0
      %1834 = vmatmul.mubr.f32.gmra.mrb[0].mxu0 %v1712
      %v1835 = vpop.f32.mrb[0].mxu0
      %v1836 = vadd.f32 0.0, %v1835
      %v1837 = vpop.f32.mrb[0].mxu0
      %1838 = vmatprep.mubr.f32.mxu0 0.0
      %1839 = vmatmul.mubr.f32.gmra.mrb[0].mxu0 %v1715
      %v1840 = vpop.f32.mrb[0].mxu0
      %v1841 = vadd.f32 0.0, %v1840
      %v1842 = vpop.f32.mrb[0].mxu0
      %1843 = vmatprep.mubr.f32.mxu0 0.0
      %1844 = vmatmul.mubr.f32.gmra.mrb[0].mxu0 %v1718
      %v1845 = vpop.f32.mrb[0].mxu0
      %v1846 = vadd.f32 0.0, %v1845
      %v1847 = vpop.f32.mrb[0].mxu0
      %1848 = vmatprep.mubr.f32.mxu0 0.0
      %1849 = vmatmul.mubr.f32.gmra.mrb[0].mxu0 %v1721
      %v1850 = vpop.f32.mrb[0].mxu0
      %v1851 = vadd.f32 0.0, %v1850
      %v1852 = vpop.f32.mrb[0].mxu0
      %1853 = vmatprep.mubr.f32.mxu0 0.0
      %1854 = vmatmul.mubr.f32.gmra.mrb[0].mxu0 %v1724
      %v1855 = vpop.f32.mrb[0].mxu0
      %v1856 = vadd.f32 0.0, %v1855
      %v1857 = vpop.f32.mrb[0].mxu0
      %1858 = vmatprep.mubr.f32.mxu0 0.0
      %1859 = vmatmul.mubr.f32.gmra.mrb[0].mxu0 %v1727
      %v1860 = vpop.f32.mrb[0].mxu0
      %v1861 = vadd.f32 0.0, %v1860
      %v1862 = vpop.f32.mrb[0].mxu0
      %1863 = vmatprep.mubr.f32.mxu0 0.0
      %1864 = vmatmul.mubr.f32.gmra.mrb[0].mxu0 %v1730
      %v1865 = vpop.f32.mrb[0].mxu0
      %v1866 = vadd.f32 0.0, %v1865
      %v1867 = vpop.f32.mrb[0].mxu0
      %1868 = vmatprep.mubr.f32.mxu0 0.0
      %1869 = vmatmul.mubr.f32.gmra.mrb[0].mxu0 %v1733
      %v1870 = vpop.f32.mrb[0].mxu0
      %v1871 = vadd.f32 0.0, %v1870
      %v1872 = vpop.f32.mrb[0].mxu0
      %1873 = vmatprep.mubr.f32.mxu0 0.0
      %1874 = vmatmul.mubr.f32.gmra.mrb[0].mxu0 %v1736
      %v1875 = vpop.f32.mrb[0].mxu0
      %v1876 = vadd.f32 0.0, %v1875
      %v1877 = vpop.f32.mrb[0].mxu0
      %1878 = vmatprep.mubr.f32.mxu0 0.0
      %1879 = vmatmul.mubr.f32.gmra.mrb[0].mxu0 %v1739
      %v1880 = vpop.f32.mrb[0].mxu0
      %v1881 = vadd.f32 0.0, %v1880
      %v1882 = vpop.f32.mrb[0].mxu0
      %1883 = vmatprep.mubr.f32.mxu0 0.0
      %1884 = vmatmul.mubr.f32.gmra.mrb[0].mxu0 %v1742
      %v1885 = vpop.f32.mrb[0].mxu0
      %v1886 = vadd.f32 0.0, %v1885
      %v1887 = vpop.f32.mrb[0].mxu0
      %1888 = vmatprep.mubr.f32.mxu0 0.0
      %1889 = vmatmul.mubr.f32.gmra.mrb[0].mxu0 %v1745
      %v1890 = vpop.f32.mrb[0].mxu0
      %v1891 = vadd.f32 0.0, %v1890
      %v1892 = vpop.f32.mrb[0].mxu0
      %1893 = vmatprep.mubr.f32.mxu0 0.0
      %1894 = vmatmul.mubr.f32.gmra.mrb[0].mxu0 %v1748
      %v1895 = vpop.f32.mrb[0].mxu0
      %v1896 = vadd.f32 0.0, %v1895
      %v1897 = vpop.f32.mrb[0].mxu0
      %1898 = vdwg.mxu0
      %v1900 = vsel %vm1701, %v606, 0
      %v1903 = vsel %vm1701, %v607, 0
      %v1906 = vsel %vm1701, %v608, 0
      %v1909 = vsel %vm1701, %v609, 0
      %v1912 = vsel %vm1701, %v610, 0
      %v1915 = vsel %vm1701, %v611, 0
      %v1918 = vsel %vm1701, %v612, 0
      %v1921 = vsel %vm1701, %v613, 0
      %v1924 = vsel %vm1701, %v614, 0
      %v1927 = vsel %vm1701, %v615, 0
      %v1930 = vsel %vm1701, %v616, 0
      %v1933 = vsel %vm1701, %v617, 0
      %v1936 = vsel %vm1701, %v618, 0
      %v1939 = vsel %vm1701, %v619, 0
      %v1942 = vsel %vm1701, %v620, 0
      %v1945 = vsel %vm1701, %v621, 0
      %v1948 = vsel %vm1750, %v1699, 0
      %1950 = vmatprep.subr.mxu0 0.0
      %1951 = vmatpush1.msra.mxu0 %v1948
      %1952 = vmatprep.subr.mxu0 0.0
      %1953 = vmatpush1.msra.mxu0 0.0
      %1954 = vmatprep.subr.mxu0 0.0
      %1955 = vmatpush1.msra.mxu0 0.0
      %1956 = vmatprep.subr.mxu0 0.0
      %1957 = vmatpush1.msra.mxu0 0.0
      %1958 = vmatprep.subr.mxu0 0.0
      %1959 = vmatpush1.msra.mxu0 0.0
      %1960 = vmatprep.subr.mxu0 0.0
      %1961 = vmatpush1.msra.mxu0 0.0
      %1962 = vmatprep.subr.mxu0 0.0
      %1963 = vmatpush1.msra.mxu0 0.0
      %1964 = vmatprep.subr.mxu0 0.0
      %1965 = vmatpush1.msra.mxu0 0.0
      %1966 = vmatprep.subr.mxu0 0.0
      %1967 = vmatpush1.msra.mxu0 0.0
      %1968 = vmatprep.subr.mxu0 0.0
      %1969 = vmatpush1.msra.mxu0 0.0
      %1970 = vmatprep.subr.mxu0 0.0
      %1971 = vmatpush1.msra.mxu0 0.0
      %1972 = vmatprep.subr.mxu0 0.0
      %1973 = vmatpush1.msra.mxu0 0.0
      %1974 = vmatprep.subr.mxu0 0.0
      %1975 = vmatpush1.msra.mxu0 0.0
      %1976 = vmatprep.subr.mxu0 0.0
      %1977 = vmatpush1.msra.mxu0 0.0
      %1978 = vmatprep.subr.mxu0 0.0
      %1979 = vmatpush1.msra.mxu0 0.0
      %1980 = vmatprep.subr.mxu0 0.0
      %1981 = vmatpush1.msra.mxu0 0.0
      %1982 = vmatprep.subr.mxu0 0.0
      %1983 = vmatpush1.msra.mxu0 0.0
      %1984 = vmatprep.subr.mxu0 0.0
      %1985 = vmatpush1.msra.mxu0 0.0
      %1986 = vmatprep.subr.mxu0 0.0
      %1987 = vmatpush1.msra.mxu0 0.0
      %1988 = vmatprep.subr.mxu0 0.0
      %1989 = vmatpush1.msra.mxu0 0.0
      %1990 = vmatprep.subr.mxu0 0.0
      %1991 = vmatpush1.msra.mxu0 0.0
      %1992 = vmatprep.subr.mxu0 0.0
      %1993 = vmatpush1.msra.mxu0 0.0
      %1994 = vmatprep.subr.mxu0 0.0
      %1995 = vmatpush1.msra.mxu0 0.0
      %1996 = vmatprep.subr.mxu0 0.0
      %1997 = vmatpush1.msra.mxu0 0.0
      %1998 = vmatprep.subr.mxu0 0.0
      %1999 = vmatpush1.msra.mxu0 0.0
      %2000 = vmatprep.subr.mxu0 0.0
      %2001 = vmatpush1.msra.mxu0 0.0
      %2002 = vmatprep.subr.mxu0 0.0
      %2003 = vmatpush1.msra.mxu0 0.0
      %2004 = vmatprep.subr.mxu0 0.0
      %2005 = vmatpush1.msra.mxu0 0.0
      %2006 = vmatprep.subr.mxu0 0.0
      %2007 = vmatpush1.msra.mxu0 0.0
      %2008 = vmatprep.subr.mxu0 0.0
      %2009 = vmatpush1.msra.mxu0 0.0
      %2010 = vmatprep.subr.mxu0 0.0
      %2011 = vmatpush1.msra.mxu0 0.0
      %2012 = vmatprep.subr.mxu0 0.0
      %2013 = vmatpush1.msra.mxu0 0.0
      %2014 = vmatprep.mubr.f32.mxu0 0.0
      %2015 = vmatmul.mubr.f32.gmra.mrb[0].mxu0 %v1900
      %v2016 = vpop.f32.mrb[0].mxu0
      %v2017 = vadd.f32 %v1821, %v2016
      %v2018 = vpop.f32.mrb[0].mxu0
      %2019 = vmatprep.mubr.f32.mxu0 0.0
      %2020 = vmatmul.mubr.f32.gmra.mrb[0].mxu0 %v1903
      %v2021 = vpop.f32.mrb[0].mxu0
      %v2022 = vadd.f32 %v1826, %v2021
      %v2023 = vpop.f32.mrb[0].mxu0
      %2024 = vmatprep.mubr.f32.mxu0 0.0
      %2025 = vmatmul.mubr.f32.gmra.mrb[0].mxu0 %v1906
      %v2026 = vpop.f32.mrb[0].mxu0
      %v2027 = vadd.f32 %v1831, %v2026
      %v2028 = vpop.f32.mrb[0].mxu0
      %2029 = vmatprep.mubr.f32.mxu0 0.0
      %2030 = vmatmul.mubr.f32.gmra.mrb[0].mxu0 %v1909
      %v2031 = vpop.f32.mrb[0].mxu0
      %v2032 = vadd.f32 %v1836, %v2031
      %v2033 = vpop.f32.mrb[0].mxu0
      %2034 = vmatprep.mubr.f32.mxu0 0.0
      %2035 = vmatmul.mubr.f32.gmra.mrb[0].mxu0 %v1912
      %v2036 = vpop.f32.mrb[0].mxu0
      %v2037 = vadd.f32 %v1841, %v2036
      %v2038 = vpop.f32.mrb[0].mxu0
      %2039 = vmatprep.mubr.f32.mxu0 0.0
      %2040 = vmatmul.mubr.f32.gmra.mrb[0].mxu0 %v1915
      %v2041 = vpop.f32.mrb[0].mxu0
      %v2042 = vadd.f32 %v1846, %v2041
      %v2043 = vpop.f32.mrb[0].mxu0
      %2044 = vmatprep.mubr.f32.mxu0 0.0
      %2045 = vmatmul.mubr.f32.gmra.mrb[0].mxu0 %v1918
      %v2046 = vpop.f32.mrb[0].mxu0
      %v2047 = vadd.f32 %v1851, %v2046
      %v2048 = vpop.f32.mrb[0].mxu0
      %2049 = vmatprep.mubr.f32.mxu0 0.0
      %2050 = vmatmul.mubr.f32.gmra.mrb[0].mxu0 %v1921
      %v2051 = vpop.f32.mrb[0].mxu0
      %v2052 = vadd.f32 %v1856, %v2051
      %v2053 = vpop.f32.mrb[0].mxu0
      %2054 = vmatprep.mubr.f32.mxu0 0.0
      %2055 = vmatmul.mubr.f32.gmra.mrb[0].mxu0 %v1924
      %v2056 = vpop.f32.mrb[0].mxu0
      %v2057 = vadd.f32 %v1861, %v2056
      %v2058 = vpop.f32.mrb[0].mxu0
      %2059 = vmatprep.mubr.f32.mxu0 0.0
      %2060 = vmatmul.mubr.f32.gmra.mrb[0].mxu0 %v1927
      %v2061 = vpop.f32.mrb[0].mxu0
      %v2062 = vadd.f32 %v1866, %v2061
      %v2063 = vpop.f32.mrb[0].mxu0
      %2064 = vmatprep.mubr.f32.mxu0 0.0
      %2065 = vmatmul.mubr.f32.gmra.mrb[0].mxu0 %v1930
      %v2066 = vpop.f32.mrb[0].mxu0
      %v2067 = vadd.f32 %v1871, %v2066
      %v2068 = vpop.f32.mrb[0].mxu0
      %2069 = vmatprep.mubr.f32.mxu0 0.0
      %2070 = vmatmul.mubr.f32.gmra.mrb[0].mxu0 %v1933
      %v2071 = vpop.f32.mrb[0].mxu0
      %v2072 = vadd.f32 %v1876, %v2071
      %v2073 = vpop.f32.mrb[0].mxu0
      %2074 = vmatprep.mubr.f32.mxu0 0.0
      %2075 = vmatmul.mubr.f32.gmra.mrb[0].mxu0 %v1936
      %v2076 = vpop.f32.mrb[0].mxu0
      %v2077 = vadd.f32 %v1881, %v2076
      %v2078 = vpop.f32.mrb[0].mxu0
      %2079 = vmatprep.mubr.f32.mxu0 0.0
      %2080 = vmatmul.mubr.f32.gmra.mrb[0].mxu0 %v1939
      %v2081 = vpop.f32.mrb[0].mxu0
      %v2082 = vadd.f32 %v1886, %v2081
      %v2083 = vpop.f32.mrb[0].mxu0
      %2084 = vmatprep.mubr.f32.mxu0 0.0
      %2085 = vmatmul.mubr.f32.gmra.mrb[0].mxu0 %v1942
      %v2086 = vpop.f32.mrb[0].mxu0
      %v2087 = vadd.f32 %v1891, %v2086
      %v2088 = vpop.f32.mrb[0].mxu0
      %2089 = vmatprep.mubr.f32.mxu0 0.0
      %2090 = vmatmul.mubr.f32.gmra.mrb[0].mxu0 %v1945
      %v2091 = vpop.f32.mrb[0].mxu0
      %v2092 = vadd.f32 %v1896, %v2091
      %v2093 = vpop.f32.mrb[0].mxu0
      %2094 = vdwg.mxu0
      %v2095 = vld [vmem:[%s10] sm:$0xf]
      %v2096 = vld [vmem:[%s11] sm:$0xf]
      %v2098 = vsel %vm1750, %v2096, 0
      %2100 = vmatprep.subr.mxu0 0.0
      %2101 = vmatpush1.msra.mxu0 %v2098
      %2102 = vmatprep.subr.mxu0 0.0
      %2103 = vmatpush1.msra.mxu0 0.0
      %2104 = vmatprep.subr.mxu0 0.0
      %2105 = vmatpush1.msra.mxu0 0.0
      %2106 = vmatprep.subr.mxu0 0.0
      %2107 = vmatpush1.msra.mxu0 0.0
      %2108 = vmatprep.subr.mxu0 0.0
      %2109 = vmatpush1.msra.mxu0 0.0
      %2110 = vmatprep.subr.mxu0 0.0
      %2111 = vmatpush1.msra.mxu0 0.0
      %2112 = vmatprep.subr.mxu0 0.0
      %2113 = vmatpush1.msra.mxu0 0.0
      %2114 = vmatprep.subr.mxu0 0.0
      %2115 = vmatpush1.msra.mxu0 0.0
      %2116 = vmatprep.subr.mxu0 0.0
      %2117 = vmatpush1.msra.mxu0 0.0
      %2118 = vmatprep.subr.mxu0 0.0
      %2119 = vmatpush1.msra.mxu0 0.0
      %2120 = vmatprep.subr.mxu0 0.0
      %2121 = vmatpush1.msra.mxu0 0.0
      %2122 = vmatprep.subr.mxu0 0.0
      %2123 = vmatpush1.msra.mxu0 0.0
      %2124 = vmatprep.subr.mxu0 0.0
      %2125 = vmatpush1.msra.mxu0 0.0
      %2126 = vmatprep.subr.mxu0 0.0
      %2127 = vmatpush1.msra.mxu0 0.0
      %2128 = vmatprep.subr.mxu0 0.0
      %2129 = vmatpush1.msra.mxu0 0.0
      %2130 = vmatprep.subr.mxu0 0.0
      %2131 = vmatpush1.msra.mxu0 0.0
      %2132 = vmatprep.subr.mxu0 0.0
      %2133 = vmatpush1.msra.mxu0 0.0
      %2134 = vmatprep.subr.mxu0 0.0
      %2135 = vmatpush1.msra.mxu0 0.0
      %2136 = vmatprep.subr.mxu0 0.0
      %2137 = vmatpush1.msra.mxu0 0.0
      %2138 = vmatprep.subr.mxu0 0.0
      %2139 = vmatpush1.msra.mxu0 0.0
      %2140 = vmatprep.subr.mxu0 0.0
      %2141 = vmatpush1.msra.mxu0 0.0
      %2142 = vmatprep.subr.mxu0 0.0
      %2143 = vmatpush1.msra.mxu0 0.0
      %2144 = vmatprep.subr.mxu0 0.0
      %2145 = vmatpush1.msra.mxu0 0.0
      %2146 = vmatprep.subr.mxu0 0.0
      %2147 = vmatpush1.msra.mxu0 0.0
      %2148 = vmatprep.subr.mxu0 0.0
      %2149 = vmatpush1.msra.mxu0 0.0
      %2150 = vmatprep.subr.mxu0 0.0
      %2151 = vmatpush1.msra.mxu0 0.0
      %2152 = vmatprep.subr.mxu0 0.0
      %2153 = vmatpush1.msra.mxu0 0.0
      %2154 = vmatprep.subr.mxu0 0.0
      %2155 = vmatpush1.msra.mxu0 0.0
      %2156 = vmatprep.subr.mxu0 0.0
      %2157 = vmatpush1.msra.mxu0 0.0
      %2158 = vmatprep.subr.mxu0 0.0
      %2159 = vmatpush1.msra.mxu0 0.0
      %2160 = vmatprep.subr.mxu0 0.0
      %2161 = vmatpush1.msra.mxu0 0.0
      %2162 = vmatprep.subr.mxu0 0.0
      %2163 = vmatpush1.msra.mxu0 0.0
      %2164 = vmatprep.mubr.f32.mxu0 0.0
      %2165 = vmatmul.mubr.f32.gmra.mrb[0].mxu0 %v1703
      %v2166 = vpop.f32.mrb[0].mxu0
      %v2167 = vadd.f32 0.0, %v2166
      %v2168 = vpop.f32.mrb[0].mxu0
      %2169 = vmatprep.mubr.f32.mxu0 0.0
      %2170 = vmatmul.mubr.f32.gmra.mrb[0].mxu0 %v1706
      %v2171 = vpop.f32.mrb[0].mxu0
      %v2172 = vadd.f32 0.0, %v2171
      %v2173 = vpop.f32.mrb[0].mxu0
      %2174 = vmatprep.mubr.f32.mxu0 0.0
      %2175 = vmatmul.mubr.f32.gmra.mrb[0].mxu0 %v1709
      %v2176 = vpop.f32.mrb[0].mxu0
      %v2177 = vadd.f32 0.0, %v2176
      %v2178 = vpop.f32.mrb[0].mxu0
      %2179 = vmatprep.mubr.f32.mxu0 0.0
      %2180 = vmatmul.mubr.f32.gmra.mrb[0].mxu0 %v1712
      %v2181 = vpop.f32.mrb[0].mxu0
      %v2182 = vadd.f32 0.0, %v2181
      %v2183 = vpop.f32.mrb[0].mxu0
      %2184 = vmatprep.mubr.f32.mxu0 0.0
      %2185 = vmatmul.mubr.f32.gmra.mrb[0].mxu0 %v1715
      %v2186 = vpop.f32.mrb[0].mxu0
      %v2187 = vadd.f32 0.0, %v2186
      %v2188 = vpop.f32.mrb[0].mxu0
      %2189 = vmatprep.mubr.f32.mxu0 0.0
      %2190 = vmatmul.mubr.f32.gmra.mrb[0].mxu0 %v1718
      %v2191 = vpop.f32.mrb[0].mxu0
      %v2192 = vadd.f32 0.0, %v2191
      %v2193 = vpop.f32.mrb[0].mxu0
      %2194 = vmatprep.mubr.f32.mxu0 0.0
      %2195 = vmatmul.mubr.f32.gmra.mrb[0].mxu0 %v1721
      %v2196 = vpop.f32.mrb[0].mxu0
      %v2197 = vadd.f32 0.0, %v2196
      %v2198 = vpop.f32.mrb[0].mxu0
      %2199 = vmatprep.mubr.f32.mxu0 0.0
      %2200 = vmatmul.mubr.f32.gmra.mrb[0].mxu0 %v1724
      %v2201 = vpop.f32.mrb[0].mxu0
      %v2202 = vadd.f32 0.0, %v2201
      %v2203 = vpop.f32.mrb[0].mxu0
      %2204 = vmatprep.mubr.f32.mxu0 0.0
      %2205 = vmatmul.mubr.f32.gmra.mrb[0].mxu0 %v1727
      %v2206 = vpop.f32.mrb[0].mxu0
      %v2207 = vadd.f32 0.0, %v2206
      %v2208 = vpop.f32.mrb[0].mxu0
      %2209 = vmatprep.mubr.f32.mxu0 0.0
      %2210 = vmatmul.mubr.f32.gmra.mrb[0].mxu0 %v1730
      %v2211 = vpop.f32.mrb[0].mxu0
      %v2212 = vadd.f32 0.0, %v2211
      %v2213 = vpop.f32.mrb[0].mxu0
      %2214 = vmatprep.mubr.f32.mxu0 0.0
      %2215 = vmatmul.mubr.f32.gmra.mrb[0].mxu0 %v1733
      %v2216 = vpop.f32.mrb[0].mxu0
      %v2217 = vadd.f32 0.0, %v2216
      %v2218 = vpop.f32.mrb[0].mxu0
      %2219 = vmatprep.mubr.f32.mxu0 0.0
      %2220 = vmatmul.mubr.f32.gmra.mrb[0].mxu0 %v1736
      %v2221 = vpop.f32.mrb[0].mxu0
      %v2222 = vadd.f32 0.0, %v2221
      %v2223 = vpop.f32.mrb[0].mxu0
      %2224 = vmatprep.mubr.f32.mxu0 0.0
      %2225 = vmatmul.mubr.f32.gmra.mrb[0].mxu0 %v1739
      %v2226 = vpop.f32.mrb[0].mxu0
      %v2227 = vadd.f32 0.0, %v2226
      %v2228 = vpop.f32.mrb[0].mxu0
      %2229 = vmatprep.mubr.f32.mxu0 0.0
      %2230 = vmatmul.mubr.f32.gmra.mrb[0].mxu0 %v1742
      %v2231 = vpop.f32.mrb[0].mxu0
      %v2232 = vadd.f32 0.0, %v2231
      %v2233 = vpop.f32.mrb[0].mxu0
      %2234 = vmatprep.mubr.f32.mxu0 0.0
      %2235 = vmatmul.mubr.f32.gmra.mrb[0].mxu0 %v1745
      %v2236 = vpop.f32.mrb[0].mxu0
      %v2237 = vadd.f32 0.0, %v2236
      %v2238 = vpop.f32.mrb[0].mxu0
      %2239 = vmatprep.mubr.f32.mxu0 0.0
      %2240 = vmatmul.mubr.f32.gmra.mrb[0].mxu0 %v1748
      %v2241 = vpop.f32.mrb[0].mxu0
      %v2242 = vadd.f32 0.0, %v2241
      %v2243 = vpop.f32.mrb[0].mxu0
      %2244 = vdwg.mxu0
      %v2246 = vsel %vm1750, %v2095, 0
      %2248 = vmatprep.subr.mxu0 0.0
      %2249 = vmatpush1.msra.mxu0 %v2246
      %2250 = vmatprep.subr.mxu0 0.0
      %2251 = vmatpush1.msra.mxu0 0.0
      %2252 = vmatprep.subr.mxu0 0.0
      %2253 = vmatpush1.msra.mxu0 0.0
      %2254 = vmatprep.subr.mxu0 0.0
      %2255 = vmatpush1.msra.mxu0 0.0
      %2256 = vmatprep.subr.mxu0 0.0
      %2257 = vmatpush1.msra.mxu0 0.0
      %2258 = vmatprep.subr.mxu0 0.0
      %2259 = vmatpush1.msra.mxu0 0.0
      %2260 = vmatprep.subr.mxu0 0.0
      %2261 = vmatpush1.msra.mxu0 0.0
      %2262 = vmatprep.subr.mxu0 0.0
      %2263 = vmatpush1.msra.mxu0 0.0
      %2264 = vmatprep.subr.mxu0 0.0
      %2265 = vmatpush1.msra.mxu0 0.0
      %2266 = vmatprep.subr.mxu0 0.0
      %2267 = vmatpush1.msra.mxu0 0.0
      %2268 = vmatprep.subr.mxu0 0.0
      %2269 = vmatpush1.msra.mxu0 0.0
      %2270 = vmatprep.subr.mxu0 0.0
      %2271 = vmatpush1.msra.mxu0 0.0
      %2272 = vmatprep.subr.mxu0 0.0
      %2273 = vmatpush1.msra.mxu0 0.0
      %2274 = vmatprep.subr.mxu0 0.0
      %2275 = vmatpush1.msra.mxu0 0.0
      %2276 = vmatprep.subr.mxu0 0.0
      %2277 = vmatpush1.msra.mxu0 0.0
      %2278 = vmatprep.subr.mxu0 0.0
      %2279 = vmatpush1.msra.mxu0 0.0
      %2280 = vmatprep.subr.mxu0 0.0
      %2281 = vmatpush1.msra.mxu0 0.0
      %2282 = vmatprep.subr.mxu0 0.0
      %2283 = vmatpush1.msra.mxu0 0.0
      %2284 = vmatprep.subr.mxu0 0.0
      %2285 = vmatpush1.msra.mxu0 0.0
      %2286 = vmatprep.subr.mxu0 0.0
      %2287 = vmatpush1.msra.mxu0 0.0
      %2288 = vmatprep.subr.mxu0 0.0
      %2289 = vmatpush1.msra.mxu0 0.0
      %2290 = vmatprep.subr.mxu0 0.0
      %2291 = vmatpush1.msra.mxu0 0.0
      %2292 = vmatprep.subr.mxu0 0.0
      %2293 = vmatpush1.msra.mxu0 0.0
      %2294 = vmatprep.subr.mxu0 0.0
      %2295 = vmatpush1.msra.mxu0 0.0
      %2296 = vmatprep.subr.mxu0 0.0
      %2297 = vmatpush1.msra.mxu0 0.0
      %2298 = vmatprep.subr.mxu0 0.0
      %2299 = vmatpush1.msra.mxu0 0.0
      %2300 = vmatprep.subr.mxu0 0.0
      %2301 = vmatpush1.msra.mxu0 0.0
      %2302 = vmatprep.subr.mxu0 0.0
      %2303 = vmatpush1.msra.mxu0 0.0
      %2304 = vmatprep.subr.mxu0 0.0
      %2305 = vmatpush1.msra.mxu0 0.0
      %2306 = vmatprep.subr.mxu0 0.0
      %2307 = vmatpush1.msra.mxu0 0.0
      %2308 = vmatprep.subr.mxu0 0.0
      %2309 = vmatpush1.msra.mxu0 0.0
      %2310 = vmatprep.subr.mxu0 0.0
      %2311 = vmatpush1.msra.mxu0 0.0
      %2312 = vmatprep.mubr.f32.mxu0 0.0
      %2313 = vmatmul.mubr.f32.gmra.mrb[0].mxu0 %v1900
      %v2314 = vpop.f32.mrb[0].mxu0
      %v2315 = vadd.f32 %v2167, %v2314
      %v2316 = vpop.f32.mrb[0].mxu0
      %2317 = vmatprep.mubr.f32.mxu0 0.0
      %2318 = vmatmul.mubr.f32.gmra.mrb[0].mxu0 %v1903
      %v2319 = vpop.f32.mrb[0].mxu0
      %v2320 = vadd.f32 %v2172, %v2319
      %v2321 = vpop.f32.mrb[0].mxu0
      %2322 = vmatprep.mubr.f32.mxu0 0.0
      %2323 = vmatmul.mubr.f32.gmra.mrb[0].mxu0 %v1906
      %v2324 = vpop.f32.mrb[0].mxu0
      %v2325 = vadd.f32 %v2177, %v2324
      %v2326 = vpop.f32.mrb[0].mxu0
      %2327 = vmatprep.mubr.f32.mxu0 0.0
      %2328 = vmatmul.mubr.f32.gmra.mrb[0].mxu0 %v1909
      %v2329 = vpop.f32.mrb[0].mxu0
      %v2330 = vadd.f32 %v2182, %v2329
      %v2331 = vpop.f32.mrb[0].mxu0
      %2332 = vmatprep.mubr.f32.mxu0 0.0
      %2333 = vmatmul.mubr.f32.gmra.mrb[0].mxu0 %v1912
      %v2334 = vpop.f32.mrb[0].mxu0
      %v2335 = vadd.f32 %v2187, %v2334
      %v2336 = vpop.f32.mrb[0].mxu0
      %2337 = vmatprep.mubr.f32.mxu0 0.0
      %2338 = vmatmul.mubr.f32.gmra.mrb[0].mxu0 %v1915
      %v2339 = vpop.f32.mrb[0].mxu0
      %v2340 = vadd.f32 %v2192, %v2339
      %v2341 = vpop.f32.mrb[0].mxu0
      %2342 = vmatprep.mubr.f32.mxu0 0.0
      %2343 = vmatmul.mubr.f32.gmra.mrb[0].mxu0 %v1918
      %v2344 = vpop.f32.mrb[0].mxu0
      %v2345 = vadd.f32 %v2197, %v2344
      %v2346 = vpop.f32.mrb[0].mxu0
      %2347 = vmatprep.mubr.f32.mxu0 0.0
      %2348 = vmatmul.mubr.f32.gmra.mrb[0].mxu0 %v1921
      %v2349 = vpop.f32.mrb[0].mxu0
      %v2350 = vadd.f32 %v2202, %v2349
      %v2351 = vpop.f32.mrb[0].mxu0
      %2352 = vmatprep.mubr.f32.mxu0 0.0
      %2353 = vmatmul.mubr.f32.gmra.mrb[0].mxu0 %v1924
      %v2354 = vpop.f32.mrb[0].mxu0
      %v2355 = vadd.f32 %v2207, %v2354
      %v2356 = vpop.f32.mrb[0].mxu0
      %2357 = vmatprep.mubr.f32.mxu0 0.0
      %2358 = vmatmul.mubr.f32.gmra.mrb[0].mxu0 %v1927
      %v2359 = vpop.f32.mrb[0].mxu0
      %v2360 = vadd.f32 %v2212, %v2359
      %v2361 = vpop.f32.mrb[0].mxu0
      %2362 = vmatprep.mubr.f32.mxu0 0.0
      %2363 = vmatmul.mubr.f32.gmra.mrb[0].mxu0 %v1930
      %v2364 = vpop.f32.mrb[0].mxu0
      %v2365 = vadd.f32 %v2217, %v2364
      %v2366 = vpop.f32.mrb[0].mxu0
      %2367 = vmatprep.mubr.f32.mxu0 0.0
      %2368 = vmatmul.mubr.f32.gmra.mrb[0].mxu0 %v1933
      %v2369 = vpop.f32.mrb[0].mxu0
      %v2370 = vadd.f32 %v2222, %v2369
      %v2371 = vpop.f32.mrb[0].mxu0
      %2372 = vmatprep.mubr.f32.mxu0 0.0
      %2373 = vmatmul.mubr.f32.gmra.mrb[0].mxu0 %v1936
      %v2374 = vpop.f32.mrb[0].mxu0
      %v2375 = vadd.f32 %v2227, %v2374
      %v2376 = vpop.f32.mrb[0].mxu0
      %2377 = vmatprep.mubr.f32.mxu0 0.0
      %2378 = vmatmul.mubr.f32.gmra.mrb[0].mxu0 %v1939
      %v2379 = vpop.f32.mrb[0].mxu0
      %v2380 = vadd.f32 %v2232, %v2379
      %v2381 = vpop.f32.mrb[0].mxu0
      %2382 = vmatprep.mubr.f32.mxu0 0.0
      %2383 = vmatmul.mubr.f32.gmra.mrb[0].mxu0 %v1942
      %v2384 = vpop.f32.mrb[0].mxu0
      %v2385 = vadd.f32 %v2237, %v2384
      %v2386 = vpop.f32.mrb[0].mxu0
      %2387 = vmatprep.mubr.f32.mxu0 0.0
      %2388 = vmatmul.mubr.f32.gmra.mrb[0].mxu0 %v1945
      %v2389 = vpop.f32.mrb[0].mxu0
      %v2390 = vadd.f32 %v2242, %v2389
      %v2391 = vpop.f32.mrb[0].mxu0
      %2392 = vdwg.mxu0
      %v2393 = vsel %vm1701, %v2017, -inf
      %v2394 = vrot.slane %v2393, 4
      %v2395 = vmax.f32 %v2393, %v2394
      %v2396 = vrot.slane %v2395, 2
      %v2397 = vmax.f32 %v2395, %v2396
      %v2398 = vrot.slane %v2397, 1
      %v2399 = vmax.f32 %v2397, %v2398
      %v2400 = vsel %vm1701, %v2022, -inf
      %v2401 = vrot.slane %v2400, 4
      %v2402 = vmax.f32 %v2400, %v2401
      %v2403 = vrot.slane %v2402, 2
      %v2404 = vmax.f32 %v2402, %v2403
      %v2405 = vrot.slane %v2404, 1
      %v2406 = vmax.f32 %v2404, %v2405
      %v2407 = vsel %vm1701, %v2027, -inf
      %v2408 = vrot.slane %v2407, 4
      %v2409 = vmax.f32 %v2407, %v2408
      %v2410 = vrot.slane %v2409, 2
      %v2411 = vmax.f32 %v2409, %v2410
      %v2412 = vrot.slane %v2411, 1
      %v2413 = vmax.f32 %v2411, %v2412
      %v2414 = vsel %vm1701, %v2032, -inf
      %v2415 = vrot.slane %v2414, 4
      %v2416 = vmax.f32 %v2414, %v2415
      %v2417 = vrot.slane %v2416, 2
      %v2418 = vmax.f32 %v2416, %v2417
      %v2419 = vrot.slane %v2418, 1
      %v2420 = vmax.f32 %v2418, %v2419
      %v2421 = vsel %vm1701, %v2037, -inf
      %v2422 = vrot.slane %v2421, 4
      %v2423 = vmax.f32 %v2421, %v2422
      %v2424 = vrot.slane %v2423, 2
      %v2425 = vmax.f32 %v2423, %v2424
      %v2426 = vrot.slane %v2425, 1
      %v2427 = vmax.f32 %v2425, %v2426
      %v2428 = vsel %vm1701, %v2042, -inf
      %v2429 = vrot.slane %v2428, 4
      %v2430 = vmax.f32 %v2428, %v2429
      %v2431 = vrot.slane %v2430, 2
      %v2432 = vmax.f32 %v2430, %v2431
      %v2433 = vrot.slane %v2432, 1
      %v2434 = vmax.f32 %v2432, %v2433
      %v2435 = vsel %vm1701, %v2047, -inf
      %v2436 = vrot.slane %v2435, 4
      %v2437 = vmax.f32 %v2435, %v2436
      %v2438 = vrot.slane %v2437, 2
      %v2439 = vmax.f32 %v2437, %v2438
      %v2440 = vrot.slane %v2439, 1
      %v2441 = vmax.f32 %v2439, %v2440
      %v2442 = vsel %vm1701, %v2052, -inf
      %v2443 = vrot.slane %v2442, 4
      %v2444 = vmax.f32 %v2442, %v2443
      %v2445 = vrot.slane %v2444, 2
      %v2446 = vmax.f32 %v2444, %v2445
      %v2447 = vrot.slane %v2446, 1
      %v2448 = vmax.f32 %v2446, %v2447
      %v2449 = vsel %vm1701, %v2057, -inf
      %v2450 = vrot.slane %v2449, 4
      %v2451 = vmax.f32 %v2449, %v2450
      %v2452 = vrot.slane %v2451, 2
      %v2453 = vmax.f32 %v2451, %v2452
      %v2454 = vrot.slane %v2453, 1
      %v2455 = vmax.f32 %v2453, %v2454
      %v2456 = vsel %vm1701, %v2062, -inf
      %v2457 = vrot.slane %v2456, 4
      %v2458 = vmax.f32 %v2456, %v2457
      %v2459 = vrot.slane %v2458, 2
      %v2460 = vmax.f32 %v2458, %v2459
      %v2461 = vrot.slane %v2460, 1
      %v2462 = vmax.f32 %v2460, %v2461
      %v2463 = vsel %vm1701, %v2067, -inf
      %v2464 = vrot.slane %v2463, 4
      %v2465 = vmax.f32 %v2463, %v2464
      %v2466 = vrot.slane %v2465, 2
      %v2467 = vmax.f32 %v2465, %v2466
      %v2468 = vrot.slane %v2467, 1
      %v2469 = vmax.f32 %v2467, %v2468
      %v2470 = vsel %vm1701, %v2072, -inf
      %v2471 = vrot.slane %v2470, 4
      %v2472 = vmax.f32 %v2470, %v2471
      %v2473 = vrot.slane %v2472, 2
      %v2474 = vmax.f32 %v2472, %v2473
      %v2475 = vrot.slane %v2474, 1
      %v2476 = vmax.f32 %v2474, %v2475
      %v2477 = vsel %vm1701, %v2077, -inf
      %v2478 = vrot.slane %v2477, 4
      %v2479 = vmax.f32 %v2477, %v2478
      %v2480 = vrot.slane %v2479, 2
      %v2481 = vmax.f32 %v2479, %v2480
      %v2482 = vrot.slane %v2481, 1
      %v2483 = vmax.f32 %v2481, %v2482
      %v2484 = vsel %vm1701, %v2082, -inf
      %v2485 = vrot.slane %v2484, 4
      %v2486 = vmax.f32 %v2484, %v2485
      %v2487 = vrot.slane %v2486, 2
      %v2488 = vmax.f32 %v2486, %v2487
      %v2489 = vrot.slane %v2488, 1
      %v2490 = vmax.f32 %v2488, %v2489
      %v2491 = vsel %vm1701, %v2087, -inf
      %v2492 = vrot.slane %v2491, 4
      %v2493 = vmax.f32 %v2491, %v2492
      %v2494 = vrot.slane %v2493, 2
      %v2495 = vmax.f32 %v2493, %v2494
      %v2496 = vrot.slane %v2495, 1
      %v2497 = vmax.f32 %v2495, %v2496
      %v2498 = vsel %vm1701, %v2092, -inf
      %v2499 = vrot.slane %v2498, 4
      %v2500 = vmax.f32 %v2498, %v2499
      %v2501 = vrot.slane %v2500, 2
      %v2502 = vmax.f32 %v2500, %v2501
      %v2503 = vrot.slane %v2502, 1
      %v2504 = vmax.f32 %v2502, %v2503
      %v2505 = vsub.f32 %v2017, %v2399
      %v2506 = vsub.f32 %v2022, %v2406
      %v2507 = vsub.f32 %v2027, %v2413
      %v2508 = vsub.f32 %v2032, %v2420
      %v2509 = vsub.f32 %v2037, %v2427
      %v2510 = vsub.f32 %v2042, %v2434
      %v2511 = vsub.f32 %v2047, %v2441
      %v2512 = vsub.f32 %v2052, %v2448
      %v2513 = vsub.f32 %v2057, %v2455
      %v2514 = vsub.f32 %v2062, %v2462
      %v2515 = vsub.f32 %v2067, %v2469
      %v2516 = vsub.f32 %v2072, %v2476
      %v2517 = vsub.f32 %v2077, %v2483
      %v2518 = vsub.f32 %v2082, %v2490
      %v2519 = vsub.f32 %v2087, %v2497
      %v2520 = vsub.f32 %v2092, %v2504
      %v2521 = vmul.f32 %v2505, 1.442695
      %v2522 = vpow.pop %v2521
      %v2523 = vmul.f32 %v2506, 1.442695
      %v2524 = vpow.pop %v2523
      %v2525 = vmul.f32 %v2507, 1.442695
      %v2526 = vpow.pop %v2525
      %v2527 = vmul.f32 %v2508, 1.442695
      %v2528 = vpow.pop %v2527
      %v2529 = vmul.f32 %v2509, 1.442695
      %v2530 = vpow.pop %v2529
      %v2531 = vmul.f32 %v2510, 1.442695
      %v2532 = vpow.pop %v2531
      %v2533 = vmul.f32 %v2511, 1.442695
      %v2534 = vpow.pop %v2533
      %v2535 = vmul.f32 %v2512, 1.442695
      %v2536 = vpow.pop %v2535
      %v2537 = vmul.f32 %v2513, 1.442695
      %v2538 = vpow.pop %v2537
      %v2539 = vmul.f32 %v2514, 1.442695
      %v2540 = vpow.pop %v2539
      %v2541 = vmul.f32 %v2515, 1.442695
      %v2542 = vpow.pop %v2541
      %v2543 = vmul.f32 %v2516, 1.442695
      %v2544 = vpow.pop %v2543
      %v2545 = vmul.f32 %v2517, 1.442695
      %v2546 = vpow.pop %v2545
      %v2547 = vmul.f32 %v2518, 1.442695
      %v2548 = vpow.pop %v2547
      %v2549 = vmul.f32 %v2519, 1.442695
      %v2550 = vpow.pop %v2549
      %v2551 = vmul.f32 %v2520, 1.442695
      %v2552 = vpow.pop %v2551
      %v2553 = vsel %vm1701, %v2522, 0.0
      %v2554 = vrot.slane %v2553, 4
      %v2555 = vadd.f32 %v2553, %v2554
      %v2556 = vrot.slane %v2555, 2
      %v2557 = vadd.f32 %v2555, %v2556
      %v2558 = vrot.slane %v2557, 1
      %v2559 = vadd.f32 %v2557, %v2558
      %v2560 = vsel %vm1701, %v2524, 0.0
      %v2561 = vrot.slane %v2560, 4
      %v2562 = vadd.f32 %v2560, %v2561
      %v2563 = vrot.slane %v2562, 2
      %v2564 = vadd.f32 %v2562, %v2563
      %v2565 = vrot.slane %v2564, 1
      %v2566 = vadd.f32 %v2564, %v2565
      %v2567 = vsel %vm1701, %v2526, 0.0
      %v2568 = vrot.slane %v2567, 4
      %v2569 = vadd.f32 %v2567, %v2568
      %v2570 = vrot.slane %v2569, 2
      %v2571 = vadd.f32 %v2569, %v2570
      %v2572 = vrot.slane %v2571, 1
      %v2573 = vadd.f32 %v2571, %v2572
      %v2574 = vsel %vm1701, %v2528, 0.0
      %v2575 = vrot.slane %v2574, 4
      %v2576 = vadd.f32 %v2574, %v2575
      %v2577 = vrot.slane %v2576, 2
      %v2578 = vadd.f32 %v2576, %v2577
      %v2579 = vrot.slane %v2578, 1
      %v2580 = vadd.f32 %v2578, %v2579
      %v2581 = vsel %vm1701, %v2530, 0.0
      %v2582 = vrot.slane %v2581, 4
      %v2583 = vadd.f32 %v2581, %v2582
      %v2584 = vrot.slane %v2583, 2
      %v2585 = vadd.f32 %v2583, %v2584
      %v2586 = vrot.slane %v2585, 1
      %v2587 = vadd.f32 %v2585, %v2586
      %v2588 = vsel %vm1701, %v2532, 0.0
      %v2589 = vrot.slane %v2588, 4
      %v2590 = vadd.f32 %v2588, %v2589
      %v2591 = vrot.slane %v2590, 2
      %v2592 = vadd.f32 %v2590, %v2591
      %v2593 = vrot.slane %v2592, 1
      %v2594 = vadd.f32 %v2592, %v2593
      %v2595 = vsel %vm1701, %v2534, 0.0
      %v2596 = vrot.slane %v2595, 4
      %v2597 = vadd.f32 %v2595, %v2596
      %v2598 = vrot.slane %v2597, 2
      %v2599 = vadd.f32 %v2597, %v2598
      %v2600 = vrot.slane %v2599, 1
      %v2601 = vadd.f32 %v2599, %v2600
      %v2602 = vsel %vm1701, %v2536, 0.0
      %v2603 = vrot.slane %v2602, 4
      %v2604 = vadd.f32 %v2602, %v2603
      %v2605 = vrot.slane %v2604, 2
      %v2606 = vadd.f32 %v2604, %v2605
      %v2607 = vrot.slane %v2606, 1
      %v2608 = vadd.f32 %v2606, %v2607
      %v2609 = vsel %vm1701, %v2538, 0.0
      %v2610 = vrot.slane %v2609, 4
      %v2611 = vadd.f32 %v2609, %v2610
      %v2612 = vrot.slane %v2611, 2
      %v2613 = vadd.f32 %v2611, %v2612
      %v2614 = vrot.slane %v2613, 1
      %v2615 = vadd.f32 %v2613, %v2614
      %v2616 = vsel %vm1701, %v2540, 0.0
      %v2617 = vrot.slane %v2616, 4
      %v2618 = vadd.f32 %v2616, %v2617
      %v2619 = vrot.slane %v2618, 2
      %v2620 = vadd.f32 %v2618, %v2619
      %v2621 = vrot.slane %v2620, 1
      %v2622 = vadd.f32 %v2620, %v2621
      %v2623 = vsel %vm1701, %v2542, 0.0
      %v2624 = vrot.slane %v2623, 4
      %v2625 = vadd.f32 %v2623, %v2624
      %v2626 = vrot.slane %v2625, 2
      %v2627 = vadd.f32 %v2625, %v2626
      %v2628 = vrot.slane %v2627, 1
      %v2629 = vadd.f32 %v2627, %v2628
      %v2630 = vsel %vm1701, %v2544, 0.0
      %v2631 = vrot.slane %v2630, 4
      %v2632 = vadd.f32 %v2630, %v2631
      %v2633 = vrot.slane %v2632, 2
      %v2634 = vadd.f32 %v2632, %v2633
      %v2635 = vrot.slane %v2634, 1
      %v2636 = vadd.f32 %v2634, %v2635
      %v2637 = vsel %vm1701, %v2546, 0.0
      %v2638 = vrot.slane %v2637, 4
      %v2639 = vadd.f32 %v2637, %v2638
      %v2640 = vrot.slane %v2639, 2
      %v2641 = vadd.f32 %v2639, %v2640
      %v2642 = vrot.slane %v2641, 1
      %v2643 = vadd.f32 %v2641, %v2642
      %v2644 = vsel %vm1701, %v2548, 0.0
      %v2645 = vrot.slane %v2644, 4
      %v2646 = vadd.f32 %v2644, %v2645
      %v2647 = vrot.slane %v2646, 2
      %v2648 = vadd.f32 %v2646, %v2647
      %v2649 = vrot.slane %v2648, 1
      %v2650 = vadd.f32 %v2648, %v2649
      %v2651 = vsel %vm1701, %v2550, 0.0
      %v2652 = vrot.slane %v2651, 4
      %v2653 = vadd.f32 %v2651, %v2652
      %v2654 = vrot.slane %v2653, 2
      %v2655 = vadd.f32 %v2653, %v2654
      %v2656 = vrot.slane %v2655, 1
      %v2657 = vadd.f32 %v2655, %v2656
      %v2658 = vsel %vm1701, %v2552, 0.0
      %v2659 = vrot.slane %v2658, 4
      %v2660 = vadd.f32 %v2658, %v2659
      %v2661 = vrot.slane %v2660, 2
      %v2662 = vadd.f32 %v2660, %v2661
      %v2663 = vrot.slane %v2662, 1
      %v2664 = vadd.f32 %v2662, %v2663
      %v2665 = vrcp.pop %v2559
      %v2666 = vrcp.pop %v2566
      %v2667 = vrcp.pop %v2573
      %v2668 = vrcp.pop %v2580
      %v2669 = vrcp.pop %v2587
      %v2670 = vrcp.pop %v2594
      %v2671 = vrcp.pop %v2601
      %v2672 = vrcp.pop %v2608
      %v2673 = vrcp.pop %v2615
      %v2674 = vrcp.pop %v2622
      %v2675 = vrcp.pop %v2629
      %v2676 = vrcp.pop %v2636
      %v2677 = vrcp.pop %v2643
      %v2678 = vrcp.pop %v2650
      %v2679 = vrcp.pop %v2657
      %v2680 = vrcp.pop %v2664
      %v2681 = vmul.f32 %v2522, %v2665
      %v2682 = vmul.f32 %v2524, %v2666
      %v2683 = vmul.f32 %v2526, %v2667
      %v2684 = vmul.f32 %v2528, %v2668
      %v2685 = vmul.f32 %v2530, %v2669
      %v2686 = vmul.f32 %v2532, %v2670
      %v2687 = vmul.f32 %v2534, %v2671
      %v2688 = vmul.f32 %v2536, %v2672
      %v2689 = vmul.f32 %v2538, %v2673
      %v2690 = vmul.f32 %v2540, %v2674
      %v2691 = vmul.f32 %v2542, %v2675
      %v2692 = vmul.f32 %v2544, %v2676
      %v2693 = vmul.f32 %v2546, %v2677
      %v2694 = vmul.f32 %v2548, %v2678
      %v2695 = vmul.f32 %v2550, %v2679
      %v2696 = vmul.f32 %v2552, %v2680
      %v2697 = vmul.f32 %v606, %v2681
      %v2698 = vmul.f32 %v607, %v2682
      %v2699 = vmul.f32 %v608, %v2683
      %v2700 = vmul.f32 %v609, %v2684
      %v2701 = vmul.f32 %v610, %v2685
      %v2702 = vmul.f32 %v611, %v2686
      %v2703 = vmul.f32 %v612, %v2687
      %v2704 = vmul.f32 %v613, %v2688
      %v2705 = vmul.f32 %v614, %v2689
      %v2706 = vmul.f32 %v615, %v2690
      %v2707 = vmul.f32 %v616, %v2691
      %v2708 = vmul.f32 %v617, %v2692
      %v2709 = vmul.f32 %v618, %v2693
      %v2710 = vmul.f32 %v619, %v2694
      %v2711 = vmul.f32 %v620, %v2695
      %v2712 = vmul.f32 %v621, %v2696
      %v2713 = vsel %vm1701, %v2697, 0.0
      %v2714 = vrot.slane %v2713, 4
      %v2715 = vadd.f32 %v2713, %v2714
      %v2716 = vrot.slane %v2715, 2
      %v2717 = vadd.f32 %v2715, %v2716
      %v2718 = vrot.slane %v2717, 1
      %v2719 = vadd.f32 %v2717, %v2718
      %v2720 = vsel %vm1701, %v2698, 0.0
      %v2721 = vrot.slane %v2720, 4
      %v2722 = vadd.f32 %v2720, %v2721
      %v2723 = vrot.slane %v2722, 2
      %v2724 = vadd.f32 %v2722, %v2723
      %v2725 = vrot.slane %v2724, 1
      %v2726 = vadd.f32 %v2724, %v2725
      %v2727 = vsel %vm1701, %v2699, 0.0
      %v2728 = vrot.slane %v2727, 4
      %v2729 = vadd.f32 %v2727, %v2728
      %v2730 = vrot.slane %v2729, 2
      %v2731 = vadd.f32 %v2729, %v2730
      %v2732 = vrot.slane %v2731, 1
      %v2733 = vadd.f32 %v2731, %v2732
      %v2734 = vsel %vm1701, %v2700, 0.0
      %v2735 = vrot.slane %v2734, 4
      %v2736 = vadd.f32 %v2734, %v2735
      %v2737 = vrot.slane %v2736, 2
      %v2738 = vadd.f32 %v2736, %v2737
      %v2739 = vrot.slane %v2738, 1
      %v2740 = vadd.f32 %v2738, %v2739
      %v2741 = vsel %vm1701, %v2701, 0.0
      %v2742 = vrot.slane %v2741, 4
      %v2743 = vadd.f32 %v2741, %v2742
      %v2744 = vrot.slane %v2743, 2
      %v2745 = vadd.f32 %v2743, %v2744
      %v2746 = vrot.slane %v2745, 1
      %v2747 = vadd.f32 %v2745, %v2746
      %v2748 = vsel %vm1701, %v2702, 0.0
      %v2749 = vrot.slane %v2748, 4
      %v2750 = vadd.f32 %v2748, %v2749
      %v2751 = vrot.slane %v2750, 2
      %v2752 = vadd.f32 %v2750, %v2751
      %v2753 = vrot.slane %v2752, 1
      %v2754 = vadd.f32 %v2752, %v2753
      %v2755 = vsel %vm1701, %v2703, 0.0
      %v2756 = vrot.slane %v2755, 4
      %v2757 = vadd.f32 %v2755, %v2756
      %v2758 = vrot.slane %v2757, 2
      %v2759 = vadd.f32 %v2757, %v2758
      %v2760 = vrot.slane %v2759, 1
      %v2761 = vadd.f32 %v2759, %v2760
      %v2762 = vsel %vm1701, %v2704, 0.0
      %v2763 = vrot.slane %v2762, 4
      %v2764 = vadd.f32 %v2762, %v2763
      %v2765 = vrot.slane %v2764, 2
      %v2766 = vadd.f32 %v2764, %v2765
      %v2767 = vrot.slane %v2766, 1
      %v2768 = vadd.f32 %v2766, %v2767
      %v2769 = vsel %vm1701, %v2705, 0.0
      %v2770 = vrot.slane %v2769, 4
      %v2771 = vadd.f32 %v2769, %v2770
      %v2772 = vrot.slane %v2771, 2
      %v2773 = vadd.f32 %v2771, %v2772
      %v2774 = vrot.slane %v2773, 1
      %v2775 = vadd.f32 %v2773, %v2774
      %v2776 = vsel %vm1701, %v2706, 0.0
      %v2777 = vrot.slane %v2776, 4
      %v2778 = vadd.f32 %v2776, %v2777
      %v2779 = vrot.slane %v2778, 2
      %v2780 = vadd.f32 %v2778, %v2779
      %v2781 = vrot.slane %v2780, 1
      %v2782 = vadd.f32 %v2780, %v2781
      %v2783 = vsel %vm1701, %v2707, 0.0
      %v2784 = vrot.slane %v2783, 4
      %v2785 = vadd.f32 %v2783, %v2784
      %v2786 = vrot.slane %v2785, 2
      %v2787 = vadd.f32 %v2785, %v2786
      %v2788 = vrot.slane %v2787, 1
      %v2789 = vadd.f32 %v2787, %v2788
      %v2790 = vsel %vm1701, %v2708, 0.0
      %v2791 = vrot.slane %v2790, 4
      %v2792 = vadd.f32 %v2790, %v2791
      %v2793 = vrot.slane %v2792, 2
      %v2794 = vadd.f32 %v2792, %v2793
      %v2795 = vrot.slane %v2794, 1
      %v2796 = vadd.f32 %v2794, %v2795
      %v2797 = vsel %vm1701, %v2709, 0.0
      %v2798 = vrot.slane %v2797, 4
      %v2799 = vadd.f32 %v2797, %v2798
      %v2800 = vrot.slane %v2799, 2
      %v2801 = vadd.f32 %v2799, %v2800
      %v2802 = vrot.slane %v2801, 1
      %v2803 = vadd.f32 %v2801, %v2802
      %v2804 = vsel %vm1701, %v2710, 0.0
      %v2805 = vrot.slane %v2804, 4
      %v2806 = vadd.f32 %v2804, %v2805
      %v2807 = vrot.slane %v2806, 2
      %v2808 = vadd.f32 %v2806, %v2807
      %v2809 = vrot.slane %v2808, 1
      %v2810 = vadd.f32 %v2808, %v2809
      %v2811 = vsel %vm1701, %v2711, 0.0
      %v2812 = vrot.slane %v2811, 4
      %v2813 = vadd.f32 %v2811, %v2812
      %v2814 = vrot.slane %v2813, 2
      %v2815 = vadd.f32 %v2813, %v2814
      %v2816 = vrot.slane %v2815, 1
      %v2817 = vadd.f32 %v2815, %v2816
      %v2818 = vsel %vm1701, %v2712, 0.0
      %v2819 = vrot.slane %v2818, 4
      %v2820 = vadd.f32 %v2818, %v2819
      %v2821 = vrot.slane %v2820, 2
      %v2822 = vadd.f32 %v2820, %v2821
      %v2823 = vrot.slane %v2822, 1
      %v2824 = vadd.f32 %v2822, %v2823
      %v2825 = vsel %vm1701, %v2315, -inf
      %v2826 = vrot.slane %v2825, 4
      %v2827 = vmax.f32 %v2825, %v2826
      %v2828 = vrot.slane %v2827, 2
      %v2829 = vmax.f32 %v2827, %v2828
      %v2830 = vrot.slane %v2829, 1
      %v2831 = vmax.f32 %v2829, %v2830
      %v2832 = vsel %vm1701, %v2320, -inf
      %v2833 = vrot.slane %v2832, 4
      %v2834 = vmax.f32 %v2832, %v2833
      %v2835 = vrot.slane %v2834, 2
      %v2836 = vmax.f32 %v2834, %v2835
      %v2837 = vrot.slane %v2836, 1
      %v2838 = vmax.f32 %v2836, %v2837
      %v2839 = vsel %vm1701, %v2325, -inf
      %v2840 = vrot.slane %v2839, 4
      %v2841 = vmax.f32 %v2839, %v2840
      %v2842 = vrot.slane %v2841, 2
      %v2843 = vmax.f32 %v2841, %v2842
      %v2844 = vrot.slane %v2843, 1
      %v2845 = vmax.f32 %v2843, %v2844
      %v2846 = vsel %vm1701, %v2330, -inf
      %v2847 = vrot.slane %v2846, 4
      %v2848 = vmax.f32 %v2846, %v2847
      %v2849 = vrot.slane %v2848, 2
      %v2850 = vmax.f32 %v2848, %v2849
      %v2851 = vrot.slane %v2850, 1
      %v2852 = vmax.f32 %v2850, %v2851
      %v2853 = vsel %vm1701, %v2335, -inf
      %v2854 = vrot.slane %v2853, 4
      %v2855 = vmax.f32 %v2853, %v2854
      %v2856 = vrot.slane %v2855, 2
      %v2857 = vmax.f32 %v2855, %v2856
      %v2858 = vrot.slane %v2857, 1
      %v2859 = vmax.f32 %v2857, %v2858
      %v2860 = vsel %vm1701, %v2340, -inf
      %v2861 = vrot.slane %v2860, 4
      %v2862 = vmax.f32 %v2860, %v2861
      %v2863 = vrot.slane %v2862, 2
      %v2864 = vmax.f32 %v2862, %v2863
      %v2865 = vrot.slane %v2864, 1
      %v2866 = vmax.f32 %v2864, %v2865
      %v2867 = vsel %vm1701, %v2345, -inf
      %v2868 = vrot.slane %v2867, 4
      %v2869 = vmax.f32 %v2867, %v2868
      %v2870 = vrot.slane %v2869, 2
      %v2871 = vmax.f32 %v2869, %v2870
      %v2872 = vrot.slane %v2871, 1
      %v2873 = vmax.f32 %v2871, %v2872
      %v2874 = vsel %vm1701, %v2350, -inf
      %v2875 = vrot.slane %v2874, 4
      %v2876 = vmax.f32 %v2874, %v2875
      %v2877 = vrot.slane %v2876, 2
      %v2878 = vmax.f32 %v2876, %v2877
      %v2879 = vrot.slane %v2878, 1
      %v2880 = vmax.f32 %v2878, %v2879
      %v2881 = vsel %vm1701, %v2355, -inf
      %v2882 = vrot.slane %v2881, 4
      %v2883 = vmax.f32 %v2881, %v2882
      %v2884 = vrot.slane %v2883, 2
      %v2885 = vmax.f32 %v2883, %v2884
      %v2886 = vrot.slane %v2885, 1
      %v2887 = vmax.f32 %v2885, %v2886
      %v2888 = vsel %vm1701, %v2360, -inf
      %v2889 = vrot.slane %v2888, 4
      %v2890 = vmax.f32 %v2888, %v2889
      %v2891 = vrot.slane %v2890, 2
      %v2892 = vmax.f32 %v2890, %v2891
      %v2893 = vrot.slane %v2892, 1
      %v2894 = vmax.f32 %v2892, %v2893
      %v2895 = vsel %vm1701, %v2365, -inf
      %v2896 = vrot.slane %v2895, 4
      %v2897 = vmax.f32 %v2895, %v2896
      %v2898 = vrot.slane %v2897, 2
      %v2899 = vmax.f32 %v2897, %v2898
      %v2900 = vrot.slane %v2899, 1
      %v2901 = vmax.f32 %v2899, %v2900
      %v2902 = vsel %vm1701, %v2370, -inf
      %v2903 = vrot.slane %v2902, 4
      %v2904 = vmax.f32 %v2902, %v2903
      %v2905 = vrot.slane %v2904, 2
      %v2906 = vmax.f32 %v2904, %v2905
      %v2907 = vrot.slane %v2906, 1
      %v2908 = vmax.f32 %v2906, %v2907
      %v2909 = vsel %vm1701, %v2375, -inf
      %v2910 = vrot.slane %v2909, 4
      %v2911 = vmax.f32 %v2909, %v2910
      %v2912 = vrot.slane %v2911, 2
      %v2913 = vmax.f32 %v2911, %v2912
      %v2914 = vrot.slane %v2913, 1
      %v2915 = vmax.f32 %v2913, %v2914
      %v2916 = vsel %vm1701, %v2380, -inf
      %v2917 = vrot.slane %v2916, 4
      %v2918 = vmax.f32 %v2916, %v2917
      %v2919 = vrot.slane %v2918, 2
      %v2920 = vmax.f32 %v2918, %v2919
      %v2921 = vrot.slane %v2920, 1
      %v2922 = vmax.f32 %v2920, %v2921
      %v2923 = vsel %vm1701, %v2385, -inf
      %v2924 = vrot.slane %v2923, 4
      %v2925 = vmax.f32 %v2923, %v2924
      %v2926 = vrot.slane %v2925, 2
      %v2927 = vmax.f32 %v2925, %v2926
      %v2928 = vrot.slane %v2927, 1
      %v2929 = vmax.f32 %v2927, %v2928
      %v2930 = vsel %vm1701, %v2390, -inf
      %v2931 = vrot.slane %v2930, 4
      %v2932 = vmax.f32 %v2930, %v2931
      %v2933 = vrot.slane %v2932, 2
      %v2934 = vmax.f32 %v2932, %v2933
      %v2935 = vrot.slane %v2934, 1
      %v2936 = vmax.f32 %v2934, %v2935
      %v2937 = vsub.f32 %v2315, %v2831
      %v2938 = vsub.f32 %v2320, %v2838
      %v2939 = vsub.f32 %v2325, %v2845
      %v2940 = vsub.f32 %v2330, %v2852
      %v2941 = vsub.f32 %v2335, %v2859
      %v2942 = vsub.f32 %v2340, %v2866
      %v2943 = vsub.f32 %v2345, %v2873
      %v2944 = vsub.f32 %v2350, %v2880
      %v2945 = vsub.f32 %v2355, %v2887
      %v2946 = vsub.f32 %v2360, %v2894
      %v2947 = vsub.f32 %v2365, %v2901
      %v2948 = vsub.f32 %v2370, %v2908
      %v2949 = vsub.f32 %v2375, %v2915
      %v2950 = vsub.f32 %v2380, %v2922
      %v2951 = vsub.f32 %v2385, %v2929
      %v2952 = vsub.f32 %v2390, %v2936
      %v2953 = vmul.f32 %v2937, 1.442695
      %v2954 = vpow.pop %v2953
      %v2955 = vmul.f32 %v2938, 1.442695
      %v2956 = vpow.pop %v2955
      %v2957 = vmul.f32 %v2939, 1.442695
      %v2958 = vpow.pop %v2957
      %v2959 = vmul.f32 %v2940, 1.442695
      %v2960 = vpow.pop %v2959
      %v2961 = vmul.f32 %v2941, 1.442695
      %v2962 = vpow.pop %v2961
      %v2963 = vmul.f32 %v2942, 1.442695
      %v2964 = vpow.pop %v2963
      %v2965 = vmul.f32 %v2943, 1.442695
      %v2966 = vpow.pop %v2965
      %v2967 = vmul.f32 %v2944, 1.442695
      %v2968 = vpow.pop %v2967
      %v2969 = vmul.f32 %v2945, 1.442695
      %v2970 = vpow.pop %v2969
      %v2971 = vmul.f32 %v2946, 1.442695
      %v2972 = vpow.pop %v2971
      %v2973 = vmul.f32 %v2947, 1.442695
      %v2974 = vpow.pop %v2973
      %v2975 = vmul.f32 %v2948, 1.442695
      %v2976 = vpow.pop %v2975
      %v2977 = vmul.f32 %v2949, 1.442695
      %v2978 = vpow.pop %v2977
      %v2979 = vmul.f32 %v2950, 1.442695
      %v2980 = vpow.pop %v2979
      %v2981 = vmul.f32 %v2951, 1.442695
      %v2982 = vpow.pop %v2981
      %v2983 = vmul.f32 %v2952, 1.442695
      %v2984 = vpow.pop %v2983
      %v2985 = vsel %vm1701, %v2954, 0.0
      %v2986 = vrot.slane %v2985, 4
      %v2987 = vadd.f32 %v2985, %v2986
      %v2988 = vrot.slane %v2987, 2
      %v2989 = vadd.f32 %v2987, %v2988
      %v2990 = vrot.slane %v2989, 1
      %v2991 = vadd.f32 %v2989, %v2990
      %v2992 = vsel %vm1701, %v2956, 0.0
      %v2993 = vrot.slane %v2992, 4
      %v2994 = vadd.f32 %v2992, %v2993
      %v2995 = vrot.slane %v2994, 2
      %v2996 = vadd.f32 %v2994, %v2995
      %v2997 = vrot.slane %v2996, 1
      %v2998 = vadd.f32 %v2996, %v2997
      %v2999 = vsel %vm1701, %v2958, 0.0
      %v3000 = vrot.slane %v2999, 4
      %v3001 = vadd.f32 %v2999, %v3000
      %v3002 = vrot.slane %v3001, 2
      %v3003 = vadd.f32 %v3001, %v3002
      %v3004 = vrot.slane %v3003, 1
      %v3005 = vadd.f32 %v3003, %v3004
      %v3006 = vsel %vm1701, %v2960, 0.0
      %v3007 = vrot.slane %v3006, 4
      %v3008 = vadd.f32 %v3006, %v3007
      %v3009 = vrot.slane %v3008, 2
      %v3010 = vadd.f32 %v3008, %v3009
      %v3011 = vrot.slane %v3010, 1
      %v3012 = vadd.f32 %v3010, %v3011
      %v3013 = vsel %vm1701, %v2962, 0.0
      %v3014 = vrot.slane %v3013, 4
      %v3015 = vadd.f32 %v3013, %v3014
      %v3016 = vrot.slane %v3015, 2
      %v3017 = vadd.f32 %v3015, %v3016
      %v3018 = vrot.slane %v3017, 1
      %v3019 = vadd.f32 %v3017, %v3018
      %v3020 = vsel %vm1701, %v2964, 0.0
      %v3021 = vrot.slane %v3020, 4
      %v3022 = vadd.f32 %v3020, %v3021
      %v3023 = vrot.slane %v3022, 2
      %v3024 = vadd.f32 %v3022, %v3023
      %v3025 = vrot.slane %v3024, 1
      %v3026 = vadd.f32 %v3024, %v3025
      %v3027 = vsel %vm1701, %v2966, 0.0
      %v3028 = vrot.slane %v3027, 4
      %v3029 = vadd.f32 %v3027, %v3028
      %v3030 = vrot.slane %v3029, 2
      %v3031 = vadd.f32 %v3029, %v3030
      %v3032 = vrot.slane %v3031, 1
      %v3033 = vadd.f32 %v3031, %v3032
      %v3034 = vsel %vm1701, %v2968, 0.0
      %v3035 = vrot.slane %v3034, 4
      %v3036 = vadd.f32 %v3034, %v3035
      %v3037 = vrot.slane %v3036, 2
      %v3038 = vadd.f32 %v3036, %v3037
      %v3039 = vrot.slane %v3038, 1
      %v3040 = vadd.f32 %v3038, %v3039
      %v3041 = vsel %vm1701, %v2970, 0.0
      %v3042 = vrot.slane %v3041, 4
      %v3043 = vadd.f32 %v3041, %v3042
      %v3044 = vrot.slane %v3043, 2
      %v3045 = vadd.f32 %v3043, %v3044
      %v3046 = vrot.slane %v3045, 1
      %v3047 = vadd.f32 %v3045, %v3046
      %v3048 = vsel %vm1701, %v2972, 0.0
      %v3049 = vrot.slane %v3048, 4
      %v3050 = vadd.f32 %v3048, %v3049
      %v3051 = vrot.slane %v3050, 2
      %v3052 = vadd.f32 %v3050, %v3051
      %v3053 = vrot.slane %v3052, 1
      %v3054 = vadd.f32 %v3052, %v3053
      %v3055 = vsel %vm1701, %v2974, 0.0
      %v3056 = vrot.slane %v3055, 4
      %v3057 = vadd.f32 %v3055, %v3056
      %v3058 = vrot.slane %v3057, 2
      %v3059 = vadd.f32 %v3057, %v3058
      %v3060 = vrot.slane %v3059, 1
      %v3061 = vadd.f32 %v3059, %v3060
      %v3062 = vsel %vm1701, %v2976, 0.0
      %v3063 = vrot.slane %v3062, 4
      %v3064 = vadd.f32 %v3062, %v3063
      %v3065 = vrot.slane %v3064, 2
      %v3066 = vadd.f32 %v3064, %v3065
      %v3067 = vrot.slane %v3066, 1
      %v3068 = vadd.f32 %v3066, %v3067
      %v3069 = vsel %vm1701, %v2978, 0.0
      %v3070 = vrot.slane %v3069, 4
      %v3071 = vadd.f32 %v3069, %v3070
      %v3072 = vrot.slane %v3071, 2
      %v3073 = vadd.f32 %v3071, %v3072
      %v3074 = vrot.slane %v3073, 1
      %v3075 = vadd.f32 %v3073, %v3074
      %v3076 = vsel %vm1701, %v2980, 0.0
      %v3077 = vrot.slane %v3076, 4
      %v3078 = vadd.f32 %v3076, %v3077
      %v3079 = vrot.slane %v3078, 2
      %v3080 = vadd.f32 %v3078, %v3079
      %v3081 = vrot.slane %v3080, 1
      %v3082 = vadd.f32 %v3080, %v3081
      %v3083 = vsel %vm1701, %v2982, 0.0
      %v3084 = vrot.slane %v3083, 4
      %v3085 = vadd.f32 %v3083, %v3084
      %v3086 = vrot.slane %v3085, 2
      %v3087 = vadd.f32 %v3085, %v3086
      %v3088 = vrot.slane %v3087, 1
      %v3089 = vadd.f32 %v3087, %v3088
      %v3090 = vsel %vm1701, %v2984, 0.0
      %v3091 = vrot.slane %v3090, 4
      %v3092 = vadd.f32 %v3090, %v3091
      %v3093 = vrot.slane %v3092, 2
      %v3094 = vadd.f32 %v3092, %v3093
      %v3095 = vrot.slane %v3094, 1
      %v3096 = vadd.f32 %v3094, %v3095
      %v3097 = vrcp.pop %v2991
      %v3098 = vrcp.pop %v2998
      %v3099 = vrcp.pop %v3005
      %v3100 = vrcp.pop %v3012
      %v3101 = vrcp.pop %v3019
      %v3102 = vrcp.pop %v3026
      %v3103 = vrcp.pop %v3033
      %v3104 = vrcp.pop %v3040
      %v3105 = vrcp.pop %v3047
      %v3106 = vrcp.pop %v3054
      %v3107 = vrcp.pop %v3061
      %v3108 = vrcp.pop %v3068
      %v3109 = vrcp.pop %v3075
      %v3110 = vrcp.pop %v3082
      %v3111 = vrcp.pop %v3089
      %v3112 = vrcp.pop %v3096
      %v3113 = vmul.f32 %v2954, %v3097
      %v3114 = vmul.f32 %v2956, %v3098
      %v3115 = vmul.f32 %v2958, %v3099
      %v3116 = vmul.f32 %v2960, %v3100
      %v3117 = vmul.f32 %v2962, %v3101
      %v3118 = vmul.f32 %v2964, %v3102
      %v3119 = vmul.f32 %v2966, %v3103
      %v3120 = vmul.f32 %v2968, %v3104
      %v3121 = vmul.f32 %v2970, %v3105
      %v3122 = vmul.f32 %v2972, %v3106
      %v3123 = vmul.f32 %v2974, %v3107
      %v3124 = vmul.f32 %v2976, %v3108
      %v3125 = vmul.f32 %v2978, %v3109
      %v3126 = vmul.f32 %v2980, %v3110
      %v3127 = vmul.f32 %v2982, %v3111
      %v3128 = vmul.f32 %v2984, %v3112
      %v3129 = vmul.f32 %v1683, %v3113
      %v3130 = vmul.f32 %v1684, %v3114
      %v3131 = vmul.f32 %v1685, %v3115
      %v3132 = vmul.f32 %v1686, %v3116
      %v3133 = vmul.f32 %v1687, %v3117
      %v3134 = vmul.f32 %v1688, %v3118
      %v3135 = vmul.f32 %v1689, %v3119
      %v3136 = vmul.f32 %v1690, %v3120
      %v3137 = vmul.f32 %v1691, %v3121
      %v3138 = vmul.f32 %v1692, %v3122
      %v3139 = vmul.f32 %v1693, %v3123
      %v3140 = vmul.f32 %v1694, %v3124
      %v3141 = vmul.f32 %v1695, %v3125
      %v3142 = vmul.f32 %v1696, %v3126
      %v3143 = vmul.f32 %v1697, %v3127
      %v3144 = vmul.f32 %v1698, %v3128
      %v3145 = vsel %vm1701, %v3129, 0.0
      %v3146 = vrot.slane %v3145, 4
      %v3147 = vadd.f32 %v3145, %v3146
      %v3148 = vrot.slane %v3147, 2
      %v3149 = vadd.f32 %v3147, %v3148
      %v3150 = vrot.slane %v3149, 1
      %v3151 = vadd.f32 %v3149, %v3150
      %v3152 = vsel %vm1701, %v3130, 0.0
      %v3153 = vrot.slane %v3152, 4
      %v3154 = vadd.f32 %v3152, %v3153
      %v3155 = vrot.slane %v3154, 2
      %v3156 = vadd.f32 %v3154, %v3155
      %v3157 = vrot.slane %v3156, 1
      %v3158 = vadd.f32 %v3156, %v3157
      %v3159 = vsel %vm1701, %v3131, 0.0
      %v3160 = vrot.slane %v3159, 4
      %v3161 = vadd.f32 %v3159, %v3160
      %v3162 = vrot.slane %v3161, 2
      %v3163 = vadd.f32 %v3161, %v3162
      %v3164 = vrot.slane %v3163, 1
      %v3165 = vadd.f32 %v3163, %v3164
      %v3166 = vsel %vm1701, %v3132, 0.0
      %v3167 = vrot.slane %v3166, 4
      %v3168 = vadd.f32 %v3166, %v3167
      %v3169 = vrot.slane %v3168, 2
      %v3170 = vadd.f32 %v3168, %v3169
      %v3171 = vrot.slane %v3170, 1
      %v3172 = vadd.f32 %v3170, %v3171
      %v3173 = vsel %vm1701, %v3133, 0.0
      %v3174 = vrot.slane %v3173, 4
      %v3175 = vadd.f32 %v3173, %v3174
      %v3176 = vrot.slane %v3175, 2
      %v3177 = vadd.f32 %v3175, %v3176
      %v3178 = vrot.slane %v3177, 1
      %v3179 = vadd.f32 %v3177, %v3178
      %v3180 = vsel %vm1701, %v3134, 0.0
      %v3181 = vrot.slane %v3180, 4
      %v3182 = vadd.f32 %v3180, %v3181
      %v3183 = vrot.slane %v3182, 2
      %v3184 = vadd.f32 %v3182, %v3183
      %v3185 = vrot.slane %v3184, 1
      %v3186 = vadd.f32 %v3184, %v3185
      %v3187 = vsel %vm1701, %v3135, 0.0
      %v3188 = vrot.slane %v3187, 4
      %v3189 = vadd.f32 %v3187, %v3188
      %v3190 = vrot.slane %v3189, 2
      %v3191 = vadd.f32 %v3189, %v3190
      %v3192 = vrot.slane %v3191, 1
      %v3193 = vadd.f32 %v3191, %v3192
      %v3194 = vsel %vm1701, %v3136, 0.0
      %v3195 = vrot.slane %v3194, 4
      %v3196 = vadd.f32 %v3194, %v3195
      %v3197 = vrot.slane %v3196, 2
      %v3198 = vadd.f32 %v3196, %v3197
      %v3199 = vrot.slane %v3198, 1
      %v3200 = vadd.f32 %v3198, %v3199
      %v3201 = vsel %vm1701, %v3137, 0.0
      %v3202 = vrot.slane %v3201, 4
      %v3203 = vadd.f32 %v3201, %v3202
      %v3204 = vrot.slane %v3203, 2
      %v3205 = vadd.f32 %v3203, %v3204
      %v3206 = vrot.slane %v3205, 1
      %v3207 = vadd.f32 %v3205, %v3206
      %v3208 = vsel %vm1701, %v3138, 0.0
      %v3209 = vrot.slane %v3208, 4
      %v3210 = vadd.f32 %v3208, %v3209
      %v3211 = vrot.slane %v3210, 2
      %v3212 = vadd.f32 %v3210, %v3211
      %v3213 = vrot.slane %v3212, 1
      %v3214 = vadd.f32 %v3212, %v3213
      %v3215 = vsel %vm1701, %v3139, 0.0
      %v3216 = vrot.slane %v3215, 4
      %v3217 = vadd.f32 %v3215, %v3216
      %v3218 = vrot.slane %v3217, 2
      %v3219 = vadd.f32 %v3217, %v3218
      %v3220 = vrot.slane %v3219, 1
      %v3221 = vadd.f32 %v3219, %v3220
      %v3222 = vsel %vm1701, %v3140, 0.0
      %v3223 = vrot.slane %v3222, 4
      %v3224 = vadd.f32 %v3222, %v3223
      %v3225 = vrot.slane %v3224, 2
      %v3226 = vadd.f32 %v3224, %v3225
      %v3227 = vrot.slane %v3226, 1
      %v3228 = vadd.f32 %v3226, %v3227
      %v3229 = vsel %vm1701, %v3141, 0.0
      %v3230 = vrot.slane %v3229, 4
      %v3231 = vadd.f32 %v3229, %v3230
      %v3232 = vrot.slane %v3231, 2
      %v3233 = vadd.f32 %v3231, %v3232
      %v3234 = vrot.slane %v3233, 1
      %v3235 = vadd.f32 %v3233, %v3234
      %v3236 = vsel %vm1701, %v3142, 0.0
      %v3237 = vrot.slane %v3236, 4
      %v3238 = vadd.f32 %v3236, %v3237
      %v3239 = vrot.slane %v3238, 2
      %v3240 = vadd.f32 %v3238, %v3239
      %v3241 = vrot.slane %v3240, 1
      %v3242 = vadd.f32 %v3240, %v3241
      %v3243 = vsel %vm1701, %v3143, 0.0
      %v3244 = vrot.slane %v3243, 4
      %v3245 = vadd.f32 %v3243, %v3244
      %v3246 = vrot.slane %v3245, 2
      %v3247 = vadd.f32 %v3245, %v3246
      %v3248 = vrot.slane %v3247, 1
      %v3249 = vadd.f32 %v3247, %v3248
      %v3250 = vsel %vm1701, %v3144, 0.0
      %v3251 = vrot.slane %v3250, 4
      %v3252 = vadd.f32 %v3250, %v3251
      %v3253 = vrot.slane %v3252, 2
      %v3254 = vadd.f32 %v3252, %v3253
      %v3255 = vrot.slane %v3254, 1
      %v3256 = vadd.f32 %v3254, %v3255
      %v3257 = vld [vmem:[%s12] sm:$0xf]
      %v3258 = vld [vmem:[%s13] sm:$0xf]
      %vm3275 = vcmask 1041409
      %v3276 = vsel %vm3275, %v3158, %v3151
      %vm3277 = vcmask 1042434
      %v3278 = vsel %vm3277, %v3165, %v3276
      %vm3279 = vcmask 1043459
      %v3280 = vsel %vm3279, %v3172, %v3278
      %vm3281 = vcmask 1044484
      %v3282 = vsel %vm3281, %v3179, %v3280
      %vm3283 = vcmask 1045509
      %v3284 = vsel %vm3283, %v3186, %v3282
      %vm3285 = vcmask 1046534
      %v3286 = vsel %vm3285, %v3193, %v3284
      %vm3287 = vcmask 1047559
      %v3288 = vsel %vm3287, %v3200, %v3286
      %v3289 = vsel %vm3275, %v3214, %v3207
      %v3290 = vsel %vm3277, %v3221, %v3289
      %v3291 = vsel %vm3279, %v3228, %v3290
      %v3292 = vsel %vm3281, %v3235, %v3291
      %v3293 = vsel %vm3283, %v3242, %v3292
      %v3294 = vsel %vm3285, %v3249, %v3293
      %v3295 = vsel %vm3287, %v3256, %v3294
      %v3296 = vsel %vm1701, %v3288, 0
      %v3298 = vsel %vm1701, %v3295, 0
      %v3301 = vsel %vm1750, %v3258, 0
      %3303 = vmatprep.subr.mxu0 0.0
      %3304 = vmatpush1.msra.mxu0 %v3301
      %3305 = vmatprep.subr.mxu0 0.0
      %3306 = vmatpush1.msra.mxu0 0.0
      %3307 = vmatprep.subr.mxu0 0.0
      %3308 = vmatpush1.msra.mxu0 0.0
      %3309 = vmatprep.subr.mxu0 0.0
      %3310 = vmatpush1.msra.mxu0 0.0
      %3311 = vmatprep.subr.mxu0 0.0
      %3312 = vmatpush1.msra.mxu0 0.0
      %3313 = vmatprep.subr.mxu0 0.0
      %3314 = vmatpush1.msra.mxu0 0.0
      %3315 = vmatprep.subr.mxu0 0.0
      %3316 = vmatpush1.msra.mxu0 0.0
      %3317 = vmatprep.subr.mxu0 0.0
      %3318 = vmatpush1.msra.mxu0 0.0
      %3319 = vmatprep.subr.mxu0 0.0
      %3320 = vmatpush1.msra.mxu0 0.0
      %3321 = vmatprep.subr.mxu0 0.0
      %3322 = vmatpush1.msra.mxu0 0.0
      %3323 = vmatprep.subr.mxu0 0.0
      %3324 = vmatpush1.msra.mxu0 0.0
      %3325 = vmatprep.subr.mxu0 0.0
      %3326 = vmatpush1.msra.mxu0 0.0
      %3327 = vmatprep.subr.mxu0 0.0
      %3328 = vmatpush1.msra.mxu0 0.0
      %3329 = vmatprep.subr.mxu0 0.0
      %3330 = vmatpush1.msra.mxu0 0.0
      %3331 = vmatprep.subr.mxu0 0.0
      %3332 = vmatpush1.msra.mxu0 0.0
      %3333 = vmatprep.subr.mxu0 0.0
      %3334 = vmatpush1.msra.mxu0 0.0
      %3335 = vmatprep.subr.mxu0 0.0
      %3336 = vmatpush1.msra.mxu0 0.0
      %3337 = vmatprep.subr.mxu0 0.0
      %3338 = vmatpush1.msra.mxu0 0.0
      %3339 = vmatprep.subr.mxu0 0.0
      %3340 = vmatpush1.msra.mxu0 0.0
      %3341 = vmatprep.subr.mxu0 0.0
      %3342 = vmatpush1.msra.mxu0 0.0
      %3343 = vmatprep.subr.mxu0 0.0
      %3344 = vmatpush1.msra.mxu0 0.0
      %3345 = vmatprep.subr.mxu0 0.0
      %3346 = vmatpush1.msra.mxu0 0.0
      %3347 = vmatprep.subr.mxu0 0.0
      %3348 = vmatpush1.msra.mxu0 0.0
      %3349 = vmatprep.subr.mxu0 0.0
      %3350 = vmatpush1.msra.mxu0 0.0
      %3351 = vmatprep.subr.mxu0 0.0
      %3352 = vmatpush1.msra.mxu0 0.0
      %3353 = vmatprep.subr.mxu0 0.0
      %3354 = vmatpush1.msra.mxu0 0.0
      %3355 = vmatprep.subr.mxu0 0.0
      %3356 = vmatpush1.msra.mxu0 0.0
      %3357 = vmatprep.subr.mxu0 0.0
      %3358 = vmatpush1.msra.mxu0 0.0
      %3359 = vmatprep.subr.mxu0 0.0
      %3360 = vmatpush1.msra.mxu0 0.0
      %3361 = vmatprep.subr.mxu0 0.0
      %3362 = vmatpush1.msra.mxu0 0.0
      %3363 = vmatprep.subr.mxu0 0.0
      %3364 = vmatpush1.msra.mxu0 0.0
      %3365 = vmatprep.subr.mxu0 0.0
      %3366 = vmatpush1.msra.mxu0 0.0
      %3367 = vmatprep.mubr.f32.mxu0 0.0
      %3368 = vmatmul.mubr.f32.gmra.mrb[0].mxu0 %v3296
      %v3369 = vpop.f32.mrb[0].mxu0
      %v3370 = vadd.f32 0.0, %v3369
      %v3371 = vpop.f32.mrb[0].mxu0
      %3372 = vmatprep.mubr.f32.mxu0 0.0
      %3373 = vmatmul.mubr.f32.gmra.mrb[0].mxu0 %v3298
      %v3374 = vpop.f32.mrb[0].mxu0
      %v3375 = vadd.f32 0.0, %v3374
      %v3376 = vpop.f32.mrb[0].mxu0
      %3377 = vdwg.mxu0
      %v3394 = vsel %vm3275, %v2726, %v2719
      %v3395 = vsel %vm3277, %v2733, %v3394
      %v3396 = vsel %vm3279, %v2740, %v3395
      %v3397 = vsel %vm3281, %v2747, %v3396
      %v3398 = vsel %vm3283, %v2754, %v3397
      %v3399 = vsel %vm3285, %v2761, %v3398
      %v3400 = vsel %vm3287, %v2768, %v3399
      %v3401 = vsel %vm3275, %v2782, %v2775
      %v3402 = vsel %vm3277, %v2789, %v3401
      %v3403 = vsel %vm3279, %v2796, %v3402
      %v3404 = vsel %vm3281, %v2803, %v3403
      %v3405 = vsel %vm3283, %v2810, %v3404
      %v3406 = vsel %vm3285, %v2817, %v3405
      %v3407 = vsel %vm3287, %v2824, %v3406
      %v3408 = vsel %vm1701, %v3400, 0
      %v3410 = vsel %vm1701, %v3407, 0
      %v3413 = vsel %vm1750, %v3257, 0
      %3415 = vmatprep.subr.mxu0 0.0
      %3416 = vmatpush1.msra.mxu0 %v3413
      %3417 = vmatprep.subr.mxu0 0.0
      %3418 = vmatpush1.msra.mxu0 0.0
      %3419 = vmatprep.subr.mxu0 0.0
      %3420 = vmatpush1.msra.mxu0 0.0
      %3421 = vmatprep.subr.mxu0 0.0
      %3422 = vmatpush1.msra.mxu0 0.0
      %3423 = vmatprep.subr.mxu0 0.0
      %3424 = vmatpush1.msra.mxu0 0.0
      %3425 = vmatprep.subr.mxu0 0.0
      %3426 = vmatpush1.msra.mxu0 0.0
      %3427 = vmatprep.subr.mxu0 0.0
      %3428 = vmatpush1.msra.mxu0 0.0
      %3429 = vmatprep.subr.mxu0 0.0
      %3430 = vmatpush1.msra.mxu0 0.0
      %3431 = vmatprep.subr.mxu0 0.0
      %3432 = vmatpush1.msra.mxu0 0.0
      %3433 = vmatprep.subr.mxu0 0.0
      %3434 = vmatpush1.msra.mxu0 0.0
      %3435 = vmatprep.subr.mxu0 0.0
      %3436 = vmatpush1.msra.mxu0 0.0
      %3437 = vmatprep.subr.mxu0 0.0
      %3438 = vmatpush1.msra.mxu0 0.0
      %3439 = vmatprep.subr.mxu0 0.0
      %3440 = vmatpush1.msra.mxu0 0.0
      %3441 = vmatprep.subr.mxu0 0.0
      %3442 = vmatpush1.msra.mxu0 0.0
      %3443 = vmatprep.subr.mxu0 0.0
      %3444 = vmatpush1.msra.mxu0 0.0
      %3445 = vmatprep.subr.mxu0 0.0
      %3446 = vmatpush1.msra.mxu0 0.0
      %3447 = vmatprep.subr.mxu0 0.0
      %3448 = vmatpush1.msra.mxu0 0.0
      %3449 = vmatprep.subr.mxu0 0.0
      %3450 = vmatpush1.msra.mxu0 0.0
      %3451 = vmatprep.subr.mxu0 0.0
      %3452 = vmatpush1.msra.mxu0 0.0
      %3453 = vmatprep.subr.mxu0 0.0
      %3454 = vmatpush1.msra.mxu0 0.0
      %3455 = vmatprep.subr.mxu0 0.0
      %3456 = vmatpush1.msra.mxu0 0.0
      %3457 = vmatprep.subr.mxu0 0.0
      %3458 = vmatpush1.msra.mxu0 0.0
      %3459 = vmatprep.subr.mxu0 0.0
      %3460 = vmatpush1.msra.mxu0 0.0
      %3461 = vmatprep.subr.mxu0 0.0
      %3462 = vmatpush1.msra.mxu0 0.0
      %3463 = vmatprep.subr.mxu0 0.0
      %3464 = vmatpush1.msra.mxu0 0.0
      %3465 = vmatprep.subr.mxu0 0.0
      %3466 = vmatpush1.msra.mxu0 0.0
      %3467 = vmatprep.subr.mxu0 0.0
      %3468 = vmatpush1.msra.mxu0 0.0
      %3469 = vmatprep.subr.mxu0 0.0
      %3470 = vmatpush1.msra.mxu0 0.0
      %3471 = vmatprep.subr.mxu0 0.0
      %3472 = vmatpush1.msra.mxu0 0.0
      %3473 = vmatprep.subr.mxu0 0.0
      %3474 = vmatpush1.msra.mxu0 0.0
      %3475 = vmatprep.subr.mxu0 0.0
      %3476 = vmatpush1.msra.mxu0 0.0
      %3477 = vmatprep.subr.mxu0 0.0
      %3478 = vmatpush1.msra.mxu0 0.0
      %3479 = vmatprep.mubr.f32.mxu0 0.0
      %3480 = vmatmul.mubr.f32.gmra.mrb[0].mxu0 %v3408
      %v3481 = vpop.f32.mrb[0].mxu0
      %v3482 = vadd.f32 %v3370, %v3481
      %v3483 = vpop.f32.mrb[0].mxu0
      %3484 = vmatprep.mubr.f32.mxu0 0.0
      %3485 = vmatmul.mubr.f32.gmra.mrb[0].mxu0 %v3410
      %v3486 = vpop.f32.mrb[0].mxu0
      %v3487 = vadd.f32 %v3375, %v3486
      %v3488 = vpop.f32.mrb[0].mxu0
      %3489 = vdwg.mxu0
      %v3490 = vld [vmem:[%s14] sm:$0x1]
      %v3492 = vlaneseq
      %v3493 = vshrl.u32 %v3492, 7
      %v3494 = vsub.s32 0, %v3493
      %v3495 = vrot.slane %v3490, %v3494
      %v3497 = vadd.f32 %v3482, %v3495
      %v3498 = vadd.f32 %v3487, %v3495
      %v3499 = vmax.f32 %v3497, 0.0
      %v3500 = vmax.f32 %v3498, 0.0
      %3501 = vst.msk [vmem:[%s604] sm:$0xff] %vm1701, %v3499
      %3502 = vst.msk [vmem:[%s604 + $0x8] sm:$0xff] %vm1701, %v3500
      %s3503 = smul.u32 2, %s30
      %p3504 = scmp.lt.s32.totalorder %s31, 1
      %s3505 = scalar_select %p3504, %s31, 1
      %p3506 = scmp.lt.s32.totalorder %s3503, 1
      %s3507 = scalar_select %p3506, %s3503, 1
      %s3508 = smul.addr %s3505, 2
      %s3509 = sadd.s32 %s3507, %s3508
      %s3510 = smul.addr %s3509, 8
      %s3511 = scalar_lea.vmem %s15, %s3510
      // Predicated region
      $region81: #{dilated_res_block_forward.5} parent=79 // pred_check
        %p3512 = pneg %p394
      $region82: #{dilated_res_block_forward.5} parent=79 // pred_check_branch
        %3514 = sbr.rel (%p3512) target = $region84
      $region83: #{dilated_res_block_forward.5} parent=79 // pred_region
        %s3515 = smul.u32 2, %s30
      $region84: #{dilated_res_block_forward.5} parent=79 // pred_fallthru
        _
    $region80: #{dilated_res_block_forward.5} parent=5 // pred_fallthru
      _
    %p3516 = scmp.le.s32.totalorder 2, %s21
    // Predicated region
    $region85: #{dilated_res_block_forward.5} parent=5 // pred_check
      %p3517 = pneg %p3516
    $region86: #{dilated_res_block_forward.5} parent=5 // pred_check_branch
      %3519 = sbr.rel (%p3517) target = $region88
    $region87: #{dilated_res_block_forward.5} parent=5 // pred_region
      %s3520 = ssub.s32 %s21, 2
      // Predicated region
      $region89: #{dilated_res_block_forward.5} parent=87 // pred_check
        %p3521 = pneg %p400
      $region90: #{dilated_res_block_forward.5} parent=87 // pred_check_branch
        %3523 = sbr.rel (%p3521) target = $region92
      $region91: #{dilated_res_block_forward.5} parent=87 // pred_region
        %s3524 = smul.u32 2, %s32
        %p3525 = scmp.lt.s32.totalorder %s33, 1
        %s3526 = scalar_select %p3525, %s33, 1
        %p3527 = scmp.lt.s32.totalorder %s3524, 1
        %s3528 = scalar_select %p3527, %s3524, 1
        %s3529 = smul.addr %s3526, 2
        %s3530 = sadd.s32 %s3528, %s3529
        %s3531 = smul.addr %s3530, 8
        %s3532 = scalar_lea.vmem %s15, %s3531
      $region92: #{dilated_res_block_forward.5} parent=87 // pred_fallthru
        _
    $region88: #{dilated_res_block_forward.5} parent=5 // pred_fallthru
      _
  $region6: #{dilated_res_block_forward.5} parent=0 // loop_footer
    %s25 = sadd.s32 1, %s21
  $region7: #{dilated_res_block_forward.5} parent=0 // loop_footer_branch
    %20 = sbr.rel target = $region3
  $region8: #{dilated_res_block_forward.5} parent=0 // loop_exit
    _

// kernel: dilated_res_block_forward.7
$region0: #{dilated_res_block_forward.7}
  #allocation0 [shape = 'u32[]', space=smem, size = 0x4, offset = 0x4, fixed_abs, tag = 'smem constant byte address 0x4 - core index']
  #allocation1 [shape = 'u32[144,128]{1,0:T(1,128)}', space=vmem, size = 0x12000, scoped, tag = 'internal scratch']
  %s0 = inlined_call_operand.vmem [shape: f32[2,16,8], index: 0, kind: input, shape index: {}]
  %s1 = inlined_call_operand.vmem [shape: f32[2,16,4], index: 1, kind: input, shape index: {}]
  %s2 = inlined_call_operand.vmem [shape: f32[8,16], index: 2, kind: input, shape index: {}]
  %s3 = inlined_call_operand.vmem [shape: f32[4,16], index: 3, kind: input, shape index: {}]
  %s4 = inlined_call_operand.vmem [shape: f32[1,16], index: 4, kind: input, shape index: {}]
  %s5 = inlined_call_operand.hbm [shape: f32[2,16,16], index: 5, kind: output, shape index: {}]
  %s6 = sld [smem:[#allocation0]]
  $region53: #{dilated_res_block_forward.7} parent=0
    _
  %s8 = ssub.s32 1, %s6
  %s9 = scalar_select 0, %s8, %s6
  $region1: #{dilated_res_block_forward.7} parent=0
    #allocation2 [shape = 'u8[16384]{0}', space=vmem, size = 0x4000, scoped, tag = 'output window, operand 0']
    #allocation3 [shape = 's32[2]{0}', space=sflag, size = 0x8, scoped, tag = 'scoped memory for dilated_res_block_forward.7']
    %10 = vsyncpa [#allocation3], 0
    %s11 = scalar_lea.sflag [#allocation3], 1
    %12 = vsyncpa %s11, 0
    loop: start=0, step=1, limit=4
    $region2: #{dilated_res_block_forward.7} parent=1 // loop_pre_header
      _
    $region3: #{dilated_res_block_forward.7} parent=1 // loop_header
      %s14 = sphi 0, %s18
      %p15 = scmp.ge.s32.totalorder %s14, 4
      %s21 = sphi 0, %s33
      %s22 = sphi 0, %s29
      %s23 = sphi 0, %s21
      %s24 = sphi 0, %s22
      %s25 = sphi 0, %s23
      %s26 = sphi 0, %s24
      %s38 = sphi 0, %s40
      %s41 = sphi 0, %s38
      %s42 = sphi 0, %s41
      %s58 = sphi 0, %s42
      %s66 = sphi 0, %s68
      %s69 = sphi 0, %s66
      %s70 = sphi 0, %s69
      %s86 = sphi 0, %s70
      %s90 = sphi 0, %s90
      %s92 = sphi 0, %s90
      %s93 = sphi 0, %s92
      %s107 = sphi 0, %s93
      %s111 = sphi 0, %s111
      %s113 = sphi 0, %s111
      %s114 = sphi 0, %s113
      %s128 = sphi 0, %s114
      %s132 = sphi 0, %s132
      %s134 = sphi 0, %s132
      %s135 = sphi 0, %s134
      %s149 = sphi 0, %s135
      %s157 = sphi 0, %s159
      %s160 = sphi 0, %s157
      %s161 = sphi 0, %s160
      %s177 = sphi 0, %s161
    $region4: #{dilated_res_block_forward.7} parent=1 // loop_header_branch
      %17 = sbr.rel (%p15) target = $region8
    $region5: #{dilated_res_block_forward.7} parent=1 // loop_body
      %s19 = ssub.s32 %s14, 1
      %s20 = ssub.s32 %s14, 2
      %s27 = sadd.s32 1, %s22
      %p28 = scmp.ge.s32.totalorder %s27, 2
      %s29 = scalar_select %p28, 0, %s27
      %s30 = sadd.s32 1, %s21
      %s31 = scalar_select %p28, %s30, %s21
      %p32 = scmp.ge.s32.totalorder %s31, 1
      %s33 = scalar_select %p32, 0, %s31
      %s34 = ssub.s32 %s22, %s29
      %s35 = ssub.s32 %s21, %s33
      %s36 = sor.u32 %s34, %s35
      %p37 = scmp.eq.s32.totalorder %s36, 0
      %s39 = sadd.s32 %s38, 1
      %s40 = scalar_select %p37, %s38, %s39
      %p43 = pneg %p37
      %p44 = scmp.eq.s32.totalorder %s14, 1
      %p45 = por %p43, %p44
      %p46 = scmp.ne.s32.totalorder %s38, %s41
      %p47 = scmp.eq.s32.totalorder %s14, 0
      %p48 = por %p46, %p47
      %p49 = scmp.ne.s32.totalorder %s38, %s41
      %p50 = scmp.eq.s32.totalorder %s19, 1
      %p51 = por %p49, %p50
      %p52 = scmp.ne.s32.totalorder %s41, %s42
      %p53 = scmp.eq.s32.totalorder %s19, 0
      %p54 = por %p52, %p53
      %p55 = scmp.ne.s32.totalorder %s41, %s42
      %p56 = scmp.eq.s32.totalorder %s20, 1
      %p57 = por %p55, %p56
      %p59 = scmp.ne.s32.totalorder %s42, %s58
      %p60 = scmp.eq.s32.totalorder %s20, 0
      %p61 = por %p59, %p60
      %s62 = ssub.s32 %s22, %s29
      %s63 = ssub.s32 %s21, %s33
      %s64 = sor.u32 %s62, %s63
      %p65 = scmp.eq.s32.totalorder %s64, 0
      %s67 = sadd.s32 %s66, 1
      %s68 = scalar_select %p65, %s66, %s67
      %p71 = pneg %p65
      %p72 = scmp.eq.s32.totalorder %s14, 1
      %p73 = por %p71, %p72
      %p74 = scmp.ne.s32.totalorder %s66, %s69
      %p75 = scmp.eq.s32.totalorder %s14, 0
      %p76 = por %p74, %p75
      %p77 = scmp.ne.s32.totalorder %s66, %s69
      %p78 = scmp.eq.s32.totalorder %s19, 1
      %p79 = por %p77, %p78
      %p80 = scmp.ne.s32.totalorder %s69, %s70
      %p81 = scmp.eq.s32.totalorder %s19, 0
      %p82 = por %p80, %p81
      %p83 = scmp.ne.s32.totalorder %s69, %s70
      %p84 = scmp.eq.s32.totalorder %s20, 1
      %p85 = por %p83, %p84
      %p87 = scmp.ne.s32.totalorder %s70, %s86
      %p88 = scmp.eq.s32.totalorder %s20, 0
      %p89 = por %p87, %p88
      %s91 = sadd.s32 %s90, 1
      %p94 = scmp.eq.s32.totalorder %s14, 1
      %p95 = scmp.ne.s32.totalorder %s90, %s92
      %p96 = scmp.eq.s32.totalorder %s14, 0
      %p97 = por %p95, %p96
      %p98 = scmp.ne.s32.totalorder %s90, %s92
      %p99 = scmp.eq.s32.totalorder %s19, 1
      %p100 = por %p98, %p99
      %p101 = scmp.ne.s32.totalorder %s92, %s93
      %p102 = scmp.eq.s32.totalorder %s19, 0
      %p103 = por %p101, %p102
      %p104 = scmp.ne.s32.totalorder %s92, %s93
      %p105 = scmp.eq.s32.totalorder %s20, 1
      %p106 = por %p104, %p105
      %p108 = scmp.ne.s32.totalorder %s93, %s107
      %p109 = scmp.eq.s32.totalorder %s20, 0
      %p110 = por %p108, %p109
      %s112 = sadd.s32 %s111, 1
      %p115 = scmp.eq.s32.totalorder %s14, 1
      %p116 = scmp.ne.s32.totalorder %s111, %s113
      %p117 = scmp.eq.s32.totalorder %s14, 0
      %p118 = por %p116, %p117
      %p119 = scmp.ne.s32.totalorder %s111, %s113
      %p120 = scmp.eq.s32.totalorder %s19, 1
      %p121 = por %p119, %p120
      %p122 = scmp.ne.s32.totalorder %s113, %s114
      %p123 = scmp.eq.s32.totalorder %s19, 0
      %p124 = por %p122, %p123
      %p125 = scmp.ne.s32.totalorder %s113, %s114
      %p126 = scmp.eq.s32.totalorder %s20, 1
      %p127 = por %p125, %p126
      %p129 = scmp.ne.s32.totalorder %s114, %s128
      %p130 = scmp.eq.s32.totalorder %s20, 0
      %p131 = por %p129, %p130
      %s133 = sadd.s32 %s132, 1
      %p136 = scmp.eq.s32.totalorder %s14, 1
      %p137 = scmp.ne.s32.totalorder %s132, %s134
      %p138 = scmp.eq.s32.totalorder %s14, 0
      %p139 = por %p137, %p138
      %p140 = scmp.ne.s32.totalorder %s132, %s134
      %p141 = scmp.eq.s32.totalorder %s19, 1
      %p142 = por %p140, %p141
      %p143 = scmp.ne.s32.totalorder %s134, %s135
      %p144 = scmp.eq.s32.totalorder %s19, 0
      %p145 = por %p143, %p144
      %p146 = scmp.ne.s32.totalorder %s134, %s135
      %p147 = scmp.eq.s32.totalorder %s20, 1
      %p148 = por %p146, %p147
      %p150 = scmp.ne.s32.totalorder %s135, %s149
      %p151 = scmp.eq.s32.totalorder %s20, 0
      %p152 = por %p150, %p151
      %s153 = ssub.s32 %s22, %s29
      %s154 = ssub.s32 %s21, %s33
      %s155 = sor.u32 %s153, %s154
      %p156 = scmp.eq.s32.totalorder %s155, 0
      %s158 = sadd.s32 %s157, 1
      %s159 = scalar_select %p156, %s157, %s158
      %p162 = pneg %p156
      %p163 = scmp.eq.s32.totalorder %s14, 1
      %p164 = por %p162, %p163
      %p165 = scmp.ne.s32.totalorder %s157, %s160
      %p166 = scmp.eq.s32.totalorder %s14, 0
      %p167 = por %p165, %p166
      %p168 = scmp.ne.s32.totalorder %s157, %s160
      %p169 = scmp.eq.s32.totalorder %s19, 1
      %p170 = por %p168, %p169
      %p171 = scmp.ne.s32.totalorder %s160, %s161
      %p172 = scmp.eq.s32.totalorder %s19, 0
      %p173 = por %p171, %p172
      %p174 = scmp.ne.s32.totalorder %s160, %s161
      %p175 = scmp.eq.s32.totalorder %s20, 1
      %p176 = por %p174, %p175
      %p178 = scmp.ne.s32.totalorder %s161, %s177
      %p179 = scmp.eq.s32.totalorder %s20, 0
      %p180 = por %p178, %p179
      %p181 = scmp.le.s32.totalorder 1, %s14
      %p182 = scmp.lt.s32.totalorder %s14, 3
      %p183 = pnand %p181, %p182
      %p184 = pneg %p183
      // Predicated region
      $region9: #{dilated_res_block_forward.7} parent=5 // pred_check
        _
      $region10: #{dilated_res_block_forward.7} parent=5 // pred_check_branch
        %186 = sbr.rel (%p183) target = $region12
      $region11: #{dilated_res_block_forward.7} parent=5 // pred_region
        %s187 = ssub.s32 %s14, 1
        // Predicated region
        $region13: #{dilated_res_block_forward.7} parent=11 // pred_check
          %p188 = pneg %p103
        $region14: #{dilated_res_block_forward.7} parent=11 // pred_check_branch
          %190 = sbr.rel (%p188) target = $region16
        $region15: #{dilated_res_block_forward.7} parent=11 // pred_region
          _
        $region16: #{dilated_res_block_forward.7} parent=11 // pred_fallthru
          _
        // Predicated region
        $region17: #{dilated_res_block_forward.7} parent=11 // pred_check
          %p191 = pneg %p124
        $region18: #{dilated_res_block_forward.7} parent=11 // pred_check_branch
          %193 = sbr.rel (%p191) target = $region20
        $region19: #{dilated_res_block_forward.7} parent=11 // pred_region
          _
        $region20: #{dilated_res_block_forward.7} parent=11 // pred_fallthru
          _
        // Predicated region
        $region21: #{dilated_res_block_forward.7} parent=11 // pred_check
          %p194 = pneg %p145
        $region22: #{dilated_res_block_forward.7} parent=11 // pred_check_branch
          %196 = sbr.rel (%p194) target = $region24
        $region23: #{dilated_res_block_forward.7} parent=11 // pred_region
          _
        $region24: #{dilated_res_block_forward.7} parent=11 // pred_fallthru
          _
      $region12: #{dilated_res_block_forward.7} parent=5 // pred_fallthru
        _
      %p197 = scmp.lt.s32.totalorder %s14, 2
      // Predicated region
      $region25: #{dilated_res_block_forward.7} parent=5 // pred_check
        %p198 = pneg %p197
      $region26: #{dilated_res_block_forward.7} parent=5 // pred_check_branch
        %200 = sbr.rel (%p198) target = $region28
      $region27: #{dilated_res_block_forward.7} parent=5 // pred_region
        // Predicated region
        $region29: #{dilated_res_block_forward.7} parent=27 // pred_check
          %p201 = pneg %p48
        $region30: #{dilated_res_block_forward.7} parent=27 // pred_check_branch
          %203 = sbr.rel (%p201) target = $region32
        $region31: #{dilated_res_block_forward.7} parent=27 // pred_region
          %s204 = smul.u32 2, %s21
          %p205 = scmp.lt.s32.totalorder %s22, 1
          %s206 = scalar_select %p205, %s22, 1
          %p207 = scmp.lt.s32.totalorder %s204, 1
          %s208 = scalar_select %p207, %s204, 1
          %s209 = smul.addr %s206, 2
          %s210 = sadd.s32 %s208, %s209
          %s211 = smul.addr %s210, 8
          %s212 = scalar_lea.vmem %s0, %s211
          %s213 = smul.u32 2, %s21
        $region32: #{dilated_res_block_forward.7} parent=27 // pred_fallthru
          _
        // Predicated region
        $region33: #{dilated_res_block_forward.7} parent=27 // pred_check
          %p214 = pneg %p76
        $region34: #{dilated_res_block_forward.7} parent=27 // pred_check_branch
          %216 = sbr.rel (%p214) target = $region36
        $region35: #{dilated_res_block_forward.7} parent=27 // pred_region
          %s217 = smul.u32 2, %s21
          %p218 = scmp.lt.s32.totalorder %s22, 1
          %s219 = scalar_select %p218, %s22, 1
          %p220 = scmp.lt.s32.totalorder %s217, 1
          %s221 = scalar_select %p220, %s217, 1
          %s222 = smul.addr %s219, 2
          %s223 = sadd.s32 %s221, %s222
          %s224 = smul.addr %s223, 8
          %s225 = scalar_lea.vmem %s1, %s224
          %s226 = smul.u32 2, %s21
        $region36: #{dilated_res_block_forward.7} parent=27 // pred_fallthru
          _
      $region28: #{dilated_res_block_forward.7} parent=5 // pred_fallthru
        _
      %p227 = scmp.le.s32.totalorder 1, %s14
      %p228 = scmp.lt.s32.totalorder %s14, 3
      %p229 = pnand %p227, %p228
      %p230 = pneg %p229
      // Predicated region
      $region37: #{dilated_res_block_forward.7} parent=5 // pred_check
        _
      $region38: #{dilated_res_block_forward.7} parent=5 // pred_check_branch
        %232 = sbr.rel (%p229) target = $region40
      $region39: #{dilated_res_block_forward.7} parent=5 // pred_region
        %s233 = ssub.s32 %s14, 1
        %s234 = smul.u32 2, %s23
        %p235 = scmp.lt.s32.totalorder %s24, 1
        %s236 = scalar_select %p235, %s24, 1
        %p237 = scmp.lt.s32.totalorder %s234, 1
        %s238 = scalar_select %p237, %s234, 1
        %s239 = smul.addr %s236, 2
        %s240 = sadd.s32 %s238, %s239
        %s241 = smul.addr %s240, 8
        %s242 = scalar_lea.vmem %s0, %s241
        %p243 = pneg %p54
        %p244 = pneg %p51
        %s245 = smul.u32 2, %s23
        %p246 = scmp.lt.s32.totalorder %s24, 1
        %s247 = scalar_select %p246, %s24, 1
        %p248 = scmp.lt.s32.totalorder %s245, 1
        %s249 = scalar_select %p248, %s245, 1
        %s250 = smul.addr %s247, 2
        %s251 = sadd.s32 %s249, %s250
        %s252 = smul.addr %s251, 8
        %s253 = scalar_lea.vmem %s1, %s252
        %p254 = pneg %p82
        %p255 = pneg %p79
        %p256 = pneg %p103
        %p257 = pneg %p100
        %p258 = pneg %p124
        %p259 = pneg %p121
        %p260 = pneg %p145
        %p261 = pneg %p142
        %p262 = pneg %p173
        %p263 = pneg %p170
        %s264 = sand.u32 %s160, 1
        %s265 = scalar_lea.sflag [#allocation3], %s264
        %s266 = sand.u32 %s160, 1
        %s267 = smul.addr %s266, 16
        %s268 = scalar_lea.vmem [#allocation2], %s267
        %s269 = smul.u32 2, %s23
        %p270 = scmp.lt.s32.totalorder %s24, 1
        %s271 = scalar_select %p270, %s24, 1
        %p272 = scmp.lt.s32.totalorder %s269, 1
        %s273 = scalar_select %p272, %s269, 1
        %s274 = smul.addr %s271, 2
        %s275 = sadd.s32 %s273, %s274
        %s276 = smul.addr %s275, 8
        %s277 = scalar_lea.vmem %s0, %s276
        %s278 = smul.u32 2, %s23
        %s279 = smul.u32 2, %s23
        %p280 = scmp.lt.s32.totalorder %s24, 1
        %s281 = scalar_select %p280, %s24, 1
        %p282 = scmp.lt.s32.totalorder %s279, 1
        %s283 = scalar_select %p282, %s279, 1
        %s284 = smul.addr %s281, 2
        %s285 = sadd.s32 %s283, %s284
        %s286 = smul.addr %s285, 8
        %s287 = scalar_lea.vmem %s1, %s286
        %s288 = smul.u32 2, %s23
        %s289 = smul.u32 2, %s23
        %v290 = vld [vmem:[%s277] sm:$0xff]
        %v291 = vld [vmem:[%s277 + $0x8] sm:$0xff]
        %v292 = vld [vmem:[%s2] sm:$0xff]
        %v293 = vld [vmem:[%s287] sm:$0xff]
        %v294 = vld [vmem:[%s287 + $0x8] sm:$0xff]
        %v295 = vld [vmem:[%s3] sm:$0xf]
        %vm296 = vcmask 31744
        %v298 = vsel %vm296, %v293, 0
        %v301 = vsel %vm296, %v294, 0
        %vm303 = vcmask 1043456
        %v305 = vsel %vm303, %v295, 0
        %307 = vmatprep.subr.mxu0 0.0
        %308 = vmatpush1.msra.mxu0 %v305
        %309 = vmatprep.subr.mxu0 0.0
        %310 = vmatpush1.msra.mxu0 0.0
        %311 = vmatprep.subr.mxu0 0.0
        %312 = vmatpush1.msra.mxu0 0.0
        %313 = vmatprep.subr.mxu0 0.0
        %314 = vmatpush1.msra.mxu0 0.0
        %315 = vmatprep.subr.mxu0 0.0
        %316 = vmatpush1.msra.mxu0 0.0
        %317 = vmatprep.subr.mxu0 0.0
        %318 = vmatpush1.msra.mxu0 0.0
        %319 = vmatprep.subr.mxu0 0.0
        %320 = vmatpush1.msra.mxu0 0.0
        %321 = vmatprep.subr.mxu0 0.0
        %322 = vmatpush1.msra.mxu0 0.0
        %323 = vmatprep.subr.mxu0 0.0
        %324 = vmatpush1.msra.mxu0 0.0
        %325 = vmatprep.subr.mxu0 0.0
        %326 = vmatpush1.msra.mxu0 0.0
        %327 = vmatprep.subr.mxu0 0.0
        %328 = vmatpush1.msra.mxu0 0.0
        %329 = vmatprep.subr.mxu0 0.0
        %330 = vmatpush1.msra.mxu0 0.0
        %331 = vmatprep.subr.mxu0 0.0
        %332 = vmatpush1.msra.mxu0 0.0
        %333 = vmatprep.subr.mxu0 0.0
        %334 = vmatpush1.msra.mxu0 0.0
        %335 = vmatprep.subr.mxu0 0.0
        %336 = vmatpush1.msra.mxu0 0.0
        %337 = vmatprep.subr.mxu0 0.0
        %338 = vmatpush1.msra.mxu0 0.0
        %339 = vmatprep.subr.mxu0 0.0
        %340 = vmatpush1.msra.mxu0 0.0
        %341 = vmatprep.subr.mxu0 0.0
        %342 = vmatpush1.msra.mxu0 0.0
        %343 = vmatprep.subr.mxu0 0.0
        %344 = vmatpush1.msra.mxu0 0.0
        %345 = vmatprep.subr.mxu0 0.0
        %346 = vmatpush1.msra.mxu0 0.0
        %347 = vmatprep.subr.mxu0 0.0
        %348 = vmatpush1.msra.mxu0 0.0
        %349 = vmatprep.subr.mxu0 0.0
        %350 = vmatpush1.msra.mxu0 0.0
        %351 = vmatprep.subr.mxu0 0.0
        %352 = vmatpush1.msra.mxu0 0.0
        %353 = vmatprep.subr.mxu0 0.0
        %354 = vmatpush1.msra.mxu0 0.0
        %355 = vmatprep.subr.mxu0 0.0
        %356 = vmatpush1.msra.mxu0 0.0
        %357 = vmatprep.subr.mxu0 0.0
        %358 = vmatpush1.msra.mxu0 0.0
        %359 = vmatprep.subr.mxu0 0.0
        %360 = vmatpush1.msra.mxu0 0.0
        %361 = vmatprep.subr.mxu0 0.0
        %362 = vmatpush1.msra.mxu0 0.0
        %363 = vmatprep.subr.mxu0 0.0
        %364 = vmatpush1.msra.mxu0 0.0
        %365 = vmatprep.subr.mxu0 0.0
        %366 = vmatpush1.msra.mxu0 0.0
        %367 = vmatprep.subr.mxu0 0.0
        %368 = vmatpush1.msra.mxu0 0.0
        %369 = vmatprep.subr.mxu0 0.0
        %370 = vmatpush1.msra.mxu0 0.0
        %371 = vmatprep.mubr.f32.mxu0 0.0
        %372 = vmatmul.mubr.f32.gmra.mrb[0].mxu0 %v298
        %v373 = vpop.f32.mrb[0].mxu0
        %v374 = vadd.f32 0.0, %v373
        %v375 = vpop.f32.mrb[0].mxu0
        %376 = vmatprep.mubr.f32.mxu0 0.0
        %377 = vmatmul.mubr.f32.gmra.mrb[0].mxu0 %v301
        %v378 = vpop.f32.mrb[0].mxu0
        %v379 = vadd.f32 0.0, %v378
        %v380 = vpop.f32.mrb[0].mxu0
        %381 = vdwg.mxu0
        %vm382 = vcmask 64512
        %v384 = vsel %vm382, %v290, 0
        %v387 = vsel %vm382, %v291, 0
        %389 = vmatprep.subr.mxu0 0.0
        %390 = vmatpush1.msra.mxu0 %v292
        %391 = vmatprep.subr.mxu0 0.0
        %392 = vmatpush1.msra.mxu0 0.0
        %393 = vmatprep.subr.mxu0 0.0
        %394 = vmatpush1.msra.mxu0 0.0
        %395 = vmatprep.subr.mxu0 0.0
        %396 = vmatpush1.msra.mxu0 0.0
        %397 = vmatprep.subr.mxu0 0.0
        %398 = vmatpush1.msra.mxu0 0.0
        %399 = vmatprep.subr.mxu0 0.0
        %400 = vmatpush1.msra.mxu0 0.0
        %401 = vmatprep.subr.mxu0 0.0
        %402 = vmatpush1.msra.mxu0 0.0
        %403 = vmatprep.subr.mxu0 0.0
        %404 = vmatpush1.msra.mxu0 0.0
        %405 = vmatprep.subr.mxu0 0.0
        %406 = vmatpush1.msra.mxu0 0.0
        %407 = vmatprep.subr.mxu0 0.0
        %408 = vmatpush1.msra.mxu0 0.0
        %409 = vmatprep.subr.mxu0 0.0
        %410 = vmatpush1.msra.mxu0 0.0
        %411 = vmatprep.subr.mxu0 0.0
        %412 = vmatpush1.msra.mxu0 0.0
        %413 = vmatprep.subr.mxu0 0.0
        %414 = vmatpush1.msra.mxu0 0.0
        %415 = vmatprep.subr.mxu0 0.0
        %416 = vmatpush1.msra.mxu0 0.0
        %417 = vmatprep.subr.mxu0 0.0
        %418 = vmatpush1.msra.mxu0 0.0
        %419 = vmatprep.subr.mxu0 0.0
        %420 = vmatpush1.msra.mxu0 0.0
        %421 = vmatprep.subr.mxu0 0.0
        %422 = vmatpush1.msra.mxu0 0.0
        %423 = vmatprep.subr.mxu0 0.0
        %424 = vmatpush1.msra.mxu0 0.0
        %425 = vmatprep.subr.mxu0 0.0
        %426 = vmatpush1.msra.mxu0 0.0
        %427 = vmatprep.subr.mxu0 0.0
        %428 = vmatpush1.msra.mxu0 0.0
        %429 = vmatprep.subr.mxu0 0.0
        %430 = vmatpush1.msra.mxu0 0.0
        %431 = vmatprep.subr.mxu0 0.0
        %432 = vmatpush1.msra.mxu0 0.0
        %433 = vmatprep.subr.mxu0 0.0
        %434 = vmatpush1.msra.mxu0 0.0
        %435 = vmatprep.subr.mxu0 0.0
        %436 = vmatpush1.msra.mxu0 0.0
        %437 = vmatprep.subr.mxu0 0.0
        %438 = vmatpush1.msra.mxu0 0.0
        %439 = vmatprep.subr.mxu0 0.0
        %440 = vmatpush1.msra.mxu0 0.0
        %441 = vmatprep.subr.mxu0 0.0
        %442 = vmatpush1.msra.mxu0 0.0
        %443 = vmatprep.subr.mxu0 0.0
        %444 = vmatpush1.msra.mxu0 0.0
        %445 = vmatprep.subr.mxu0 0.0
        %446 = vmatpush1.msra.mxu0 0.0
        %447 = vmatprep.subr.mxu0 0.0
        %448 = vmatpush1.msra.mxu0 0.0
        %449 = vmatprep.subr.mxu0 0.0
        %450 = vmatpush1.msra.mxu0 0.0
        %451 = vmatprep.subr.mxu0 0.0
        %452 = vmatpush1.msra.mxu0 0.0
        %453 = vmatprep.mubr.f32.mxu0 0.0
        %454 = vmatmul.mubr.f32.gmra.mrb[0].mxu0 %v384
        %v455 = vpop.f32.mrb[0].mxu0
        %v456 = vadd.f32 %v374, %v455
        %v457 = vpop.f32.mrb[0].mxu0
        %458 = vmatprep.mubr.f32.mxu0 0.0
        %459 = vmatmul.mubr.f32.gmra.mrb[0].mxu0 %v387
        %v460 = vpop.f32.mrb[0].mxu0
        %v461 = vadd.f32 %v379, %v460
        %v462 = vpop.f32.mrb[0].mxu0
        %463 = vdwg.mxu0
        %v464 = vld [vmem:[%s4] sm:$0x1]
        %v466 = vlaneseq
        %v467 = vshrl.u32 %v466, 7
        %v468 = vsub.s32 0, %v467
        %v469 = vrot.slane %v464, %v468
        %v471 = vadd.f32 %v456, %v469
        %v472 = vadd.f32 %v461, %v469
        %vm473 = vcmp.ge.f32.partialorder %v471, 0.0
        %vm474 = vcmp.ge.f32.partialorder %v472, 0.0
        %v475 = vmul.f32 %v471, 0.2
        %v476 = vmul.f32 %v472, 0.2
        %v477 = vsel %vm473, %v471, %v475
        %v478 = vsel %vm474, %v472, %v476
        %vm479 = vcmask 130048
        %480 = vst.msk [vmem:[%s268] sm:$0xff] %vm479, %v477
        %481 = vst.msk [vmem:[%s268 + $0x8] sm:$0xff] %vm479, %v478
        %s482 = sand.u32 %s160, 1
        %s483 = scalar_lea.sflag [#allocation3], %s482
        %s484 = sand.u32 %s160, 1
        %s485 = smul.addr %s484, 16
        %s486 = scalar_lea.vmem [#allocation2], %s485
        // Predicated region
        $region41: #{dilated_res_block_forward.7} parent=39 // pred_check
          %p487 = pneg %p170
        $region42: #{dilated_res_block_forward.7} parent=39 // pred_check_branch
          %489 = sbr.rel (%p487) target = $region44
        $region43: #{dilated_res_block_forward.7} parent=39 // pred_region
          %s490 = smul.u32 2, %s23
          %s492 = ssub.s32 256, 256
          %493 = vsyncadd %s483, %s492
          %s494 = smul.addr %s24, 2
          %s495 = sadd.s32 %s490, %s494
          %s496 = smul.addr %s495, 128
          %s497 = scalar_lea.hbm %s5, %s496
          %s498 = sshll.u32 %s486, 4
          %s499 = int_to_ptr.vmem [resolvable:$true] %s498
          %504 = dma.vmem_to_hbm [thread:$0]  %s499, 256, %s497, %s483, 128, 128, 8
        $region44: #{dilated_res_block_forward.7} parent=39 // pred_fallthru
          _
      $region40: #{dilated_res_block_forward.7} parent=5 // pred_fallthru
        _
      %p505 = scmp.le.s32.totalorder 2, %s14
      // Predicated region
      $region45: #{dilated_res_block_forward.7} parent=5 // pred_check
        %p506 = pneg %p505
      $region46: #{dilated_res_block_forward.7} parent=5 // pred_check_branch
        %508 = sbr.rel (%p506) target = $region48
      $region47: #{dilated_res_block_forward.7} parent=5 // pred_region
        %s509 = ssub.s32 %s14, 2
        // Predicated region
        $region49: #{dilated_res_block_forward.7} parent=47 // pred_check
          %p510 = pneg %p176
        $region50: #{dilated_res_block_forward.7} parent=47 // pred_check_branch
          %512 = sbr.rel (%p510) target = $region52
        $region51: #{dilated_res_block_forward.7} parent=47 // pred_region
          %s513 = sand.u32 %s161, 1
          %s514 = scalar_lea.sflag [#allocation3], %s513
          %s515 = sand.u32 %s161, 1
          %s516 = smul.addr %s515, 16
          %s517 = scalar_lea.vmem [#allocation2], %s516
          %518 = dma.done %s514, 256
        $region52: #{dilated_res_block_forward.7} parent=47 // pred_fallthru
          _
      $region48: #{dilated_res_block_forward.7} parent=5 // pred_fallthru
        _
    $region6: #{dilated_res_block_forward.7} parent=1 // loop_footer
      %s18 = sadd.s32 1, %s14
    $region7: #{dilated_res_block_forward.7} parent=1 // loop_footer_branch
      %13 = sbr.rel target = $region3
    $region8: #{dilated_res_block_forward.7} parent=1 // loop_exit
      _
    %519 = vsyncpa [#allocation3], 1
    %s520 = scalar_lea.sflag [#allocation3], 1
    %521 = vsyncpa %s520, 1

// kernel: dilated_res_block_forward.6
$region0: #{dilated_res_block_forward.6}
  #allocation0 [shape = 'u32[]', space=smem, size = 0x4, offset = 0x4, fixed_abs, tag = 'smem constant byte address 0x4 - core index']
  #allocation1 [shape = 'u32[144,128]{1,0:T(1,128)}', space=vmem, size = 0x12000, scoped, tag = 'internal scratch']
  %s0 = inlined_call_operand.vmem [shape: f32[2,16,8,4], index: 0, kind: input, shape index: {}]
  %s1 = inlined_call_operand.vmem [shape: f32[2,16,8,3], index: 1, kind: input, shape index: {}]
  %s2 = inlined_call_operand.vmem [shape: f32[2,16,3], index: 2, kind: input, shape index: {}]
  %s3 = inlined_call_operand.vmem [shape: f32[1,4], index: 3, kind: input, shape index: {}]
  %s4 = inlined_call_operand.vmem [shape: f32[3,4], index: 4, kind: input, shape index: {}]
  %s5 = inlined_call_operand.vmem [shape: f32[3,4], index: 5, kind: input, shape index: {}]
  %s6 = inlined_call_operand.vmem [shape: f32[3,4], index: 6, kind: input, shape index: {}]
  %s7 = inlined_call_operand.vmem [shape: f32[1,4], index: 7, kind: input, shape index: {}]
  %s8 = inlined_call_operand.vmem [shape: f32[4,4], index: 8, kind: input, shape index: {}]
  %s9 = inlined_call_operand.vmem [shape: f32[1,4], index: 9, kind: input, shape index: {}]
  %s10 = inlined_call_operand.vmem [shape: f32[4,4], index: 10, kind: input, shape index: {}]
  %s11 = inlined_call_operand.vmem [shape: f32[4,4], index: 11, kind: input, shape index: {}]
  %s12 = inlined_call_operand.vmem [shape: f32[4,4], index: 12, kind: input, shape index: {}]
  %s13 = inlined_call_operand.vmem [shape: f32[4,4], index: 13, kind: input, shape index: {}]
  %s14 = inlined_call_operand.vmem [shape: f32[4,8], index: 14, kind: input, shape index: {}]
  %s15 = inlined_call_operand.vmem [shape: f32[4,8], index: 15, kind: input, shape index: {}]
  %s16 = inlined_call_operand.vmem [shape: f32[1,8], index: 16, kind: input, shape index: {}]
  %s17 = inlined_call_operand.vmem [shape: f32[2,16,8], index: 17, kind: output, shape index: {}]
  %s18 = sld [smem:[#allocation0]]
  $region101: #{dilated_res_block_forward.6} parent=0
    _
  %s20 = ssub.s32 1, %s18
  %s21 = scalar_select 0, %s20, %s18
  loop: start=0, step=1, limit=4
  $region2: #{dilated_res_block_forward.6} parent=0 // loop_pre_header
    _
  $region3: #{dilated_res_block_forward.6} parent=0 // loop_header
    %s23 = sphi 0, %s27
    %p24 = scmp.ge.s32.totalorder %s23, 4
    %s30 = sphi 0, %s42
    %s31 = sphi 0, %s38
    %s32 = sphi 0, %s30
    %s33 = sphi 0, %s31
    %s34 = sphi 0, %s32
    %s35 = sphi 0, %s33
    %s47 = sphi 0, %s49
    %s50 = sphi 0, %s47
    %s51 = sphi 0, %s50
    %s67 = sphi 0, %s51
    %s75 = sphi 0, %s77
    %s78 = sphi 0, %s75
    %s79 = sphi 0, %s78
    %s95 = sphi 0, %s79
    %s103 = sphi 0, %s105
    %s106 = sphi 0, %s103
    %s107 = sphi 0, %s106
    %s123 = sphi 0, %s107
    %s127 = sphi 0, %s127
    %s129 = sphi 0, %s127
    %s130 = sphi 0, %s129
    %s144 = sphi 0, %s130
    %s148 = sphi 0, %s148
    %s150 = sphi 0, %s148
    %s151 = sphi 0, %s150
    %s165 = sphi 0, %s151
    %s169 = sphi 0, %s169
    %s171 = sphi 0, %s169
    %s172 = sphi 0, %s171
    %s186 = sphi 0, %s172
    %s190 = sphi 0, %s190
    %s192 = sphi 0, %s190
    %s193 = sphi 0, %s192
    %s207 = sphi 0, %s193
    %s211 = sphi 0, %s211
    %s213 = sphi 0, %s211
    %s214 = sphi 0, %s213
    %s228 = sphi 0, %s214
    %s232 = sphi 0, %s232
    %s234 = sphi 0, %s232
    %s235 = sphi 0, %s234
    %s249 = sphi 0, %s235
    %s253 = sphi 0, %s253
    %s255 = sphi 0, %s253
    %s256 = sphi 0, %s255
    %s270 = sphi 0, %s256
    %s274 = sphi 0, %s274
    %s276 = sphi 0, %s274
    %s277 = sphi 0, %s276
    %s291 = sphi 0, %s277
    %s295 = sphi 0, %s295
    %s297 = sphi 0, %s295
    %s298 = sphi 0, %s297
    %s312 = sphi 0, %s298
    %s316 = sphi 0, %s316
    %s318 = sphi 0, %s316
    %s319 = sphi 0, %s318
    %s333 = sphi 0, %s319
    %s337 = sphi 0, %s337
    %s339 = sphi 0, %s337
    %s340 = sphi 0, %s339
    %s354 = sphi 0, %s340
    %s358 = sphi 0, %s358
    %s360 = sphi 0, %s358
    %s361 = sphi 0, %s360
    %s375 = sphi 0, %s361
    %s379 = sphi 0, %s379
    %s381 = sphi 0, %s379
    %s382 = sphi 0, %s381
    %s396 = sphi 0, %s382
    %s400 = sphi 0, %s400
    %s402 = sphi 0, %s400
    %s403 = sphi 0, %s402
    %s417 = sphi 0, %s403
    %s425 = sphi 0, %s427
    %s428 = sphi 0, %s425
    %s429 = sphi 0, %s428
    %s445 = sphi 0, %s429
  $region4: #{dilated_res_block_forward.6} parent=0 // loop_header_branch
    %26 = sbr.rel (%p24) target = $region8
  $region5: #{dilated_res_block_forward.6} parent=0 // loop_body
    %s28 = ssub.s32 %s23, 1
    %s29 = ssub.s32 %s23, 2
    %s36 = sadd.s32 1, %s31
    %p37 = scmp.ge.s32.totalorder %s36, 2
    %s38 = scalar_select %p37, 0, %s36
    %s39 = sadd.s32 1, %s30
    %s40 = scalar_select %p37, %s39, %s30
    %p41 = scmp.ge.s32.totalorder %s40, 1
    %s42 = scalar_select %p41, 0, %s40
    %s43 = ssub.s32 %s31, %s38
    %s44 = ssub.s32 %s30, %s42
    %s45 = sor.u32 %s43, %s44
    %p46 = scmp.eq.s32.totalorder %s45, 0
    %s48 = sadd.s32 %s47, 1
    %s49 = scalar_select %p46, %s47, %s48
    %p52 = pneg %p46
    %p53 = scmp.eq.s32.totalorder %s23, 1
    %p54 = por %p52, %p53
    %p55 = scmp.ne.s32.totalorder %s47, %s50
    %p56 = scmp.eq.s32.totalorder %s23, 0
    %p57 = por %p55, %p56
    %p58 = scmp.ne.s32.totalorder %s47, %s50
    %p59 = scmp.eq.s32.totalorder %s28, 1
    %p60 = por %p58, %p59
    %p61 = scmp.ne.s32.totalorder %s50, %s51
    %p62 = scmp.eq.s32.totalorder %s28, 0
    %p63 = por %p61, %p62
    %p64 = scmp.ne.s32.totalorder %s50, %s51
    %p65 = scmp.eq.s32.totalorder %s29, 1
    %p66 = por %p64, %p65
    %p68 = scmp.ne.s32.totalorder %s51, %s67
    %p69 = scmp.eq.s32.totalorder %s29, 0
    %p70 = por %p68, %p69
    %s71 = ssub.s32 %s31, %s38
    %s72 = ssub.s32 %s30, %s42
    %s73 = sor.u32 %s71, %s72
    %p74 = scmp.eq.s32.totalorder %s73, 0
    %s76 = sadd.s32 %s75, 1
    %s77 = scalar_select %p74, %s75, %s76
    %p80 = pneg %p74
    %p81 = scmp.eq.s32.totalorder %s23, 1
    %p82 = por %p80, %p81
    %p83 = scmp.ne.s32.totalorder %s75, %s78
    %p84 = scmp.eq.s32.totalorder %s23, 0
    %p85 = por %p83, %p84
    %p86 = scmp.ne.s32.totalorder %s75, %s78
    %p87 = scmp.eq.s32.totalorder %s28, 1
    %p88 = por %p86, %p87
    %p89 = scmp.ne.s32.totalorder %s78, %s79
    %p90 = scmp.eq.s32.totalorder %s28, 0
    %p91 = por %p89, %p90
    %p92 = scmp.ne.s32.totalorder %s78, %s79
    %p93 = scmp.eq.s32.totalorder %s29, 1
    %p94 = por %p92, %p93
    %p96 = scmp.ne.s32.totalorder %s79, %s95
    %p97 = scmp.eq.s32.totalorder %s29, 0
    %p98 = por %p96, %p97
    %s99 = ssub.s32 %s31, %s38
    %s100 = ssub.s32 %s30, %s42
    %s101 = sor.u32 %s99, %s100
    %p102 = scmp.eq.s32.totalorder %s101, 0
    %s104 = sadd.s32 %s103, 1
    %s105 = scalar_select %p102, %s103, %s104
    %p108 = pneg %p102
    %p109 = scmp.eq.s32.totalorder %s23, 1
    %p110 = por %p108, %p109
    %p111 = scmp.ne.s32.totalorder %s103, %s106
    %p112 = scmp.eq.s32.totalorder %s23, 0
    %p113 = por %p111, %p112
    %p114 = scmp.ne.s32.totalorder %s103, %s106
    %p115 = scmp.eq.s32.totalorder %s28, 1
    %p116 = por %p114, %p115
    %p117 = scmp.ne.s32.totalorder %s106, %s107
    %p118 = scmp.eq.s32.totalorder %s28, 0
    %p119 = por %p117, %p118
    %p120 = scmp.ne.s32.totalorder %s106, %s107
    %p121 = scmp.eq.s32.totalorder %s29, 1
    %p122 = por %p120, %p121
    %p124 = scmp.ne.s32.totalorder %s107, %s123
    %p125 = scmp.eq.s32.totalorder %s29, 0
    %p126 = por %p124, %p125
    %s128 = sadd.s32 %s127, 1
    %p131 = scmp.eq.s32.totalorder %s23, 1
    %p132 = scmp.ne.s32.totalorder %s127, %s129
    %p133 = scmp.eq.s32.totalorder %s23, 0
    %p134 = por %p132, %p133
    %p135 = scmp.ne.s32.totalorder %s127, %s129
    %p136 = scmp.eq.s32.totalorder %s28, 1
    %p137 = por %p135, %p136
    %p138 = scmp.ne.s32.totalorder %s129, %s130
    %p139 = scmp.eq.s32.totalorder %s28, 0
    %p140 = por %p138, %p139
    %p141 = scmp.ne.s32.totalorder %s129, %s130
    %p142 = scmp.eq.s32.totalorder %s29, 1
    %p143 = por %p141, %p142
    %p145 = scmp.ne.s32.totalorder %s130, %s144
    %p146 = scmp.eq.s32.totalorder %s29, 0
    %p147 = por %p145, %p146
    %s149 = sadd.s32 %s148, 1
    %p152 = scmp.eq.s32.totalorder %s23, 1
    %p153 = scmp.ne.s32.totalorder %s148, %s150
    %p154 = scmp.eq.s32.totalorder %s23, 0
    %p155 = por %p153, %p154
    %p156 = scmp.ne.s32.totalorder %s148, %s150
    %p157 = scmp.eq.s32.totalorder %s28, 1
    %p158 = por %p156, %p157
    %p159 = scmp.ne.s32.totalorder %s150, %s151
    %p160 = scmp.eq.s32.totalorder %s28, 0
    %p161 = por %p159, %p160
    %p162 = scmp.ne.s32.totalorder %s150, %s151
    %p163 = scmp.eq.s32.totalorder %s29, 1
    %p164 = por %p162, %p163
    %p166 = scmp.ne.s32.totalorder %s151, %s165
    %p167 = scmp.eq.s32.totalorder %s29, 0
    %p168 = por %p166, %p167
    %s170 = sadd.s32 %s169, 1
    %p173 = scmp.eq.s32.totalorder %s23, 1
    %p174 = scmp.ne.s32.totalorder %s169, %s171
    %p175 = scmp.eq.s32.totalorder %s23, 0
    %p176 = por %p174, %p175
    %p177 = scmp.ne.s32.totalorder %s169, %s171
    %p178 = scmp.eq.s32.totalorder %s28, 1
    %p179 = por %p177, %p178
    %p180 = scmp.ne.s32.totalorder %s171, %s172
    %p181 = scmp.eq.s32.totalorder %s28, 0
    %p182 = por %p180, %p181
    %p183 = scmp.ne.s32.totalorder %s171, %s172
    %p184 = scmp.eq.s32.totalorder %s29, 1
    %p185 = por %p183, %p184
    %p187 = scmp.ne.s32.totalorder %s172, %s186
    %p188 = scmp.eq.s32.totalorder %s29, 0
    %p189 = por %p187, %p188
    %s191 = sadd.s32 %s190, 1
    %p194 = scmp.eq.s32.totalorder %s23, 1
    %p195 = scmp.ne.s32.totalorder %s190, %s192
    %p196 = scmp.eq.s32.totalorder %s23, 0
    %p197 = por %p195, %p196
    %p198 = scmp.ne.s32.totalorder %s190, %s192
    %p199 = scmp.eq.s32.totalorder %s28, 1
    %p200 = por %p198, %p199
    %p201 = scmp.ne.s32.totalorder %s192, %s193
    %p202 = scmp.eq.s32.totalorder %s28, 0
    %p203 = por %p201, %p202
    %p204 = scmp.ne.s32.totalorder %s192, %s193
    %p205 = scmp.eq.s32.totalorder %s29, 1
    %p206 = por %p204, %p205
    %p208 = scmp.ne.s32.totalorder %s193, %s207
    %p209 = scmp.eq.s32.totalorder %s29, 0
    %p210 = por %p208, %p209
    %s212 = sadd.s32 %s211, 1
    %p215 = scmp.eq.s32.totalorder %s23, 1
    %p216 = scmp.ne.s32.totalorder %s211, %s213
    %p217 = scmp.eq.s32.totalorder %s23, 0
    %p218 = por %p216, %p217
    %p219 = scmp.ne.s32.totalorder %s211, %s213
    %p220 = scmp.eq.s32.totalorder %s28, 1
    %p221 = por %p219, %p220
    %p222 = scmp.ne.s32.totalorder %s213, %s214
    %p223 = scmp.eq.s32.totalorder %s28, 0
    %p224 = por %p222, %p223
    %p225 = scmp.ne.s32.totalorder %s213, %s214
    %p226 = scmp.eq.s32.totalorder %s29, 1
    %p227 = por %p225, %p226
    %p229 = scmp.ne.s32.totalorder %s214, %s228
    %p230 = scmp.eq.s32.totalorder %s29, 0
    %p231 = por %p229, %p230
    %s233 = sadd.s32 %s232, 1
    %p236 = scmp.eq.s32.totalorder %s23, 1
    %p237 = scmp.ne.s32.totalorder %s232, %s234
    %p238 = scmp.eq.s32.totalorder %s23, 0
    %p239 = por %p237, %p238
    %p240 = scmp.ne.s32.totalorder %s232, %s234
    %p241 = scmp.eq.s32.totalorder %s28, 1
    %p242 = por %p240, %p241
    %p243 = scmp.ne.s32.totalorder %s234, %s235
    %p244 = scmp.eq.s32.totalorder %s28, 0
    %p245 = por %p243, %p244
    %p246 = scmp.ne.s32.totalorder %s234, %s235
    %p247 = scmp.eq.s32.totalorder %s29, 1
    %p248 = por %p246, %p247
    %p250 = scmp.ne.s32.totalorder %s235, %s249
    %p251 = scmp.eq.s32.totalorder %s29, 0
    %p252 = por %p250, %p251
    %s254 = sadd.s32 %s253, 1
    %p257 = scmp.eq.s32.totalorder %s23, 1
    %p258 = scmp.ne.s32.totalorder %s253, %s255
    %p259 = scmp.eq.s32.totalorder %s23, 0
    %p260 = por %p258, %p259
    %p261 = scmp.ne.s32.totalorder %s253, %s255
    %p262 = scmp.eq.s32.totalorder %s28, 1
    %p263 = por %p261, %p262
    %p264 = scmp.ne.s32.totalorder %s255, %s256
    %p265 = scmp.eq.s32.totalorder %s28, 0
    %p266 = por %p264, %p265
    %p267 = scmp.ne.s32.totalorder %s255, %s256
    %p268 = scmp.eq.s32.totalorder %s29, 1
    %p269 = por %p267, %p268
    %p271 = scmp.ne.s32.totalorder %s256, %s270
    %p272 = scmp.eq.s32.totalorder %s29, 0
    %p273 = por %p271, %p272
    %s275 = sadd.s32 %s274, 1
    %p278 = scmp.eq.s32.totalorder %s23, 1
    %p279 = scmp.ne.s32.totalorder %s274, %s276
    %p280 = scmp.eq.s32.totalorder %s23, 0
    %p281 = por %p279, %p280
    %p282 = scmp.ne.s32.totalorder %s274, %s276
    %p283 = scmp.eq.s32.totalorder %s28, 1
    %p284 = por %p282, %p283
    %p285 = scmp.ne.s32.totalorder %s276, %s277
    %p286 = scmp.eq.s32.totalorder %s28, 0
    %p287 = por %p285, %p286
    %p288 = scmp.ne.s32.totalorder %s276, %s277
    %p289 = scmp.eq.s32.totalorder %s29, 1
    %p290 = por %p288, %p289
    %p292 = scmp.ne.s32.totalorder %s277, %s291
    %p293 = scmp.eq.s32.totalorder %s29, 0
    %p294 = por %p292, %p293
    %s296 = sadd.s32 %s295, 1
    %p299 = scmp.eq.s32.totalorder %s23, 1
    %p300 = scmp.ne.s32.totalorder %s295, %s297
    %p301 = scmp.eq.s32.totalorder %s23, 0
    %p302 = por %p300, %p301
    %p303 = scmp.ne.s32.totalorder %s295, %s297
    %p304 = scmp.eq.s32.totalorder %s28, 1
    %p305 = por %p303, %p304
    %p306 = scmp.ne.s32.totalorder %s297, %s298
    %p307 = scmp.eq.s32.totalorder %s28, 0
    %p308 = por %p306, %p307
    %p309 = scmp.ne.s32.totalorder %s297, %s298
    %p310 = scmp.eq.s32.totalorder %s29, 1
    %p311 = por %p309, %p310
    %p313 = scmp.ne.s32.totalorder %s298, %s312
    %p314 = scmp.eq.s32.totalorder %s29, 0
    %p315 = por %p313, %p314
    %s317 = sadd.s32 %s316, 1
    %p320 = scmp.eq.s32.totalorder %s23, 1
    %p321 = scmp.ne.s32.totalorder %s316, %s318
    %p322 = scmp.eq.s32.totalorder %s23, 0
    %p323 = por %p321, %p322
    %p324 = scmp.ne.s32.totalorder %s316, %s318
    %p325 = scmp.eq.s32.totalorder %s28, 1
    %p326 = por %p324, %p325
    %p327 = scmp.ne.s32.totalorder %s318, %s319
    %p328 = scmp.eq.s32.totalorder %s28, 0
    %p329 = por %p327, %p328
    %p330 = scmp.ne.s32.totalorder %s318, %s319
    %p331 = scmp.eq.s32.totalorder %s29, 1
    %p332 = por %p330, %p331
    %p334 = scmp.ne.s32.totalorder %s319, %s333
    %p335 = scmp.eq.s32.totalorder %s29, 0
    %p336 = por %p334, %p335
    %s338 = sadd.s32 %s337, 1
    %p341 = scmp.eq.s32.totalorder %s23, 1
    %p342 = scmp.ne.s32.totalorder %s337, %s339
    %p343 = scmp.eq.s32.totalorder %s23, 0
    %p344 = por %p342, %p343
    %p345 = scmp.ne.s32.totalorder %s337, %s339
    %p346 = scmp.eq.s32.totalorder %s28, 1
    %p347 = por %p345, %p346
    %p348 = scmp.ne.s32.totalorder %s339, %s340
    %p349 = scmp.eq.s32.totalorder %s28, 0
    %p350 = por %p348, %p349
    %p351 = scmp.ne.s32.totalorder %s339, %s340
    %p352 = scmp.eq.s32.totalorder %s29, 1
    %p353 = por %p351, %p352
    %p355 = scmp.ne.s32.totalorder %s340, %s354
    %p356 = scmp.eq.s32.totalorder %s29, 0
    %p357 = por %p355, %p356
    %s359 = sadd.s32 %s358, 1
    %p362 = scmp.eq.s32.totalorder %s23, 1
    %p363 = scmp.ne.s32.totalorder %s358, %s360
    %p364 = scmp.eq.s32.totalorder %s23, 0
    %p365 = por %p363, %p364
    %p366 = scmp.ne.s32.totalorder %s358, %s360
    %p367 = scmp.eq.s32.totalorder %s28, 1
    %p368 = por %p366, %p367
    %p369 = scmp.ne.s32.totalorder %s360, %s361
    %p370 = scmp.eq.s32.totalorder %s28, 0
    %p371 = por %p369, %p370
    %p372 = scmp.ne.s32.totalorder %s360, %s361
    %p373 = scmp.eq.s32.totalorder %s29, 1
    %p374 = por %p372, %p373
    %p376 = scmp.ne.s32.totalorder %s361, %s375
    %p377 = scmp.eq.s32.totalorder %s29, 0
    %p378 = por %p376, %p377
    %s380 = sadd.s32 %s379, 1
    %p383 = scmp.eq.s32.totalorder %s23, 1
    %p384 = scmp.ne.s32.totalorder %s379, %s381
    %p385 = scmp.eq.s32.totalorder %s23, 0
    %p386 = por %p384, %p385
    %p387 = scmp.ne.s32.totalorder %s379, %s381
    %p388 = scmp.eq.s32.totalorder %s28, 1
    %p389 = por %p387, %p388
    %p390 = scmp.ne.s32.totalorder %s381, %s382
    %p391 = scmp.eq.s32.totalorder %s28, 0
    %p392 = por %p390, %p391
    %p393 = scmp.ne.s32.totalorder %s381, %s382
    %p394 = scmp.eq.s32.totalorder %s29, 1
    %p395 = por %p393, %p394
    %p397 = scmp.ne.s32.totalorder %s382, %s396
    %p398 = scmp.eq.s32.totalorder %s29, 0
    %p399 = por %p397, %p398
    %s401 = sadd.s32 %s400, 1
    %p404 = scmp.eq.s32.totalorder %s23, 1
    %p405 = scmp.ne.s32.totalorder %s400, %s402
    %p406 = scmp.eq.s32.totalorder %s23, 0
    %p407 = por %p405, %p406
    %p408 = scmp.ne.s32.totalorder %s400, %s402
    %p409 = scmp.eq.s32.totalorder %s28, 1
    %p410 = por %p408, %p409
    %p411 = scmp.ne.s32.totalorder %s402, %s403
    %p412 = scmp.eq.s32.totalorder %s28, 0
    %p413 = por %p411, %p412
    %p414 = scmp.ne.s32.totalorder %s402, %s403
    %p415 = scmp.eq.s32.totalorder %s29, 1
    %p416 = por %p414, %p415
    %p418 = scmp.ne.s32.totalorder %s403, %s417
    %p419 = scmp.eq.s32.totalorder %s29, 0
    %p420 = por %p418, %p419
    %s421 = ssub.s32 %s31, %s38
    %s422 = ssub.s32 %s30, %s42
    %s423 = sor.u32 %s421, %s422
    %p424 = scmp.eq.s32.totalorder %s423, 0
    %s426 = sadd.s32 %s425, 1
    %s427 = scalar_select %p424, %s425, %s426
    %p430 = pneg %p424
    %p431 = scmp.eq.s32.totalorder %s23, 1
    %p432 = por %p430, %p431
    %p433 = scmp.ne.s32.totalorder %s425, %s428
    %p434 = scmp.eq.s32.totalorder %s23, 0
    %p435 = por %p433, %p434
    %p436 = scmp.ne.s32.totalorder %s425, %s428
    %p437 = scmp.eq.s32.totalorder %s28, 1
    %p438 = por %p436, %p437
    %p439 = scmp.ne.s32.totalorder %s428, %s429
    %p440 = scmp.eq.s32.totalorder %s28, 0
    %p441 = por %p439, %p440
    %p442 = scmp.ne.s32.totalorder %s428, %s429
    %p443 = scmp.eq.s32.totalorder %s29, 1
    %p444 = por %p442, %p443
    %p446 = scmp.ne.s32.totalorder %s429, %s445
    %p447 = scmp.eq.s32.totalorder %s29, 0
    %p448 = por %p446, %p447
    %p449 = scmp.le.s32.totalorder 1, %s23
    %p450 = scmp.lt.s32.totalorder %s23, 3
    %p451 = pnand %p449, %p450
    %p452 = pneg %p451
    // Predicated region
    $region9: #{dilated_res_block_forward.6} parent=5 // pred_check
      _
    $region10: #{dilated_res_block_forward.6} parent=5 // pred_check_branch
      %454 = sbr.rel (%p451) target = $region12
    $region11: #{dilated_res_block_forward.6} parent=5 // pred_region
      %s455 = ssub.s32 %s23, 1
      // Predicated region
      $region13: #{dilated_res_block_forward.6} parent=11 // pred_check
        %p456 = pneg %p140
      $region14: #{dilated_res_block_forward.6} parent=11 // pred_check_branch
        %458 = sbr.rel (%p456) target = $region16
      $region15: #{dilated_res_block_forward.6} parent=11 // pred_region
        _
      $region16: #{dilated_res_block_forward.6} parent=11 // pred_fallthru
        _
      // Predicated region
      $region17: #{dilated_res_block_forward.6} parent=11 // pred_check
        %p459 = pneg %p161
      $region18: #{dilated_res_block_forward.6} parent=11 // pred_check_branch
        %461 = sbr.rel (%p459) target = $region20
      $region19: #{dilated_res_block_forward.6} parent=11 // pred_region
        _
      $region20: #{dilated_res_block_forward.6} parent=11 // pred_fallthru
        _
      // Predicated region
      $region21: #{dilated_res_block_forward.6} parent=11 // pred_check
        %p462 = pneg %p182
      $region22: #{dilated_res_block_forward.6} parent=11 // pred_check_branch
        %464 = sbr.rel (%p462) target = $region24
      $region23: #{dilated_res_block_forward.6} parent=11 // pred_region
        _
      $region24: #{dilated_res_block_forward.6} parent=11 // pred_fallthru
        _
      // Predicated region
      $region25: #{dilated_res_block_forward.6} parent=11 // pred_check
        %p465 = pneg %p203
      $region26: #{dilated_res_block_forward.6} parent=11 // pred_check_branch
        %467 = sbr.rel (%p465) target = $region28
      $region27: #{dilated_res_block_forward.6} parent=11 // pred_region
        _
      $region28: #{dilated_res_block_forward.6} parent=11 // pred_fallthru
        _
      // Predicated region
      $region29: #{dilated_res_block_forward.6} parent=11 // pred_check
        %p468 = pneg %p224
      $region30: #{dilated_res_block_forward.6} parent=11 // pred_check_branch
        %470 = sbr.rel (%p468) target = $region32
      $region31: #{dilated_res_block_forward.6} parent=11 // pred_region
        _
      $region32: #{dilated_res_block_forward.6} parent=11 // pred_fallthru
        _
      // Predicated region
      $region33: #{dilated_res_block_forward.6} parent=11 // pred_check
        %p471 = pneg %p245
      $region34: #{dilated_res_block_forward.6} parent=11 // pred_check_branch
        %473 = sbr.rel (%p471) target = $region36
      $region35: #{dilated_res_block_forward.6} parent=11 // pred_region
        _
      $region36: #{dilated_res_block_forward.6} parent=11 // pred_fallthru
        _
      // Predicated region
      $region37: #{dilated_res_block_forward.6} parent=11 // pred_check
        %p474 = pneg %p266
      $region38: #{dilated_res_block_forward.6} parent=11 // pred_check_branch
        %476 = sbr.rel (%p474) target = $region40
      $region39: #{dilated_res_block_forward.6} parent=11 // pred_region
        _
      $region40: #{dilated_res_block_forward.6} parent=11 // pred_fallthru
        _
      // Predicated region
      $region41: #{dilated_res_block_forward.6} parent=11 // pred_check
        %p477 = pneg %p287
      $region42: #{dilated_res_block_forward.6} parent=11 // pred_check_branch
        %479 = sbr.rel (%p477) target = $region44
      $region43: #{dilated_res_block_forward.6} parent=11 // pred_region
        _
      $region44: #{dilated_res_block_forward.6} parent=11 // pred_fallthru
        _
      // Predicated region
      $region45: #{dilated_res_block_forward.6} parent=11 // pred_check
        %p480 = pneg %p308
      $region46: #{dilated_res_block_forward.6} parent=11 // pred_check_branch
        %482 = sbr.rel (%p480) target = $region48
      $region47: #{dilated_res_block_forward.6} parent=11 // pred_region
        _
      $region48: #{dilated_res_block_forward.6} parent=11 // pred_fallthru
        _
      // Predicated region
      $region49: #{dilated_res_block_forward.6} parent=11 // pred_check
        %p483 = pneg %p329
      $region50: #{dilated_res_block_forward.6} parent=11 // pred_check_branch
        %485 = sbr.rel (%p483) target = $region52
      $region51: #{dilated_res_block_forward.6} parent=11 // pred_region
        _
      $region52: #{dilated_res_block_forward.6} parent=11 // pred_fallthru
        _
      // Predicated region
      $region53: #{dilated_res_block_forward.6} parent=11 // pred_check
        %p486 = pneg %p350
      $region54: #{dilated_res_block_forward.6} parent=11 // pred_check_branch
        %488 = sbr.rel (%p486) target = $region56
      $region55: #{dilated_res_block_forward.6} parent=11 // pred_region
        _
      $region56: #{dilated_res_block_forward.6} parent=11 // pred_fallthru
        _
      // Predicated region
      $region57: #{dilated_res_block_forward.6} parent=11 // pred_check
        %p489 = pneg %p371
      $region58: #{dilated_res_block_forward.6} parent=11 // pred_check_branch
        %491 = sbr.rel (%p489) target = $region60
      $region59: #{dilated_res_block_forward.6} parent=11 // pred_region
        _
      $region60: #{dilated_res_block_forward.6} parent=11 // pred_fallthru
        _
      // Predicated region
      $region61: #{dilated_res_block_forward.6} parent=11 // pred_check
        %p492 = pneg %p392
      $region62: #{dilated_res_block_forward.6} parent=11 // pred_check_branch
        %494 = sbr.rel (%p492) target = $region64
      $region63: #{dilated_res_block_forward.6} parent=11 // pred_region
        _
      $region64: #{dilated_res_block_forward.6} parent=11 // pred_fallthru
        _
      // Predicated region
      $region65: #{dilated_res_block_forward.6} parent=11 // pred_check
        %p495 = pneg %p413
      $region66: #{dilated_res_block_forward.6} parent=11 // pred_check_branch
        %497 = sbr.rel (%p495) target = $region68
      $region67: #{dilated_res_block_forward.6} parent=11 // pred_region
        _
      $region68: #{dilated_res_block_forward.6} parent=11 // pred_fallthru
        _
    $region12: #{dilated_res_block_forward.6} parent=5 // pred_fallthru
      _
    %p498 = scmp.lt.s32.totalorder %s23, 2
    // Predicated region
    $region69: #{dilated_res_block_forward.6} parent=5 // pred_check
      %p499 = pneg %p498
    $region70: #{dilated_res_block_forward.6} parent=5 // pred_check_branch
      %501 = sbr.rel (%p499) target = $region72
    $region71: #{dilated_res_block_forward.6} parent=5 // pred_region
      // Predicated region
      $region73: #{dilated_res_block_forward.6} parent=71 // pred_check
        %p502 = pneg %p57
      $region74: #{dilated_res_block_forward.6} parent=71 // pred_check_branch
        %504 = sbr.rel (%p502) target = $region76
      $region75: #{dilated_res_block_forward.6} parent=71 // pred_region
        %s505 = smul.u32 16, %s30
        %p506 = scmp.lt.s32.totalorder %s31, 1
        %s507 = scalar_select %p506, %s31, 1
        %p508 = scmp.lt.s32.totalorder %s505, 15
        %s509 = scalar_select %p508, %s505, 15
        %s510 = smul.addr %s507, 16
        %s511 = sadd.s32 %s509, %s510
        %s512 = smul.addr %s511, 8
        %s513 = scalar_lea.vmem %s0, %s512
        %s514 = smul.u32 16, %s30
      $region76: #{dilated_res_block_forward.6} parent=71 // pred_fallthru
        _
      // Predicated region
      $region77: #{dilated_res_block_forward.6} parent=71 // pred_check
        %p515 = pneg %p85
      $region78: #{dilated_res_block_forward.6} parent=71 // pred_check_branch
        %517 = sbr.rel (%p515) target = $region80
      $region79: #{dilated_res_block_forward.6} parent=71 // pred_region
        %s518 = smul.u32 16, %s30
        %p519 = scmp.lt.s32.totalorder %s31, 1
        %s520 = scalar_select %p519, %s31, 1
        %p521 = scmp.lt.s32.totalorder %s518, 15
        %s522 = scalar_select %p521, %s518, 15
        %s523 = smul.addr %s520, 16
        %s524 = sadd.s32 %s522, %s523
        %s525 = smul.addr %s524, 8
        %s526 = scalar_lea.vmem %s1, %s525
        %s527 = smul.u32 16, %s30
      $region80: #{dilated_res_block_forward.6} parent=71 // pred_fallthru
        _
      // Predicated region
      $region81: #{dilated_res_block_forward.6} parent=71 // pred_check
        %p528 = pneg %p113
      $region82: #{dilated_res_block_forward.6} parent=71 // pred_check_branch
        %530 = sbr.rel (%p528) target = $region84
      $region83: #{dilated_res_block_forward.6} parent=71 // pred_region
        %s531 = smul.u32 2, %s30
        %p532 = scmp.lt.s32.totalorder %s31, 1
        %s533 = scalar_select %p532, %s31, 1
        %p534 = scmp.lt.s32.totalorder %s531, 1
        %s535 = scalar_select %p534, %s531, 1
        %s536 = smul.addr %s533, 2
        %s537 = sadd.s32 %s535, %s536
        %s538 = smul.addr %s537, 8
        %s539 = scalar_lea.vmem %s2, %s538
        %s540 = smul.u32 2, %s30
      $region84: #{dilated_res_block_forward.6} parent=71 // pred_fallthru
        _
    $region72: #{dilated_res_block_forward.6} parent=5 // pred_fallthru
      _
    %p541 = scmp.le.s32.totalorder 1, %s23
    %p542 = scmp.lt.s32.totalorder %s23, 3
    %p543 = pnand %p541, %p542
    %p544 = pneg %p543
    // Predicated region
    $region85: #{dilated_res_block_forward.6} parent=5 // pred_check
      _
    $region86: #{dilated_res_block_forward.6} parent=5 // pred_check_branch
      %546 = sbr.rel (%p543) target = $region88
    $region87: #{dilated_res_block_forward.6} parent=5 // pred_region
      %s547 = ssub.s32 %s23, 1
      %s548 = smul.u32 16, %s32
      %p549 = scmp.lt.s32.totalorder %s33, 1
      %s550 = scalar_select %p549, %s33, 1
      %p551 = scmp.lt.s32.totalorder %s548, 15
      %s552 = scalar_select %p551, %s548, 15
      %s553 = smul.addr %s550, 16
      %s554 = sadd.s32 %s552, %s553
      %s555 = smul.addr %s554, 8
      %s556 = scalar_lea.vmem %s0, %s555
      %p557 = pneg %p63
      %p558 = pneg %p60
      %s559 = smul.u32 16, %s32
      %p560 = scmp.lt.s32.totalorder %s33, 1
      %s561 = scalar_select %p560, %s33, 1
      %p562 = scmp.lt.s32.totalorder %s559, 15
      %s563 = scalar_select %p562, %s559, 15
      %s564 = smul.addr %s561, 16
      %s565 = sadd.s32 %s563, %s564
      %s566 = smul.addr %s565, 8
      %s567 = scalar_lea.vmem %s1, %s566
      %p568 = pneg %p91
      %p569 = pneg %p88
      %s570 = smul.u32 2, %s32
      %p571 = scmp.lt.s32.totalorder %s33, 1
      %s572 = scalar_select %p571, %s33, 1
      %p573 = scmp.lt.s32.totalorder %s570, 1
      %s574 = scalar_select %p573, %s570, 1
      %s575 = smul.addr %s572, 2
      %s576 = sadd.s32 %s574, %s575
      %s577 = smul.addr %s576, 8
      %s578 = scalar_lea.vmem %s2, %s577
      %p579 = pneg %p119
      %p580 = pneg %p116
      %p581 = pneg %p140
      %p582 = pneg %p137
      %p583 = pneg %p161
      %p584 = pneg %p158
      %p585 = pneg %p182
      %p586 = pneg %p179
      %p587 = pneg %p203
      %p588 = pneg %p200
      %p589 = pneg %p224
      %p590 = pneg %p221
      %p591 = pneg %p245
      %p592 = pneg %p242
      %p593 = pneg %p266
      %p594 = pneg %p263
      %p595 = pneg %p287
      %p596 = pneg %p284
      %p597 = pneg %p308
      %p598 = pneg %p305
      %p599 = pneg %p329
      %p600 = pneg %p326
      %p601 = pneg %p350
      %p602 = pneg %p347
      %p603 = pneg %p371
      %p604 = pneg %p368
      %p605 = pneg %p392
      %p606 = pneg %p389
      %p607 = pneg %p413
      %p608 = pneg %p410
      %p609 = pneg %p441
      %p610 = pneg %p438
      %s611 = smul.u32 2, %s32
      %p612 = scmp.lt.s32.totalorder %s33, 1
      %s613 = scalar_select %p612, %s33, 1
      %p614 = scmp.lt.s32.totalorder %s611, 1
      %s615 = scalar_select %p614, %s611, 1
      %s616 = smul.addr %s613, 2
      %s617 = sadd.s32 %s615, %s616
      %s618 = smul.addr %s617, 8
      %s619 = scalar_lea.vmem %s17, %s618
      %s620 = smul.u32 16, %s32
      %p621 = scmp.lt.s32.totalorder %s33, 1
      %s622 = scalar_select %p621, %s33, 1
      %p623 = scmp.lt.s32.totalorder %s620, 15
      %s624 = scalar_select %p623, %s620, 15
      %s625 = smul.addr %s622, 16
      %s626 = sadd.s32 %s624, %s625
      %s627 = smul.addr %s626, 8
      %s628 = scalar_lea.vmem %s0, %s627
      %s629 = smul.u32 16, %s32
      %s630 = smul.u32 16, %s32
      %p631 = scmp.lt.s32.totalorder %s33, 1
      %s632 = scalar_select %p631, %s33, 1
      %p633 = scmp.lt.s32.totalorder %s630, 15
      %s634 = scalar_select %p633, %s630, 15
      %s635 = smul.addr %s632, 16
      %s636 = sadd.s32 %s634, %s635
      %s637 = smul.addr %s636, 8
      %s638 = scalar_lea.vmem %s1, %s637
      %s639 = smul.u32 16, %s32
      %s640 = smul.u32 2, %s32
      %p641 = scmp.lt.s32.totalorder %s33, 1
      %s642 = scalar_select %p641, %s33, 1
      %p643 = scmp.lt.s32.totalorder %s640, 1
      %s644 = scalar_select %p643, %s640, 1
      %s645 = smul.addr %s642, 2
      %s646 = sadd.s32 %s644, %s645
      %s647 = smul.addr %s646, 8
      %s648 = scalar_lea.vmem %s2, %s647
      %s649 = smul.u32 2, %s32
      %s650 = smul.u32 2, %s32
      %p651 = scmp.lt.s32.totalorder %s33, 1
      %s652 = scalar_select %p651, %s33, 1
      %p653 = scmp.lt.s32.totalorder %s650, 1
      %s654 = scalar_select %p653, %s650, 1
      %s655 = smul.addr %s652, 2
      %s656 = sadd.s32 %s654, %s655
      %s657 = smul.addr %s656, 8
      %s658 = scalar_lea.vmem %s17, %s657
      %s659 = smul.u32 2, %s32
      %v660 = vld [vmem:[%s628] sm:$0xff]
      %v661 = vld [vmem:[%s628 + $0x8] sm:$0xff]
      %v662 = vld [vmem:[%s628 + $0x10] sm:$0xff]
      %v663 = vld [vmem:[%s628 + $0x18] sm:$0xff]
      %v664 = vld [vmem:[%s628 + $0x20] sm:$0xff]
      %v665 = vld [vmem:[%s628 + $0x28] sm:$0xff]
      %v666 = vld [vmem:[%s628 + $0x30] sm:$0xff]
      %v667 = vld [vmem:[%s628 + $0x38] sm:$0xff]
      %v668 = vld [vmem:[%s628 + $0x40] sm:$0xff]
      %v669 = vld [vmem:[%s628 + $0x48] sm:$0xff]
      %v670 = vld [vmem:[%s628 + $0x50] sm:$0xff]
      %v671 = vld [vmem:[%s628 + $0x58] sm:$0xff]
      %v672 = vld [vmem:[%s628 + $0x60] sm:$0xff]
      %v673 = vld [vmem:[%s628 + $0x68] sm:$0xff]
      %v674 = vld [vmem:[%s628 + $0x70] sm:$0xff]
      %v675 = vld [vmem:[%s628 + $0x78] sm:$0xff]
      %v676 = vld [vmem:[%s638] sm:$0xff]
      %v677 = vld [vmem:[%s638 + $0x8] sm:$0xff]
      %v678 = vld [vmem:[%s638 + $0x10] sm:$0xff]
      %v679 = vld [vmem:[%s638 + $0x18] sm:$0xff]
      %v680 = vld [vmem:[%s638 + $0x20] sm:$0xff]
      %v681 = vld [vmem:[%s638 + $0x28] sm:$0xff]
      %v682 = vld [vmem:[%s638 + $0x30] sm:$0xff]
      %v683 = vld [vmem:[%s638 + $0x38] sm:$0xff]
      %v684 = vld [vmem:[%s638 + $0x40] sm:$0xff]
      %v685 = vld [vmem:[%s638 + $0x48] sm:$0xff]
      %v686 = vld [vmem:[%s638 + $0x50] sm:$0xff]
      %v687 = vld [vmem:[%s638 + $0x58] sm:$0xff]
      %v688 = vld [vmem:[%s638 + $0x60] sm:$0xff]
      %v689 = vld [vmem:[%s638 + $0x68] sm:$0xff]
      %v690 = vld [vmem:[%s638 + $0x70] sm:$0xff]
      %v691 = vld [vmem:[%s638 + $0x78] sm:$0xff]
      %v692 = vld [vmem:[%s648] sm:$0xff]
      %v693 = vld [vmem:[%s648 + $0x8] sm:$0xff]
      %v696 = vcombine.high %v692, %v692
      %v698 = vunpack.c.l.s4 1966171168
      %v699 = vunpack.c.0.s8 %v698
      %v700 = vlaneseq
      %v701 = vshrl.u32 %v700, 7
      %v702 = vsub.s32 %v699, %v701
      %v703 = vrot.slane %v692, %v702
      %v705 = vunpack.c.l.s4 1966171168
      %v706 = vunpack.c.0.s8 %v705
      %v707 = vlaneseq
      %v708 = vshrl.u32 %v707, 7
      %v709 = vsub.s32 %v706, %v708
      %v710 = vrot.slane %v696, %v709
      %v711 = vcombine.high %v703, %v703
      %v712 = vcombine.high %v710, %v710
      %v714 = vunpack.c.l.s4 1966171168
      %v715 = vunpack.c.0.s8 %v714
      %v716 = vlaneseq
      %v717 = vshrl.u32 %v716, 7
      %v718 = vsub.s32 %v715, %v717
      %v719 = vrot.slane %v703, %v718
      %v721 = vunpack.c.l.s4 1966171168
      %v722 = vunpack.c.0.s8 %v721
      %v723 = vlaneseq
      %v724 = vshrl.u32 %v723, 7
      %v725 = vsub.s32 %v722, %v724
      %v726 = vrot.slane %v710, %v725
      %v728 = vunpack.c.l.s4 1966171168
      %v729 = vunpack.c.0.s8 %v728
      %v730 = vlaneseq
      %v731 = vshrl.u32 %v730, 7
      %v732 = vsub.s32 %v729, %v731
      %v733 = vrot.slane %v711, %v732
      %v735 = vunpack.c.l.s4 1966171168
      %v736 = vunpack.c.0.s8 %v735
      %v737 = vlaneseq
      %v738 = vshrl.u32 %v737, 7
      %v739 = vsub.s32 %v736, %v738
      %v740 = vrot.slane %v712, %v739
      %v741 = vcombine.high %v719, %v719
      %v742 = vcombine.high %v726, %v726
      %v743 = vcombine.high %v733, %v733
      %v744 = vcombine.high %v740, %v740
      %v745 = vcombine.high %v693, %v693
      %v747 = vunpack.c.l.s4 1966171168
      %v748 = vunpack.c.0.s8 %v747
      %v749 = vlaneseq
      %v750 = vshrl.u32 %v749, 7
      %v751 = vsub.s32 %v748, %v750
      %v752 = vrot.slane %v693, %v751
      %v754 = vunpack.c.l.s4 1966171168
      %v755 = vunpack.c.0.s8 %v754
      %v756 = vlaneseq
      %v757 = vshrl.u32 %v756, 7
      %v758 = vsub.s32 %v755, %v757
      %v759 = vrot.slane %v745, %v758
      %v760 = vcombine.high %v752, %v752
      %v761 = vcombine.high %v759, %v759
      %v763 = vunpack.c.l.s4 1966171168
      %v764 = vunpack.c.0.s8 %v763
      %v765 = vlaneseq
      %v766 = vshrl.u32 %v765, 7
      %v767 = vsub.s32 %v764, %v766
      %v768 = vrot.slane %v752, %v767
      %v770 = vunpack.c.l.s4 1966171168
      %v771 = vunpack.c.0.s8 %v770
      %v772 = vlaneseq
      %v773 = vshrl.u32 %v772, 7
      %v774 = vsub.s32 %v771, %v773
      %v775 = vrot.slane %v759, %v774
      %v777 = vunpack.c.l.s4 1966171168
      %v778 = vunpack.c.0.s8 %v777
      %v779 = vlaneseq
      %v780 = vshrl.u32 %v779, 7
      %v781 = vsub.s32 %v778, %v780
      %v782 = vrot.slane %v760, %v781
      %v784 = vunpack.c.l.s4 1966171168
      %v785 = vunpack.c.0.s8 %v784
      %v786 = vlaneseq
      %v787 = vshrl.u32 %v786, 7
      %v788 = vsub.s32 %v785, %v787
      %v789 = vrot.slane %v761, %v788
      %v790 = vcombine.high %v768, %v768
      %v791 = vcombine.high %v775, %v775
      %v792 = vcombine.high %v782, %v782
      %v793 = vcombine.high %v789, %v789
      %v794 = vlaneseq
      %v795 = vshrl.u32 %v794, 7
      %v796 = vsub.s32 0, %v795
      %v797 = vrot.slane %v719, %v796
      %v798 = vlaneseq
      %v799 = vshrl.u32 %v798, 7
      %v800 = vsub.s32 0, %v799
      %v801 = vrot.slane %v733, %v800
      %v802 = vlaneseq
      %v803 = vshrl.u32 %v802, 7
      %v804 = vsub.s32 0, %v803
      %v805 = vrot.slane %v741, %v804
      %v806 = vlaneseq
      %v807 = vshrl.u32 %v806, 7
      %v808 = vsub.s32 0, %v807
      %v809 = vrot.slane %v743, %v808
      %v810 = vlaneseq
      %v811 = vshrl.u32 %v810, 7
      %v812 = vsub.s32 0, %v811
      %v813 = vrot.slane %v726, %v812
      %v814 = vlaneseq
      %v815 = vshrl.u32 %v814, 7
      %v816 = vsub.s32 0, %v815
      %v817 = vrot.slane %v740, %v816
      %v818 = vlaneseq
      %v819 = vshrl.u32 %v818, 7
      %v820 = vsub.s32 0, %v819
      %v821 = vrot.slane %v742, %v820
      %v822 = vlaneseq
      %v823 = vshrl.u32 %v822, 7
      %v824 = vsub.s32 0, %v823
      %v825 = vrot.slane %v744, %v824
      %v826 = vlaneseq
      %v827 = vshrl.u32 %v826, 7
      %v828 = vsub.s32 0, %v827
      %v829 = vrot.slane %v768, %v828
      %v830 = vlaneseq
      %v831 = vshrl.u32 %v830, 7
      %v832 = vsub.s32 0, %v831
      %v833 = vrot.slane %v782, %v832
      %v834 = vlaneseq
      %v835 = vshrl.u32 %v834, 7
      %v836 = vsub.s32 0, %v835
      %v837 = vrot.slane %v790, %v836
      %v838 = vlaneseq
      %v839 = vshrl.u32 %v838, 7
      %v840 = vsub.s32 0, %v839
      %v841 = vrot.slane %v792, %v840
      %v842 = vlaneseq
      %v843 = vshrl.u32 %v842, 7
      %v844 = vsub.s32 0, %v843
      %v845 = vrot.slane %v775, %v844
      %v846 = vlaneseq
      %v847 = vshrl.u32 %v846, 7
      %v848 = vsub.s32 0, %v847
      %v849 = vrot.slane %v789, %v848
      %v850 = vlaneseq
      %v851 = vshrl.u32 %v850, 7
      %v852 = vsub.s32 0, %v851
      %v853 = vrot.slane %v791, %v852
      %v854 = vlaneseq
      %v855 = vshrl.u32 %v854, 7
      %v856 = vsub.s32 0, %v855
      %v857 = vrot.slane %v793, %v856
      %v874 = vsub.f32 %v797, %v676
      %v875 = vsub.f32 %v801, %v677
      %v876 = vsub.f32 %v805, %v678
      %v877 = vsub.f32 %v809, %v679
      %v878 = vsub.f32 %v813, %v680
      %v879 = vsub.f32 %v817, %v681
      %v880 = vsub.f32 %v821, %v682
      %v881 = vsub.f32 %v825, %v683
      %v882 = vsub.f32 %v829, %v684
      %v883 = vsub.f32 %v833, %v685
      %v884 = vsub.f32 %v837, %v686
      %v885 = vsub.f32 %v841, %v687
      %v886 = vsub.f32 %v845, %v688
      %v887 = vsub.f32 %v849, %v689
      %v888 = vsub.f32 %v853, %v690
      %v889 = vsub.f32 %v857, %v691
      %v890 = vmul.f32 %v874, %v874
      %v891 = vmul.f32 %v875, %v875
      %v892 = vmul.f32 %v876, %v876
      %v893 = vmul.f32 %v877, %v877
      %v894 = vmul.f32 %v878, %v878
      %v895 = vmul.f32 %v879, %v879
      %v896 = vmul.f32 %v880, %v880
      %v897 = vmul.f32 %v881, %v881
      %v898 = vmul.f32 %v882, %v882
      %v899 = vmul.f32 %v883, %v883
      %v900 = vmul.f32 %v884, %v884
      %v901 = vmul.f32 %v885, %v885
      %v902 = vmul.f32 %v886, %v886
      %v903 = vmul.f32 %v887, %v887
      %v904 = vmul.f32 %v888, %v888
      %v905 = vmul.f32 %v889, %v889
      %vm906 = vcmask 23552
      %v907 = vsel %vm906, %v890, 0.0
      %908 = vadd.xlane.f32.xlu0 %v907
      %v909 = vpop.xlane.xlu0 %908
      %v910 = vsel %vm906, %v891, 0.0
      %911 = vadd.xlane.f32.xlu0 %v910
      %v912 = vpop.xlane.xlu0 %911
      %v913 = vsel %vm906, %v892, 0.0
      %914 = vadd.xlane.f32.xlu0 %v913
      %v915 = vpop.xlane.xlu0 %914
      %v916 = vsel %vm906, %v893, 0.0
      %917 = vadd.xlane.f32.xlu0 %v916
      %v918 = vpop.xlane.xlu0 %917
      %v919 = vsel %vm906, %v894, 0.0
      %920 = vadd.xlane.f32.xlu0 %v919
      %v921 = vpop.xlane.xlu0 %920
      %v922 = vsel %vm906, %v895, 0.0
      %923 = vadd.xlane.f32.xlu0 %v922
      %v924 = vpop.xlane.xlu0 %923
      %v925 = vsel %vm906, %v896, 0.0
      %926 = vadd.xlane.f32.xlu0 %v925
      %v927 = vpop.xlane.xlu0 %926
      %v928 = vsel %vm906, %v897, 0.0
      %929 = vadd.xlane.f32.xlu0 %v928
      %v930 = vpop.xlane.xlu0 %929
      %v931 = vsel %vm906, %v898, 0.0
      %932 = vadd.xlane.f32.xlu0 %v931
      %v933 = vpop.xlane.xlu0 %932
      %v934 = vsel %vm906, %v899, 0.0
      %935 = vadd.xlane.f32.xlu0 %v934
      %v936 = vpop.xlane.xlu0 %935
      %v937 = vsel %vm906, %v900, 0.0
      %938 = vadd.xlane.f32.xlu0 %v937
      %v939 = vpop.xlane.xlu0 %938
      %v940 = vsel %vm906, %v901, 0.0
      %941 = vadd.xlane.f32.xlu0 %v940
      %v942 = vpop.xlane.xlu0 %941
      %v943 = vsel %vm906, %v902, 0.0
      %944 = vadd.xlane.f32.xlu0 %v943
      %v945 = vpop.xlane.xlu0 %944
      %v946 = vsel %vm906, %v903, 0.0
      %947 = vadd.xlane.f32.xlu0 %v946
      %v948 = vpop.xlane.xlu0 %947
      %v949 = vsel %vm906, %v904, 0.0
      %950 = vadd.xlane.f32.xlu0 %v949
      %v951 = vpop.xlane.xlu0 %950
      %v952 = vsel %vm906, %v905, 0.0
      %953 = vadd.xlane.f32.xlu0 %v952
      %v954 = vpop.xlane.xlu0 %953
      %v955 = vrsqrt.pop %v909
      %v956 = vmul.f32 %v909, %v955
      %vm957 = vcmp.eq.f32.partialorder %v909, inf
      %v958 = vsel %vm957, %v909, %v956
      %vm959 = vcmp.eq.f32.partialorder %v909, 0.0
      %v960 = vand.u32 %v909, 2147483648
      %v961 = vsel %vm959, %v960, %v958
      %v962 = vrsqrt.pop %v912
      %v963 = vmul.f32 %v912, %v962
      %vm964 = vcmp.eq.f32.partialorder %v912, inf
      %v965 = vsel %vm964, %v912, %v963
      %vm966 = vcmp.eq.f32.partialorder %v912, 0.0
      %v967 = vand.u32 %v912, 2147483648
      %v968 = vsel %vm966, %v967, %v965
      %v969 = vrsqrt.pop %v915
      %v970 = vmul.f32 %v915, %v969
      %vm971 = vcmp.eq.f32.partialorder %v915, inf
      %v972 = vsel %vm971, %v915, %v970
      %vm973 = vcmp.eq.f32.partialorder %v915, 0.0
      %v974 = vand.u32 %v915, 2147483648
      %v975 = vsel %vm973, %v974, %v972
      %v976 = vrsqrt.pop %v918
      %v977 = vmul.f32 %v918, %v976
      %vm978 = vcmp.eq.f32.partialorder %v918, inf
      %v979 = vsel %vm978, %v918, %v977
      %vm980 = vcmp.eq.f32.partialorder %v918, 0.0
      %v981 = vand.u32 %v918, 2147483648
      %v982 = vsel %vm980, %v981, %v979
      %v983 = vrsqrt.pop %v921
      %v984 = vmul.f32 %v921, %v983
      %vm985 = vcmp.eq.f32.partialorder %v921, inf
      %v986 = vsel %vm985, %v921, %v984
      %vm987 = vcmp.eq.f32.partialorder %v921, 0.0
      %v988 = vand.u32 %v921, 2147483648
      %v989 = vsel %vm987, %v988, %v986
      %v990 = vrsqrt.pop %v924
      %v991 = vmul.f32 %v924, %v990
      %vm992 = vcmp.eq.f32.partialorder %v924, inf
      %v993 = vsel %vm992, %v924, %v991
      %vm994 = vcmp.eq.f32.partialorder %v924, 0.0
      %v995 = vand.u32 %v924, 2147483648
      %v996 = vsel %vm994, %v995, %v993
      %v997 = vrsqrt.pop %v927
      %v998 = vmul.f32 %v927, %v997
      %vm999 = vcmp.eq.f32.partialorder %v927, inf
      %v1000 = vsel %vm999, %v927, %v998
      %vm1001 = vcmp.eq.f32.partialorder %v927, 0.0
      %v1002 = vand.u32 %v927, 2147483648
      %v1003 = vsel %vm1001, %v1002, %v1000
      %v1004 = vrsqrt.pop %v930
      %v1005 = vmul.f32 %v930, %v1004
      %vm1006 = vcmp.eq.f32.partialorder %v930, inf
      %v1007 = vsel %vm1006, %v930, %v1005
      %vm1008 = vcmp.eq.f32.partialorder %v930, 0.0
      %v1009 = vand.u32 %v930, 2147483648
      %v1010 = vsel %vm1008, %v1009, %v1007
      %v1011 = vrsqrt.pop %v933
      %v1012 = vmul.f32 %v933, %v1011
      %vm1013 = vcmp.eq.f32.partialorder %v933, inf
      %v1014 = vsel %vm1013, %v933, %v1012
      %vm1015 = vcmp.eq.f32.partialorder %v933, 0.0
      %v1016 = vand.u32 %v933, 2147483648
      %v1017 = vsel %vm1015, %v1016, %v1014
      %v1018 = vrsqrt.pop %v936
      %v1019 = vmul.f32 %v936, %v1018
      %vm1020 = vcmp.eq.f32.partialorder %v936, inf
      %v1021 = vsel %vm1020, %v936, %v1019
      %vm1022 = vcmp.eq.f32.partialorder %v936, 0.0
      %v1023 = vand.u32 %v936, 2147483648
      %v1024 = vsel %vm1022, %v1023, %v1021
      %v1025 = vrsqrt.pop %v939
      %v1026 = vmul.f32 %v939, %v1025
      %vm1027 = vcmp.eq.f32.partialorder %v939, inf
      %v1028 = vsel %vm1027, %v939, %v1026
      %vm1029 = vcmp.eq.f32.partialorder %v939, 0.0
      %v1030 = vand.u32 %v939, 2147483648
      %v1031 = vsel %vm1029, %v1030, %v1028
      %v1032 = vrsqrt.pop %v942
      %v1033 = vmul.f32 %v942, %v1032
      %vm1034 = vcmp.eq.f32.partialorder %v942, inf
      %v1035 = vsel %vm1034, %v942, %v1033
      %vm1036 = vcmp.eq.f32.partialorder %v942, 0.0
      %v1037 = vand.u32 %v942, 2147483648
      %v1038 = vsel %vm1036, %v1037, %v1035
      %v1039 = vrsqrt.pop %v945
      %v1040 = vmul.f32 %v945, %v1039
      %vm1041 = vcmp.eq.f32.partialorder %v945, inf
      %v1042 = vsel %vm1041, %v945, %v1040
      %vm1043 = vcmp.eq.f32.partialorder %v945, 0.0
      %v1044 = vand.u32 %v945, 2147483648
      %v1045 = vsel %vm1043, %v1044, %v1042
      %v1046 = vrsqrt.pop %v948
      %v1047 = vmul.f32 %v948, %v1046
      %vm1048 = vcmp.eq.f32.partialorder %v948, inf
      %v1049 = vsel %vm1048, %v948, %v1047
      %vm1050 = vcmp.eq.f32.partialorder %v948, 0.0
      %v1051 = vand.u32 %v948, 2147483648
      %v1052 = vsel %vm1050, %v1051, %v1049
      %v1053 = vrsqrt.pop %v951
      %v1054 = vmul.f32 %v951, %v1053
      %vm1055 = vcmp.eq.f32.partialorder %v951, inf
      %v1056 = vsel %vm1055, %v951, %v1054
      %vm1057 = vcmp.eq.f32.partialorder %v951, 0.0
      %v1058 = vand.u32 %v951, 2147483648
      %v1059 = vsel %vm1057, %v1058, %v1056
      %v1060 = vrsqrt.pop %v954
      %v1061 = vmul.f32 %v954, %v1060
      %vm1062 = vcmp.eq.f32.partialorder %v954, inf
      %v1063 = vsel %vm1062, %v954, %v1061
      %vm1064 = vcmp.eq.f32.partialorder %v954, 0.0
      %v1065 = vand.u32 %v954, 2147483648
      %v1066 = vsel %vm1064, %v1065, %v1063
      %v1067 = vld [vmem:[%s3] sm:$0x1]
      %v1069 = vlaneseq
      %v1070 = vshrl.u32 %v1069, 7
      %v1071 = vsub.s32 0, %v1070
      %v1072 = vrot.slane %v1067, %v1071
      %v1074 = vmul.f32 %v961, %v1072
      %v1075 = vmul.f32 %v968, %v1072
      %v1076 = vmul.f32 %v975, %v1072
      %v1077 = vmul.f32 %v982, %v1072
      %v1078 = vmul.f32 %v989, %v1072
      %v1079 = vmul.f32 %v996, %v1072
      %v1080 = vmul.f32 %v1003, %v1072
      %v1081 = vmul.f32 %v1010, %v1072
      %v1082 = vmul.f32 %v1017, %v1072
      %v1083 = vmul.f32 %v1024, %v1072
      %v1084 = vmul.f32 %v1031, %v1072
      %v1085 = vmul.f32 %v1038, %v1072
      %v1086 = vmul.f32 %v1045, %v1072
      %v1087 = vmul.f32 %v1052, %v1072
      %v1088 = vmul.f32 %v1059, %v1072
      %v1089 = vmul.f32 %v1066, %v1072
      %v1090 = vld [vmem:[%s4] sm:$0x7]
      %v1092 = vsel %vm906, %v874, 0
      %v1095 = vsel %vm906, %v875, 0
      %v1098 = vsel %vm906, %v876, 0
      %v1101 = vsel %vm906, %v877, 0
      %v1104 = vsel %vm906, %v878, 0
      %v1107 = vsel %vm906, %v879, 0
      %v1110 = vsel %vm906, %v880, 0
      %v1113 = vsel %vm906, %v881, 0
      %v1116 = vsel %vm906, %v882, 0
      %v1119 = vsel %vm906, %v883, 0
      %v1122 = vsel %vm906, %v884, 0
      %v1125 = vsel %vm906, %v885, 0
      %v1128 = vsel %vm906, %v886, 0
      %v1131 = vsel %vm906, %v887, 0
      %v1134 = vsel %vm906, %v888, 0
      %v1137 = vsel %vm906, %v889, 0
      %vm1139 = vcmask 1042432
      %v1141 = vsel %vm1139, %v1090, 0
      %1143 = vmatprep.subr.mxu0 0.0
      %1144 = vmatpush1.msra.mxu0 %v1141
      %1145 = vmatprep.subr.mxu0 0.0
      %1146 = vmatpush1.msra.mxu0 0.0
      %1147 = vmatprep.subr.mxu0 0.0
      %1148 = vmatpush1.msra.mxu0 0.0
      %1149 = vmatprep.subr.mxu0 0.0
      %1150 = vmatpush1.msra.mxu0 0.0
      %1151 = vmatprep.subr.mxu0 0.0
      %1152 = vmatpush1.msra.mxu0 0.0
      %1153 = vmatprep.subr.mxu0 0.0
      %1154 = vmatpush1.msra.mxu0 0.0
      %1155 = vmatprep.subr.mxu0 0.0
      %1156 = vmatpush1.msra.mxu0 0.0
      %1157 = vmatprep.subr.mxu0 0.0
      %1158 = vmatpush1.msra.mxu0 0.0
      %1159 = vmatprep.subr.mxu0 0.0
      %1160 = vmatpush1.msra.mxu0 0.0
      %1161 = vmatprep.subr.mxu0 0.0
      %1162 = vmatpush1.msra.mxu0 0.0
      %1163 = vmatprep.subr.mxu0 0.0
      %1164 = vmatpush1.msra.mxu0 0.0
      %1165 = vmatprep.subr.mxu0 0.0
      %1166 = vmatpush1.msra.mxu0 0.0
      %1167 = vmatprep.subr.mxu0 0.0
      %1168 = vmatpush1.msra.mxu0 0.0
      %1169 = vmatprep.subr.mxu0 0.0
      %1170 = vmatpush1.msra.mxu0 0.0
      %1171 = vmatprep.subr.mxu0 0.0
      %1172 = vmatpush1.msra.mxu0 0.0
      %1173 = vmatprep.subr.mxu0 0.0
      %1174 = vmatpush1.msra.mxu0 0.0
      %1175 = vmatprep.subr.mxu0 0.0
      %1176 = vmatpush1.msra.mxu0 0.0
      %1177 = vmatprep.subr.mxu0 0.0
      %1178 = vmatpush1.msra.mxu0 0.0
      %1179 = vmatprep.subr.mxu0 0.0
      %1180 = vmatpush1.msra.mxu0 0.0
      %1181 = vmatprep.subr.mxu0 0.0
      %1182 = vmatpush1.msra.mxu0 0.0
      %1183 = vmatprep.subr.mxu0 0.0
      %1184 = vmatpush1.msra.mxu0 0.0
      %1185 = vmatprep.subr.mxu0 0.0
      %1186 = vmatpush1.msra.mxu0 0.0
      %1187 = vmatprep.subr.mxu0 0.0
      %1188 = vmatpush1.msra.mxu0 0.0
      %1189 = vmatprep.subr.mxu0 0.0
      %1190 = vmatpush1.msra.mxu0 0.0
      %1191 = vmatprep.subr.mxu0 0.0
      %1192 = vmatpush1.msra.mxu0 0.0
      %1193 = vmatprep.subr.mxu0 0.0
      %1194 = vmatpush1.msra.mxu0 0.0
      %1195 = vmatprep.subr.mxu0 0.0
      %1196 = vmatpush1.msra.mxu0 0.0
      %1197 = vmatprep.subr.mxu0 0.0
      %1198 = vmatpush1.msra.mxu0 0.0
      %1199 = vmatprep.subr.mxu0 0.0
      %1200 = vmatpush1.msra.mxu0 0.0
      %1201 = vmatprep.subr.mxu0 0.0
      %1202 = vmatpush1.msra.mxu0 0.0
      %1203 = vmatprep.subr.mxu0 0.0
      %1204 = vmatpush1.msra.mxu0 0.0
      %1205 = vmatprep.subr.mxu0 0.0
      %1206 = vmatpush1.msra.mxu0 0.0
      %1207 = vmatprep.mubr.f32.mxu0 0.0
      %1208 = vmatmul.mubr.f32.gmra.mrb[0].mxu0 %v1092
      %v1209 = vpop.f32.mrb[0].mxu0
      %v1210 = vadd.f32 0.0, %v1209
      %v1211 = vpop.f32.mrb[0].mxu0
      %1212 = vmatprep.mubr.f32.mxu0 0.0
      %1213 = vmatmul.mubr.f32.gmra.mrb[0].mxu0 %v1095
      %v1214 = vpop.f32.mrb[0].mxu0
      %v1215 = vadd.f32 0.0, %v1214
      %v1216 = vpop.f32.mrb[0].mxu0
      %1217 = vmatprep.mubr.f32.mxu0 0.0
      %1218 = vmatmul.mubr.f32.gmra.mrb[0].mxu0 %v1098
      %v1219 = vpop.f32.mrb[0].mxu0
      %v1220 = vadd.f32 0.0, %v1219
      %v1221 = vpop.f32.mrb[0].mxu0
      %1222 = vmatprep.mubr.f32.mxu0 0.0
      %1223 = vmatmul.mubr.f32.gmra.mrb[0].mxu0 %v1101
      %v1224 = vpop.f32.mrb[0].mxu0
      %v1225 = vadd.f32 0.0, %v1224
      %v1226 = vpop.f32.mrb[0].mxu0
      %1227 = vmatprep.mubr.f32.mxu0 0.0
      %1228 = vmatmul.mubr.f32.gmra.mrb[0].mxu0 %v1104
      %v1229 = vpop.f32.mrb[0].mxu0
      %v1230 = vadd.f32 0.0, %v1229
      %v1231 = vpop.f32.mrb[0].mxu0
      %1232 = vmatprep.mubr.f32.mxu0 0.0
      %1233 = vmatmul.mubr.f32.gmra.mrb[0].mxu0 %v1107
      %v1234 = vpop.f32.mrb[0].mxu0
      %v1235 = vadd.f32 0.0, %v1234
      %v1236 = vpop.f32.mrb[0].mxu0
      %1237 = vmatprep.mubr.f32.mxu0 0.0
      %1238 = vmatmul.mubr.f32.gmra.mrb[0].mxu0 %v1110
      %v1239 = vpop.f32.mrb[0].mxu0
      %v1240 = vadd.f32 0.0, %v1239
      %v1241 = vpop.f32.mrb[0].mxu0
      %1242 = vmatprep.mubr.f32.mxu0 0.0
      %1243 = vmatmul.mubr.f32.gmra.mrb[0].mxu0 %v1113
      %v1244 = vpop.f32.mrb[0].mxu0
      %v1245 = vadd.f32 0.0, %v1244
      %v1246 = vpop.f32.mrb[0].mxu0
      %1247 = vmatprep.mubr.f32.mxu0 0.0
      %1248 = vmatmul.mubr.f32.gmra.mrb[0].mxu0 %v1116
      %v1249 = vpop.f32.mrb[0].mxu0
      %v1250 = vadd.f32 0.0, %v1249
      %v1251 = vpop.f32.mrb[0].mxu0
      %1252 = vmatprep.mubr.f32.mxu0 0.0
      %1253 = vmatmul.mubr.f32.gmra.mrb[0].mxu0 %v1119
      %v1254 = vpop.f32.mrb[0].mxu0
      %v1255 = vadd.f32 0.0, %v1254
      %v1256 = vpop.f32.mrb[0].mxu0
      %1257 = vmatprep.mubr.f32.mxu0 0.0
      %1258 = vmatmul.mubr.f32.gmra.mrb[0].mxu0 %v1122
      %v1259 = vpop.f32.mrb[0].mxu0
      %v1260 = vadd.f32 0.0, %v1259
      %v1261 = vpop.f32.mrb[0].mxu0
      %1262 = vmatprep.mubr.f32.mxu0 0.0
      %1263 = vmatmul.mubr.f32.gmra.mrb[0].mxu0 %v1125
      %v1264 = vpop.f32.mrb[0].mxu0
      %v1265 = vadd.f32 0.0, %v1264
      %v1266 = vpop.f32.mrb[0].mxu0
      %1267 = vmatprep.mubr.f32.mxu0 0.0
      %1268 = vmatmul.mubr.f32.gmra.mrb[0].mxu0 %v1128
      %v1269 = vpop.f32.mrb[0].mxu0
      %v1270 = vadd.f32 0.0, %v1269
      %v1271 = vpop.f32.mrb[0].mxu0
      %1272 = vmatprep.mubr.f32.mxu0 0.0
      %1273 = vmatmul.mubr.f32.gmra.mrb[0].mxu0 %v1131
      %v1274 = vpop.f32.mrb[0].mxu0
      %v1275 = vadd.f32 0.0, %v1274
      %v1276 = vpop.f32.mrb[0].mxu0
      %1277 = vmatprep.mubr.f32.mxu0 0.0
      %1278 = vmatmul.mubr.f32.gmra.mrb[0].mxu0 %v1134
      %v1279 = vpop.f32.mrb[0].mxu0
      %v1280 = vadd.f32 0.0, %v1279
      %v1281 = vpop.f32.mrb[0].mxu0
      %1282 = vmatprep.mubr.f32.mxu0 0.0
      %1283 = vmatmul.mubr.f32.gmra.mrb[0].mxu0 %v1137
      %v1284 = vpop.f32.mrb[0].mxu0
      %v1285 = vadd.f32 0.0, %v1284
      %v1286 = vpop.f32.mrb[0].mxu0
      %1287 = vdwg.mxu0
      %v1288 = vadd.f32 %v1074, %v1210
      %v1289 = vadd.f32 %v1075, %v1215
      %v1290 = vadd.f32 %v1076, %v1220
      %v1291 = vadd.f32 %v1077, %v1225
      %v1292 = vadd.f32 %v1078, %v1230
      %v1293 = vadd.f32 %v1079, %v1235
      %v1294 = vadd.f32 %v1080, %v1240
      %v1295 = vadd.f32 %v1081, %v1245
      %v1296 = vadd.f32 %v1082, %v1250
      %v1297 = vadd.f32 %v1083, %v1255
      %v1298 = vadd.f32 %v1084, %v1260
      %v1299 = vadd.f32 %v1085, %v1265
      %v1300 = vadd.f32 %v1086, %v1270
      %v1301 = vadd.f32 %v1087, %v1275
      %v1302 = vadd.f32 %v1088, %v1280
      %v1303 = vadd.f32 %v1089, %v1285
      %v1304 = vld [vmem:[%s5] sm:$0x7]
      %v1305 = vsel %vm906, %v797, 0
      %v1307 = vsel %vm906, %v801, 0
      %v1309 = vsel %vm906, %v805, 0
      %v1311 = vsel %vm906, %v809, 0
      %v1313 = vsel %vm906, %v813, 0
      %v1315 = vsel %vm906, %v817, 0
      %v1317 = vsel %vm906, %v821, 0
      %v1319 = vsel %vm906, %v825, 0
      %v1321 = vsel %vm906, %v829, 0
      %v1323 = vsel %vm906, %v833, 0
      %v1325 = vsel %vm906, %v837, 0
      %v1327 = vsel %vm906, %v841, 0
      %v1329 = vsel %vm906, %v845, 0
      %v1331 = vsel %vm906, %v849, 0
      %v1333 = vsel %vm906, %v853, 0
      %v1335 = vsel %vm906, %v857, 0
      %v1338 = vsel %vm1139, %v1304, 0
      %1340 = vmatprep.subr.mxu0 0.0
      %1341 = vmatpush1.msra.mxu0 %v1338
      %1342 = vmatprep.subr.mxu0 0.0
      %1343 = vmatpush1.msra.mxu0 0.0
      %1344 = vmatprep.subr.mxu0 0.0
      %1345 = vmatpush1.msra.mxu0 0.0
      %1346 = vmatprep.subr.mxu0 0.0
      %1347 = vmatpush1.msra.mxu0 0.0
      %1348 = vmatprep.subr.mxu0 0.0
      %1349 = vmatpush1.msra.mxu0 0.0
      %1350 = vmatprep.subr.mxu0 0.0
      %1351 = vmatpush1.msra.mxu0 0.0
      %1352 = vmatprep.subr.mxu0 0.0
      %1353 = vmatpush1.msra.mxu0 0.0
      %1354 = vmatprep.subr.mxu0 0.0
      %1355 = vmatpush1.msra.mxu0 0.0
      %1356 = vmatprep.subr.mxu0 0.0
      %1357 = vmatpush1.msra.mxu0 0.0
      %1358 = vmatprep.subr.mxu0 0.0
      %1359 = vmatpush1.msra.mxu0 0.0
      %1360 = vmatprep.subr.mxu0 0.0
      %1361 = vmatpush1.msra.mxu0 0.0
      %1362 = vmatprep.subr.mxu0 0.0
      %1363 = vmatpush1.msra.mxu0 0.0
      %1364 = vmatprep.subr.mxu0 0.0
      %1365 = vmatpush1.msra.mxu0 0.0
      %1366 = vmatprep.subr.mxu0 0.0
      %1367 = vmatpush1.msra.mxu0 0.0
      %1368 = vmatprep.subr.mxu0 0.0
      %1369 = vmatpush1.msra.mxu0 0.0
      %1370 = vmatprep.subr.mxu0 0.0
      %1371 = vmatpush1.msra.mxu0 0.0
      %1372 = vmatprep.subr.mxu0 0.0
      %1373 = vmatpush1.msra.mxu0 0.0
      %1374 = vmatprep.subr.mxu0 0.0
      %1375 = vmatpush1.msra.mxu0 0.0
      %1376 = vmatprep.subr.mxu0 0.0
      %1377 = vmatpush1.msra.mxu0 0.0
      %1378 = vmatprep.subr.mxu0 0.0
      %1379 = vmatpush1.msra.mxu0 0.0
      %1380 = vmatprep.subr.mxu0 0.0
      %1381 = vmatpush1.msra.mxu0 0.0
      %1382 = vmatprep.subr.mxu0 0.0
      %1383 = vmatpush1.msra.mxu0 0.0
      %1384 = vmatprep.subr.mxu0 0.0
      %1385 = vmatpush1.msra.mxu0 0.0
      %1386 = vmatprep.subr.mxu0 0.0
      %1387 = vmatpush1.msra.mxu0 0.0
      %1388 = vmatprep.subr.mxu0 0.0
      %1389 = vmatpush1.msra.mxu0 0.0
      %1390 = vmatprep.subr.mxu0 0.0
      %1391 = vmatpush1.msra.mxu0 0.0
      %1392 = vmatprep.subr.mxu0 0.0
      %1393 = vmatpush1.msra.mxu0 0.0
      %1394 = vmatprep.subr.mxu0 0.0
      %1395 = vmatpush1.msra.mxu0 0.0
      %1396 = vmatprep.subr.mxu0 0.0
      %1397 = vmatpush1.msra.mxu0 0.0
      %1398 = vmatprep.subr.mxu0 0.0
      %1399 = vmatpush1.msra.mxu0 0.0
      %1400 = vmatprep.subr.mxu0 0.0
      %1401 = vmatpush1.msra.mxu0 0.0
      %1402 = vmatprep.subr.mxu0 0.0
      %1403 = vmatpush1.msra.mxu0 0.0
      %1404 = vmatprep.mubr.f32.mxu0 0.0
      %1405 = vmatmul.mubr.f32.gmra.mrb[0].mxu0 %v1305
      %v1406 = vpop.f32.mrb[0].mxu0
      %v1407 = vadd.f32 0.0, %v1406
      %v1408 = vpop.f32.mrb[0].mxu0
      %1409 = vmatprep.mubr.f32.mxu0 0.0
      %1410 = vmatmul.mubr.f32.gmra.mrb[0].mxu0 %v1307
      %v1411 = vpop.f32.mrb[0].mxu0
      %v1412 = vadd.f32 0.0, %v1411
      %v1413 = vpop.f32.mrb[0].mxu0
      %1414 = vmatprep.mubr.f32.mxu0 0.0
      %1415 = vmatmul.mubr.f32.gmra.mrb[0].mxu0 %v1309
      %v1416 = vpop.f32.mrb[0].mxu0
      %v1417 = vadd.f32 0.0, %v1416
      %v1418 = vpop.f32.mrb[0].mxu0
      %1419 = vmatprep.mubr.f32.mxu0 0.0
      %1420 = vmatmul.mubr.f32.gmra.mrb[0].mxu0 %v1311
      %v1421 = vpop.f32.mrb[0].mxu0
      %v1422 = vadd.f32 0.0, %v1421
      %v1423 = vpop.f32.mrb[0].mxu0
      %1424 = vmatprep.mubr.f32.mxu0 0.0
      %1425 = vmatmul.mubr.f32.gmra.mrb[0].mxu0 %v1313
      %v1426 = vpop.f32.mrb[0].mxu0
      %v1427 = vadd.f32 0.0, %v1426
      %v1428 = vpop.f32.mrb[0].mxu0
      %1429 = vmatprep.mubr.f32.mxu0 0.0
      %1430 = vmatmul.mubr.f32.gmra.mrb[0].mxu0 %v1315
      %v1431 = vpop.f32.mrb[0].mxu0
      %v1432 = vadd.f32 0.0, %v1431
      %v1433 = vpop.f32.mrb[0].mxu0
      %1434 = vmatprep.mubr.f32.mxu0 0.0
      %1435 = vmatmul.mubr.f32.gmra.mrb[0].mxu0 %v1317
      %v1436 = vpop.f32.mrb[0].mxu0
      %v1437 = vadd.f32 0.0, %v1436
      %v1438 = vpop.f32.mrb[0].mxu0
      %1439 = vmatprep.mubr.f32.mxu0 0.0
      %1440 = vmatmul.mubr.f32.gmra.mrb[0].mxu0 %v1319
      %v1441 = vpop.f32.mrb[0].mxu0
      %v1442 = vadd.f32 0.0, %v1441
      %v1443 = vpop.f32.mrb[0].mxu0
      %1444 = vmatprep.mubr.f32.mxu0 0.0
      %1445 = vmatmul.mubr.f32.gmra.mrb[0].mxu0 %v1321
      %v1446 = vpop.f32.mrb[0].mxu0
      %v1447 = vadd.f32 0.0, %v1446
      %v1448 = vpop.f32.mrb[0].mxu0
      %1449 = vmatprep.mubr.f32.mxu0 0.0
      %1450 = vmatmul.mubr.f32.gmra.mrb[0].mxu0 %v1323
      %v1451 = vpop.f32.mrb[0].mxu0
      %v1452 = vadd.f32 0.0, %v1451
      %v1453 = vpop.f32.mrb[0].mxu0
      %1454 = vmatprep.mubr.f32.mxu0 0.0
      %1455 = vmatmul.mubr.f32.gmra.mrb[0].mxu0 %v1325
      %v1456 = vpop.f32.mrb[0].mxu0
      %v1457 = vadd.f32 0.0, %v1456
      %v1458 = vpop.f32.mrb[0].mxu0
      %1459 = vmatprep.mubr.f32.mxu0 0.0
      %1460 = vmatmul.mubr.f32.gmra.mrb[0].mxu0 %v1327
      %v1461 = vpop.f32.mrb[0].mxu0
      %v1462 = vadd.f32 0.0, %v1461
      %v1463 = vpop.f32.mrb[0].mxu0
      %1464 = vmatprep.mubr.f32.mxu0 0.0
      %1465 = vmatmul.mubr.f32.gmra.mrb[0].mxu0 %v1329
      %v1466 = vpop.f32.mrb[0].mxu0
      %v1467 = vadd.f32 0.0, %v1466
      %v1468 = vpop.f32.mrb[0].mxu0
      %1469 = vmatprep.mubr.f32.mxu0 0.0
      %1470 = vmatmul.mubr.f32.gmra.mrb[0].mxu0 %v1331
      %v1471 = vpop.f32.mrb[0].mxu0
      %v1472 = vadd.f32 0.0, %v1471
      %v1473 = vpop.f32.mrb[0].mxu0
      %1474 = vmatprep.mubr.f32.mxu0 0.0
      %1475 = vmatmul.mubr.f32.gmra.mrb[0].mxu0 %v1333
      %v1476 = vpop.f32.mrb[0].mxu0
      %v1477 = vadd.f32 0.0, %v1476
      %v1478 = vpop.f32.mrb[0].mxu0
      %1479 = vmatprep.mubr.f32.mxu0 0.0
      %1480 = vmatmul.mubr.f32.gmra.mrb[0].mxu0 %v1335
      %v1481 = vpop.f32.mrb[0].mxu0
      %v1482 = vadd.f32 0.0, %v1481
      %v1483 = vpop.f32.mrb[0].mxu0
      %1484 = vdwg.mxu0
      %v1485 = vadd.f32 %v1288, %v1407
      %v1486 = vadd.f32 %v1289, %v1412
      %v1487 = vadd.f32 %v1290, %v1417
      %v1488 = vadd.f32 %v1291, %v1422
      %v1489 = vadd.f32 %v1292, %v1427
      %v1490 = vadd.f32 %v1293, %v1432
      %v1491 = vadd.f32 %v1294, %v1437
      %v1492 = vadd.f32 %v1295, %v1442
      %v1493 = vadd.f32 %v1296, %v1447
      %v1494 = vadd.f32 %v1297, %v1452
      %v1495 = vadd.f32 %v1298, %v1457
      %v1496 = vadd.f32 %v1299, %v1462
      %v1497 = vadd.f32 %v1300, %v1467
      %v1498 = vadd.f32 %v1301, %v1472
      %v1499 = vadd.f32 %v1302, %v1477
      %v1500 = vadd.f32 %v1303, %v1482
      %v1501 = vld [vmem:[%s6] sm:$0x7]
      %v1503 = vsel %vm906, %v676, 0
      %v1506 = vsel %vm906, %v677, 0
      %v1509 = vsel %vm906, %v678, 0
      %v1512 = vsel %vm906, %v679, 0
      %v1515 = vsel %vm906, %v680, 0
      %v1518 = vsel %vm906, %v681, 0
      %v1521 = vsel %vm906, %v682, 0
      %v1524 = vsel %vm906, %v683, 0
      %v1527 = vsel %vm906, %v684, 0
      %v1530 = vsel %vm906, %v685, 0
      %v1533 = vsel %vm906, %v686, 0
      %v1536 = vsel %vm906, %v687, 0
      %v1539 = vsel %vm906, %v688, 0
      %v1542 = vsel %vm906, %v689, 0
      %v1545 = vsel %vm906, %v690, 0
      %v1548 = vsel %vm906, %v691, 0
      %v1551 = vsel %vm1139, %v1501, 0
      %1553 = vmatprep.subr.mxu0 0.0
      %1554 = vmatpush1.msra.mxu0 %v1551
      %1555 = vmatprep.subr.mxu0 0.0
      %1556 = vmatpush1.msra.mxu0 0.0
      %1557 = vmatprep.subr.mxu0 0.0
      %1558 = vmatpush1.msra.mxu0 0.0
      %1559 = vmatprep.subr.mxu0 0.0
      %1560 = vmatpush1.msra.mxu0 0.0
      %1561 = vmatprep.subr.mxu0 0.0
      %1562 = vmatpush1.msra.mxu0 0.0
      %1563 = vmatprep.subr.mxu0 0.0
      %1564 = vmatpush1.msra.mxu0 0.0
      %1565 = vmatprep.subr.mxu0 0.0
      %1566 = vmatpush1.msra.mxu0 0.0
      %1567 = vmatprep.subr.mxu0 0.0
      %1568 = vmatpush1.msra.mxu0 0.0
      %1569 = vmatprep.subr.mxu0 0.0
      %1570 = vmatpush1.msra.mxu0 0.0
      %1571 = vmatprep.subr.mxu0 0.0
      %1572 = vmatpush1.msra.mxu0 0.0
      %1573 = vmatprep.subr.mxu0 0.0
      %1574 = vmatpush1.msra.mxu0 0.0
      %1575 = vmatprep.subr.mxu0 0.0
      %1576 = vmatpush1.msra.mxu0 0.0
      %1577 = vmatprep.subr.mxu0 0.0
      %1578 = vmatpush1.msra.mxu0 0.0
      %1579 = vmatprep.subr.mxu0 0.0
      %1580 = vmatpush1.msra.mxu0 0.0
      %1581 = vmatprep.subr.mxu0 0.0
      %1582 = vmatpush1.msra.mxu0 0.0
      %1583 = vmatprep.subr.mxu0 0.0
      %1584 = vmatpush1.msra.mxu0 0.0
      %1585 = vmatprep.subr.mxu0 0.0
      %1586 = vmatpush1.msra.mxu0 0.0
      %1587 = vmatprep.subr.mxu0 0.0
      %1588 = vmatpush1.msra.mxu0 0.0
      %1589 = vmatprep.subr.mxu0 0.0
      %1590 = vmatpush1.msra.mxu0 0.0
      %1591 = vmatprep.subr.mxu0 0.0
      %1592 = vmatpush1.msra.mxu0 0.0
      %1593 = vmatprep.subr.mxu0 0.0
      %1594 = vmatpush1.msra.mxu0 0.0
      %1595 = vmatprep.subr.mxu0 0.0
      %1596 = vmatpush1.msra.mxu0 0.0
      %1597 = vmatprep.subr.mxu0 0.0
      %1598 = vmatpush1.msra.mxu0 0.0
      %1599 = vmatprep.subr.mxu0 0.0
      %1600 = vmatpush1.msra.mxu0 0.0
      %1601 = vmatprep.subr.mxu0 0.0
      %1602 = vmatpush1.msra.mxu0 0.0
      %1603 = vmatprep.subr.mxu0 0.0
      %1604 = vmatpush1.msra.mxu0 0.0
      %1605 = vmatprep.subr.mxu0 0.0
      %1606 = vmatpush1.msra.mxu0 0.0
      %1607 = vmatprep.subr.mxu0 0.0
      %1608 = vmatpush1.msra.mxu0 0.0
      %1609 = vmatprep.subr.mxu0 0.0
      %1610 = vmatpush1.msra.mxu0 0.0
      %1611 = vmatprep.subr.mxu0 0.0
      %1612 = vmatpush1.msra.mxu0 0.0
      %1613 = vmatprep.subr.mxu0 0.0
      %1614 = vmatpush1.msra.mxu0 0.0
      %1615 = vmatprep.subr.mxu0 0.0
      %1616 = vmatpush1.msra.mxu0 0.0
      %1617 = vmatprep.mubr.f32.mxu0 0.0
      %1618 = vmatmul.mubr.f32.gmra.mrb[0].mxu0 %v1503
      %v1619 = vpop.f32.mrb[0].mxu0
      %v1620 = vadd.f32 0.0, %v1619
      %v1621 = vpop.f32.mrb[0].mxu0
      %1622 = vmatprep.mubr.f32.mxu0 0.0
      %1623 = vmatmul.mubr.f32.gmra.mrb[0].mxu0 %v1506
      %v1624 = vpop.f32.mrb[0].mxu0
      %v1625 = vadd.f32 0.0, %v1624
      %v1626 = vpop.f32.mrb[0].mxu0
      %1627 = vmatprep.mubr.f32.mxu0 0.0
      %1628 = vmatmul.mubr.f32.gmra.mrb[0].mxu0 %v1509
      %v1629 = vpop.f32.mrb[0].mxu0
      %v1630 = vadd.f32 0.0, %v1629
      %v1631 = vpop.f32.mrb[0].mxu0
      %1632 = vmatprep.mubr.f32.mxu0 0.0
      %1633 = vmatmul.mubr.f32.gmra.mrb[0].mxu0 %v1512
      %v1634 = vpop.f32.mrb[0].mxu0
      %v1635 = vadd.f32 0.0, %v1634
      %v1636 = vpop.f32.mrb[0].mxu0
      %1637 = vmatprep.mubr.f32.mxu0 0.0
      %1638 = vmatmul.mubr.f32.gmra.mrb[0].mxu0 %v1515
      %v1639 = vpop.f32.mrb[0].mxu0
      %v1640 = vadd.f32 0.0, %v1639
      %v1641 = vpop.f32.mrb[0].mxu0
      %1642 = vmatprep.mubr.f32.mxu0 0.0
      %1643 = vmatmul.mubr.f32.gmra.mrb[0].mxu0 %v1518
      %v1644 = vpop.f32.mrb[0].mxu0
      %v1645 = vadd.f32 0.0, %v1644
      %v1646 = vpop.f32.mrb[0].mxu0
      %1647 = vmatprep.mubr.f32.mxu0 0.0
      %1648 = vmatmul.mubr.f32.gmra.mrb[0].mxu0 %v1521
      %v1649 = vpop.f32.mrb[0].mxu0
      %v1650 = vadd.f32 0.0, %v1649
      %v1651 = vpop.f32.mrb[0].mxu0
      %1652 = vmatprep.mubr.f32.mxu0 0.0
      %1653 = vmatmul.mubr.f32.gmra.mrb[0].mxu0 %v1524
      %v1654 = vpop.f32.mrb[0].mxu0
      %v1655 = vadd.f32 0.0, %v1654
      %v1656 = vpop.f32.mrb[0].mxu0
      %1657 = vmatprep.mubr.f32.mxu0 0.0
      %1658 = vmatmul.mubr.f32.gmra.mrb[0].mxu0 %v1527
      %v1659 = vpop.f32.mrb[0].mxu0
      %v1660 = vadd.f32 0.0, %v1659
      %v1661 = vpop.f32.mrb[0].mxu0
      %1662 = vmatprep.mubr.f32.mxu0 0.0
      %1663 = vmatmul.mubr.f32.gmra.mrb[0].mxu0 %v1530
      %v1664 = vpop.f32.mrb[0].mxu0
      %v1665 = vadd.f32 0.0, %v1664
      %v1666 = vpop.f32.mrb[0].mxu0
      %1667 = vmatprep.mubr.f32.mxu0 0.0
      %1668 = vmatmul.mubr.f32.gmra.mrb[0].mxu0 %v1533
      %v1669 = vpop.f32.mrb[0].mxu0
      %v1670 = vadd.f32 0.0, %v1669
      %v1671 = vpop.f32.mrb[0].mxu0
      %1672 = vmatprep.mubr.f32.mxu0 0.0
      %1673 = vmatmul.mubr.f32.gmra.mrb[0].mxu0 %v1536
      %v1674 = vpop.f32.mrb[0].mxu0
      %v1675 = vadd.f32 0.0, %v1674
      %v1676 = vpop.f32.mrb[0].mxu0
      %1677 = vmatprep.mubr.f32.mxu0 0.0
      %1678 = vmatmul.mubr.f32.gmra.mrb[0].mxu0 %v1539
      %v1679 = vpop.f32.mrb[0].mxu0
      %v1680 = vadd.f32 0.0, %v1679
      %v1681 = vpop.f32.mrb[0].mxu0
      %1682 = vmatprep.mubr.f32.mxu0 0.0
      %1683 = vmatmul.mubr.f32.gmra.mrb[0].mxu0 %v1542
      %v1684 = vpop.f32.mrb[0].mxu0
      %v1685 = vadd.f32 0.0, %v1684
      %v1686 = vpop.f32.mrb[0].mxu0
      %1687 = vmatprep.mubr.f32.mxu0 0.0
      %1688 = vmatmul.mubr.f32.gmra.mrb[0].mxu0 %v1545
      %v1689 = vpop.f32.mrb[0].mxu0
      %v1690 = vadd.f32 0.0, %v1689
      %v1691 = vpop.f32.mrb[0].mxu0
      %1692 = vmatprep.mubr.f32.mxu0 0.0
      %1693 = vmatmul.mubr.f32.gmra.mrb[0].mxu0 %v1548
      %v1694 = vpop.f32.mrb[0].mxu0
      %v1695 = vadd.f32 0.0, %v1694
      %v1696 = vpop.f32.mrb[0].mxu0
      %1697 = vdwg.mxu0
      %v1698 = vadd.f32 %v1485, %v1620
      %v1699 = vadd.f32 %v1486, %v1625
      %v1700 = vadd.f32 %v1487, %v1630
      %v1701 = vadd.f32 %v1488, %v1635
      %v1702 = vadd.f32 %v1489, %v1640
      %v1703 = vadd.f32 %v1490, %v1645
      %v1704 = vadd.f32 %v1491, %v1650
      %v1705 = vadd.f32 %v1492, %v1655
      %v1706 = vadd.f32 %v1493, %v1660
      %v1707 = vadd.f32 %v1494, %v1665
      %v1708 = vadd.f32 %v1495, %v1670
      %v1709 = vadd.f32 %v1496, %v1675
      %v1710 = vadd.f32 %v1497, %v1680
      %v1711 = vadd.f32 %v1498, %v1685
      %v1712 = vadd.f32 %v1499, %v1690
      %v1713 = vadd.f32 %v1500, %v1695
      %v1714 = vld [vmem:[%s7] sm:$0x1]
      %v1716 = vlaneseq
      %v1717 = vshrl.u32 %v1716, 7
      %v1718 = vsub.s32 0, %v1717
      %v1719 = vrot.slane %v1714, %v1718
      %v1721 = vadd.f32 %v1698, %v1719
      %v1722 = vadd.f32 %v1699, %v1719
      %v1723 = vadd.f32 %v1700, %v1719
      %v1724 = vadd.f32 %v1701, %v1719
      %v1725 = vadd.f32 %v1702, %v1719
      %v1726 = vadd.f32 %v1703, %v1719
      %v1727 = vadd.f32 %v1704, %v1719
      %v1728 = vadd.f32 %v1705, %v1719
      %v1729 = vadd.f32 %v1706, %v1719
      %v1730 = vadd.f32 %v1707, %v1719
      %v1731 = vadd.f32 %v1708, %v1719
      %v1732 = vadd.f32 %v1709, %v1719
      %v1733 = vadd.f32 %v1710, %v1719
      %v1734 = vadd.f32 %v1711, %v1719
      %v1735 = vadd.f32 %v1712, %v1719
      %v1736 = vadd.f32 %v1713, %v1719
      %v1737 = vmax.f32 %v1721, 0.0
      %v1738 = vmax.f32 %v1722, 0.0
      %v1739 = vmax.f32 %v1723, 0.0
      %v1740 = vmax.f32 %v1724, 0.0
      %v1741 = vmax.f32 %v1725, 0.0
      %v1742 = vmax.f32 %v1726, 0.0
      %v1743 = vmax.f32 %v1727, 0.0
      %v1744 = vmax.f32 %v1728, 0.0
      %v1745 = vmax.f32 %v1729, 0.0
      %v1746 = vmax.f32 %v1730, 0.0
      %v1747 = vmax.f32 %v1731, 0.0
      %v1748 = vmax.f32 %v1732, 0.0
      %v1749 = vmax.f32 %v1733, 0.0
      %v1750 = vmax.f32 %v1734, 0.0
      %v1751 = vmax.f32 %v1735, 0.0
      %v1752 = vmax.f32 %v1736, 0.0
      %v1753 = vld [vmem:[%s8] sm:$0xf]
      %v1754 = vld [vmem:[%s9] sm:$0x1]
      %v1756 = vlaneseq
      %v1757 = vshrl.u32 %v1756, 7
      %v1758 = vsub.s32 0, %v1757
      %v1759 = vrot.slane %v1754, %v1758
      %vm1761 = vcmask 31744
      %v1763 = vsel %vm1761, %v1737, 0
      %v1766 = vsel %vm1761, %v1738, 0
      %v1769 = vsel %vm1761, %v1739, 0
      %v1772 = vsel %vm1761, %v1740, 0
      %v1775 = vsel %vm1761, %v1741, 0
      %v1778 = vsel %vm1761, %v1742, 0
      %v1781 = vsel %vm1761, %v1743, 0
      %v1784 = vsel %vm1761, %v1744, 0
      %v1787 = vsel %vm1761, %v1745, 0
      %v1790 = vsel %vm1761, %v1746, 0
      %v1793 = vsel %vm1761, %v1747, 0
      %v1796 = vsel %vm1761, %v1748, 0
      %v1799 = vsel %vm1761, %v1749, 0
      %v1802 = vsel %vm1761, %v1750, 0
      %v1805 = vsel %vm1761, %v1751, 0
      %v1808 = vsel %vm1761, %v1752, 0
      %vm1810 = vcmask 1043456
      %v1812 = vsel %vm1810, %v1753, 0
      %1814 = vmatprep.subr.mxu0 0.0
      %1815 = vmatpush1.msra.mxu0 %v1812
      %1816 = vmatprep.subr.mxu0 0.0
      %1817 = vmatpush1.msra.mxu0 0.0
      %1818 = vmatprep.subr.mxu0 0.0
      %1819 = vmatpush1.msra.mxu0 0.0
      %1820 = vmatprep.subr.mxu0 0.0
      %1821 = vmatpush1.msra.mxu0 0.0
      %1822 = vmatprep.subr.mxu0 0.0
      %1823 = vmatpush1.msra.mxu0 0.0
      %1824 = vmatprep.subr.mxu0 0.0
      %1825 = vmatpush1.msra.mxu0 0.0
      %1826 = vmatprep.subr.mxu0 0.0
      %1827 = vmatpush1.msra.mxu0 0.0
      %1828 = vmatprep.subr.mxu0 0.0
      %1829 = vmatpush1.msra.mxu0 0.0
      %1830 = vmatprep.subr.mxu0 0.0
      %1831 = vmatpush1.msra.mxu0 0.0
      %1832 = vmatprep.subr.mxu0 0.0
      %1833 = vmatpush1.msra.mxu0 0.0
      %1834 = vmatprep.subr.mxu0 0.0
      %1835 = vmatpush1.msra.mxu0 0.0
      %1836 = vmatprep.subr.mxu0 0.0
      %1837 = vmatpush1.msra.mxu0 0.0
      %1838 = vmatprep.subr.mxu0 0.0
      %1839 = vmatpush1.msra.mxu0 0.0
      %1840 = vmatprep.subr.mxu0 0.0
      %1841 = vmatpush1.msra.mxu0 0.0
      %1842 = vmatprep.subr.mxu0 0.0
      %1843 = vmatpush1.msra.mxu0 0.0
      %1844 = vmatprep.subr.mxu0 0.0
      %1845 = vmatpush1.msra.mxu0 0.0
      %1846 = vmatprep.subr.mxu0 0.0
      %1847 = vmatpush1.msra.mxu0 0.0
      %1848 = vmatprep.subr.mxu0 0.0
      %1849 = vmatpush1.msra.mxu0 0.0
      %1850 = vmatprep.subr.mxu0 0.0
      %1851 = vmatpush1.msra.mxu0 0.0
      %1852 = vmatprep.subr.mxu0 0.0
      %1853 = vmatpush1.msra.mxu0 0.0
      %1854 = vmatprep.subr.mxu0 0.0
      %1855 = vmatpush1.msra.mxu0 0.0
      %1856 = vmatprep.subr.mxu0 0.0
      %1857 = vmatpush1.msra.mxu0 0.0
      %1858 = vmatprep.subr.mxu0 0.0
      %1859 = vmatpush1.msra.mxu0 0.0
      %1860 = vmatprep.subr.mxu0 0.0
      %1861 = vmatpush1.msra.mxu0 0.0
      %1862 = vmatprep.subr.mxu0 0.0
      %1863 = vmatpush1.msra.mxu0 0.0
      %1864 = vmatprep.subr.mxu0 0.0
      %1865 = vmatpush1.msra.mxu0 0.0
      %1866 = vmatprep.subr.mxu0 0.0
      %1867 = vmatpush1.msra.mxu0 0.0
      %1868 = vmatprep.subr.mxu0 0.0
      %1869 = vmatpush1.msra.mxu0 0.0
      %1870 = vmatprep.subr.mxu0 0.0
      %1871 = vmatpush1.msra.mxu0 0.0
      %1872 = vmatprep.subr.mxu0 0.0
      %1873 = vmatpush1.msra.mxu0 0.0
      %1874 = vmatprep.subr.mxu0 0.0
      %1875 = vmatpush1.msra.mxu0 0.0
      %1876 = vmatprep.subr.mxu0 0.0
      %1877 = vmatpush1.msra.mxu0 0.0
      %1878 = vmatprep.mubr.f32.mxu0 0.0
      %1879 = vmatmul.mubr.f32.gmra.mrb[0].mxu0 %v1763
      %v1880 = vpop.f32.mrb[0].mxu0
      %v1881 = vadd.f32 %v1759, %v1880
      %v1882 = vpop.f32.mrb[0].mxu0
      %1883 = vmatprep.mubr.f32.mxu0 0.0
      %1884 = vmatmul.mubr.f32.gmra.mrb[0].mxu0 %v1766
      %v1885 = vpop.f32.mrb[0].mxu0
      %v1886 = vadd.f32 %v1759, %v1885
      %v1887 = vpop.f32.mrb[0].mxu0
      %1888 = vmatprep.mubr.f32.mxu0 0.0
      %1889 = vmatmul.mubr.f32.gmra.mrb[0].mxu0 %v1769
      %v1890 = vpop.f32.mrb[0].mxu0
      %v1891 = vadd.f32 %v1759, %v1890
      %v1892 = vpop.f32.mrb[0].mxu0
      %1893 = vmatprep.mubr.f32.mxu0 0.0
      %1894 = vmatmul.mubr.f32.gmra.mrb[0].mxu0 %v1772
      %v1895 = vpop.f32.mrb[0].mxu0
      %v1896 = vadd.f32 %v1759, %v1895
      %v1897 = vpop.f32.mrb[0].mxu0
      %1898 = vmatprep.mubr.f32.mxu0 0.0
      %1899 = vmatmul.mubr.f32.gmra.mrb[0].mxu0 %v1775
      %v1900 = vpop.f32.mrb[0].mxu0
      %v1901 = vadd.f32 %v1759, %v1900
      %v1902 = vpop.f32.mrb[0].mxu0
      %1903 = vmatprep.mubr.f32.mxu0 0.0
      %1904 = vmatmul.mubr.f32.gmra.mrb[0].mxu0 %v1778
      %v1905 = vpop.f32.mrb[0].mxu0
      %v1906 = vadd.f32 %v1759, %v1905
      %v1907 = vpop.f32.mrb[0].mxu0
      %1908 = vmatprep.mubr.f32.mxu0 0.0
      %1909 = vmatmul.mubr.f32.gmra.mrb[0].mxu0 %v1781
      %v1910 = vpop.f32.mrb[0].mxu0
      %v1911 = vadd.f32 %v1759, %v1910
      %v1912 = vpop.f32.mrb[0].mxu0
      %1913 = vmatprep.mubr.f32.mxu0 0.0
      %1914 = vmatmul.mubr.f32.gmra.mrb[0].mxu0 %v1784
      %v1915 = vpop.f32.mrb[0].mxu0
      %v1916 = vadd.f32 %v1759, %v1915
      %v1917 = vpop.f32.mrb[0].mxu0
      %1918 = vmatprep.mubr.f32.mxu0 0.0
      %1919 = vmatmul.mubr.f32.gmra.mrb[0].mxu0 %v1787
      %v1920 = vpop.f32.mrb[0].mxu0
      %v1921 = vadd.f32 %v1759, %v1920
      %v1922 = vpop.f32.mrb[0].mxu0
      %1923 = vmatprep.mubr.f32.mxu0 0.0
      %1924 = vmatmul.mubr.f32.gmra.mrb[0].mxu0 %v1790
      %v1925 = vpop.f32.mrb[0].mxu0
      %v1926 = vadd.f32 %v1759, %v1925
      %v1927 = vpop.f32.mrb[0].mxu0
      %1928 = vmatprep.mubr.f32.mxu0 0.0
      %1929 = vmatmul.mubr.f32.gmra.mrb[0].mxu0 %v1793
      %v1930 = vpop.f32.mrb[0].mxu0
      %v1931 = vadd.f32 %v1759, %v1930
      %v1932 = vpop.f32.mrb[0].mxu0
      %1933 = vmatprep.mubr.f32.mxu0 0.0
      %1934 = vmatmul.mubr.f32.gmra.mrb[0].mxu0 %v1796
      %v1935 = vpop.f32.mrb[0].mxu0
      %v1936 = vadd.f32 %v1759, %v1935
      %v1937 = vpop.f32.mrb[0].mxu0
      %1938 = vmatprep.mubr.f32.mxu0 0.0
      %1939 = vmatmul.mubr.f32.gmra.mrb[0].mxu0 %v1799
      %v1940 = vpop.f32.mrb[0].mxu0
      %v1941 = vadd.f32 %v1759, %v1940
      %v1942 = vpop.f32.mrb[0].mxu0
      %1943 = vmatprep.mubr.f32.mxu0 0.0
      %1944 = vmatmul.mubr.f32.gmra.mrb[0].mxu0 %v1802
      %v1945 = vpop.f32.mrb[0].mxu0
      %v1946 = vadd.f32 %v1759, %v1945
      %v1947 = vpop.f32.mrb[0].mxu0
      %1948 = vmatprep.mubr.f32.mxu0 0.0
      %1949 = vmatmul.mubr.f32.gmra.mrb[0].mxu0 %v1805
      %v1950 = vpop.f32.mrb[0].mxu0
      %v1951 = vadd.f32 %v1759, %v1950
      %v1952 = vpop.f32.mrb[0].mxu0
      %1953 = vmatprep.mubr.f32.mxu0 0.0
      %1954 = vmatmul.mubr.f32.gmra.mrb[0].mxu0 %v1808
      %v1955 = vpop.f32.mrb[0].mxu0
      %v1956 = vadd.f32 %v1759, %v1955
      %v1957 = vpop.f32.mrb[0].mxu0
      %1958 = vdwg.mxu0
      %v1959 = vmax.f32 %v1881, 0.0
      %v1960 = vmax.f32 %v1886, 0.0
      %v1961 = vmax.f32 %v1891, 0.0
      %v1962 = vmax.f32 %v1896, 0.0
      %v1963 = vmax.f32 %v1901, 0.0
      %v1964 = vmax.f32 %v1906, 0.0
      %v1965 = vmax.f32 %v1911, 0.0
      %v1966 = vmax.f32 %v1916, 0.0
      %v1967 = vmax.f32 %v1921, 0.0
      %v1968 = vmax.f32 %v1926, 0.0
      %v1969 = vmax.f32 %v1931, 0.0
      %v1970 = vmax.f32 %v1936, 0.0
      %v1971 = vmax.f32 %v1941, 0.0
      %v1972 = vmax.f32 %v1946, 0.0
      %v1973 = vmax.f32 %v1951, 0.0
      %v1974 = vmax.f32 %v1956, 0.0
      %v1975 = vld [vmem:[%s10] sm:$0xf]
      %v1976 = vld [vmem:[%s11] sm:$0xf]
      %v1978 = vsel %vm1761, %v1959, 0
      %v1981 = vsel %vm1761, %v1960, 0
      %v1984 = vsel %vm1761, %v1961, 0
      %v1987 = vsel %vm1761, %v1962, 0
      %v1990 = vsel %vm1761, %v1963, 0
      %v1993 = vsel %vm1761, %v1964, 0
      %v1996 = vsel %vm1761, %v1965, 0
      %v1999 = vsel %vm1761, %v1966, 0
      %v2002 = vsel %vm1761, %v1967, 0
      %v2005 = vsel %vm1761, %v1968, 0
      %v2008 = vsel %vm1761, %v1969, 0
      %v2011 = vsel %vm1761, %v1970, 0
      %v2014 = vsel %vm1761, %v1971, 0
      %v2017 = vsel %vm1761, %v1972, 0
      %v2020 = vsel %vm1761, %v1973, 0
      %v2023 = vsel %vm1761, %v1974, 0
      %v2026 = vsel %vm1810, %v1976, 0
      %2028 = vmatprep.subr.mxu0 0.0
      %2029 = vmatpush1.msra.mxu0 %v2026
      %2030 = vmatprep.subr.mxu0 0.0
      %2031 = vmatpush1.msra.mxu0 0.0
      %2032 = vmatprep.subr.mxu0 0.0
      %2033 = vmatpush1.msra.mxu0 0.0
      %2034 = vmatprep.subr.mxu0 0.0
      %2035 = vmatpush1.msra.mxu0 0.0
      %2036 = vmatprep.subr.mxu0 0.0
      %2037 = vmatpush1.msra.mxu0 0.0
      %2038 = vmatprep.subr.mxu0 0.0
      %2039 = vmatpush1.msra.mxu0 0.0
      %2040 = vmatprep.subr.mxu0 0.0
      %2041 = vmatpush1.msra.mxu0 0.0
      %2042 = vmatprep.subr.mxu0 0.0
      %2043 = vmatpush1.msra.mxu0 0.0
      %2044 = vmatprep.subr.mxu0 0.0
      %2045 = vmatpush1.msra.mxu0 0.0
      %2046 = vmatprep.subr.mxu0 0.0
      %2047 = vmatpush1.msra.mxu0 0.0
      %2048 = vmatprep.subr.mxu0 0.0
      %2049 = vmatpush1.msra.mxu0 0.0
      %2050 = vmatprep.subr.mxu0 0.0
      %2051 = vmatpush1.msra.mxu0 0.0
      %2052 = vmatprep.subr.mxu0 0.0
      %2053 = vmatpush1.msra.mxu0 0.0
      %2054 = vmatprep.subr.mxu0 0.0
      %2055 = vmatpush1.msra.mxu0 0.0
      %2056 = vmatprep.subr.mxu0 0.0
      %2057 = vmatpush1.msra.mxu0 0.0
      %2058 = vmatprep.subr.mxu0 0.0
      %2059 = vmatpush1.msra.mxu0 0.0
      %2060 = vmatprep.subr.mxu0 0.0
      %2061 = vmatpush1.msra.mxu0 0.0
      %2062 = vmatprep.subr.mxu0 0.0
      %2063 = vmatpush1.msra.mxu0 0.0
      %2064 = vmatprep.subr.mxu0 0.0
      %2065 = vmatpush1.msra.mxu0 0.0
      %2066 = vmatprep.subr.mxu0 0.0
      %2067 = vmatpush1.msra.mxu0 0.0
      %2068 = vmatprep.subr.mxu0 0.0
      %2069 = vmatpush1.msra.mxu0 0.0
      %2070 = vmatprep.subr.mxu0 0.0
      %2071 = vmatpush1.msra.mxu0 0.0
      %2072 = vmatprep.subr.mxu0 0.0
      %2073 = vmatpush1.msra.mxu0 0.0
      %2074 = vmatprep.subr.mxu0 0.0
      %2075 = vmatpush1.msra.mxu0 0.0
      %2076 = vmatprep.subr.mxu0 0.0
      %2077 = vmatpush1.msra.mxu0 0.0
      %2078 = vmatprep.subr.mxu0 0.0
      %2079 = vmatpush1.msra.mxu0 0.0
      %2080 = vmatprep.subr.mxu0 0.0
      %2081 = vmatpush1.msra.mxu0 0.0
      %2082 = vmatprep.subr.mxu0 0.0
      %2083 = vmatpush1.msra.mxu0 0.0
      %2084 = vmatprep.subr.mxu0 0.0
      %2085 = vmatpush1.msra.mxu0 0.0
      %2086 = vmatprep.subr.mxu0 0.0
      %2087 = vmatpush1.msra.mxu0 0.0
      %2088 = vmatprep.subr.mxu0 0.0
      %2089 = vmatpush1.msra.mxu0 0.0
      %2090 = vmatprep.subr.mxu0 0.0
      %2091 = vmatpush1.msra.mxu0 0.0
      %2092 = vmatprep.mubr.f32.mxu0 0.0
      %2093 = vmatmul.mubr.f32.gmra.mrb[0].mxu0 %v1978
      %v2094 = vpop.f32.mrb[0].mxu0
      %v2095 = vadd.f32 0.0, %v2094
      %v2096 = vpop.f32.mrb[0].mxu0
      %2097 = vmatprep.mubr.f32.mxu0 0.0
      %2098 = vmatmul.mubr.f32.gmra.mrb[0].mxu0 %v1981
      %v2099 = vpop.f32.mrb[0].mxu0
      %v2100 = vadd.f32 0.0, %v2099
      %v2101 = vpop.f32.mrb[0].mxu0
      %2102 = vmatprep.mubr.f32.mxu0 0.0
      %2103 = vmatmul.mubr.f32.gmra.mrb[0].mxu0 %v1984
      %v2104 = vpop.f32.mrb[0].mxu0
      %v2105 = vadd.f32 0.0, %v2104
      %v2106 = vpop.f32.mrb[0].mxu0
      %2107 = vmatprep.mubr.f32.mxu0 0.0
      %2108 = vmatmul.mubr.f32.gmra.mrb[0].mxu0 %v1987
      %v2109 = vpop.f32.mrb[0].mxu0
      %v2110 = vadd.f32 0.0, %v2109
      %v2111 = vpop.f32.mrb[0].mxu0
      %2112 = vmatprep.mubr.f32.mxu0 0.0
      %2113 = vmatmul.mubr.f32.gmra.mrb[0].mxu0 %v1990
      %v2114 = vpop.f32.mrb[0].mxu0
      %v2115 = vadd.f32 0.0, %v2114
      %v2116 = vpop.f32.mrb[0].mxu0
      %2117 = vmatprep.mubr.f32.mxu0 0.0
      %2118 = vmatmul.mubr.f32.gmra.mrb[0].mxu0 %v1993
      %v2119 = vpop.f32.mrb[0].mxu0
      %v2120 = vadd.f32 0.0, %v2119
      %v2121 = vpop.f32.mrb[0].mxu0
      %2122 = vmatprep.mubr.f32.mxu0 0.0
      %2123 = vmatmul.mubr.f32.gmra.mrb[0].mxu0 %v1996
      %v2124 = vpop.f32.mrb[0].mxu0
      %v2125 = vadd.f32 0.0, %v2124
      %v2126 = vpop.f32.mrb[0].mxu0
      %2127 = vmatprep.mubr.f32.mxu0 0.0
      %2128 = vmatmul.mubr.f32.gmra.mrb[0].mxu0 %v1999
      %v2129 = vpop.f32.mrb[0].mxu0
      %v2130 = vadd.f32 0.0, %v2129
      %v2131 = vpop.f32.mrb[0].mxu0
      %2132 = vmatprep.mubr.f32.mxu0 0.0
      %2133 = vmatmul.mubr.f32.gmra.mrb[0].mxu0 %v2002
      %v2134 = vpop.f32.mrb[0].mxu0
      %v2135 = vadd.f32 0.0, %v2134
      %v2136 = vpop.f32.mrb[0].mxu0
      %2137 = vmatprep.mubr.f32.mxu0 0.0
      %2138 = vmatmul.mubr.f32.gmra.mrb[0].mxu0 %v2005
      %v2139 = vpop.f32.mrb[0].mxu0
      %v2140 = vadd.f32 0.0, %v2139
      %v2141 = vpop.f32.mrb[0].mxu0
      %2142 = vmatprep.mubr.f32.mxu0 0.0
      %2143 = vmatmul.mubr.f32.gmra.mrb[0].mxu0 %v2008
      %v2144 = vpop.f32.mrb[0].mxu0
      %v2145 = vadd.f32 0.0, %v2144
      %v2146 = vpop.f32.mrb[0].mxu0
      %2147 = vmatprep.mubr.f32.mxu0 0.0
      %2148 = vmatmul.mubr.f32.gmra.mrb[0].mxu0 %v2011
      %v2149 = vpop.f32.mrb[0].mxu0
      %v2150 = vadd.f32 0.0, %v2149
      %v2151 = vpop.f32.mrb[0].mxu0
      %2152 = vmatprep.mubr.f32.mxu0 0.0
      %2153 = vmatmul.mubr.f32.gmra.mrb[0].mxu0 %v2014
      %v2154 = vpop.f32.mrb[0].mxu0
      %v2155 = vadd.f32 0.0, %v2154
      %v2156 = vpop.f32.mrb[0].mxu0
      %2157 = vmatprep.mubr.f32.mxu0 0.0
      %2158 = vmatmul.mubr.f32.gmra.mrb[0].mxu0 %v2017
      %v2159 = vpop.f32.mrb[0].mxu0
      %v2160 = vadd.f32 0.0, %v2159
      %v2161 = vpop.f32.mrb[0].mxu0
      %2162 = vmatprep.mubr.f32.mxu0 0.0
      %2163 = vmatmul.mubr.f32.gmra.mrb[0].mxu0 %v2020
      %v2164 = vpop.f32.mrb[0].mxu0
      %v2165 = vadd.f32 0.0, %v2164
      %v2166 = vpop.f32.mrb[0].mxu0
      %2167 = vmatprep.mubr.f32.mxu0 0.0
      %2168 = vmatmul.mubr.f32.gmra.mrb[0].mxu0 %v2023
      %v2169 = vpop.f32.mrb[0].mxu0
      %v2170 = vadd.f32 0.0, %v2169
      %v2171 = vpop.f32.mrb[0].mxu0
      %2172 = vdwg.mxu0
      %v2174 = vsel %vm1761, %v660, 0
      %v2177 = vsel %vm1761, %v661, 0
      %v2180 = vsel %vm1761, %v662, 0
      %v2183 = vsel %vm1761, %v663, 0
      %v2186 = vsel %vm1761, %v664, 0
      %v2189 = vsel %vm1761, %v665, 0
      %v2192 = vsel %vm1761, %v666, 0
      %v2195 = vsel %vm1761, %v667, 0
      %v2198 = vsel %vm1761, %v668, 0
      %v2201 = vsel %vm1761, %v669, 0
      %v2204 = vsel %vm1761, %v670, 0
      %v2207 = vsel %vm1761, %v671, 0
      %v2210 = vsel %vm1761, %v672, 0
      %v2213 = vsel %vm1761, %v673, 0
      %v2216 = vsel %vm1761, %v674, 0
      %v2219 = vsel %vm1761, %v675, 0
      %v2222 = vsel %vm1810, %v1975, 0
      %2224 = vmatprep.subr.mxu0 0.0
      %2225 = vmatpush1.msra.mxu0 %v2222
      %2226 = vmatprep.subr.mxu0 0.0
      %2227 = vmatpush1.msra.mxu0 0.0
      %2228 = vmatprep.subr.mxu0 0.0
      %2229 = vmatpush1.msra.mxu0 0.0
      %2230 = vmatprep.subr.mxu0 0.0
      %2231 = vmatpush1.msra.mxu0 0.0
      %2232 = vmatprep.subr.mxu0 0.0
      %2233 = vmatpush1.msra.mxu0 0.0
      %2234 = vmatprep.subr.mxu0 0.0
      %2235 = vmatpush1.msra.mxu0 0.0
      %2236 = vmatprep.subr.mxu0 0.0
      %2237 = vmatpush1.msra.mxu0 0.0
      %2238 = vmatprep.subr.mxu0 0.0
      %2239 = vmatpush1.msra.mxu0 0.0
      %2240 = vmatprep.subr.mxu0 0.0
      %2241 = vmatpush1.msra.mxu0 0.0
      %2242 = vmatprep.subr.mxu0 0.0
      %2243 = vmatpush1.msra.mxu0 0.0
      %2244 = vmatprep.subr.mxu0 0.0
      %2245 = vmatpush1.msra.mxu0 0.0
      %2246 = vmatprep.subr.mxu0 0.0
      %2247 = vmatpush1.msra.mxu0 0.0
      %2248 = vmatprep.subr.mxu0 0.0
      %2249 = vmatpush1.msra.mxu0 0.0
      %2250 = vmatprep.subr.mxu0 0.0
      %2251 = vmatpush1.msra.mxu0 0.0
      %2252 = vmatprep.subr.mxu0 0.0
      %2253 = vmatpush1.msra.mxu0 0.0
      %2254 = vmatprep.subr.mxu0 0.0
      %2255 = vmatpush1.msra.mxu0 0.0
      %2256 = vmatprep.subr.mxu0 0.0
      %2257 = vmatpush1.msra.mxu0 0.0
      %2258 = vmatprep.subr.mxu0 0.0
      %2259 = vmatpush1.msra.mxu0 0.0
      %2260 = vmatprep.subr.mxu0 0.0
      %2261 = vmatpush1.msra.mxu0 0.0
      %2262 = vmatprep.subr.mxu0 0.0
      %2263 = vmatpush1.msra.mxu0 0.0
      %2264 = vmatprep.subr.mxu0 0.0
      %2265 = vmatpush1.msra.mxu0 0.0
      %2266 = vmatprep.subr.mxu0 0.0
      %2267 = vmatpush1.msra.mxu0 0.0
      %2268 = vmatprep.subr.mxu0 0.0
      %2269 = vmatpush1.msra.mxu0 0.0
      %2270 = vmatprep.subr.mxu0 0.0
      %2271 = vmatpush1.msra.mxu0 0.0
      %2272 = vmatprep.subr.mxu0 0.0
      %2273 = vmatpush1.msra.mxu0 0.0
      %2274 = vmatprep.subr.mxu0 0.0
      %2275 = vmatpush1.msra.mxu0 0.0
      %2276 = vmatprep.subr.mxu0 0.0
      %2277 = vmatpush1.msra.mxu0 0.0
      %2278 = vmatprep.subr.mxu0 0.0
      %2279 = vmatpush1.msra.mxu0 0.0
      %2280 = vmatprep.subr.mxu0 0.0
      %2281 = vmatpush1.msra.mxu0 0.0
      %2282 = vmatprep.subr.mxu0 0.0
      %2283 = vmatpush1.msra.mxu0 0.0
      %2284 = vmatprep.subr.mxu0 0.0
      %2285 = vmatpush1.msra.mxu0 0.0
      %2286 = vmatprep.subr.mxu0 0.0
      %2287 = vmatpush1.msra.mxu0 0.0
      %2288 = vmatprep.mubr.f32.mxu0 0.0
      %2289 = vmatmul.mubr.f32.gmra.mrb[0].mxu0 %v2174
      %v2290 = vpop.f32.mrb[0].mxu0
      %v2291 = vadd.f32 %v2095, %v2290
      %v2292 = vpop.f32.mrb[0].mxu0
      %2293 = vmatprep.mubr.f32.mxu0 0.0
      %2294 = vmatmul.mubr.f32.gmra.mrb[0].mxu0 %v2177
      %v2295 = vpop.f32.mrb[0].mxu0
      %v2296 = vadd.f32 %v2100, %v2295
      %v2297 = vpop.f32.mrb[0].mxu0
      %2298 = vmatprep.mubr.f32.mxu0 0.0
      %2299 = vmatmul.mubr.f32.gmra.mrb[0].mxu0 %v2180
      %v2300 = vpop.f32.mrb[0].mxu0
      %v2301 = vadd.f32 %v2105, %v2300
      %v2302 = vpop.f32.mrb[0].mxu0
      %2303 = vmatprep.mubr.f32.mxu0 0.0
      %2304 = vmatmul.mubr.f32.gmra.mrb[0].mxu0 %v2183
      %v2305 = vpop.f32.mrb[0].mxu0
      %v2306 = vadd.f32 %v2110, %v2305
      %v2307 = vpop.f32.mrb[0].mxu0
      %2308 = vmatprep.mubr.f32.mxu0 0.0
      %2309 = vmatmul.mubr.f32.gmra.mrb[0].mxu0 %v2186
      %v2310 = vpop.f32.mrb[0].mxu0
      %v2311 = vadd.f32 %v2115, %v2310
      %v2312 = vpop.f32.mrb[0].mxu0
      %2313 = vmatprep.mubr.f32.mxu0 0.0
      %2314 = vmatmul.mubr.f32.gmra.mrb[0].mxu0 %v2189
      %v2315 = vpop.f32.mrb[0].mxu0
      %v2316 = vadd.f32 %v2120, %v2315
      %v2317 = vpop.f32.mrb[0].mxu0
      %2318 = vmatprep.mubr.f32.mxu0 0.0
      %2319 = vmatmul.mubr.f32.gmra.mrb[0].mxu0 %v2192
      %v2320 = vpop.f32.mrb[0].mxu0
      %v2321 = vadd.f32 %v2125, %v2320
      %v2322 = vpop.f32.mrb[0].mxu0
      %2323 = vmatprep.mubr.f32.mxu0 0.0
      %2324 = vmatmul.mubr.f32.gmra.mrb[0].mxu0 %v2195
      %v2325 = vpop.f32.mrb[0].mxu0
      %v2326 = vadd.f32 %v2130, %v2325
      %v2327 = vpop.f32.mrb[0].mxu0
      %2328 = vmatprep.mubr.f32.mxu0 0.0
      %2329 = vmatmul.mubr.f32.gmra.mrb[0].mxu0 %v2198
      %v2330 = vpop.f32.mrb[0].mxu0
      %v2331 = vadd.f32 %v2135, %v2330
      %v2332 = vpop.f32.mrb[0].mxu0
      %2333 = vmatprep.mubr.f32.mxu0 0.0
      %2334 = vmatmul.mubr.f32.gmra.mrb[0].mxu0 %v2201
      %v2335 = vpop.f32.mrb[0].mxu0
      %v2336 = vadd.f32 %v2140, %v2335
      %v2337 = vpop.f32.mrb[0].mxu0
      %2338 = vmatprep.mubr.f32.mxu0 0.0
      %2339 = vmatmul.mubr.f32.gmra.mrb[0].mxu0 %v2204
      %v2340 = vpop.f32.mrb[0].mxu0
      %v2341 = vadd.f32 %v2145, %v2340
      %v2342 = vpop.f32.mrb[0].mxu0
      %2343 = vmatprep.mubr.f32.mxu0 0.0
      %2344 = vmatmul.mubr.f32.gmra.mrb[0].mxu0 %v2207
      %v2345 = vpop.f32.mrb[0].mxu0
      %v2346 = vadd.f32 %v2150, %v2345
      %v2347 = vpop.f32.mrb[0].mxu0
      %2348 = vmatprep.mubr.f32.mxu0 0.0
      %2349 = vmatmul.mubr.f32.gmra.mrb[0].mxu0 %v2210
      %v2350 = vpop.f32.mrb[0].mxu0
      %v2351 = vadd.f32 %v2155, %v2350
      %v2352 = vpop.f32.mrb[0].mxu0
      %2353 = vmatprep.mubr.f32.mxu0 0.0
      %2354 = vmatmul.mubr.f32.gmra.mrb[0].mxu0 %v2213
      %v2355 = vpop.f32.mrb[0].mxu0
      %v2356 = vadd.f32 %v2160, %v2355
      %v2357 = vpop.f32.mrb[0].mxu0
      %2358 = vmatprep.mubr.f32.mxu0 0.0
      %2359 = vmatmul.mubr.f32.gmra.mrb[0].mxu0 %v2216
      %v2360 = vpop.f32.mrb[0].mxu0
      %v2361 = vadd.f32 %v2165, %v2360
      %v2362 = vpop.f32.mrb[0].mxu0
      %2363 = vmatprep.mubr.f32.mxu0 0.0
      %2364 = vmatmul.mubr.f32.gmra.mrb[0].mxu0 %v2219
      %v2365 = vpop.f32.mrb[0].mxu0
      %v2366 = vadd.f32 %v2170, %v2365
      %v2367 = vpop.f32.mrb[0].mxu0
      %2368 = vdwg.mxu0
      %v2369 = vld [vmem:[%s12] sm:$0xf]
      %v2370 = vld [vmem:[%s13] sm:$0xf]
      %v2372 = vsel %vm1810, %v2370, 0
      %2374 = vmatprep.subr.mxu0 0.0
      %2375 = vmatpush1.msra.mxu0 %v2372
      %2376 = vmatprep.subr.mxu0 0.0
      %2377 = vmatpush1.msra.mxu0 0.0
      %2378 = vmatprep.subr.mxu0 0.0
      %2379 = vmatpush1.msra.mxu0 0.0
      %2380 = vmatprep.subr.mxu0 0.0
      %2381 = vmatpush1.msra.mxu0 0.0
      %2382 = vmatprep.subr.mxu0 0.0
      %2383 = vmatpush1.msra.mxu0 0.0
      %2384 = vmatprep.subr.mxu0 0.0
      %2385 = vmatpush1.msra.mxu0 0.0
      %2386 = vmatprep.subr.mxu0 0.0
      %2387 = vmatpush1.msra.mxu0 0.0
      %2388 = vmatprep.subr.mxu0 0.0
      %2389 = vmatpush1.msra.mxu0 0.0
      %2390 = vmatprep.subr.mxu0 0.0
      %2391 = vmatpush1.msra.mxu0 0.0
      %2392 = vmatprep.subr.mxu0 0.0
      %2393 = vmatpush1.msra.mxu0 0.0
      %2394 = vmatprep.subr.mxu0 0.0
      %2395 = vmatpush1.msra.mxu0 0.0
      %2396 = vmatprep.subr.mxu0 0.0
      %2397 = vmatpush1.msra.mxu0 0.0
      %2398 = vmatprep.subr.mxu0 0.0
      %2399 = vmatpush1.msra.mxu0 0.0
      %2400 = vmatprep.subr.mxu0 0.0
      %2401 = vmatpush1.msra.mxu0 0.0
      %2402 = vmatprep.subr.mxu0 0.0
      %2403 = vmatpush1.msra.mxu0 0.0
      %2404 = vmatprep.subr.mxu0 0.0
      %2405 = vmatpush1.msra.mxu0 0.0
      %2406 = vmatprep.subr.mxu0 0.0
      %2407 = vmatpush1.msra.mxu0 0.0
      %2408 = vmatprep.subr.mxu0 0.0
      %2409 = vmatpush1.msra.mxu0 0.0
      %2410 = vmatprep.subr.mxu0 0.0
      %2411 = vmatpush1.msra.mxu0 0.0
      %2412 = vmatprep.subr.mxu0 0.0
      %2413 = vmatpush1.msra.mxu0 0.0
      %2414 = vmatprep.subr.mxu0 0.0
      %2415 = vmatpush1.msra.mxu0 0.0
      %2416 = vmatprep.subr.mxu0 0.0
      %2417 = vmatpush1.msra.mxu0 0.0
      %2418 = vmatprep.subr.mxu0 0.0
      %2419 = vmatpush1.msra.mxu0 0.0
      %2420 = vmatprep.subr.mxu0 0.0
      %2421 = vmatpush1.msra.mxu0 0.0
      %2422 = vmatprep.subr.mxu0 0.0
      %2423 = vmatpush1.msra.mxu0 0.0
      %2424 = vmatprep.subr.mxu0 0.0
      %2425 = vmatpush1.msra.mxu0 0.0
      %2426 = vmatprep.subr.mxu0 0.0
      %2427 = vmatpush1.msra.mxu0 0.0
      %2428 = vmatprep.subr.mxu0 0.0
      %2429 = vmatpush1.msra.mxu0 0.0
      %2430 = vmatprep.subr.mxu0 0.0
      %2431 = vmatpush1.msra.mxu0 0.0
      %2432 = vmatprep.subr.mxu0 0.0
      %2433 = vmatpush1.msra.mxu0 0.0
      %2434 = vmatprep.subr.mxu0 0.0
      %2435 = vmatpush1.msra.mxu0 0.0
      %2436 = vmatprep.subr.mxu0 0.0
      %2437 = vmatpush1.msra.mxu0 0.0
      %2438 = vmatprep.mubr.f32.mxu0 0.0
      %2439 = vmatmul.mubr.f32.gmra.mrb[0].mxu0 %v1978
      %v2440 = vpop.f32.mrb[0].mxu0
      %v2441 = vadd.f32 0.0, %v2440
      %v2442 = vpop.f32.mrb[0].mxu0
      %2443 = vmatprep.mubr.f32.mxu0 0.0
      %2444 = vmatmul.mubr.f32.gmra.mrb[0].mxu0 %v1981
      %v2445 = vpop.f32.mrb[0].mxu0
      %v2446 = vadd.f32 0.0, %v2445
      %v2447 = vpop.f32.mrb[0].mxu0
      %2448 = vmatprep.mubr.f32.mxu0 0.0
      %2449 = vmatmul.mubr.f32.gmra.mrb[0].mxu0 %v1984
      %v2450 = vpop.f32.mrb[0].mxu0
      %v2451 = vadd.f32 0.0, %v2450
      %v2452 = vpop.f32.mrb[0].mxu0
      %2453 = vmatprep.mubr.f32.mxu0 0.0
      %2454 = vmatmul.mubr.f32.gmra.mrb[0].mxu0 %v1987
      %v2455 = vpop.f32.mrb[0].mxu0
      %v2456 = vadd.f32 0.0, %v2455
      %v2457 = vpop.f32.mrb[0].mxu0
      %2458 = vmatprep.mubr.f32.mxu0 0.0
      %2459 = vmatmul.mubr.f32.gmra.mrb[0].mxu0 %v1990
      %v2460 = vpop.f32.mrb[0].mxu0
      %v2461 = vadd.f32 0.0, %v2460
      %v2462 = vpop.f32.mrb[0].mxu0
      %2463 = vmatprep.mubr.f32.mxu0 0.0
      %2464 = vmatmul.mubr.f32.gmra.mrb[0].mxu0 %v1993
      %v2465 = vpop.f32.mrb[0].mxu0
      %v2466 = vadd.f32 0.0, %v2465
      %v2467 = vpop.f32.mrb[0].mxu0
      %2468 = vmatprep.mubr.f32.mxu0 0.0
      %2469 = vmatmul.mubr.f32.gmra.mrb[0].mxu0 %v1996
      %v2470 = vpop.f32.mrb[0].mxu0
      %v2471 = vadd.f32 0.0, %v2470
      %v2472 = vpop.f32.mrb[0].mxu0
      %2473 = vmatprep.mubr.f32.mxu0 0.0
      %2474 = vmatmul.mubr.f32.gmra.mrb[0].mxu0 %v1999
      %v2475 = vpop.f32.mrb[0].mxu0
      %v2476 = vadd.f32 0.0, %v2475
      %v2477 = vpop.f32.mrb[0].mxu0
      %2478 = vmatprep.mubr.f32.mxu0 0.0
      %2479 = vmatmul.mubr.f32.gmra.mrb[0].mxu0 %v2002
      %v2480 = vpop.f32.mrb[0].mxu0
      %v2481 = vadd.f32 0.0, %v2480
      %v2482 = vpop.f32.mrb[0].mxu0
      %2483 = vmatprep.mubr.f32.mxu0 0.0
      %2484 = vmatmul.mubr.f32.gmra.mrb[0].mxu0 %v2005
      %v2485 = vpop.f32.mrb[0].mxu0
      %v2486 = vadd.f32 0.0, %v2485
      %v2487 = vpop.f32.mrb[0].mxu0
      %2488 = vmatprep.mubr.f32.mxu0 0.0
      %2489 = vmatmul.mubr.f32.gmra.mrb[0].mxu0 %v2008
      %v2490 = vpop.f32.mrb[0].mxu0
      %v2491 = vadd.f32 0.0, %v2490
      %v2492 = vpop.f32.mrb[0].mxu0
      %2493 = vmatprep.mubr.f32.mxu0 0.0
      %2494 = vmatmul.mubr.f32.gmra.mrb[0].mxu0 %v2011
      %v2495 = vpop.f32.mrb[0].mxu0
      %v2496 = vadd.f32 0.0, %v2495
      %v2497 = vpop.f32.mrb[0].mxu0
      %2498 = vmatprep.mubr.f32.mxu0 0.0
      %2499 = vmatmul.mubr.f32.gmra.mrb[0].mxu0 %v2014
      %v2500 = vpop.f32.mrb[0].mxu0
      %v2501 = vadd.f32 0.0, %v2500
      %v2502 = vpop.f32.mrb[0].mxu0
      %2503 = vmatprep.mubr.f32.mxu0 0.0
      %2504 = vmatmul.mubr.f32.gmra.mrb[0].mxu0 %v2017
      %v2505 = vpop.f32.mrb[0].mxu0
      %v2506 = vadd.f32 0.0, %v2505
      %v2507 = vpop.f32.mrb[0].mxu0
      %2508 = vmatprep.mubr.f32.mxu0 0.0
      %2509 = vmatmul.mubr.f32.gmra.mrb[0].mxu0 %v2020
      %v2510 = vpop.f32.mrb[0].mxu0
      %v2511 = vadd.f32 0.0, %v2510
      %v2512 = vpop.f32.mrb[0].mxu0
      %2513 = vmatprep.mubr.f32.mxu0 0.0
      %2514 = vmatmul.mubr.f32.gmra.mrb[0].mxu0 %v2023
      %v2515 = vpop.f32.mrb[0].mxu0
      %v2516 = vadd.f32 0.0, %v2515
      %v2517 = vpop.f32.mrb[0].mxu0
      %2518 = vdwg.mxu0
      %v2520 = vsel %vm1810, %v2369, 0
      %2522 = vmatprep.subr.mxu0 0.0
      %2523 = vmatpush1.msra.mxu0 %v2520
      %2524 = vmatprep.subr.mxu0 0.0
      %2525 = vmatpush1.msra.mxu0 0.0
      %2526 = vmatprep.subr.mxu0 0.0
      %2527 = vmatpush1.msra.mxu0 0.0
      %2528 = vmatprep.subr.mxu0 0.0
      %2529 = vmatpush1.msra.mxu0 0.0
      %2530 = vmatprep.subr.mxu0 0.0
      %2531 = vmatpush1.msra.mxu0 0.0
      %2532 = vmatprep.subr.mxu0 0.0
      %2533 = vmatpush1.msra.mxu0 0.0
      %2534 = vmatprep.subr.mxu0 0.0
      %2535 = vmatpush1.msra.mxu0 0.0
      %2536 = vmatprep.subr.mxu0 0.0
      %2537 = vmatpush1.msra.mxu0 0.0
      %2538 = vmatprep.subr.mxu0 0.0
      %2539 = vmatpush1.msra.mxu0 0.0
      %2540 = vmatprep.subr.mxu0 0.0
      %2541 = vmatpush1.msra.mxu0 0.0
      %2542 = vmatprep.subr.mxu0 0.0
      %2543 = vmatpush1.msra.mxu0 0.0
      %2544 = vmatprep.subr.mxu0 0.0
      %2545 = vmatpush1.msra.mxu0 0.0
      %2546 = vmatprep.subr.mxu0 0.0
      %2547 = vmatpush1.msra.mxu0 0.0
      %2548 = vmatprep.subr.mxu0 0.0
      %2549 = vmatpush1.msra.mxu0 0.0
      %2550 = vmatprep.subr.mxu0 0.0
      %2551 = vmatpush1.msra.mxu0 0.0
      %2552 = vmatprep.subr.mxu0 0.0
      %2553 = vmatpush1.msra.mxu0 0.0
      %2554 = vmatprep.subr.mxu0 0.0
      %2555 = vmatpush1.msra.mxu0 0.0
      %2556 = vmatprep.subr.mxu0 0.0
      %2557 = vmatpush1.msra.mxu0 0.0
      %2558 = vmatprep.subr.mxu0 0.0
      %2559 = vmatpush1.msra.mxu0 0.0
      %2560 = vmatprep.subr.mxu0 0.0
      %2561 = vmatpush1.msra.mxu0 0.0
      %2562 = vmatprep.subr.mxu0 0.0
      %2563 = vmatpush1.msra.mxu0 0.0
      %2564 = vmatprep.subr.mxu0 0.0
      %2565 = vmatpush1.msra.mxu0 0.0
      %2566 = vmatprep.subr.mxu0 0.0
      %2567 = vmatpush1.msra.mxu0 0.0
      %2568 = vmatprep.subr.mxu0 0.0
      %2569 = vmatpush1.msra.mxu0 0.0
      %2570 = vmatprep.subr.mxu0 0.0
      %2571 = vmatpush1.msra.mxu0 0.0
      %2572 = vmatprep.subr.mxu0 0.0
      %2573 = vmatpush1.msra.mxu0 0.0
      %2574 = vmatprep.subr.mxu0 0.0
      %2575 = vmatpush1.msra.mxu0 0.0
      %2576 = vmatprep.subr.mxu0 0.0
      %2577 = vmatpush1.msra.mxu0 0.0
      %2578 = vmatprep.subr.mxu0 0.0
      %2579 = vmatpush1.msra.mxu0 0.0
      %2580 = vmatprep.subr.mxu0 0.0
      %2581 = vmatpush1.msra.mxu0 0.0
      %2582 = vmatprep.subr.mxu0 0.0
      %2583 = vmatpush1.msra.mxu0 0.0
      %2584 = vmatprep.subr.mxu0 0.0
      %2585 = vmatpush1.msra.mxu0 0.0
      %2586 = vmatprep.mubr.f32.mxu0 0.0
      %2587 = vmatmul.mubr.f32.gmra.mrb[0].mxu0 %v2174
      %v2588 = vpop.f32.mrb[0].mxu0
      %v2589 = vadd.f32 %v2441, %v2588
      %v2590 = vpop.f32.mrb[0].mxu0
      %2591 = vmatprep.mubr.f32.mxu0 0.0
      %2592 = vmatmul.mubr.f32.gmra.mrb[0].mxu0 %v2177
      %v2593 = vpop.f32.mrb[0].mxu0
      %v2594 = vadd.f32 %v2446, %v2593
      %v2595 = vpop.f32.mrb[0].mxu0
      %2596 = vmatprep.mubr.f32.mxu0 0.0
      %2597 = vmatmul.mubr.f32.gmra.mrb[0].mxu0 %v2180
      %v2598 = vpop.f32.mrb[0].mxu0
      %v2599 = vadd.f32 %v2451, %v2598
      %v2600 = vpop.f32.mrb[0].mxu0
      %2601 = vmatprep.mubr.f32.mxu0 0.0
      %2602 = vmatmul.mubr.f32.gmra.mrb[0].mxu0 %v2183
      %v2603 = vpop.f32.mrb[0].mxu0
      %v2604 = vadd.f32 %v2456, %v2603
      %v2605 = vpop.f32.mrb[0].mxu0
      %2606 = vmatprep.mubr.f32.mxu0 0.0
      %2607 = vmatmul.mubr.f32.gmra.mrb[0].mxu0 %v2186
      %v2608 = vpop.f32.mrb[0].mxu0
      %v2609 = vadd.f32 %v2461, %v2608
      %v2610 = vpop.f32.mrb[0].mxu0
      %2611 = vmatprep.mubr.f32.mxu0 0.0
      %2612 = vmatmul.mubr.f32.gmra.mrb[0].mxu0 %v2189
      %v2613 = vpop.f32.mrb[0].mxu0
      %v2614 = vadd.f32 %v2466, %v2613
      %v2615 = vpop.f32.mrb[0].mxu0
      %2616 = vmatprep.mubr.f32.mxu0 0.0
      %2617 = vmatmul.mubr.f32.gmra.mrb[0].mxu0 %v2192
      %v2618 = vpop.f32.mrb[0].mxu0
      %v2619 = vadd.f32 %v2471, %v2618
      %v2620 = vpop.f32.mrb[0].mxu0
      %2621 = vmatprep.mubr.f32.mxu0 0.0
      %2622 = vmatmul.mubr.f32.gmra.mrb[0].mxu0 %v2195
      %v2623 = vpop.f32.mrb[0].mxu0
      %v2624 = vadd.f32 %v2476, %v2623
      %v2625 = vpop.f32.mrb[0].mxu0
      %2626 = vmatprep.mubr.f32.mxu0 0.0
      %2627 = vmatmul.mubr.f32.gmra.mrb[0].mxu0 %v2198
      %v2628 = vpop.f32.mrb[0].mxu0
      %v2629 = vadd.f32 %v2481, %v2628
      %v2630 = vpop.f32.mrb[0].mxu0
      %2631 = vmatprep.mubr.f32.mxu0 0.0
      %2632 = vmatmul.mubr.f32.gmra.mrb[0].mxu0 %v2201
      %v2633 = vpop.f32.mrb[0].mxu0
      %v2634 = vadd.f32 %v2486, %v2633
      %v2635 = vpop.f32.mrb[0].mxu0
      %2636 = vmatprep.mubr.f32.mxu0 0.0
      %2637 = vmatmul.mubr.f32.gmra.mrb[0].mxu0 %v2204
      %v2638 = vpop.f32.mrb[0].mxu0
      %v2639 = vadd.f32 %v2491, %v2638
      %v2640 = vpop.f32.mrb[0].mxu0
      %2641 = vmatprep.mubr.f32.mxu0 0.0
      %2642 = vmatmul.mubr.f32.gmra.mrb[0].mxu0 %v2207
      %v2643 = vpop.f32.mrb[0].mxu0
      %v2644 = vadd.f32 %v2496, %v2643
      %v2645 = vpop.f32.mrb[0].mxu0
      %2646 = vmatprep.mubr.f32.mxu0 0.0
      %2647 = vmatmul.mubr.f32.gmra.mrb[0].mxu0 %v2210
      %v2648 = vpop.f32.mrb[0].mxu0
      %v2649 = vadd.f32 %v2501, %v2648
      %v2650 = vpop.f32.mrb[0].mxu0
      %2651 = vmatprep.mubr.f32.mxu0 0.0
      %2652 = vmatmul.mubr.f32.gmra.mrb[0].mxu0 %v2213
      %v2653 = vpop.f32.mrb[0].mxu0
      %v2654 = vadd.f32 %v2506, %v2653
      %v2655 = vpop.f32.mrb[0].mxu0
      %2656 = vmatprep.mubr.f32.mxu0 0.0
      %2657 = vmatmul.mubr.f32.gmra.mrb[0].mxu0 %v2216
      %v2658 = vpop.f32.mrb[0].mxu0
      %v2659 = vadd.f32 %v2511, %v2658
      %v2660 = vpop.f32.mrb[0].mxu0
      %2661 = vmatprep.mubr.f32.mxu0 0.0
      %2662 = vmatmul.mubr.f32.gmra.mrb[0].mxu0 %v2219
      %v2663 = vpop.f32.mrb[0].mxu0
      %v2664 = vadd.f32 %v2516, %v2663
      %v2665 = vpop.f32.mrb[0].mxu0
      %2666 = vdwg.mxu0
      %v2667 = vsel %vm1761, %v2291, -inf
      %v2668 = vrot.slane %v2667, 4
      %v2669 = vmax.f32 %v2667, %v2668
      %v2670 = vrot.slane %v2669, 2
      %v2671 = vmax.f32 %v2669, %v2670
      %v2672 = vrot.slane %v2671, 1
      %v2673 = vmax.f32 %v2671, %v2672
      %v2674 = vsel %vm1761, %v2296, -inf
      %v2675 = vrot.slane %v2674, 4
      %v2676 = vmax.f32 %v2674, %v2675
      %v2677 = vrot.slane %v2676, 2
      %v2678 = vmax.f32 %v2676, %v2677
      %v2679 = vrot.slane %v2678, 1
      %v2680 = vmax.f32 %v2678, %v2679
      %v2681 = vsel %vm1761, %v2301, -inf
      %v2682 = vrot.slane %v2681, 4
      %v2683 = vmax.f32 %v2681, %v2682
      %v2684 = vrot.slane %v2683, 2
      %v2685 = vmax.f32 %v2683, %v2684
      %v2686 = vrot.slane %v2685, 1
      %v2687 = vmax.f32 %v2685, %v2686
      %v2688 = vsel %vm1761, %v2306, -inf
      %v2689 = vrot.slane %v2688, 4
      %v2690 = vmax.f32 %v2688, %v2689
      %v2691 = vrot.slane %v2690, 2
      %v2692 = vmax.f32 %v2690, %v2691
      %v2693 = vrot.slane %v2692, 1
      %v2694 = vmax.f32 %v2692, %v2693
      %v2695 = vsel %vm1761, %v2311, -inf
      %v2696 = vrot.slane %v2695, 4
      %v2697 = vmax.f32 %v2695, %v2696
      %v2698 = vrot.slane %v2697, 2
      %v2699 = vmax.f32 %v2697, %v2698
      %v2700 = vrot.slane %v2699, 1
      %v2701 = vmax.f32 %v2699, %v2700
      %v2702 = vsel %vm1761, %v2316, -inf
      %v2703 = vrot.slane %v2702, 4
      %v2704 = vmax.f32 %v2702, %v2703
      %v2705 = vrot.slane %v2704, 2
      %v2706 = vmax.f32 %v2704, %v2705
      %v2707 = vrot.slane %v2706, 1
      %v2708 = vmax.f32 %v2706, %v2707
      %v2709 = vsel %vm1761, %v2321, -inf
      %v2710 = vrot.slane %v2709, 4
      %v2711 = vmax.f32 %v2709, %v2710
      %v2712 = vrot.slane %v2711, 2
      %v2713 = vmax.f32 %v2711, %v2712
      %v2714 = vrot.slane %v2713, 1
      %v2715 = vmax.f32 %v2713, %v2714
      %v2716 = vsel %vm1761, %v2326, -inf
      %v2717 = vrot.slane %v2716, 4
      %v2718 = vmax.f32 %v2716, %v2717
      %v2719 = vrot.slane %v2718, 2
      %v2720 = vmax.f32 %v2718, %v2719
      %v2721 = vrot.slane %v2720, 1
      %v2722 = vmax.f32 %v2720, %v2721
      %v2723 = vsel %vm1761, %v2331, -inf
      %v2724 = vrot.slane %v2723, 4
      %v2725 = vmax.f32 %v2723, %v2724
      %v2726 = vrot.slane %v2725, 2
      %v2727 = vmax.f32 %v2725, %v2726
      %v2728 = vrot.slane %v2727, 1
      %v2729 = vmax.f32 %v2727, %v2728
      %v2730 = vsel %vm1761, %v2336, -inf
      %v2731 = vrot.slane %v2730, 4
      %v2732 = vmax.f32 %v2730, %v2731
      %v2733 = vrot.slane %v2732, 2
      %v2734 = vmax.f32 %v2732, %v2733
      %v2735 = vrot.slane %v2734, 1
      %v2736 = vmax.f32 %v2734, %v2735
      %v2737 = vsel %vm1761, %v2341, -inf
      %v2738 = vrot.slane %v2737, 4
      %v2739 = vmax.f32 %v2737, %v2738
      %v2740 = vrot.slane %v2739, 2
      %v2741 = vmax.f32 %v2739, %v2740
      %v2742 = vrot.slane %v2741, 1
      %v2743 = vmax.f32 %v2741, %v2742
      %v2744 = vsel %vm1761, %v2346, -inf
      %v2745 = vrot.slane %v2744, 4
      %v2746 = vmax.f32 %v2744, %v2745
      %v2747 = vrot.slane %v2746, 2
      %v2748 = vmax.f32 %v2746, %v2747
      %v2749 = vrot.slane %v2748, 1
      %v2750 = vmax.f32 %v2748, %v2749
      %v2751 = vsel %vm1761, %v2351, -inf
      %v2752 = vrot.slane %v2751, 4
      %v2753 = vmax.f32 %v2751, %v2752
      %v2754 = vrot.slane %v2753, 2
      %v2755 = vmax.f32 %v2753, %v2754
      %v2756 = vrot.slane %v2755, 1
      %v2757 = vmax.f32 %v2755, %v2756
      %v2758 = vsel %vm1761, %v2356, -inf
      %v2759 = vrot.slane %v2758, 4
      %v2760 = vmax.f32 %v2758, %v2759
      %v2761 = vrot.slane %v2760, 2
      %v2762 = vmax.f32 %v2760, %v2761
      %v2763 = vrot.slane %v2762, 1
      %v2764 = vmax.f32 %v2762, %v2763
      %v2765 = vsel %vm1761, %v2361, -inf
      %v2766 = vrot.slane %v2765, 4
      %v2767 = vmax.f32 %v2765, %v2766
      %v2768 = vrot.slane %v2767, 2
      %v2769 = vmax.f32 %v2767, %v2768
      %v2770 = vrot.slane %v2769, 1
      %v2771 = vmax.f32 %v2769, %v2770
      %v2772 = vsel %vm1761, %v2366, -inf
      %v2773 = vrot.slane %v2772, 4
      %v2774 = vmax.f32 %v2772, %v2773
      %v2775 = vrot.slane %v2774, 2
      %v2776 = vmax.f32 %v2774, %v2775
      %v2777 = vrot.slane %v2776, 1
      %v2778 = vmax.f32 %v2776, %v2777
      %v2779 = vsub.f32 %v2291, %v2673
      %v2780 = vsub.f32 %v2296, %v2680
      %v2781 = vsub.f32 %v2301, %v2687
      %v2782 = vsub.f32 %v2306, %v2694
      %v2783 = vsub.f32 %v2311, %v2701
      %v2784 = vsub.f32 %v2316, %v2708
      %v2785 = vsub.f32 %v2321, %v2715
      %v2786 = vsub.f32 %v2326, %v2722
      %v2787 = vsub.f32 %v2331, %v2729
      %v2788 = vsub.f32 %v2336, %v2736
      %v2789 = vsub.f32 %v2341, %v2743
      %v2790 = vsub.f32 %v2346, %v2750
      %v2791 = vsub.f32 %v2351, %v2757
      %v2792 = vsub.f32 %v2356, %v2764
      %v2793 = vsub.f32 %v2361, %v2771
      %v2794 = vsub.f32 %v2366, %v2778
      %v2795 = vmul.f32 %v2779, 1.442695
      %v2796 = vpow.pop %v2795
      %v2797 = vmul.f32 %v2780, 1.442695
      %v2798 = vpow.pop %v2797
      %v2799 = vmul.f32 %v2781, 1.442695
      %v2800 = vpow.pop %v2799
      %v2801 = vmul.f32 %v2782, 1.442695
      %v2802 = vpow.pop %v2801
      %v2803 = vmul.f32 %v2783, 1.442695
      %v2804 = vpow.pop %v2803
      %v2805 = vmul.f32 %v2784, 1.442695
      %v2806 = vpow.pop %v2805
      %v2807 = vmul.f32 %v2785, 1.442695
      %v2808 = vpow.pop %v2807
      %v2809 = vmul.f32 %v2786, 1.442695
      %v2810 = vpow.pop %v2809
      %v2811 = vmul.f32 %v2787, 1.442695
      %v2812 = vpow.pop %v2811
      %v2813 = vmul.f32 %v2788, 1.442695
      %v2814 = vpow.pop %v2813
      %v2815 = vmul.f32 %v2789, 1.442695
      %v2816 = vpow.pop %v2815
      %v2817 = vmul.f32 %v2790, 1.442695
      %v2818 = vpow.pop %v2817
      %v2819 = vmul.f32 %v2791, 1.442695
      %v2820 = vpow.pop %v2819
      %v2821 = vmul.f32 %v2792, 1.442695
      %v2822 = vpow.pop %v2821
      %v2823 = vmul.f32 %v2793, 1.442695
      %v2824 = vpow.pop %v2823
      %v2825 = vmul.f32 %v2794, 1.442695
      %v2826 = vpow.pop %v2825
      %v2827 = vsel %vm1761, %v2796, 0.0
      %v2828 = vrot.slane %v2827, 4
      %v2829 = vadd.f32 %v2827, %v2828
      %v2830 = vrot.slane %v2829, 2
      %v2831 = vadd.f32 %v2829, %v2830
      %v2832 = vrot.slane %v2831, 1
      %v2833 = vadd.f32 %v2831, %v2832
      %v2834 = vsel %vm1761, %v2798, 0.0
      %v2835 = vrot.slane %v2834, 4
      %v2836 = vadd.f32 %v2834, %v2835
      %v2837 = vrot.slane %v2836, 2
      %v2838 = vadd.f32 %v2836, %v2837
      %v2839 = vrot.slane %v2838, 1
      %v2840 = vadd.f32 %v2838, %v2839
      %v2841 = vsel %vm1761, %v2800, 0.0
      %v2842 = vrot.slane %v2841, 4
      %v2843 = vadd.f32 %v2841, %v2842
      %v2844 = vrot.slane %v2843, 2
      %v2845 = vadd.f32 %v2843, %v2844
      %v2846 = vrot.slane %v2845, 1
      %v2847 = vadd.f32 %v2845, %v2846
      %v2848 = vsel %vm1761, %v2802, 0.0
      %v2849 = vrot.slane %v2848, 4
      %v2850 = vadd.f32 %v2848, %v2849
      %v2851 = vrot.slane %v2850, 2
      %v2852 = vadd.f32 %v2850, %v2851
      %v2853 = vrot.slane %v2852, 1
      %v2854 = vadd.f32 %v2852, %v2853
      %v2855 = vsel %vm1761, %v2804, 0.0
      %v2856 = vrot.slane %v2855, 4
      %v2857 = vadd.f32 %v2855, %v2856
      %v2858 = vrot.slane %v2857, 2
      %v2859 = vadd.f32 %v2857, %v2858
      %v2860 = vrot.slane %v2859, 1
      %v2861 = vadd.f32 %v2859, %v2860
      %v2862 = vsel %vm1761, %v2806, 0.0
      %v2863 = vrot.slane %v2862, 4
      %v2864 = vadd.f32 %v2862, %v2863
      %v2865 = vrot.slane %v2864, 2
      %v2866 = vadd.f32 %v2864, %v2865
      %v2867 = vrot.slane %v2866, 1
      %v2868 = vadd.f32 %v2866, %v2867
      %v2869 = vsel %vm1761, %v2808, 0.0
      %v2870 = vrot.slane %v2869, 4
      %v2871 = vadd.f32 %v2869, %v2870
      %v2872 = vrot.slane %v2871, 2
      %v2873 = vadd.f32 %v2871, %v2872
      %v2874 = vrot.slane %v2873, 1
      %v2875 = vadd.f32 %v2873, %v2874
      %v2876 = vsel %vm1761, %v2810, 0.0
      %v2877 = vrot.slane %v2876, 4
      %v2878 = vadd.f32 %v2876, %v2877
      %v2879 = vrot.slane %v2878, 2
      %v2880 = vadd.f32 %v2878, %v2879
      %v2881 = vrot.slane %v2880, 1
      %v2882 = vadd.f32 %v2880, %v2881
      %v2883 = vsel %vm1761, %v2812, 0.0
      %v2884 = vrot.slane %v2883, 4
      %v2885 = vadd.f32 %v2883, %v2884
      %v2886 = vrot.slane %v2885, 2
      %v2887 = vadd.f32 %v2885, %v2886
      %v2888 = vrot.slane %v2887, 1
      %v2889 = vadd.f32 %v2887, %v2888
      %v2890 = vsel %vm1761, %v2814, 0.0
      %v2891 = vrot.slane %v2890, 4
      %v2892 = vadd.f32 %v2890, %v2891
      %v2893 = vrot.slane %v2892, 2
      %v2894 = vadd.f32 %v2892, %v2893
      %v2895 = vrot.slane %v2894, 1
      %v2896 = vadd.f32 %v2894, %v2895
      %v2897 = vsel %vm1761, %v2816, 0.0
      %v2898 = vrot.slane %v2897, 4
      %v2899 = vadd.f32 %v2897, %v2898
      %v2900 = vrot.slane %v2899, 2
      %v2901 = vadd.f32 %v2899, %v2900
      %v2902 = vrot.slane %v2901, 1
      %v2903 = vadd.f32 %v2901, %v2902
      %v2904 = vsel %vm1761, %v2818, 0.0
      %v2905 = vrot.slane %v2904, 4
      %v2906 = vadd.f32 %v2904, %v2905
      %v2907 = vrot.slane %v2906, 2
      %v2908 = vadd.f32 %v2906, %v2907
      %v2909 = vrot.slane %v2908, 1
      %v2910 = vadd.f32 %v2908, %v2909
      %v2911 = vsel %vm1761, %v2820, 0.0
      %v2912 = vrot.slane %v2911, 4
      %v2913 = vadd.f32 %v2911, %v2912
      %v2914 = vrot.slane %v2913, 2
      %v2915 = vadd.f32 %v2913, %v2914
      %v2916 = vrot.slane %v2915, 1
      %v2917 = vadd.f32 %v2915, %v2916
      %v2918 = vsel %vm1761, %v2822, 0.0
      %v2919 = vrot.slane %v2918, 4
      %v2920 = vadd.f32 %v2918, %v2919
      %v2921 = vrot.slane %v2920, 2
      %v2922 = vadd.f32 %v2920, %v2921
      %v2923 = vrot.slane %v2922, 1
      %v2924 = vadd.f32 %v2922, %v2923
      %v2925 = vsel %vm1761, %v2824, 0.0
      %v2926 = vrot.slane %v2925, 4
      %v2927 = vadd.f32 %v2925, %v2926
      %v2928 = vrot.slane %v2927, 2
      %v2929 = vadd.f32 %v2927, %v2928
      %v2930 = vrot.slane %v2929, 1
      %v2931 = vadd.f32 %v2929, %v2930
      %v2932 = vsel %vm1761, %v2826, 0.0
      %v2933 = vrot.slane %v2932, 4
      %v2934 = vadd.f32 %v2932, %v2933
      %v2935 = vrot.slane %v2934, 2
      %v2936 = vadd.f32 %v2934, %v2935
      %v2937 = vrot.slane %v2936, 1
      %v2938 = vadd.f32 %v2936, %v2937
      %v2939 = vrcp.pop %v2833
      %v2940 = vrcp.pop %v2840
      %v2941 = vrcp.pop %v2847
      %v2942 = vrcp.pop %v2854
      %v2943 = vrcp.pop %v2861
      %v2944 = vrcp.pop %v2868
      %v2945 = vrcp.pop %v2875
      %v2946 = vrcp.pop %v2882
      %v2947 = vrcp.pop %v2889
      %v2948 = vrcp.pop %v2896
      %v2949 = vrcp.pop %v2903
      %v2950 = vrcp.pop %v2910
      %v2951 = vrcp.pop %v2917
      %v2952 = vrcp.pop %v2924
      %v2953 = vrcp.pop %v2931
      %v2954 = vrcp.pop %v2938
      %v2955 = vmul.f32 %v2796, %v2939
      %v2956 = vmul.f32 %v2798, %v2940
      %v2957 = vmul.f32 %v2800, %v2941
      %v2958 = vmul.f32 %v2802, %v2942
      %v2959 = vmul.f32 %v2804, %v2943
      %v2960 = vmul.f32 %v2806, %v2944
      %v2961 = vmul.f32 %v2808, %v2945
      %v2962 = vmul.f32 %v2810, %v2946
      %v2963 = vmul.f32 %v2812, %v2947
      %v2964 = vmul.f32 %v2814, %v2948
      %v2965 = vmul.f32 %v2816, %v2949
      %v2966 = vmul.f32 %v2818, %v2950
      %v2967 = vmul.f32 %v2820, %v2951
      %v2968 = vmul.f32 %v2822, %v2952
      %v2969 = vmul.f32 %v2824, %v2953
      %v2970 = vmul.f32 %v2826, %v2954
      %v2971 = vmul.f32 %v660, %v2955
      %v2972 = vmul.f32 %v661, %v2956
      %v2973 = vmul.f32 %v662, %v2957
      %v2974 = vmul.f32 %v663, %v2958
      %v2975 = vmul.f32 %v664, %v2959
      %v2976 = vmul.f32 %v665, %v2960
      %v2977 = vmul.f32 %v666, %v2961
      %v2978 = vmul.f32 %v667, %v2962
      %v2979 = vmul.f32 %v668, %v2963
      %v2980 = vmul.f32 %v669, %v2964
      %v2981 = vmul.f32 %v670, %v2965
      %v2982 = vmul.f32 %v671, %v2966
      %v2983 = vmul.f32 %v672, %v2967
      %v2984 = vmul.f32 %v673, %v2968
      %v2985 = vmul.f32 %v674, %v2969
      %v2986 = vmul.f32 %v675, %v2970
      %v2987 = vsel %vm1761, %v2971, 0.0
      %v2988 = vrot.slane %v2987, 4
      %v2989 = vadd.f32 %v2987, %v2988
      %v2990 = vrot.slane %v2989, 2
      %v2991 = vadd.f32 %v2989, %v2990
      %v2992 = vrot.slane %v2991, 1
      %v2993 = vadd.f32 %v2991, %v2992
      %v2994 = vsel %vm1761, %v2972, 0.0
      %v2995 = vrot.slane %v2994, 4
      %v2996 = vadd.f32 %v2994, %v2995
      %v2997 = vrot.slane %v2996, 2
      %v2998 = vadd.f32 %v2996, %v2997
      %v2999 = vrot.slane %v2998, 1
      %v3000 = vadd.f32 %v2998, %v2999
      %v3001 = vsel %vm1761, %v2973, 0.0
      %v3002 = vrot.slane %v3001, 4
      %v3003 = vadd.f32 %v3001, %v3002
      %v3004 = vrot.slane %v3003, 2
      %v3005 = vadd.f32 %v3003, %v3004
      %v3006 = vrot.slane %v3005, 1
      %v3007 = vadd.f32 %v3005, %v3006
      %v3008 = vsel %vm1761, %v2974, 0.0
      %v3009 = vrot.slane %v3008, 4
      %v3010 = vadd.f32 %v3008, %v3009
      %v3011 = vrot.slane %v3010, 2
      %v3012 = vadd.f32 %v3010, %v3011
      %v3013 = vrot.slane %v3012, 1
      %v3014 = vadd.f32 %v3012, %v3013
      %v3015 = vsel %vm1761, %v2975, 0.0
      %v3016 = vrot.slane %v3015, 4
      %v3017 = vadd.f32 %v3015, %v3016
      %v3018 = vrot.slane %v3017, 2
      %v3019 = vadd.f32 %v3017, %v3018
      %v3020 = vrot.slane %v3019, 1
      %v3021 = vadd.f32 %v3019, %v3020
      %v3022 = vsel %vm1761, %v2976, 0.0
      %v3023 = vrot.slane %v3022, 4
      %v3024 = vadd.f32 %v3022, %v3023
      %v3025 = vrot.slane %v3024, 2
      %v3026 = vadd.f32 %v3024, %v3025
      %v3027 = vrot.slane %v3026, 1
      %v3028 = vadd.f32 %v3026, %v3027
      %v3029 = vsel %vm1761, %v2977, 0.0
      %v3030 = vrot.slane %v3029, 4
      %v3031 = vadd.f32 %v3029, %v3030
      %v3032 = vrot.slane %v3031, 2
      %v3033 = vadd.f32 %v3031, %v3032
      %v3034 = vrot.slane %v3033, 1
      %v3035 = vadd.f32 %v3033, %v3034
      %v3036 = vsel %vm1761, %v2978, 0.0
      %v3037 = vrot.slane %v3036, 4
      %v3038 = vadd.f32 %v3036, %v3037
      %v3039 = vrot.slane %v3038, 2
      %v3040 = vadd.f32 %v3038, %v3039
      %v3041 = vrot.slane %v3040, 1
      %v3042 = vadd.f32 %v3040, %v3041
      %v3043 = vsel %vm1761, %v2979, 0.0
      %v3044 = vrot.slane %v3043, 4
      %v3045 = vadd.f32 %v3043, %v3044
      %v3046 = vrot.slane %v3045, 2
      %v3047 = vadd.f32 %v3045, %v3046
      %v3048 = vrot.slane %v3047, 1
      %v3049 = vadd.f32 %v3047, %v3048
      %v3050 = vsel %vm1761, %v2980, 0.0
      %v3051 = vrot.slane %v3050, 4
      %v3052 = vadd.f32 %v3050, %v3051
      %v3053 = vrot.slane %v3052, 2
      %v3054 = vadd.f32 %v3052, %v3053
      %v3055 = vrot.slane %v3054, 1
      %v3056 = vadd.f32 %v3054, %v3055
      %v3057 = vsel %vm1761, %v2981, 0.0
      %v3058 = vrot.slane %v3057, 4
      %v3059 = vadd.f32 %v3057, %v3058
      %v3060 = vrot.slane %v3059, 2
      %v3061 = vadd.f32 %v3059, %v3060
      %v3062 = vrot.slane %v3061, 1
      %v3063 = vadd.f32 %v3061, %v3062
      %v3064 = vsel %vm1761, %v2982, 0.0
      %v3065 = vrot.slane %v3064, 4
      %v3066 = vadd.f32 %v3064, %v3065
      %v3067 = vrot.slane %v3066, 2
      %v3068 = vadd.f32 %v3066, %v3067
      %v3069 = vrot.slane %v3068, 1
      %v3070 = vadd.f32 %v3068, %v3069
      %v3071 = vsel %vm1761, %v2983, 0.0
      %v3072 = vrot.slane %v3071, 4
      %v3073 = vadd.f32 %v3071, %v3072
      %v3074 = vrot.slane %v3073, 2
      %v3075 = vadd.f32 %v3073, %v3074
      %v3076 = vrot.slane %v3075, 1
      %v3077 = vadd.f32 %v3075, %v3076
      %v3078 = vsel %vm1761, %v2984, 0.0
      %v3079 = vrot.slane %v3078, 4
      %v3080 = vadd.f32 %v3078, %v3079
      %v3081 = vrot.slane %v3080, 2
      %v3082 = vadd.f32 %v3080, %v3081
      %v3083 = vrot.slane %v3082, 1
      %v3084 = vadd.f32 %v3082, %v3083
      %v3085 = vsel %vm1761, %v2985, 0.0
      %v3086 = vrot.slane %v3085, 4
      %v3087 = vadd.f32 %v3085, %v3086
      %v3088 = vrot.slane %v3087, 2
      %v3089 = vadd.f32 %v3087, %v3088
      %v3090 = vrot.slane %v3089, 1
      %v3091 = vadd.f32 %v3089, %v3090
      %v3092 = vsel %vm1761, %v2986, 0.0
      %v3093 = vrot.slane %v3092, 4
      %v3094 = vadd.f32 %v3092, %v3093
      %v3095 = vrot.slane %v3094, 2
      %v3096 = vadd.f32 %v3094, %v3095
      %v3097 = vrot.slane %v3096, 1
      %v3098 = vadd.f32 %v3096, %v3097
      %v3099 = vsel %vm1761, %v2589, -inf
      %v3100 = vrot.slane %v3099, 4
      %v3101 = vmax.f32 %v3099, %v3100
      %v3102 = vrot.slane %v3101, 2
      %v3103 = vmax.f32 %v3101, %v3102
      %v3104 = vrot.slane %v3103, 1
      %v3105 = vmax.f32 %v3103, %v3104
      %v3106 = vsel %vm1761, %v2594, -inf
      %v3107 = vrot.slane %v3106, 4
      %v3108 = vmax.f32 %v3106, %v3107
      %v3109 = vrot.slane %v3108, 2
      %v3110 = vmax.f32 %v3108, %v3109
      %v3111 = vrot.slane %v3110, 1
      %v3112 = vmax.f32 %v3110, %v3111
      %v3113 = vsel %vm1761, %v2599, -inf
      %v3114 = vrot.slane %v3113, 4
      %v3115 = vmax.f32 %v3113, %v3114
      %v3116 = vrot.slane %v3115, 2
      %v3117 = vmax.f32 %v3115, %v3116
      %v3118 = vrot.slane %v3117, 1
      %v3119 = vmax.f32 %v3117, %v3118
      %v3120 = vsel %vm1761, %v2604, -inf
      %v3121 = vrot.slane %v3120, 4
      %v3122 = vmax.f32 %v3120, %v3121
      %v3123 = vrot.slane %v3122, 2
      %v3124 = vmax.f32 %v3122, %v3123
      %v3125 = vrot.slane %v3124, 1
      %v3126 = vmax.f32 %v3124, %v3125
      %v3127 = vsel %vm1761, %v2609, -inf
      %v3128 = vrot.slane %v3127, 4
      %v3129 = vmax.f32 %v3127, %v3128
      %v3130 = vrot.slane %v3129, 2
      %v3131 = vmax.f32 %v3129, %v3130
      %v3132 = vrot.slane %v3131, 1
      %v3133 = vmax.f32 %v3131, %v3132
      %v3134 = vsel %vm1761, %v2614, -inf
      %v3135 = vrot.slane %v3134, 4
      %v3136 = vmax.f32 %v3134, %v3135
      %v3137 = vrot.slane %v3136, 2
      %v3138 = vmax.f32 %v3136, %v3137
      %v3139 = vrot.slane %v3138, 1
      %v3140 = vmax.f32 %v3138, %v3139
      %v3141 = vsel %vm1761, %v2619, -inf
      %v3142 = vrot.slane %v3141, 4
      %v3143 = vmax.f32 %v3141, %v3142
      %v3144 = vrot.slane %v3143, 2
      %v3145 = vmax.f32 %v3143, %v3144
      %v3146 = vrot.slane %v3145, 1
      %v3147 = vmax.f32 %v3145, %v3146
      %v3148 = vsel %vm1761, %v2624, -inf
      %v3149 = vrot.slane %v3148, 4
      %v3150 = vmax.f32 %v3148, %v3149
      %v3151 = vrot.slane %v3150, 2
      %v3152 = vmax.f32 %v3150, %v3151
      %v3153 = vrot.slane %v3152, 1
      %v3154 = vmax.f32 %v3152, %v3153
      %v3155 = vsel %vm1761, %v2629, -inf
      %v3156 = vrot.slane %v3155, 4
      %v3157 = vmax.f32 %v3155, %v3156
      %v3158 = vrot.slane %v3157, 2
      %v3159 = vmax.f32 %v3157, %v3158
      %v3160 = vrot.slane %v3159, 1
      %v3161 = vmax.f32 %v3159, %v3160
      %v3162 = vsel %vm1761, %v2634, -inf
      %v3163 = vrot.slane %v3162, 4
      %v3164 = vmax.f32 %v3162, %v3163
      %v3165 = vrot.slane %v3164, 2
      %v3166 = vmax.f32 %v3164, %v3165
      %v3167 = vrot.slane %v3166, 1
      %v3168 = vmax.f32 %v3166, %v3167
      %v3169 = vsel %vm1761, %v2639, -inf
      %v3170 = vrot.slane %v3169, 4
      %v3171 = vmax.f32 %v3169, %v3170
      %v3172 = vrot.slane %v3171, 2
      %v3173 = vmax.f32 %v3171, %v3172
      %v3174 = vrot.slane %v3173, 1
      %v3175 = vmax.f32 %v3173, %v3174
      %v3176 = vsel %vm1761, %v2644, -inf
      %v3177 = vrot.slane %v3176, 4
      %v3178 = vmax.f32 %v3176, %v3177
      %v3179 = vrot.slane %v3178, 2
      %v3180 = vmax.f32 %v3178, %v3179
      %v3181 = vrot.slane %v3180, 1
      %v3182 = vmax.f32 %v3180, %v3181
      %v3183 = vsel %vm1761, %v2649, -inf
      %v3184 = vrot.slane %v3183, 4
      %v3185 = vmax.f32 %v3183, %v3184
      %v3186 = vrot.slane %v3185, 2
      %v3187 = vmax.f32 %v3185, %v3186
      %v3188 = vrot.slane %v3187, 1
      %v3189 = vmax.f32 %v3187, %v3188
      %v3190 = vsel %vm1761, %v2654, -inf
      %v3191 = vrot.slane %v3190, 4
      %v3192 = vmax.f32 %v3190, %v3191
      %v3193 = vrot.slane %v3192, 2
      %v3194 = vmax.f32 %v3192, %v3193
      %v3195 = vrot.slane %v3194, 1
      %v3196 = vmax.f32 %v3194, %v3195
      %v3197 = vsel %vm1761, %v2659, -inf
      %v3198 = vrot.slane %v3197, 4
      %v3199 = vmax.f32 %v3197, %v3198
      %v3200 = vrot.slane %v3199, 2
      %v3201 = vmax.f32 %v3199, %v3200
      %v3202 = vrot.slane %v3201, 1
      %v3203 = vmax.f32 %v3201, %v3202
      %v3204 = vsel %vm1761, %v2664, -inf
      %v3205 = vrot.slane %v3204, 4
      %v3206 = vmax.f32 %v3204, %v3205
      %v3207 = vrot.slane %v3206, 2
      %v3208 = vmax.f32 %v3206, %v3207
      %v3209 = vrot.slane %v3208, 1
      %v3210 = vmax.f32 %v3208, %v3209
      %v3211 = vsub.f32 %v2589, %v3105
      %v3212 = vsub.f32 %v2594, %v3112
      %v3213 = vsub.f32 %v2599, %v3119
      %v3214 = vsub.f32 %v2604, %v3126
      %v3215 = vsub.f32 %v2609, %v3133
      %v3216 = vsub.f32 %v2614, %v3140
      %v3217 = vsub.f32 %v2619, %v3147
      %v3218 = vsub.f32 %v2624, %v3154
      %v3219 = vsub.f32 %v2629, %v3161
      %v3220 = vsub.f32 %v2634, %v3168
      %v3221 = vsub.f32 %v2639, %v3175
      %v3222 = vsub.f32 %v2644, %v3182
      %v3223 = vsub.f32 %v2649, %v3189
      %v3224 = vsub.f32 %v2654, %v3196
      %v3225 = vsub.f32 %v2659, %v3203
      %v3226 = vsub.f32 %v2664, %v3210
      %v3227 = vmul.f32 %v3211, 1.442695
      %v3228 = vpow.pop %v3227
      %v3229 = vmul.f32 %v3212, 1.442695
      %v3230 = vpow.pop %v3229
      %v3231 = vmul.f32 %v3213, 1.442695
      %v3232 = vpow.pop %v3231
      %v3233 = vmul.f32 %v3214, 1.442695
      %v3234 = vpow.pop %v3233
      %v3235 = vmul.f32 %v3215, 1.442695
      %v3236 = vpow.pop %v3235
      %v3237 = vmul.f32 %v3216, 1.442695
      %v3238 = vpow.pop %v3237
      %v3239 = vmul.f32 %v3217, 1.442695
      %v3240 = vpow.pop %v3239
      %v3241 = vmul.f32 %v3218, 1.442695
      %v3242 = vpow.pop %v3241
      %v3243 = vmul.f32 %v3219, 1.442695
      %v3244 = vpow.pop %v3243
      %v3245 = vmul.f32 %v3220, 1.442695
      %v3246 = vpow.pop %v3245
      %v3247 = vmul.f32 %v3221, 1.442695
      %v3248 = vpow.pop %v3247
      %v3249 = vmul.f32 %v3222, 1.442695
      %v3250 = vpow.pop %v3249
      %v3251 = vmul.f32 %v3223, 1.442695
      %v3252 = vpow.pop %v3251
      %v3253 = vmul.f32 %v3224, 1.442695
      %v3254 = vpow.pop %v3253
      %v3255 = vmul.f32 %v3225, 1.442695
      %v3256 = vpow.pop %v3255
      %v3257 = vmul.f32 %v3226, 1.442695
      %v3258 = vpow.pop %v3257
      %v3259 = vsel %vm1761, %v3228, 0.0
      %v3260 = vrot.slane %v3259, 4
      %v3261 = vadd.f32 %v3259, %v3260
      %v3262 = vrot.slane %v3261, 2
      %v3263 = vadd.f32 %v3261, %v3262
      %v3264 = vrot.slane %v3263, 1
      %v3265 = vadd.f32 %v3263, %v3264
      %v3266 = vsel %vm1761, %v3230, 0.0
      %v3267 = vrot.slane %v3266, 4
      %v3268 = vadd.f32 %v3266, %v3267
      %v3269 = vrot.slane %v3268, 2
      %v3270 = vadd.f32 %v3268, %v3269
      %v3271 = vrot.slane %v3270, 1
      %v3272 = vadd.f32 %v3270, %v3271
      %v3273 = vsel %vm1761, %v3232, 0.0
      %v3274 = vrot.slane %v3273, 4
      %v3275 = vadd.f32 %v3273, %v3274
      %v3276 = vrot.slane %v3275, 2
      %v3277 = vadd.f32 %v3275, %v3276
      %v3278 = vrot.slane %v3277, 1
      %v3279 = vadd.f32 %v3277, %v3278
      %v3280 = vsel %vm1761, %v3234, 0.0
      %v3281 = vrot.slane %v3280, 4
      %v3282 = vadd.f32 %v3280, %v3281
      %v3283 = vrot.slane %v3282, 2
      %v3284 = vadd.f32 %v3282, %v3283
      %v3285 = vrot.slane %v3284, 1
      %v3286 = vadd.f32 %v3284, %v3285
      %v3287 = vsel %vm1761, %v3236, 0.0
      %v3288 = vrot.slane %v3287, 4
      %v3289 = vadd.f32 %v3287, %v3288
      %v3290 = vrot.slane %v3289, 2
      %v3291 = vadd.f32 %v3289, %v3290
      %v3292 = vrot.slane %v3291, 1
      %v3293 = vadd.f32 %v3291, %v3292
      %v3294 = vsel %vm1761, %v3238, 0.0
      %v3295 = vrot.slane %v3294, 4
      %v3296 = vadd.f32 %v3294, %v3295
      %v3297 = vrot.slane %v3296, 2
      %v3298 = vadd.f32 %v3296, %v3297
      %v3299 = vrot.slane %v3298, 1
      %v3300 = vadd.f32 %v3298, %v3299
      %v3301 = vsel %vm1761, %v3240, 0.0
      %v3302 = vrot.slane %v3301, 4
      %v3303 = vadd.f32 %v3301, %v3302
      %v3304 = vrot.slane %v3303, 2
      %v3305 = vadd.f32 %v3303, %v3304
      %v3306 = vrot.slane %v3305, 1
      %v3307 = vadd.f32 %v3305, %v3306
      %v3308 = vsel %vm1761, %v3242, 0.0
      %v3309 = vrot.slane %v3308, 4
      %v3310 = vadd.f32 %v3308, %v3309
      %v3311 = vrot.slane %v3310, 2
      %v3312 = vadd.f32 %v3310, %v3311
      %v3313 = vrot.slane %v3312, 1
      %v3314 = vadd.f32 %v3312, %v3313
      %v3315 = vsel %vm1761, %v3244, 0.0
      %v3316 = vrot.slane %v3315, 4
      %v3317 = vadd.f32 %v3315, %v3316
      %v3318 = vrot.slane %v3317, 2
      %v3319 = vadd.f32 %v3317, %v3318
      %v3320 = vrot.slane %v3319, 1
      %v3321 = vadd.f32 %v3319, %v3320
      %v3322 = vsel %vm1761, %v3246, 0.0
      %v3323 = vrot.slane %v3322, 4
      %v3324 = vadd.f32 %v3322, %v3323
      %v3325 = vrot.slane %v3324, 2
      %v3326 = vadd.f32 %v3324, %v3325
      %v3327 = vrot.slane %v3326, 1
      %v3328 = vadd.f32 %v3326, %v3327
      %v3329 = vsel %vm1761, %v3248, 0.0
      %v3330 = vrot.slane %v3329, 4
      %v3331 = vadd.f32 %v3329, %v3330
      %v3332 = vrot.slane %v3331, 2
      %v3333 = vadd.f32 %v3331, %v3332
      %v3334 = vrot.slane %v3333, 1
      %v3335 = vadd.f32 %v3333, %v3334
      %v3336 = vsel %vm1761, %v3250, 0.0
      %v3337 = vrot.slane %v3336, 4
      %v3338 = vadd.f32 %v3336, %v3337
      %v3339 = vrot.slane %v3338, 2
      %v3340 = vadd.f32 %v3338, %v3339
      %v3341 = vrot.slane %v3340, 1
      %v3342 = vadd.f32 %v3340, %v3341
      %v3343 = vsel %vm1761, %v3252, 0.0
      %v3344 = vrot.slane %v3343, 4
      %v3345 = vadd.f32 %v3343, %v3344
      %v3346 = vrot.slane %v3345, 2
      %v3347 = vadd.f32 %v3345, %v3346
      %v3348 = vrot.slane %v3347, 1
      %v3349 = vadd.f32 %v3347, %v3348
      %v3350 = vsel %vm1761, %v3254, 0.0
      %v3351 = vrot.slane %v3350, 4
      %v3352 = vadd.f32 %v3350, %v3351
      %v3353 = vrot.slane %v3352, 2
      %v3354 = vadd.f32 %v3352, %v3353
      %v3355 = vrot.slane %v3354, 1
      %v3356 = vadd.f32 %v3354, %v3355
      %v3357 = vsel %vm1761, %v3256, 0.0
      %v3358 = vrot.slane %v3357, 4
      %v3359 = vadd.f32 %v3357, %v3358
      %v3360 = vrot.slane %v3359, 2
      %v3361 = vadd.f32 %v3359, %v3360
      %v3362 = vrot.slane %v3361, 1
      %v3363 = vadd.f32 %v3361, %v3362
      %v3364 = vsel %vm1761, %v3258, 0.0
      %v3365 = vrot.slane %v3364, 4
      %v3366 = vadd.f32 %v3364, %v3365
      %v3367 = vrot.slane %v3366, 2
      %v3368 = vadd.f32 %v3366, %v3367
      %v3369 = vrot.slane %v3368, 1
      %v3370 = vadd.f32 %v3368, %v3369
      %v3371 = vrcp.pop %v3265
      %v3372 = vrcp.pop %v3272
      %v3373 = vrcp.pop %v3279
      %v3374 = vrcp.pop %v3286
      %v3375 = vrcp.pop %v3293
      %v3376 = vrcp.pop %v3300
      %v3377 = vrcp.pop %v3307
      %v3378 = vrcp.pop %v3314
      %v3379 = vrcp.pop %v3321
      %v3380 = vrcp.pop %v3328
      %v3381 = vrcp.pop %v3335
      %v3382 = vrcp.pop %v3342
      %v3383 = vrcp.pop %v3349
      %v3384 = vrcp.pop %v3356
      %v3385 = vrcp.pop %v3363
      %v3386 = vrcp.pop %v3370
      %v3387 = vmul.f32 %v3228, %v3371
      %v3388 = vmul.f32 %v3230, %v3372
      %v3389 = vmul.f32 %v3232, %v3373
      %v3390 = vmul.f32 %v3234, %v3374
      %v3391 = vmul.f32 %v3236, %v3375
      %v3392 = vmul.f32 %v3238, %v3376
      %v3393 = vmul.f32 %v3240, %v3377
      %v3394 = vmul.f32 %v3242, %v3378
      %v3395 = vmul.f32 %v3244, %v3379
      %v3396 = vmul.f32 %v3246, %v3380
      %v3397 = vmul.f32 %v3248, %v3381
      %v3398 = vmul.f32 %v3250, %v3382
      %v3399 = vmul.f32 %v3252, %v3383
      %v3400 = vmul.f32 %v3254, %v3384
      %v3401 = vmul.f32 %v3256, %v3385
      %v3402 = vmul.f32 %v3258, %v3386
      %v3403 = vmul.f32 %v1959, %v3387
      %v3404 = vmul.f32 %v1960, %v3388
      %v3405 = vmul.f32 %v1961, %v3389
      %v3406 = vmul.f32 %v1962, %v3390
      %v3407 = vmul.f32 %v1963, %v3391
      %v3408 = vmul.f32 %v1964, %v3392
      %v3409 = vmul.f32 %v1965, %v3393
      %v3410 = vmul.f32 %v1966, %v3394
      %v3411 = vmul.f32 %v1967, %v3395
      %v3412 = vmul.f32 %v1968, %v3396
      %v3413 = vmul.f32 %v1969, %v3397
      %v3414 = vmul.f32 %v1970, %v3398
      %v3415 = vmul.f32 %v1971, %v3399
      %v3416 = vmul.f32 %v1972, %v3400
      %v3417 = vmul.f32 %v1973, %v3401
      %v3418 = vmul.f32 %v1974, %v3402
      %v3419 = vsel %vm1761, %v3403, 0.0
      %v3420 = vrot.slane %v3419, 4
      %v3421 = vadd.f32 %v3419, %v3420
      %v3422 = vrot.slane %v3421, 2
      %v3423 = vadd.f32 %v3421, %v3422
      %v3424 = vrot.slane %v3423, 1
      %v3425 = vadd.f32 %v3423, %v3424
      %v3426 = vsel %vm1761, %v3404, 0.0
      %v3427 = vrot.slane %v3426, 4
      %v3428 = vadd.f32 %v3426, %v3427
      %v3429 = vrot.slane %v3428, 2
      %v3430 = vadd.f32 %v3428, %v3429
      %v3431 = vrot.slane %v3430, 1
      %v3432 = vadd.f32 %v3430, %v3431
      %v3433 = vsel %vm1761, %v3405, 0.0
      %v3434 = vrot.slane %v3433, 4
      %v3435 = vadd.f32 %v3433, %v3434
      %v3436 = vrot.slane %v3435, 2
      %v3437 = vadd.f32 %v3435, %v3436
      %v3438 = vrot.slane %v3437, 1
      %v3439 = vadd.f32 %v3437, %v3438
      %v3440 = vsel %vm1761, %v3406, 0.0
      %v3441 = vrot.slane %v3440, 4
      %v3442 = vadd.f32 %v3440, %v3441
      %v3443 = vrot.slane %v3442, 2
      %v3444 = vadd.f32 %v3442, %v3443
      %v3445 = vrot.slane %v3444, 1
      %v3446 = vadd.f32 %v3444, %v3445
      %v3447 = vsel %vm1761, %v3407, 0.0
      %v3448 = vrot.slane %v3447, 4
      %v3449 = vadd.f32 %v3447, %v3448
      %v3450 = vrot.slane %v3449, 2
      %v3451 = vadd.f32 %v3449, %v3450
      %v3452 = vrot.slane %v3451, 1
      %v3453 = vadd.f32 %v3451, %v3452
      %v3454 = vsel %vm1761, %v3408, 0.0
      %v3455 = vrot.slane %v3454, 4
      %v3456 = vadd.f32 %v3454, %v3455
      %v3457 = vrot.slane %v3456, 2
      %v3458 = vadd.f32 %v3456, %v3457
      %v3459 = vrot.slane %v3458, 1
      %v3460 = vadd.f32 %v3458, %v3459
      %v3461 = vsel %vm1761, %v3409, 0.0
      %v3462 = vrot.slane %v3461, 4
      %v3463 = vadd.f32 %v3461, %v3462
      %v3464 = vrot.slane %v3463, 2
      %v3465 = vadd.f32 %v3463, %v3464
      %v3466 = vrot.slane %v3465, 1
      %v3467 = vadd.f32 %v3465, %v3466
      %v3468 = vsel %vm1761, %v3410, 0.0
      %v3469 = vrot.slane %v3468, 4
      %v3470 = vadd.f32 %v3468, %v3469
      %v3471 = vrot.slane %v3470, 2
      %v3472 = vadd.f32 %v3470, %v3471
      %v3473 = vrot.slane %v3472, 1
      %v3474 = vadd.f32 %v3472, %v3473
      %v3475 = vsel %vm1761, %v3411, 0.0
      %v3476 = vrot.slane %v3475, 4
      %v3477 = vadd.f32 %v3475, %v3476
      %v3478 = vrot.slane %v3477, 2
      %v3479 = vadd.f32 %v3477, %v3478
      %v3480 = vrot.slane %v3479, 1
      %v3481 = vadd.f32 %v3479, %v3480
      %v3482 = vsel %vm1761, %v3412, 0.0
      %v3483 = vrot.slane %v3482, 4
      %v3484 = vadd.f32 %v3482, %v3483
      %v3485 = vrot.slane %v3484, 2
      %v3486 = vadd.f32 %v3484, %v3485
      %v3487 = vrot.slane %v3486, 1
      %v3488 = vadd.f32 %v3486, %v3487
      %v3489 = vsel %vm1761, %v3413, 0.0
      %v3490 = vrot.slane %v3489, 4
      %v3491 = vadd.f32 %v3489, %v3490
      %v3492 = vrot.slane %v3491, 2
      %v3493 = vadd.f32 %v3491, %v3492
      %v3494 = vrot.slane %v3493, 1
      %v3495 = vadd.f32 %v3493, %v3494
      %v3496 = vsel %vm1761, %v3414, 0.0
      %v3497 = vrot.slane %v3496, 4
      %v3498 = vadd.f32 %v3496, %v3497
      %v3499 = vrot.slane %v3498, 2
      %v3500 = vadd.f32 %v3498, %v3499
      %v3501 = vrot.slane %v3500, 1
      %v3502 = vadd.f32 %v3500, %v3501
      %v3503 = vsel %vm1761, %v3415, 0.0
      %v3504 = vrot.slane %v3503, 4
      %v3505 = vadd.f32 %v3503, %v3504
      %v3506 = vrot.slane %v3505, 2
      %v3507 = vadd.f32 %v3505, %v3506
      %v3508 = vrot.slane %v3507, 1
      %v3509 = vadd.f32 %v3507, %v3508
      %v3510 = vsel %vm1761, %v3416, 0.0
      %v3511 = vrot.slane %v3510, 4
      %v3512 = vadd.f32 %v3510, %v3511
      %v3513 = vrot.slane %v3512, 2
      %v3514 = vadd.f32 %v3512, %v3513
      %v3515 = vrot.slane %v3514, 1
      %v3516 = vadd.f32 %v3514, %v3515
      %v3517 = vsel %vm1761, %v3417, 0.0
      %v3518 = vrot.slane %v3517, 4
      %v3519 = vadd.f32 %v3517, %v3518
      %v3520 = vrot.slane %v3519, 2
      %v3521 = vadd.f32 %v3519, %v3520
      %v3522 = vrot.slane %v3521, 1
      %v3523 = vadd.f32 %v3521, %v3522
      %v3524 = vsel %vm1761, %v3418, 0.0
      %v3525 = vrot.slane %v3524, 4
      %v3526 = vadd.f32 %v3524, %v3525
      %v3527 = vrot.slane %v3526, 2
      %v3528 = vadd.f32 %v3526, %v3527
      %v3529 = vrot.slane %v3528, 1
      %v3530 = vadd.f32 %v3528, %v3529
      %v3531 = vld [vmem:[%s14] sm:$0xf]
      %v3532 = vld [vmem:[%s15] sm:$0xf]
      %vm3549 = vcmask 1041409
      %v3550 = vsel %vm3549, %v3432, %v3425
      %vm3551 = vcmask 1042434
      %v3552 = vsel %vm3551, %v3439, %v3550
      %vm3553 = vcmask 1043459
      %v3554 = vsel %vm3553, %v3446, %v3552
      %vm3555 = vcmask 1044484
      %v3556 = vsel %vm3555, %v3453, %v3554
      %vm3557 = vcmask 1045509
      %v3558 = vsel %vm3557, %v3460, %v3556
      %vm3559 = vcmask 1046534
      %v3560 = vsel %vm3559, %v3467, %v3558
      %vm3561 = vcmask 1047559
      %v3562 = vsel %vm3561, %v3474, %v3560
      %v3563 = vsel %vm3549, %v3488, %v3481
      %v3564 = vsel %vm3551, %v3495, %v3563
      %v3565 = vsel %vm3553, %v3502, %v3564
      %v3566 = vsel %vm3555, %v3509, %v3565
      %v3567 = vsel %vm3557, %v3516, %v3566
      %v3568 = vsel %vm3559, %v3523, %v3567
      %v3569 = vsel %vm3561, %v3530, %v3568
      %v3570 = vsel %vm1761, %v3562, 0
      %v3572 = vsel %vm1761, %v3569, 0
      %v3575 = vsel %vm1810, %v3532, 0
      %3577 = vmatprep.subr.mxu0 0.0
      %3578 = vmatpush1.msra.mxu0 %v3575
      %3579 = vmatprep.subr.mxu0 0.0
      %3580 = vmatpush1.msra.mxu0 0.0
      %3581 = vmatprep.subr.mxu0 0.0
      %3582 = vmatpush1.msra.mxu0 0.0
      %3583 = vmatprep.subr.mxu0 0.0
      %3584 = vmatpush1.msra.mxu0 0.0
      %3585 = vmatprep.subr.mxu0 0.0
      %3586 = vmatpush1.msra.mxu0 0.0
      %3587 = vmatprep.subr.mxu0 0.0
      %3588 = vmatpush1.msra.mxu0 0.0
      %3589 = vmatprep.subr.mxu0 0.0
      %3590 = vmatpush1.msra.mxu0 0.0
      %3591 = vmatprep.subr.mxu0 0.0
      %3592 = vmatpush1.msra.mxu0 0.0
      %3593 = vmatprep.subr.mxu0 0.0
      %3594 = vmatpush1.msra.mxu0 0.0
      %3595 = vmatprep.subr.mxu0 0.0
      %3596 = vmatpush1.msra.mxu0 0.0
      %3597 = vmatprep.subr.mxu0 0.0
      %3598 = vmatpush1.msra.mxu0 0.0
      %3599 = vmatprep.subr.mxu0 0.0
      %3600 = vmatpush1.msra.mxu0 0.0
      %3601 = vmatprep.subr.mxu0 0.0
      %3602 = vmatpush1.msra.mxu0 0.0
      %3603 = vmatprep.subr.mxu0 0.0
      %3604 = vmatpush1.msra.mxu0 0.0
      %3605 = vmatprep.subr.mxu0 0.0
      %3606 = vmatpush1.msra.mxu0 0.0
      %3607 = vmatprep.subr.mxu0 0.0
      %3608 = vmatpush1.msra.mxu0 0.0
      %3609 = vmatprep.subr.mxu0 0.0
      %3610 = vmatpush1.msra.mxu0 0.0
      %3611 = vmatprep.subr.mxu0 0.0
      %3612 = vmatpush1.msra.mxu0 0.0
      %3613 = vmatprep.subr.mxu0 0.0
      %3614 = vmatpush1.msra.mxu0 0.0
      %3615 = vmatprep.subr.mxu0 0.0
      %3616 = vmatpush1.msra.mxu0 0.0
      %3617 = vmatprep.subr.mxu0 0.0
      %3618 = vmatpush1.msra.mxu0 0.0
      %3619 = vmatprep.subr.mxu0 0.0
      %3620 = vmatpush1.msra.mxu0 0.0
      %3621 = vmatprep.subr.mxu0 0.0
      %3622 = vmatpush1.msra.mxu0 0.0
      %3623 = vmatprep.subr.mxu0 0.0
      %3624 = vmatpush1.msra.mxu0 0.0
      %3625 = vmatprep.subr.mxu0 0.0
      %3626 = vmatpush1.msra.mxu0 0.0
      %3627 = vmatprep.subr.mxu0 0.0
      %3628 = vmatpush1.msra.mxu0 0.0
      %3629 = vmatprep.subr.mxu0 0.0
      %3630 = vmatpush1.msra.mxu0 0.0
      %3631 = vmatprep.subr.mxu0 0.0
      %3632 = vmatpush1.msra.mxu0 0.0
      %3633 = vmatprep.subr.mxu0 0.0
      %3634 = vmatpush1.msra.mxu0 0.0
      %3635 = vmatprep.subr.mxu0 0.0
      %3636 = vmatpush1.msra.mxu0 0.0
      %3637 = vmatprep.subr.mxu0 0.0
      %3638 = vmatpush1.msra.mxu0 0.0
      %3639 = vmatprep.subr.mxu0 0.0
      %3640 = vmatpush1.msra.mxu0 0.0
      %3641 = vmatprep.mubr.f32.mxu0 0.0
      %3642 = vmatmul.mubr.f32.gmra.mrb[0].mxu0 %v3570
      %v3643 = vpop.f32.mrb[0].mxu0
      %v3644 = vadd.f32 0.0, %v3643
      %v3645 = vpop.f32.mrb[0].mxu0
      %3646 = vmatprep.mubr.f32.mxu0 0.0
      %3647 = vmatmul.mubr.f32.gmra.mrb[0].mxu0 %v3572
      %v3648 = vpop.f32.mrb[0].mxu0
      %v3649 = vadd.f32 0.0, %v3648
      %v3650 = vpop.f32.mrb[0].mxu0
      %3651 = vdwg.mxu0
      %v3668 = vsel %vm3549, %v3000, %v2993
      %v3669 = vsel %vm3551, %v3007, %v3668
      %v3670 = vsel %vm3553, %v3014, %v3669
      %v3671 = vsel %vm3555, %v3021, %v3670
      %v3672 = vsel %vm3557, %v3028, %v3671
      %v3673 = vsel %vm3559, %v3035, %v3672
      %v3674 = vsel %vm3561, %v3042, %v3673
      %v3675 = vsel %vm3549, %v3056, %v3049
      %v3676 = vsel %vm3551, %v3063, %v3675
      %v3677 = vsel %vm3553, %v3070, %v3676
      %v3678 = vsel %vm3555, %v3077, %v3677
      %v3679 = vsel %vm3557, %v3084, %v3678
      %v3680 = vsel %vm3559, %v3091, %v3679
      %v3681 = vsel %vm3561, %v3098, %v3680
      %v3682 = vsel %vm1761, %v3674, 0
      %v3684 = vsel %vm1761, %v3681, 0
      %v3687 = vsel %vm1810, %v3531, 0
      %3689 = vmatprep.subr.mxu0 0.0
      %3690 = vmatpush1.msra.mxu0 %v3687
      %3691 = vmatprep.subr.mxu0 0.0
      %3692 = vmatpush1.msra.mxu0 0.0
      %3693 = vmatprep.subr.mxu0 0.0
      %3694 = vmatpush1.msra.mxu0 0.0
      %3695 = vmatprep.subr.mxu0 0.0
      %3696 = vmatpush1.msra.mxu0 0.0
      %3697 = vmatprep.subr.mxu0 0.0
      %3698 = vmatpush1.msra.mxu0 0.0
      %3699 = vmatprep.subr.mxu0 0.0
      %3700 = vmatpush1.msra.mxu0 0.0
      %3701 = vmatprep.subr.mxu0 0.0
      %3702 = vmatpush1.msra.mxu0 0.0
      %3703 = vmatprep.subr.mxu0 0.0
      %3704 = vmatpush1.msra.mxu0 0.0
      %3705 = vmatprep.subr.mxu0 0.0
      %3706 = vmatpush1.msra.mxu0 0.0
      %3707 = vmatprep.subr.mxu0 0.0
      %3708 = vmatpush1.msra.mxu0 0.0
      %3709 = vmatprep.subr.mxu0 0.0
      %3710 = vmatpush1.msra.mxu0 0.0
      %3711 = vmatprep.subr.mxu0 0.0
      %3712 = vmatpush1.msra.mxu0 0.0
      %3713 = vmatprep.subr.mxu0 0.0
      %3714 = vmatpush1.msra.mxu0 0.0
      %3715 = vmatprep.subr.mxu0 0.0
      %3716 = vmatpush1.msra.mxu0 0.0
      %3717 = vmatprep.subr.mxu0 0.0
      %3718 = vmatpush1.msra.mxu0 0.0
      %3719 = vmatprep.subr.mxu0 0.0
      %3720 = vmatpush1.msra.mxu0 0.0
      %3721 = vmatprep.subr.mxu0 0.0
      %3722 = vmatpush1.msra.mxu0 0.0
      %3723 = vmatprep.subr.mxu0 0.0
      %3724 = vmatpush1.msra.mxu0 0.0
      %3725 = vmatprep.subr.mxu0 0.0
      %3726 = vmatpush1.msra.mxu0 0.0
      %3727 = vmatprep.subr.mxu0 0.0
      %3728 = vmatpush1.msra.mxu0 0.0
      %3729 = vmatprep.subr.mxu0 0.0
      %3730 = vmatpush1.msra.mxu0 0.0
      %3731 = vmatprep.subr.mxu0 0.0
      %3732 = vmatpush1.msra.mxu0 0.0
      %3733 = vmatprep.subr.mxu0 0.0
      %3734 = vmatpush1.msra.mxu0 0.0
      %3735 = vmatprep.subr.mxu0 0.0
      %3736 = vmatpush1.msra.mxu0 0.0
      %3737 = vmatprep.subr.mxu0 0.0
      %3738 = vmatpush1.msra.mxu0 0.0
      %3739 = vmatprep.subr.mxu0 0.0
      %3740 = vmatpush1.msra.mxu0 0.0
      %3741 = vmatprep.subr.mxu0 0.0
      %3742 = vmatpush1.msra.mxu0 0.0
      %3743 = vmatprep.subr.mxu0 0.0
      %3744 = vmatpush1.msra.mxu0 0.0
      %3745 = vmatprep.subr.mxu0 0.0
      %3746 = vmatpush1.msra.mxu0 0.0
      %3747 = vmatprep.subr.mxu0 0.0
      %3748 = vmatpush1.msra.mxu0 0.0
      %3749 = vmatprep.subr.mxu0 0.0
      %3750 = vmatpush1.msra.mxu0 0.0
      %3751 = vmatprep.subr.mxu0 0.0
      %3752 = vmatpush1.msra.mxu0 0.0
      %3753 = vmatprep.mubr.f32.mxu0 0.0
      %3754 = vmatmul.mubr.f32.gmra.mrb[0].mxu0 %v3682
      %v3755 = vpop.f32.mrb[0].mxu0
      %v3756 = vadd.f32 %v3644, %v3755
      %v3757 = vpop.f32.mrb[0].mxu0
      %3758 = vmatprep.mubr.f32.mxu0 0.0
      %3759 = vmatmul.mubr.f32.gmra.mrb[0].mxu0 %v3684
      %v3760 = vpop.f32.mrb[0].mxu0
      %v3761 = vadd.f32 %v3649, %v3760
      %v3762 = vpop.f32.mrb[0].mxu0
      %3763 = vdwg.mxu0
      %v3764 = vld [vmem:[%s16] sm:$0x1]
      %v3766 = vlaneseq
      %v3767 = vshrl.u32 %v3766, 7
      %v3768 = vsub.s32 0, %v3767
      %v3769 = vrot.slane %v3764, %v3768
      %v3771 = vadd.f32 %v3756, %v3769
      %v3772 = vadd.f32 %v3761, %v3769
      %v3773 = vmax.f32 %v3771, 0.0
      %v3774 = vmax.f32 %v3772, 0.0
      %vm3775 = vcmask 64512
      %3776 = vst.msk [vmem:[%s658] sm:$0xff] %vm3775, %v3773
      %3777 = vst.msk [vmem:[%s658 + $0x8] sm:$0xff] %vm3775, %v3774
      %s3778 = smul.u32 2, %s32
      %p3779 = scmp.lt.s32.totalorder %s33, 1
      %s3780 = scalar_select %p3779, %s33, 1
      %p3781 = scmp.lt.s32.totalorder %s3778, 1
      %s3782 = scalar_select %p3781, %s3778, 1
      %s3783 = smul.addr %s3780, 2
      %s3784 = sadd.s32 %s3782, %s3783
      %s3785 = smul.addr %s3784, 8
      %s3786 = scalar_lea.vmem %s17, %s3785
      // Predicated region
      $region89: #{dilated_res_block_forward.6} parent=87 // pred_check
        %p3787 = pneg %p438
      $region90: #{dilated_res_block_forward.6} parent=87 // pred_check_branch
        %3789 = sbr.rel (%p3787) target = $region92
      $region91: #{dilated_res_block_forward.6} parent=87 // pred_region
        %s3790 = smul.u32 2, %s32
      $region92: #{dilated_res_block_forward.6} parent=87 // pred_fallthru
        _
    $region88: #{dilated_res_block_forward.6} parent=5 // pred_fallthru
      _
    %p3791 = scmp.le.s32.totalorder 2, %s23
    // Predicated region
    $region93: #{dilated_res_block_forward.6} parent=5 // pred_check
      %p3792 = pneg %p3791
    $region94: #{dilated_res_block_forward.6} parent=5 // pred_check_branch
      %3794 = sbr.rel (%p3792) target = $region96
    $region95: #{dilated_res_block_forward.6} parent=5 // pred_region
      %s3795 = ssub.s32 %s23, 2
      // Predicated region
      $region97: #{dilated_res_block_forward.6} parent=95 // pred_check
        %p3796 = pneg %p444
      $region98: #{dilated_res_block_forward.6} parent=95 // pred_check_branch
        %3798 = sbr.rel (%p3796) target = $region100
      $region99: #{dilated_res_block_forward.6} parent=95 // pred_region
        %s3799 = smul.u32 2, %s34
        %p3800 = scmp.lt.s32.totalorder %s35, 1
        %s3801 = scalar_select %p3800, %s35, 1
        %p3802 = scmp.lt.s32.totalorder %s3799, 1
        %s3803 = scalar_select %p3802, %s3799, 1
        %s3804 = smul.addr %s3801, 2
        %s3805 = sadd.s32 %s3803, %s3804
        %s3806 = smul.addr %s3805, 8
        %s3807 = scalar_lea.vmem %s17, %s3806
      $region100: #{dilated_res_block_forward.6} parent=95 // pred_fallthru
        _
    $region96: #{dilated_res_block_forward.6} parent=5 // pred_fallthru
      _
  $region6: #{dilated_res_block_forward.6} parent=0 // loop_footer
    %s27 = sadd.s32 1, %s23
  $region7: #{dilated_res_block_forward.6} parent=0 // loop_footer_branch
    %22 = sbr.rel target = $region3
  $region8: #{dilated_res_block_forward.6} parent=0 // loop_exit
    _

</llo_original>
